<compile_context>
chip_gen: v5e
topology: v5e:2x2
jax: 0.10.0
libtpu: 0.0.40
codegen_flags: <defaults>
</compile_context>

<pallas_src>
import functools

import jax
import jax.numpy as jnp
from jax.experimental import pallas as pl
from jax.experimental.pallas import tpu as pltpu


def _vmem_limit_bytes():
    """Scoped VMEM limit sized per TPU generation (safe fallback: 32 MiB)."""
    try:
        cap = pltpu.get_tpu_info().vmem_capacity_bytes
        return int(min((cap * 3) // 4, 100 * 1024 * 1024))
    except Exception:  # older JAX / no attr / CPU tracing edge cases
        return 32 * 1024 * 1024


# ----------------------------------------------------------------------------
# Fused conv3x3 + InstanceNorm (+ReLU | +residual) (+fused output reflect-pad)
# ----------------------------------------------------------------------------

def _conv_in_kernel(*refs, H, W, Wp, eps, relu, has_residual, pad_output):
    """One grid step = one sample.

    refs (in order):
      xp_ref  : (L, Cin)        row-flattened reflection-padded input, bf16
                                (L >= (H+2)*Wp + 2; tail rows are zeros)
      res_ref : (H*W, Cout)     residual to add (only if has_residual), f32
      w_ref   : (3, 3, Cin, Cout) conv weight, bf16
      g_ref   : (1, Cout)       instance-norm gamma, f32
      be_ref  : (1, Cout)       instance-norm beta, f32
      o_ref   : (L, Cout) bf16 if pad_output (next stage's padded flat input)
                (H*W, Cout) f32 otherwise
    """
    if has_residual:
        xp_ref, res_ref, w_ref, g_ref, be_ref, o_ref = refs
    else:
        xp_ref, w_ref, g_ref, be_ref, o_ref = refs
        res_ref = None

    Cout = w_ref.shape[-1]
    HWp = H * Wp

    # Conv as 9 tap matmuls over CONTIGUOUS row-slabs of the flat padded input.
    # acc row f = y*Wp + x holds the conv output at (y, x) for x < W; the last
    # Wp-W columns per row are junk and dropped below.  bf16 MXU inputs, f32
    # accumulate, no interleaved VALU work between taps.
    acc = None
    for i in range(3):
        for j in range(3):
            slab = xp_ref[pl.ds(i * Wp + j, HWp), :]            # (H*Wp, Cin)
            tap = jnp.dot(slab, w_ref[i, j],
                          preferred_element_type=jnp.float32)   # (H*Wp, Cout)
            acc = tap if acc is None else acc + tap

    # Drop the junk columns once; all epilogue work runs on the valid region.
    val = acc.reshape(H, Wp, Cout)[:, :W, :].reshape(H * W, Cout)

    # InstanceNorm with folded scale/shift epilogue (two-pass stats for f32
    # safety): y = val * s + t,  s = gamma*rsqrt(var+eps), t = beta - mean*s.
    inv_n = 1.0 / float(H * W)
    mean = jnp.sum(val, axis=0, keepdims=True) * inv_n              # (1, Cout)
    var = jnp.sum(jnp.square(val - mean), axis=0, keepdims=True) * inv_n
    s = g_ref[...] * jax.lax.rsqrt(var + eps)
    t = be_ref[...] - mean * s
    y = val * s + t
    if relu:
        y = jnp.maximum(y, 0.0)
    if has_residual:
        y = y + res_ref[...]

    if pad_output:
        # Emit the next conv's input directly: reflection-pad by 1 pixel and
        # row-flatten, so no jnp.pad / HBM round trip between the two stages.
        y3 = y.astype(o_ref.dtype).reshape(H, W, Cout)
        yc = jnp.concatenate([y3[:, 1:2, :], y3, y3[:, W - 2:W - 1, :]], axis=1)
        yr = jnp.concatenate([yc[1:2], yc, yc[H - 2:H - 1]], axis=0)
        flat = yr.reshape((H + 2) * Wp, Cout)
        tail = o_ref.shape[0] - (H + 2) * Wp
        o_ref[...] = jnp.concatenate(
            [flat, jnp.zeros((tail, Cout), o_ref.dtype)], axis=0)
    else:
        o_ref[...] = y.astype(o_ref.dtype)


def conv3x3_in_fused(xp_flat, w_oihw, gamma, beta, *, H, W, Wp, relu,
                     residual=None, pad_output=False,
                     out_dtype=jnp.float32, eps=1e-5):
    """Fused Conv2d(3x3, s1, VALID on padded input) + InstanceNorm epilogue.

    xp_flat:  (N, L, Cin) bf16, row-flattened reflection-padded input
              (L >= (H+2)*Wp + 2, zero tail rows).
    residual: optional (N, H*W, Cout) f32 added after the norm.
    pad_output=True makes the kernel emit the reflection-padded flat bf16
    input of the NEXT conv stage instead of the plain (N, H*W, Cout) output.
    Conv bias is intentionally omitted: InstanceNorm cancels it exactly.
    """
    N, L, Cin = xp_flat.shape
    Cout = w_oihw.shape[0]

    # (Cout, Cin, kh, kw) -> (kh, kw, Cin, Cout); bf16 feeds the MXU directly.
    w = jnp.transpose(w_oihw, (2, 3, 1, 0)).astype(jnp.bfloat16)
    g2 = gamma.reshape(1, Cout).astype(jnp.float32)
    be2 = beta.reshape(1, Cout).astype(jnp.float32)

    has_res = residual is not None
    kern = functools.partial(_conv_in_kernel, H=H, W=W, Wp=Wp, eps=eps,
                             relu=relu, has_residual=has_res,
                             pad_output=pad_output)

    in_specs = [pl.BlockSpec((None, L, Cin), lambda n: (n, 0, 0))]
    args = [xp_flat]
    if has_res:
        in_specs.append(pl.BlockSpec((None, H * W, Cout), lambda n: (n, 0, 0)))
        args.append(residual)
    # Weights / affine params: constant block index -> VMEM-resident.
    in_specs += [
        pl.BlockSpec((3, 3, Cin, Cout), lambda n: (0, 0, 0, 0)),
        pl.BlockSpec((1, Cout), lambda n: (0, 0)),
        pl.BlockSpec((1, Cout), lambda n: (0, 0)),
    ]
    args += [w, g2, be2]

    out_rows = L if pad_output else H * W
    out_itemsize = 2 if out_dtype == jnp.bfloat16 else 4

    flops = 2 * N * 9 * H * Wp * Cin * Cout
    bytes_accessed = (xp_flat.size * 2 + w.size * 2
                      + (g2.size + be2.size) * 4
                      + N * out_rows * Cout * out_itemsize
                      + (residual.size * 4 if has_res else 0))
    cost = pl.CostEstimate(flops=int(flops),
                           transcendentals=int(N * Cout),
                           bytes_accessed=int(bytes_accessed))

    return pl.pallas_call(
        kern,
        out_shape=jax.ShapeDtypeStruct((N, out_rows, Cout), out_dtype),
        grid=(N,),
        in_specs=in_specs,
        out_specs=pl.BlockSpec((None, out_rows, Cout), lambda n: (n, 0, 0)),
        compiler_params=pltpu.CompilerParams(
            dimension_semantics=("parallel",),
            vmem_limit_bytes=_vmem_limit_bytes()),
        cost_estimate=cost,
    )(*args)


# ----------------------------------------------------------------------------
# ResidualBlock forward
# ----------------------------------------------------------------------------

def residual_block_forward_nhwc(x, params, eps=1e-5):
    """NHWC-native forward (use this when chaining blocks to avoid per-block
    NCHW<->NHWC transposes).  x: (N, H, W, C) f32."""
    x = x.astype(jnp.float32)
    N, H, W, C = x.shape
    Hp, Wp = H + 2, W + 2
    # Flat row count: padded rows + >=2 guard rows (so the (2, j>0) taps never
    # read OOB), rounded up to a sublane multiple.
    L = -(-(Hp * Wp + 2) // 8) * 8

    # Entry-side reflection pad of x stays in XLA (tiny, one-time); activations
    # are handed to the kernel as bf16 + row-flattened with a zero tail.
    xp = jnp.pad(x, ((0, 0), (1, 1), (1, 1), (0, 0)), mode="reflect")
    xp = xp.astype(jnp.bfloat16).reshape(N, Hp * Wp, C)
    xp = jnp.pad(xp, ((0, 0), (0, L - Hp * Wp), (0, 0)))

    # conv1 + IN1 + ReLU; emits conv2's reflection-padded flat bf16 input.
    yp = conv3x3_in_fused(xp, params["conv1_w"], params["in1_g"],
                          params["in1_b"], H=H, W=W, Wp=Wp, relu=True,
                          residual=None, pad_output=True,
                          out_dtype=jnp.bfloat16, eps=eps)

    # conv2 + IN2 + residual add (residual kept f32 for an exact skip path).
    out = conv3x3_in_fused(yp, params["conv2_w"], params["in2_g"],
                           params["in2_b"], H=H, W=W, Wp=Wp, relu=False,
                           residual=x.reshape(N, H * W, C), pad_output=False,
                           out_dtype=jnp.float32, eps=eps)
    return out.reshape(N, H, W, C)


def residual_block_forward(x_nchw, params, eps=1e-5):
    """Public entry matching the PyTorch module layout (NCHW in / NCHW out)."""
    x = jnp.transpose(x_nchw, (0, 2, 3, 1))
    y = residual_block_forward_nhwc(x, params, eps=eps)
    return jnp.transpose(y, (0, 3, 1, 2))


# ----------------------------------------------------------------------------
# Pure-JAX reference (keeps the conv bias — IN cancels it) and parameter init
# ----------------------------------------------------------------------------

def _reference_residual_block(x_nchw, params, eps=1e-5):
    x = jnp.transpose(x_nchw, (0, 2, 3, 1)).astype(jnp.float32)

    def conv(h, w, b):
        hp = jnp.pad(h, ((0, 0), (1, 1), (1, 1), (0, 0)), mode="reflect")
        wt = jnp.transpose(w, (2, 3, 1, 0))  # HWIO
        out = jax.lax.conv_general_dilated(
            hp, wt, window_strides=(1, 1), padding="VALID",
            dimension_numbers=("NHWC", "HWIO", "NHWC"))
        return out + b.reshape(1, 1, 1, -1)

    def inorm(h, g, be):
        m = jnp.mean(h, axis=(1, 2), keepdims=True)
        v = jnp.mean(jnp.square(h - m), axis=(1, 2), keepdims=True)
        return ((h - m) * jax.lax.rsqrt(v + eps)
                * g.reshape(1, 1, 1, -1) + be.reshape(1, 1, 1, -1))

    y = jnp.maximum(inorm(conv(x, params["conv1_w"], params["conv1_b"]),
                          params["in1_g"], params["in1_b"]), 0.0)
    y = inorm(conv(y, params["conv2_w"], params["conv2_b"]),
              params["in2_g"], params["in2_b"])
    y = y + x
    return jnp.transpose(y, (0, 3, 1, 2))


def init_params(key, channels):
    ks = jax.random.split(key, 4)

    def conv_p(k, cout, cin, ksize):
        kw, kb = jax.random.split(k)
        fan_in = cin * ksize * ksize
        w = jax.random.normal(kw, (cout, cin, ksize, ksize),
                              jnp.float32) / jnp.sqrt(fan_in)
        b = 0.01 * jax.random.normal(kb, (cout,), jnp.float32)
        return w, b

    def in_p(k, c):
        kg, kb = jax.random.split(k)
        return (1.0 + 0.1 * jax.random.normal(kg, (c,), jnp.float32),
                0.1 * jax.random.normal(kb, (c,), jnp.float32))

    p = {}
    p["conv1_w"], p["conv1_b"] = conv_p(ks[0], channels, channels, 3)
    p["in1_g"], p["in1_b"] = in_p(ks[1], channels)
    p["conv2_w"], p["conv2_b"] = conv_p(ks[2], channels, channels, 3)
    p["in2_g"], p["in2_b"] = in_p(ks[3], channels)
    return p


if __name__ == "__main__":
    key = jax.random.PRNGKey(0)
    kx, kp = jax.random.split(key)

    # ResidualBlock runs at the 128-channel stage of TransformerNet; 128
    # channels is lane-dense on TPU.  Small spatial size for the test.
    N, C, H, W = 2, 128, 16, 16
    x = jax.random.normal(kx, (N, C, H, W), jnp.float32)
    params = init_params(kp, C)

    fwd = jax.jit(residual_block_forward)
    out = jax.block_until_ready(fwd(x, params))

    assert out.shape == (N, C, H, W), out.shape
    assert out.dtype == jnp.float32
    assert bool(jnp.all(jnp.isfinite(out)))

    # Correctness vs pure-JAX f32 reference.  Normalized error tolerates bf16
    # activation/MXU rounding while still catching genuine layout/stat bugs.
    ref = _reference_residual_block(x, params)
    nerr = float(jnp.max(jnp.abs(out - ref) / (jnp.abs(ref) + 1.0)))
    assert nerr < 0.15, f"normalized max err vs reference: {nerr}"

    print("KERNEL_OK")
</pallas_src>

<mosaic_0001>
module attributes {stable_mosaic.version = 11 : i64} {
  func.func @_conv_in_kernel(%arg0: i32, %arg1: memref<1x328x128xbf16, #tpu.memory_space<vmem>>, %arg2: memref<3x3x128x128xbf16, #tpu.memory_space<vmem>>, %arg3: memref<1x128xf32, #tpu.memory_space<vmem>>, %arg4: memref<1x128xf32, #tpu.memory_space<vmem>>, %arg5: memref<1x328x128xbf16, #tpu.memory_space<vmem>>) attributes {dimension_semantics = [#tpu.dimension_semantics<parallel>], iteration_bounds = array<i64: 2>, scalar_prefetch = 0 : i64, scratch_operands = 0 : i64, tpu.core_type = #tpu.core_type<tc>, window_params = [{transform_indices = @transform_0, window_bounds = array<i64: 1, 328, 128>}, {pipeline_mode = #tpu.pipeline_mode<synchronous>, transform_indices = @transform_1, window_bounds = array<i64: 3, 3, 128, 128>}, {pipeline_mode = #tpu.pipeline_mode<synchronous>, transform_indices = @transform_2, window_bounds = array<i64: 1, 128>}, {pipeline_mode = #tpu.pipeline_mode<synchronous>, transform_indices = @transform_3, window_bounds = array<i64: 1, 128>}, {transform_indices = @transform_4, window_bounds = array<i64: 1, 328, 128>}]} {
    %c0 = arith.constant 0 : index
    %c0_0 = arith.constant 0 : index
    %c0_1 = arith.constant 0 : index
    %0 = vector.load %arg1[%c0, %c0_0, %c0_1] : memref<1x328x128xbf16, #tpu.memory_space<vmem>>, vector<1x288x128xbf16>
    %1 = vector.shape_cast %0 : vector<1x288x128xbf16> to vector<288x128xbf16>
    %c0_2 = arith.constant 0 : index
    %c0_3 = arith.constant 0 : index
    %c0_4 = arith.constant 0 : index
    %c0_5 = arith.constant 0 : index
    %2 = vector.load %arg2[%c0_2, %c0_3, %c0_4, %c0_5] : memref<3x3x128x128xbf16, #tpu.memory_space<vmem>>, vector<1x1x128x128xbf16>
    %3 = vector.shape_cast %2 : vector<1x1x128x128xbf16> to vector<128x128xbf16>
    %cst = arith.constant dense<0.000000e+00> : vector<288x128xf32>
    %4 = tpu.matmul %1, %3, %cst {dimension_numbers = #tpu.dot_dimension_numbers<[1], [0], [0], [1], [0, 0, 1, 1], [], []>} : vector<288x128xbf16>, vector<128x128xbf16>, vector<288x128xf32> -> vector<288x128xf32>
    %c0_6 = arith.constant 0 : index
    %c1 = arith.constant 1 : index
    %c0_7 = arith.constant 0 : index
    %5 = vector.load %arg1[%c0_6, %c1, %c0_7] : memref<1x328x128xbf16, #tpu.memory_space<vmem>>, vector<1x288x128xbf16>
    %6 = vector.shape_cast %5 : vector<1x288x128xbf16> to vector<288x128xbf16>
    %c0_8 = arith.constant 0 : index
    %c1_9 = arith.constant 1 : index
    %c0_10 = arith.constant 0 : index
    %c0_11 = arith.constant 0 : index
    %7 = vector.load %arg2[%c0_8, %c1_9, %c0_10, %c0_11] : memref<3x3x128x128xbf16, #tpu.memory_space<vmem>>, vector<1x1x128x128xbf16>
    %8 = vector.shape_cast %7 : vector<1x1x128x128xbf16> to vector<128x128xbf16>
    %cst_12 = arith.constant dense<0.000000e+00> : vector<288x128xf32>
    %9 = tpu.matmul %6, %8, %cst_12 {dimension_numbers = #tpu.dot_dimension_numbers<[1], [0], [0], [1], [0, 0, 1, 1], [], []>} : vector<288x128xbf16>, vector<128x128xbf16>, vector<288x128xf32> -> vector<288x128xf32>
    %10 = arith.addf %4, %9 : vector<288x128xf32>
    %c0_13 = arith.constant 0 : index
    %c2 = arith.constant 2 : index
    %c0_14 = arith.constant 0 : index
    %11 = vector.load %arg1[%c0_13, %c2, %c0_14] : memref<1x328x128xbf16, #tpu.memory_space<vmem>>, vector<1x288x128xbf16>
    %12 = vector.shape_cast %11 : vector<1x288x128xbf16> to vector<288x128xbf16>
    %c0_15 = arith.constant 0 : index
    %c2_16 = arith.constant 2 : index
    %c0_17 = arith.constant 0 : index
    %c0_18 = arith.constant 0 : index
    %13 = vector.load %arg2[%c0_15, %c2_16, %c0_17, %c0_18] : memref<3x3x128x128xbf16, #tpu.memory_space<vmem>>, vector<1x1x128x128xbf16>
    %14 = vector.shape_cast %13 : vector<1x1x128x128xbf16> to vector<128x128xbf16>
    %cst_19 = arith.constant dense<0.000000e+00> : vector<288x128xf32>
    %15 = tpu.matmul %12, %14, %cst_19 {dimension_numbers = #tpu.dot_dimension_numbers<[1], [0], [0], [1], [0, 0, 1, 1], [], []>} : vector<288x128xbf16>, vector<128x128xbf16>, vector<288x128xf32> -> vector<288x128xf32>
    %16 = arith.addf %10, %15 : vector<288x128xf32>
    %c0_20 = arith.constant 0 : index
    %c18 = arith.constant 18 : index
    %c0_21 = arith.constant 0 : index
    %17 = vector.load %arg1[%c0_20, %c18, %c0_21] : memref<1x328x128xbf16, #tpu.memory_space<vmem>>, vector<1x288x128xbf16>
    %18 = vector.shape_cast %17 : vector<1x288x128xbf16> to vector<288x128xbf16>
    %c1_22 = arith.constant 1 : index
    %c0_23 = arith.constant 0 : index
    %c0_24 = arith.constant 0 : index
    %c0_25 = arith.constant 0 : index
    %19 = vector.load %arg2[%c1_22, %c0_23, %c0_24, %c0_25] : memref<3x3x128x128xbf16, #tpu.memory_space<vmem>>, vector<1x1x128x128xbf16>
    %20 = vector.shape_cast %19 : vector<1x1x128x128xbf16> to vector<128x128xbf16>
    %cst_26 = arith.constant dense<0.000000e+00> : vector<288x128xf32>
    %21 = tpu.matmul %18, %20, %cst_26 {dimension_numbers = #tpu.dot_dimension_numbers<[1], [0], [0], [1], [0, 0, 1, 1], [], []>} : vector<288x128xbf16>, vector<128x128xbf16>, vector<288x128xf32> -> vector<288x128xf32>
    %22 = arith.addf %16, %21 : vector<288x128xf32>
    %c0_27 = arith.constant 0 : index
    %c19 = arith.constant 19 : index
    %c0_28 = arith.constant 0 : index
    %23 = vector.load %arg1[%c0_27, %c19, %c0_28] : memref<1x328x128xbf16, #tpu.memory_space<vmem>>, vector<1x288x128xbf16>
    %24 = vector.shape_cast %23 : vector<1x288x128xbf16> to vector<288x128xbf16>
    %c1_29 = arith.constant 1 : index
    %c1_30 = arith.constant 1 : index
    %c0_31 = arith.constant 0 : index
    %c0_32 = arith.constant 0 : index
    %25 = vector.load %arg2[%c1_29, %c1_30, %c0_31, %c0_32] : memref<3x3x128x128xbf16, #tpu.memory_space<vmem>>, vector<1x1x128x128xbf16>
    %26 = vector.shape_cast %25 : vector<1x1x128x128xbf16> to vector<128x128xbf16>
    %cst_33 = arith.constant dense<0.000000e+00> : vector<288x128xf32>
    %27 = tpu.matmul %24, %26, %cst_33 {dimension_numbers = #tpu.dot_dimension_numbers<[1], [0], [0], [1], [0, 0, 1, 1], [], []>} : vector<288x128xbf16>, vector<128x128xbf16>, vector<288x128xf32> -> vector<288x128xf32>
    %28 = arith.addf %22, %27 : vector<288x128xf32>
    %c0_34 = arith.constant 0 : index
    %c20 = arith.constant 20 : index
    %c0_35 = arith.constant 0 : index
    %29 = vector.load %arg1[%c0_34, %c20, %c0_35] : memref<1x328x128xbf16, #tpu.memory_space<vmem>>, vector<1x288x128xbf16>
    %30 = vector.shape_cast %29 : vector<1x288x128xbf16> to vector<288x128xbf16>
    %c1_36 = arith.constant 1 : index
    %c2_37 = arith.constant 2 : index
    %c0_38 = arith.constant 0 : index
    %c0_39 = arith.constant 0 : index
    %31 = vector.load %arg2[%c1_36, %c2_37, %c0_38, %c0_39] : memref<3x3x128x128xbf16, #tpu.memory_space<vmem>>, vector<1x1x128x128xbf16>
    %32 = vector.shape_cast %31 : vector<1x1x128x128xbf16> to vector<128x128xbf16>
    %cst_40 = arith.constant dense<0.000000e+00> : vector<288x128xf32>
    %33 = tpu.matmul %30, %32, %cst_40 {dimension_numbers = #tpu.dot_dimension_numbers<[1], [0], [0], [1], [0, 0, 1, 1], [], []>} : vector<288x128xbf16>, vector<128x128xbf16>, vector<288x128xf32> -> vector<288x128xf32>
    %34 = arith.addf %28, %33 : vector<288x128xf32>
    %c0_41 = arith.constant 0 : index
    %c36 = arith.constant 36 : index
    %c0_42 = arith.constant 0 : index
    %35 = vector.load %arg1[%c0_41, %c36, %c0_42] : memref<1x328x128xbf16, #tpu.memory_space<vmem>>, vector<1x288x128xbf16>
    %36 = vector.shape_cast %35 : vector<1x288x128xbf16> to vector<288x128xbf16>
    %c2_43 = arith.constant 2 : index
    %c0_44 = arith.constant 0 : index
    %c0_45 = arith.constant 0 : index
    %c0_46 = arith.constant 0 : index
    %37 = vector.load %arg2[%c2_43, %c0_44, %c0_45, %c0_46] : memref<3x3x128x128xbf16, #tpu.memory_space<vmem>>, vector<1x1x128x128xbf16>
    %38 = vector.shape_cast %37 : vector<1x1x128x128xbf16> to vector<128x128xbf16>
    %cst_47 = arith.constant dense<0.000000e+00> : vector<288x128xf32>
    %39 = tpu.matmul %36, %38, %cst_47 {dimension_numbers = #tpu.dot_dimension_numbers<[1], [0], [0], [1], [0, 0, 1, 1], [], []>} : vector<288x128xbf16>, vector<128x128xbf16>, vector<288x128xf32> -> vector<288x128xf32>
    %40 = arith.addf %34, %39 : vector<288x128xf32>
    %c0_48 = arith.constant 0 : index
    %c37 = arith.constant 37 : index
    %c0_49 = arith.constant 0 : index
    %41 = vector.load %arg1[%c0_48, %c37, %c0_49] : memref<1x328x128xbf16, #tpu.memory_space<vmem>>, vector<1x288x128xbf16>
    %42 = vector.shape_cast %41 : vector<1x288x128xbf16> to vector<288x128xbf16>
    %c2_50 = arith.constant 2 : index
    %c1_51 = arith.constant 1 : index
    %c0_52 = arith.constant 0 : index
    %c0_53 = arith.constant 0 : index
    %43 = vector.load %arg2[%c2_50, %c1_51, %c0_52, %c0_53] : memref<3x3x128x128xbf16, #tpu.memory_space<vmem>>, vector<1x1x128x128xbf16>
    %44 = vector.shape_cast %43 : vector<1x1x128x128xbf16> to vector<128x128xbf16>
    %cst_54 = arith.constant dense<0.000000e+00> : vector<288x128xf32>
    %45 = tpu.matmul %42, %44, %cst_54 {dimension_numbers = #tpu.dot_dimension_numbers<[1], [0], [0], [1], [0, 0, 1, 1], [], []>} : vector<288x128xbf16>, vector<128x128xbf16>, vector<288x128xf32> -> vector<288x128xf32>
    %46 = arith.addf %40, %45 : vector<288x128xf32>
    %c0_55 = arith.constant 0 : index
    %c38 = arith.constant 38 : index
    %c0_56 = arith.constant 0 : index
    %47 = vector.load %arg1[%c0_55, %c38, %c0_56] : memref<1x328x128xbf16, #tpu.memory_space<vmem>>, vector<1x288x128xbf16>
    %48 = vector.shape_cast %47 : vector<1x288x128xbf16> to vector<288x128xbf16>
    %c2_57 = arith.constant 2 : index
    %c2_58 = arith.constant 2 : index
    %c0_59 = arith.constant 0 : index
    %c0_60 = arith.constant 0 : index
    %49 = vector.load %arg2[%c2_57, %c2_58, %c0_59, %c0_60] : memref<3x3x128x128xbf16, #tpu.memory_space<vmem>>, vector<1x1x128x128xbf16>
    %50 = vector.shape_cast %49 : vector<1x1x128x128xbf16> to vector<128x128xbf16>
    %cst_61 = arith.constant dense<0.000000e+00> : vector<288x128xf32>
    %51 = tpu.matmul %48, %50, %cst_61 {dimension_numbers = #tpu.dot_dimension_numbers<[1], [0], [0], [1], [0, 0, 1, 1], [], []>} : vector<288x128xbf16>, vector<128x128xbf16>, vector<288x128xf32> -> vector<288x128xf32>
    %52 = arith.addf %46, %51 : vector<288x128xf32>
    %53 = vector.shape_cast %52 : vector<288x128xf32> to vector<16x18x128xf32>
    %54 = vector.extract_strided_slice %53 {offsets = [0, 0, 0], sizes = [16, 16, 128], strides = [1, 1, 1]} : vector<16x18x128xf32> to vector<16x16x128xf32>
    %55 = vector.shape_cast %54 : vector<16x16x128xf32> to vector<256x128xf32>
    %cst_62 = arith.constant dense<0.000000e+00> : vector<128xf32>
    %56 = vector.multi_reduction <add>, %55, %cst_62 [0] : vector<256x128xf32> to vector<128xf32>
    %57 = vector.shape_cast %56 : vector<128xf32> to vector<1x128xf32>
    %cst_63 = arith.constant 3.906250e-03 : f32
    %58 = vector.broadcast %cst_63 : f32 to vector<1x128xf32>
    %59 = arith.mulf %57, %58 : vector<1x128xf32>
    %60 = vector.broadcast %59 : vector<1x128xf32> to vector<256x128xf32>
    %61 = arith.subf %55, %60 : vector<256x128xf32>
    %62 = arith.mulf %61, %61 : vector<256x128xf32>
    %cst_64 = arith.constant dense<0.000000e+00> : vector<128xf32>
    %63 = vector.multi_reduction <add>, %62, %cst_64 [0] : vector<256x128xf32> to vector<128xf32>
    %64 = vector.shape_cast %63 : vector<128xf32> to vector<1x128xf32>
    %cst_65 = arith.constant 3.906250e-03 : f32
    %65 = vector.broadcast %cst_65 : f32 to vector<1x128xf32>
    %66 = arith.mulf %64, %65 : vector<1x128xf32>
    %c0_66 = arith.constant 0 : index
    %c0_67 = arith.constant 0 : index
    %67 = vector.load %arg3[%c0_66, %c0_67] : memref<1x128xf32, #tpu.memory_space<vmem>>, vector<1x128xf32>
    %cst_68 = arith.constant 9.99999974E-6 : f32
    %68 = vector.broadcast %cst_68 : f32 to vector<1x128xf32>
    %69 = arith.addf %66, %68 : vector<1x128xf32>
    %70 = math.rsqrt %69 : vector<1x128xf32>
    %71 = arith.mulf %67, %70 : vector<1x128xf32>
    %c0_69 = arith.constant 0 : index
    %c0_70 = arith.constant 0 : index
    %72 = vector.load %arg4[%c0_69, %c0_70] : memref<1x128xf32, #tpu.memory_space<vmem>>, vector<1x128xf32>
    %73 = arith.mulf %59, %71 : vector<1x128xf32>
    %74 = arith.subf %72, %73 : vector<1x128xf32>
    %75 = vector.broadcast %71 : vector<1x128xf32> to vector<256x128xf32>
    %76 = arith.mulf %55, %75 : vector<256x128xf32>
    %77 = vector.broadcast %74 : vector<1x128xf32> to vector<256x128xf32>
    %78 = arith.addf %76, %77 : vector<256x128xf32>
    %cst_71 = arith.constant 0.000000e+00 : f32
    %79 = vector.broadcast %cst_71 : f32 to vector<256x128xf32>
    %80 = arith.maximumf %78, %79 : vector<256x128xf32>
    %81 = arith.truncf %80 : vector<256x128xf32> to vector<256x128xbf16>
    %82 = vector.shape_cast %81 : vector<256x128xbf16> to vector<16x16x128xbf16>
    %83 = vector.extract_strided_slice %82 {offsets = [0, 1, 0], sizes = [16, 1, 128], strides = [1, 1, 1]} : vector<16x16x128xbf16> to vector<16x1x128xbf16>
    %84 = vector.extract_strided_slice %82 {offsets = [0, 14, 0], sizes = [16, 1, 128], strides = [1, 1, 1]} : vector<16x16x128xbf16> to vector<16x1x128xbf16>
    %85 = tpu.concatenate %83, %82, %84 in 1 : vector<16x1x128xbf16>, vector<16x16x128xbf16>, vector<16x1x128xbf16> -> vector<16x18x128xbf16>
    %86 = vector.extract_strided_slice %85 {offsets = [1, 0, 0], sizes = [1, 18, 128], strides = [1, 1, 1]} : vector<16x18x128xbf16> to vector<1x18x128xbf16>
    %87 = vector.extract_strided_slice %85 {offsets = [14, 0, 0], sizes = [1, 18, 128], strides = [1, 1, 1]} : vector<16x18x128xbf16> to vector<1x18x128xbf16>
    %88 = tpu.concatenate %86, %85, %87 in 0 : vector<1x18x128xbf16>, vector<16x18x128xbf16>, vector<1x18x128xbf16> -> vector<18x18x128xbf16>
    %89 = vector.shape_cast %88 : vector<18x18x128xbf16> to vector<324x128xbf16>
    %cst_72 = arith.constant 0.000000e+00 : bf16
    %90 = vector.broadcast %cst_72 : bf16 to vector<4x128xbf16>
    %91 = tpu.concatenate %89, %90 in 0 : vector<324x128xbf16>, vector<4x128xbf16> -> vector<328x128xbf16>
    %c0_73 = arith.constant 0 : index
    %c0_74 = arith.constant 0 : index
    %c0_75 = arith.constant 0 : index
    %92 = vector.load %arg5[%c0_73, %c0_74, %c0_75] : memref<1x328x128xbf16, #tpu.memory_space<vmem>>, vector<1x328x128xbf16>
    %93 = vector.shape_cast %92 : vector<1x328x128xbf16> to vector<328x128xbf16>
    %94 = vector.shape_cast %91 : vector<328x128xbf16> to vector<1x328x128xbf16>
    tpu.vector_store %arg5[%c0_73, %c0_74, %c0_75], %94 {strides = array<i32>} : memref<1x328x128xbf16, #tpu.memory_space<vmem>>, vector<1x328x128xbf16>,
    return
  }
  func.func @transform_0(%arg0: i32) -> (i32, i32, i32) {
    %c0_i32 = arith.constant 0 : i32
    %c0_i32_0 = arith.constant 0 : i32
    %c0_i32_1 = arith.constant 0 : i32
    return %arg0, %c0_i32, %c0_i32_0 : i32, i32, i32
  }
  func.func @transform_1(%arg0: i32) -> (i32, i32, i32, i32) {
    %c0_i32 = arith.constant 0 : i32
    %c0_i32_0 = arith.constant 0 : i32
    %c0_i32_1 = arith.constant 0 : i32
    %c0_i32_2 = arith.constant 0 : i32
    %c0_i32_3 = arith.constant 0 : i32
    return %c0_i32, %c0_i32_0, %c0_i32_1, %c0_i32_2 : i32, i32, i32, i32
  }
  func.func @transform_2(%arg0: i32) -> (i32, i32) {
    %c0_i32 = arith.constant 0 : i32
    %c0_i32_0 = arith.constant 0 : i32
    %c0_i32_1 = arith.constant 0 : i32
    return %c0_i32, %c0_i32_0 : i32, i32
  }
  func.func @transform_3(%arg0: i32) -> (i32, i32) {
    %c0_i32 = arith.constant 0 : i32
    %c0_i32_0 = arith.constant 0 : i32
    %c0_i32_1 = arith.constant 0 : i32
    return %c0_i32, %c0_i32_0 : i32, i32
  }
  func.func @transform_4(%arg0: i32) -> (i32, i32, i32) {
    %c0_i32 = arith.constant 0 : i32
    %c0_i32_0 = arith.constant 0 : i32
    %c0_i32_1 = arith.constant 0 : i32
    return %arg0, %c0_i32, %c0_i32_0 : i32, i32, i32
  }
}

module attributes {stable_mosaic.version = 11 : i64} {
  func.func @_conv_in_kernel(%arg0: i32, %arg1: memref<1x328x128xbf16, #tpu.memory_space<vmem>>, %arg2: memref<1x256x128xf32, #tpu.memory_space<vmem>>, %arg3: memref<3x3x128x128xbf16, #tpu.memory_space<vmem>>, %arg4: memref<1x128xf32, #tpu.memory_space<vmem>>, %arg5: memref<1x128xf32, #tpu.memory_space<vmem>>, %arg6: memref<1x256x128xf32, #tpu.memory_space<vmem>>) attributes {dimension_semantics = [#tpu.dimension_semantics<parallel>], iteration_bounds = array<i64: 2>, scalar_prefetch = 0 : i64, scratch_operands = 0 : i64, tpu.core_type = #tpu.core_type<tc>, window_params = [{transform_indices = @transform_0, window_bounds = array<i64: 1, 328, 128>}, {transform_indices = @transform_1, window_bounds = array<i64: 1, 256, 128>}, {pipeline_mode = #tpu.pipeline_mode<synchronous>, transform_indices = @transform_2, window_bounds = array<i64: 3, 3, 128, 128>}, {pipeline_mode = #tpu.pipeline_mode<synchronous>, transform_indices = @transform_3, window_bounds = array<i64: 1, 128>}, {pipeline_mode = #tpu.pipeline_mode<synchronous>, transform_indices = @transform_4, window_bounds = array<i64: 1, 128>}, {transform_indices = @transform_5, window_bounds = array<i64: 1, 256, 128>}]} {
    %c0 = arith.constant 0 : index
    %c0_0 = arith.constant 0 : index
    %c0_1 = arith.constant 0 : index
    %0 = vector.load %arg1[%c0, %c0_0, %c0_1] : memref<1x328x128xbf16, #tpu.memory_space<vmem>>, vector<1x288x128xbf16>
    %1 = vector.shape_cast %0 : vector<1x288x128xbf16> to vector<288x128xbf16>
    %c0_2 = arith.constant 0 : index
    %c0_3 = arith.constant 0 : index
    %c0_4 = arith.constant 0 : index
    %c0_5 = arith.constant 0 : index
    %2 = vector.load %arg3[%c0_2, %c0_3, %c0_4, %c0_5] : memref<3x3x128x128xbf16, #tpu.memory_space<vmem>>, vector<1x1x128x128xbf16>
    %3 = vector.shape_cast %2 : vector<1x1x128x128xbf16> to vector<128x128xbf16>
    %cst = arith.constant dense<0.000000e+00> : vector<288x128xf32>
    %4 = tpu.matmul %1, %3, %cst {dimension_numbers = #tpu.dot_dimension_numbers<[1], [0], [0], [1], [0, 0, 1, 1], [], []>} : vector<288x128xbf16>, vector<128x128xbf16>, vector<288x128xf32> -> vector<288x128xf32>
    %c0_6 = arith.constant 0 : index
    %c1 = arith.constant 1 : index
    %c0_7 = arith.constant 0 : index
    %5 = vector.load %arg1[%c0_6, %c1, %c0_7] : memref<1x328x128xbf16, #tpu.memory_space<vmem>>, vector<1x288x128xbf16>
    %6 = vector.shape_cast %5 : vector<1x288x128xbf16> to vector<288x128xbf16>
    %c0_8 = arith.constant 0 : index
    %c1_9 = arith.constant 1 : index
    %c0_10 = arith.constant 0 : index
    %c0_11 = arith.constant 0 : index
    %7 = vector.load %arg3[%c0_8, %c1_9, %c0_10, %c0_11] : memref<3x3x128x128xbf16, #tpu.memory_space<vmem>>, vector<1x1x128x128xbf16>
    %8 = vector.shape_cast %7 : vector<1x1x128x128xbf16> to vector<128x128xbf16>
    %cst_12 = arith.constant dense<0.000000e+00> : vector<288x128xf32>
    %9 = tpu.matmul %6, %8, %cst_12 {dimension_numbers = #tpu.dot_dimension_numbers<[1], [0], [0], [1], [0, 0, 1, 1], [], []>} : vector<288x128xbf16>, vector<128x128xbf16>, vector<288x128xf32> -> vector<288x128xf32>
    %10 = arith.addf %4, %9 : vector<288x128xf32>
    %c0_13 = arith.constant 0 : index
    %c2 = arith.constant 2 : index
    %c0_14 = arith.constant 0 : index
    %11 = vector.load %arg1[%c0_13, %c2, %c0_14] : memref<1x328x128xbf16, #tpu.memory_space<vmem>>, vector<1x288x128xbf16>
    %12 = vector.shape_cast %11 : vector<1x288x128xbf16> to vector<288x128xbf16>
    %c0_15 = arith.constant 0 : index
    %c2_16 = arith.constant 2 : index
    %c0_17 = arith.constant 0 : index
    %c0_18 = arith.constant 0 : index
    %13 = vector.load %arg3[%c0_15, %c2_16, %c0_17, %c0_18] : memref<3x3x128x128xbf16, #tpu.memory_space<vmem>>, vector<1x1x128x128xbf16>
    %14 = vector.shape_cast %13 : vector<1x1x128x128xbf16> to vector<128x128xbf16>
    %cst_19 = arith.constant dense<0.000000e+00> : vector<288x128xf32>
    %15 = tpu.matmul %12, %14, %cst_19 {dimension_numbers = #tpu.dot_dimension_numbers<[1], [0], [0], [1], [0, 0, 1, 1], [], []>} : vector<288x128xbf16>, vector<128x128xbf16>, vector<288x128xf32> -> vector<288x128xf32>
    %16 = arith.addf %10, %15 : vector<288x128xf32>
    %c0_20 = arith.constant 0 : index
    %c18 = arith.constant 18 : index
    %c0_21 = arith.constant 0 : index
    %17 = vector.load %arg1[%c0_20, %c18, %c0_21] : memref<1x328x128xbf16, #tpu.memory_space<vmem>>, vector<1x288x128xbf16>
    %18 = vector.shape_cast %17 : vector<1x288x128xbf16> to vector<288x128xbf16>
    %c1_22 = arith.constant 1 : index
    %c0_23 = arith.constant 0 : index
    %c0_24 = arith.constant 0 : index
    %c0_25 = arith.constant 0 : index
    %19 = vector.load %arg3[%c1_22, %c0_23, %c0_24, %c0_25] : memref<3x3x128x128xbf16, #tpu.memory_space<vmem>>, vector<1x1x128x128xbf16>
    %20 = vector.shape_cast %19 : vector<1x1x128x128xbf16> to vector<128x128xbf16>
    %cst_26 = arith.constant dense<0.000000e+00> : vector<288x128xf32>
    %21 = tpu.matmul %18, %20, %cst_26 {dimension_numbers = #tpu.dot_dimension_numbers<[1], [0], [0], [1], [0, 0, 1, 1], [], []>} : vector<288x128xbf16>, vector<128x128xbf16>, vector<288x128xf32> -> vector<288x128xf32>
    %22 = arith.addf %16, %21 : vector<288x128xf32>
    %c0_27 = arith.constant 0 : index
    %c19 = arith.constant 19 : index
    %c0_28 = arith.constant 0 : index
    %23 = vector.load %arg1[%c0_27, %c19, %c0_28] : memref<1x328x128xbf16, #tpu.memory_space<vmem>>, vector<1x288x128xbf16>
    %24 = vector.shape_cast %23 : vector<1x288x128xbf16> to vector<288x128xbf16>
    %c1_29 = arith.constant 1 : index
    %c1_30 = arith.constant 1 : index
    %c0_31 = arith.constant 0 : index
    %c0_32 = arith.constant 0 : index
    %25 = vector.load %arg3[%c1_29, %c1_30, %c0_31, %c0_32] : memref<3x3x128x128xbf16, #tpu.memory_space<vmem>>, vector<1x1x128x128xbf16>
    %26 = vector.shape_cast %25 : vector<1x1x128x128xbf16> to vector<128x128xbf16>
    %cst_33 = arith.constant dense<0.000000e+00> : vector<288x128xf32>
    %27 = tpu.matmul %24, %26, %cst_33 {dimension_numbers = #tpu.dot_dimension_numbers<[1], [0], [0], [1], [0, 0, 1, 1], [], []>} : vector<288x128xbf16>, vector<128x128xbf16>, vector<288x128xf32> -> vector<288x128xf32>
    %28 = arith.addf %22, %27 : vector<288x128xf32>
    %c0_34 = arith.constant 0 : index
    %c20 = arith.constant 20 : index
    %c0_35 = arith.constant 0 : index
    %29 = vector.load %arg1[%c0_34, %c20, %c0_35] : memref<1x328x128xbf16, #tpu.memory_space<vmem>>, vector<1x288x128xbf16>
    %30 = vector.shape_cast %29 : vector<1x288x128xbf16> to vector<288x128xbf16>
    %c1_36 = arith.constant 1 : index
    %c2_37 = arith.constant 2 : index
    %c0_38 = arith.constant 0 : index
    %c0_39 = arith.constant 0 : index
    %31 = vector.load %arg3[%c1_36, %c2_37, %c0_38, %c0_39] : memref<3x3x128x128xbf16, #tpu.memory_space<vmem>>, vector<1x1x128x128xbf16>
    %32 = vector.shape_cast %31 : vector<1x1x128x128xbf16> to vector<128x128xbf16>
    %cst_40 = arith.constant dense<0.000000e+00> : vector<288x128xf32>
    %33 = tpu.matmul %30, %32, %cst_40 {dimension_numbers = #tpu.dot_dimension_numbers<[1], [0], [0], [1], [0, 0, 1, 1], [], []>} : vector<288x128xbf16>, vector<128x128xbf16>, vector<288x128xf32> -> vector<288x128xf32>
    %34 = arith.addf %28, %33 : vector<288x128xf32>
    %c0_41 = arith.constant 0 : index
    %c36 = arith.constant 36 : index
    %c0_42 = arith.constant 0 : index
    %35 = vector.load %arg1[%c0_41, %c36, %c0_42] : memref<1x328x128xbf16, #tpu.memory_space<vmem>>, vector<1x288x128xbf16>
    %36 = vector.shape_cast %35 : vector<1x288x128xbf16> to vector<288x128xbf16>
    %c2_43 = arith.constant 2 : index
    %c0_44 = arith.constant 0 : index
    %c0_45 = arith.constant 0 : index
    %c0_46 = arith.constant 0 : index
    %37 = vector.load %arg3[%c2_43, %c0_44, %c0_45, %c0_46] : memref<3x3x128x128xbf16, #tpu.memory_space<vmem>>, vector<1x1x128x128xbf16>
    %38 = vector.shape_cast %37 : vector<1x1x128x128xbf16> to vector<128x128xbf16>
    %cst_47 = arith.constant dense<0.000000e+00> : vector<288x128xf32>
    %39 = tpu.matmul %36, %38, %cst_47 {dimension_numbers = #tpu.dot_dimension_numbers<[1], [0], [0], [1], [0, 0, 1, 1], [], []>} : vector<288x128xbf16>, vector<128x128xbf16>, vector<288x128xf32> -> vector<288x128xf32>
    %40 = arith.addf %34, %39 : vector<288x128xf32>
    %c0_48 = arith.constant 0 : index
    %c37 = arith.constant 37 : index
    %c0_49 = arith.constant 0 : index
    %41 = vector.load %arg1[%c0_48, %c37, %c0_49] : memref<1x328x128xbf16, #tpu.memory_space<vmem>>, vector<1x288x128xbf16>
    %42 = vector.shape_cast %41 : vector<1x288x128xbf16> to vector<288x128xbf16>
    %c2_50 = arith.constant 2 : index
    %c1_51 = arith.constant 1 : index
    %c0_52 = arith.constant 0 : index
    %c0_53 = arith.constant 0 : index
    %43 = vector.load %arg3[%c2_50, %c1_51, %c0_52, %c0_53] : memref<3x3x128x128xbf16, #tpu.memory_space<vmem>>, vector<1x1x128x128xbf16>
    %44 = vector.shape_cast %43 : vector<1x1x128x128xbf16> to vector<128x128xbf16>
    %cst_54 = arith.constant dense<0.000000e+00> : vector<288x128xf32>
    %45 = tpu.matmul %42, %44, %cst_54 {dimension_numbers = #tpu.dot_dimension_numbers<[1], [0], [0], [1], [0, 0, 1, 1], [], []>} : vector<288x128xbf16>, vector<128x128xbf16>, vector<288x128xf32> -> vector<288x128xf32>
    %46 = arith.addf %40, %45 : vector<288x128xf32>
    %c0_55 = arith.constant 0 : index
    %c38 = arith.constant 38 : index
    %c0_56 = arith.constant 0 : index
    %47 = vector.load %arg1[%c0_55, %c38, %c0_56] : memref<1x328x128xbf16, #tpu.memory_space<vmem>>, vector<1x288x128xbf16>
    %48 = vector.shape_cast %47 : vector<1x288x128xbf16> to vector<288x128xbf16>
    %c2_57 = arith.constant 2 : index
    %c2_58 = arith.constant 2 : index
    %c0_59 = arith.constant 0 : index
    %c0_60 = arith.constant 0 : index
    %49 = vector.load %arg3[%c2_57, %c2_58, %c0_59, %c0_60] : memref<3x3x128x128xbf16, #tpu.memory_space<vmem>>, vector<1x1x128x128xbf16>
    %50 = vector.shape_cast %49 : vector<1x1x128x128xbf16> to vector<128x128xbf16>
    %cst_61 = arith.constant dense<0.000000e+00> : vector<288x128xf32>
    %51 = tpu.matmul %48, %50, %cst_61 {dimension_numbers = #tpu.dot_dimension_numbers<[1], [0], [0], [1], [0, 0, 1, 1], [], []>} : vector<288x128xbf16>, vector<128x128xbf16>, vector<288x128xf32> -> vector<288x128xf32>
    %52 = arith.addf %46, %51 : vector<288x128xf32>
    %53 = vector.shape_cast %52 : vector<288x128xf32> to vector<16x18x128xf32>
    %54 = vector.extract_strided_slice %53 {offsets = [0, 0, 0], sizes = [16, 16, 128], strides = [1, 1, 1]} : vector<16x18x128xf32> to vector<16x16x128xf32>
    %55 = vector.shape_cast %54 : vector<16x16x128xf32> to vector<256x128xf32>
    %cst_62 = arith.constant dense<0.000000e+00> : vector<128xf32>
    %56 = vector.multi_reduction <add>, %55, %cst_62 [0] : vector<256x128xf32> to vector<128xf32>
    %57 = vector.shape_cast %56 : vector<128xf32> to vector<1x128xf32>
    %cst_63 = arith.constant 3.906250e-03 : f32
    %58 = vector.broadcast %cst_63 : f32 to vector<1x128xf32>
    %59 = arith.mulf %57, %58 : vector<1x128xf32>
    %60 = vector.broadcast %59 : vector<1x128xf32> to vector<256x128xf32>
    %61 = arith.subf %55, %60 : vector<256x128xf32>
    %62 = arith.mulf %61, %61 : vector<256x128xf32>
    %cst_64 = arith.constant dense<0.000000e+00> : vector<128xf32>
    %63 = vector.multi_reduction <add>, %62, %cst_64 [0] : vector<256x128xf32> to vector<128xf32>
    %64 = vector.shape_cast %63 : vector<128xf32> to vector<1x128xf32>
    %cst_65 = arith.constant 3.906250e-03 : f32
    %65 = vector.broadcast %cst_65 : f32 to vector<1x128xf32>
    %66 = arith.mulf %64, %65 : vector<1x128xf32>
    %c0_66 = arith.constant 0 : index
    %c0_67 = arith.constant 0 : index
    %67 = vector.load %arg4[%c0_66, %c0_67] : memref<1x128xf32, #tpu.memory_space<vmem>>, vector<1x128xf32>
    %cst_68 = arith.constant 9.99999974E-6 : f32
    %68 = vector.broadcast %cst_68 : f32 to vector<1x128xf32>
    %69 = arith.addf %66, %68 : vector<1x128xf32>
    %70 = math.rsqrt %69 : vector<1x128xf32>
    %71 = arith.mulf %67, %70 : vector<1x128xf32>
    %c0_69 = arith.constant 0 : index
    %c0_70 = arith.constant 0 : index
    %72 = vector.load %arg5[%c0_69, %c0_70] : memref<1x128xf32, #tpu.memory_space<vmem>>, vector<1x128xf32>
    %73 = arith.mulf %59, %71 : vector<1x128xf32>
    %74 = arith.subf %72, %73 : vector<1x128xf32>
    %75 = vector.broadcast %71 : vector<1x128xf32> to vector<256x128xf32>
    %76 = arith.mulf %55, %75 : vector<256x128xf32>
    %77 = vector.broadcast %74 : vector<1x128xf32> to vector<256x128xf32>
    %78 = arith.addf %76, %77 : vector<256x128xf32>
    %c0_71 = arith.constant 0 : index
    %c0_72 = arith.constant 0 : index
    %c0_73 = arith.constant 0 : index
    %79 = vector.load %arg2[%c0_71, %c0_72, %c0_73] : memref<1x256x128xf32, #tpu.memory_space<vmem>>, vector<1x256x128xf32>
    %80 = vector.shape_cast %79 : vector<1x256x128xf32> to vector<256x128xf32>
    %81 = arith.addf %78, %80 : vector<256x128xf32>
    %c0_74 = arith.constant 0 : index
    %c0_75 = arith.constant 0 : index
    %c0_76 = arith.constant 0 : index
    %82 = vector.load %arg6[%c0_74, %c0_75, %c0_76] : memref<1x256x128xf32, #tpu.memory_space<vmem>>, vector<1x256x128xf32>
    %83 = vector.shape_cast %82 : vector<1x256x128xf32> to vector<256x128xf32>
    %84 = vector.shape_cast %81 : vector<256x128xf32> to vector<1x256x128xf32>
    tpu.vector_store %arg6[%c0_74, %c0_75, %c0_76], %84 {strides = array<i32>} : memref<1x256x128xf32, #tpu.memory_space<vmem>>, vector<1x256x128xf32>,
    return
  }
  func.func @transform_0(%arg0: i32) -> (i32, i32, i32) {
    %c0_i32 = arith.constant 0 : i32
    %c0_i32_0 = arith.constant 0 : i32
    %c0_i32_1 = arith.constant 0 : i32
    return %arg0, %c0_i32, %c0_i32_0 : i32, i32, i32
  }
  func.func @transform_1(%arg0: i32) -> (i32, i32, i32) {
    %c0_i32 = arith.constant 0 : i32
    %c0_i32_0 = arith.constant 0 : i32
    %c0_i32_1 = arith.constant 0 : i32
    return %arg0, %c0_i32, %c0_i32_0 : i32, i32, i32
  }
  func.func @transform_2(%arg0: i32) -> (i32, i32, i32, i32) {
    %c0_i32 = arith.constant 0 : i32
    %c0_i32_0 = arith.constant 0 : i32
    %c0_i32_1 = arith.constant 0 : i32
    %c0_i32_2 = arith.constant 0 : i32
    %c0_i32_3 = arith.constant 0 : i32
    return %c0_i32, %c0_i32_0, %c0_i32_1, %c0_i32_2 : i32, i32, i32, i32
  }
  func.func @transform_3(%arg0: i32) -> (i32, i32) {
    %c0_i32 = arith.constant 0 : i32
    %c0_i32_0 = arith.constant 0 : i32
    %c0_i32_1 = arith.constant 0 : i32
    return %c0_i32, %c0_i32_0 : i32, i32
  }
  func.func @transform_4(%arg0: i32) -> (i32, i32) {
    %c0_i32 = arith.constant 0 : i32
    %c0_i32_0 = arith.constant 0 : i32
    %c0_i32_1 = arith.constant 0 : i32
    return %c0_i32, %c0_i32_0 : i32, i32
  }
  func.func @transform_5(%arg0: i32) -> (i32, i32, i32) {
    %c0_i32 = arith.constant 0 : i32
    %c0_i32_0 = arith.constant 0 : i32
    %c0_i32_1 = arith.constant 0 : i32
    return %arg0, %c0_i32, %c0_i32_0 : i32, i32, i32
  }
}

</mosaic_0001>

<llo_original>
// kernel: residual_block_forward.3
$region0: #{residual_block_forward.3}
  #allocation0 [shape = 'u32[]', space=smem, size = 0x4, offset = 0x4, fixed_abs, tag = 'smem constant byte address 0x4 - core index']
  #allocation1 [shape = 'u32[72,128]{1,0:T(1,128)}', space=vmem, size = 0x9000, scoped, tag = 'internal scratch']
  %s0 = inlined_call_operand.vmem [shape: bf16[2,328,128], index: 0, kind: input, shape index: {}]
  %s1 = inlined_call_operand.vmem [shape: f32[2,256,128], index: 1, kind: input, shape index: {}]
  %s2 = inlined_call_operand.vmem [shape: bf16[3,3,128,128], index: 2, kind: input, shape index: {}]
  %s3 = inlined_call_operand.vmem [shape: f32[1,128], index: 3, kind: input, shape index: {}]
  %s4 = inlined_call_operand.vmem [shape: f32[1,128], index: 4, kind: input, shape index: {}]
  %s5 = inlined_call_operand.hbm [shape: f32[2,256,128], index: 5, kind: output, shape index: {}]
  %s6 = sld [smem:[#allocation0]]
  $region53: #{residual_block_forward.3} parent=0
    _
  %s8 = ssub.s32 1, %s6
  %s9 = scalar_select 0, %s8, %s6
  $region1: #{residual_block_forward.3} parent=0
    #allocation2 [shape = 'u8[262144]{0}', space=vmem, size = 0x40000, scoped, tag = 'output window, operand 0']
    #allocation3 [shape = 's32[2]{0}', space=sflag, size = 0x8, scoped, tag = 'scoped memory for residual_block_forward.3']
    %10 = vsyncpa [#allocation3], 0
    %s11 = scalar_lea.sflag [#allocation3], 1
    %12 = vsyncpa %s11, 0
    loop: start=0, step=1, limit=4
    $region2: #{residual_block_forward.3} parent=1 // loop_pre_header
      _
    $region3: #{residual_block_forward.3} parent=1 // loop_header
      %s14 = sphi 0, %s18
      %p15 = scmp.ge.s32.totalorder %s14, 4
      %s24 = sphi 0, %s26
      %s27 = sphi 0, %s24
      %s28 = sphi 0, %s27
      %s44 = sphi 0, %s28
      %s50 = sphi 0, %s52
      %s53 = sphi 0, %s50
      %s54 = sphi 0, %s53
      %s70 = sphi 0, %s54
      %s74 = sphi 0, %s74
      %s76 = sphi 0, %s74
      %s77 = sphi 0, %s76
      %s91 = sphi 0, %s77
      %s95 = sphi 0, %s95
      %s97 = sphi 0, %s95
      %s98 = sphi 0, %s97
      %s112 = sphi 0, %s98
      %s116 = sphi 0, %s116
      %s118 = sphi 0, %s116
      %s119 = sphi 0, %s118
      %s133 = sphi 0, %s119
      %s139 = sphi 0, %s141
      %s142 = sphi 0, %s139
      %s143 = sphi 0, %s142
      %s159 = sphi 0, %s143
    $region4: #{residual_block_forward.3} parent=1 // loop_header_branch
      %17 = sbr.rel (%p15) target = $region8
    $region5: #{residual_block_forward.3} parent=1 // loop_body
      %s19 = ssub.s32 %s14, 1
      %s20 = ssub.s32 %s14, 2
      %s21 = sadd.s32 %s14, 1
      %s22 = ssub.s32 %s14, %s21
      %p23 = scmp.eq.s32.totalorder %s22, 0
      %s25 = sadd.s32 %s24, 1
      %s26 = scalar_select %p23, %s24, %s25
      %p29 = pneg %p23
      %p30 = scmp.eq.s32.totalorder %s14, 1
      %p31 = por %p29, %p30
      %p32 = scmp.ne.s32.totalorder %s24, %s27
      %p33 = scmp.eq.s32.totalorder %s14, 0
      %p34 = por %p32, %p33
      %p35 = scmp.ne.s32.totalorder %s24, %s27
      %p36 = scmp.eq.s32.totalorder %s19, 1
      %p37 = por %p35, %p36
      %p38 = scmp.ne.s32.totalorder %s27, %s28
      %p39 = scmp.eq.s32.totalorder %s19, 0
      %p40 = por %p38, %p39
      %p41 = scmp.ne.s32.totalorder %s27, %s28
      %p42 = scmp.eq.s32.totalorder %s20, 1
      %p43 = por %p41, %p42
      %p45 = scmp.ne.s32.totalorder %s28, %s44
      %p46 = scmp.eq.s32.totalorder %s20, 0
      %p47 = por %p45, %p46
      %s48 = ssub.s32 %s14, %s21
      %p49 = scmp.eq.s32.totalorder %s48, 0
      %s51 = sadd.s32 %s50, 1
      %s52 = scalar_select %p49, %s50, %s51
      %p55 = pneg %p49
      %p56 = scmp.eq.s32.totalorder %s14, 1
      %p57 = por %p55, %p56
      %p58 = scmp.ne.s32.totalorder %s50, %s53
      %p59 = scmp.eq.s32.totalorder %s14, 0
      %p60 = por %p58, %p59
      %p61 = scmp.ne.s32.totalorder %s50, %s53
      %p62 = scmp.eq.s32.totalorder %s19, 1
      %p63 = por %p61, %p62
      %p64 = scmp.ne.s32.totalorder %s53, %s54
      %p65 = scmp.eq.s32.totalorder %s19, 0
      %p66 = por %p64, %p65
      %p67 = scmp.ne.s32.totalorder %s53, %s54
      %p68 = scmp.eq.s32.totalorder %s20, 1
      %p69 = por %p67, %p68
      %p71 = scmp.ne.s32.totalorder %s54, %s70
      %p72 = scmp.eq.s32.totalorder %s20, 0
      %p73 = por %p71, %p72
      %s75 = sadd.s32 %s74, 1
      %p78 = scmp.eq.s32.totalorder %s14, 1
      %p79 = scmp.ne.s32.totalorder %s74, %s76
      %p80 = scmp.eq.s32.totalorder %s14, 0
      %p81 = por %p79, %p80
      %p82 = scmp.ne.s32.totalorder %s74, %s76
      %p83 = scmp.eq.s32.totalorder %s19, 1
      %p84 = por %p82, %p83
      %p85 = scmp.ne.s32.totalorder %s76, %s77
      %p86 = scmp.eq.s32.totalorder %s19, 0
      %p87 = por %p85, %p86
      %p88 = scmp.ne.s32.totalorder %s76, %s77
      %p89 = scmp.eq.s32.totalorder %s20, 1
      %p90 = por %p88, %p89
      %p92 = scmp.ne.s32.totalorder %s77, %s91
      %p93 = scmp.eq.s32.totalorder %s20, 0
      %p94 = por %p92, %p93
      %s96 = sadd.s32 %s95, 1
      %p99 = scmp.eq.s32.totalorder %s14, 1
      %p100 = scmp.ne.s32.totalorder %s95, %s97
      %p101 = scmp.eq.s32.totalorder %s14, 0
      %p102 = por %p100, %p101
      %p103 = scmp.ne.s32.totalorder %s95, %s97
      %p104 = scmp.eq.s32.totalorder %s19, 1
      %p105 = por %p103, %p104
      %p106 = scmp.ne.s32.totalorder %s97, %s98
      %p107 = scmp.eq.s32.totalorder %s19, 0
      %p108 = por %p106, %p107
      %p109 = scmp.ne.s32.totalorder %s97, %s98
      %p110 = scmp.eq.s32.totalorder %s20, 1
      %p111 = por %p109, %p110
      %p113 = scmp.ne.s32.totalorder %s98, %s112
      %p114 = scmp.eq.s32.totalorder %s20, 0
      %p115 = por %p113, %p114
      %s117 = sadd.s32 %s116, 1
      %p120 = scmp.eq.s32.totalorder %s14, 1
      %p121 = scmp.ne.s32.totalorder %s116, %s118
      %p122 = scmp.eq.s32.totalorder %s14, 0
      %p123 = por %p121, %p122
      %p124 = scmp.ne.s32.totalorder %s116, %s118
      %p125 = scmp.eq.s32.totalorder %s19, 1
      %p126 = por %p124, %p125
      %p127 = scmp.ne.s32.totalorder %s118, %s119
      %p128 = scmp.eq.s32.totalorder %s19, 0
      %p129 = por %p127, %p128
      %p130 = scmp.ne.s32.totalorder %s118, %s119
      %p131 = scmp.eq.s32.totalorder %s20, 1
      %p132 = por %p130, %p131
      %p134 = scmp.ne.s32.totalorder %s119, %s133
      %p135 = scmp.eq.s32.totalorder %s20, 0
      %p136 = por %p134, %p135
      %s137 = ssub.s32 %s14, %s21
      %p138 = scmp.eq.s32.totalorder %s137, 0
      %s140 = sadd.s32 %s139, 1
      %s141 = scalar_select %p138, %s139, %s140
      %p144 = pneg %p138
      %p145 = scmp.eq.s32.totalorder %s14, 1
      %p146 = por %p144, %p145
      %p147 = scmp.ne.s32.totalorder %s139, %s142
      %p148 = scmp.eq.s32.totalorder %s14, 0
      %p149 = por %p147, %p148
      %p150 = scmp.ne.s32.totalorder %s139, %s142
      %p151 = scmp.eq.s32.totalorder %s19, 1
      %p152 = por %p150, %p151
      %p153 = scmp.ne.s32.totalorder %s142, %s143
      %p154 = scmp.eq.s32.totalorder %s19, 0
      %p155 = por %p153, %p154
      %p156 = scmp.ne.s32.totalorder %s142, %s143
      %p157 = scmp.eq.s32.totalorder %s20, 1
      %p158 = por %p156, %p157
      %p160 = scmp.ne.s32.totalorder %s143, %s159
      %p161 = scmp.eq.s32.totalorder %s20, 0
      %p162 = por %p160, %p161
      %p163 = scmp.le.s32.totalorder 1, %s14
      %p164 = scmp.lt.s32.totalorder %s14, 3
      %p165 = pnand %p163, %p164
      %p166 = pneg %p165
      // Predicated region
      $region9: #{residual_block_forward.3} parent=5 // pred_check
        _
      $region10: #{residual_block_forward.3} parent=5 // pred_check_branch
        %168 = sbr.rel (%p165) target = $region12
      $region11: #{residual_block_forward.3} parent=5 // pred_region
        %s169 = ssub.s32 %s14, 1
        // Predicated region
        $region13: #{residual_block_forward.3} parent=11 // pred_check
          %p170 = pneg %p87
        $region14: #{residual_block_forward.3} parent=11 // pred_check_branch
          %172 = sbr.rel (%p170) target = $region16
        $region15: #{residual_block_forward.3} parent=11 // pred_region
          _
        $region16: #{residual_block_forward.3} parent=11 // pred_fallthru
          _
        // Predicated region
        $region17: #{residual_block_forward.3} parent=11 // pred_check
          %p173 = pneg %p108
        $region18: #{residual_block_forward.3} parent=11 // pred_check_branch
          %175 = sbr.rel (%p173) target = $region20
        $region19: #{residual_block_forward.3} parent=11 // pred_region
          _
        $region20: #{residual_block_forward.3} parent=11 // pred_fallthru
          _
        // Predicated region
        $region21: #{residual_block_forward.3} parent=11 // pred_check
          %p176 = pneg %p129
        $region22: #{residual_block_forward.3} parent=11 // pred_check_branch
          %178 = sbr.rel (%p176) target = $region24
        $region23: #{residual_block_forward.3} parent=11 // pred_region
          _
        $region24: #{residual_block_forward.3} parent=11 // pred_fallthru
          _
      $region12: #{residual_block_forward.3} parent=5 // pred_fallthru
        _
      %p179 = scmp.lt.s32.totalorder %s14, 2
      // Predicated region
      $region25: #{residual_block_forward.3} parent=5 // pred_check
        %p180 = pneg %p179
      $region26: #{residual_block_forward.3} parent=5 // pred_check_branch
        %182 = sbr.rel (%p180) target = $region28
      $region27: #{residual_block_forward.3} parent=5 // pred_region
        // Predicated region
        $region29: #{residual_block_forward.3} parent=27 // pred_check
          %p183 = pneg %p34
        $region30: #{residual_block_forward.3} parent=27 // pred_check_branch
          %185 = sbr.rel (%p183) target = $region32
        $region31: #{residual_block_forward.3} parent=27 // pred_region
          %p186 = scmp.lt.s32.totalorder %s14, 1
          %s187 = scalar_select %p186, %s14, 1
          %s188 = smul.addr %s187, 41
          %s189 = smul.addr %s188, 4
          %s190 = scalar_lea.vmem %s0, %s189
        $region32: #{residual_block_forward.3} parent=27 // pred_fallthru
          _
        // Predicated region
        $region33: #{residual_block_forward.3} parent=27 // pred_check
          %p191 = pneg %p60
        $region34: #{residual_block_forward.3} parent=27 // pred_check_branch
          %193 = sbr.rel (%p191) target = $region36
        $region35: #{residual_block_forward.3} parent=27 // pred_region
          %p194 = scmp.lt.s32.totalorder %s14, 1
          %s195 = scalar_select %p194, %s14, 1
          %s196 = smul.addr %s195, 32
          %s197 = smul.addr %s196, 8
          %s198 = scalar_lea.vmem %s1, %s197
        $region36: #{residual_block_forward.3} parent=27 // pred_fallthru
          _
      $region28: #{residual_block_forward.3} parent=5 // pred_fallthru
        _
      %p199 = scmp.le.s32.totalorder 1, %s14
      %p200 = scmp.lt.s32.totalorder %s14, 3
      %p201 = pnand %p199, %p200
      %p202 = pneg %p201
      // Predicated region
      $region37: #{residual_block_forward.3} parent=5 // pred_check
        _
      $region38: #{residual_block_forward.3} parent=5 // pred_check_branch
        %204 = sbr.rel (%p201) target = $region40
      $region39: #{residual_block_forward.3} parent=5 // pred_region
        %s205 = ssub.s32 %s14, 1
        %p206 = scmp.lt.s32.totalorder %s19, 1
        %s207 = scalar_select %p206, %s19, 1
        %s208 = smul.addr %s207, 41
        %s209 = smul.addr %s208, 4
        %s210 = scalar_lea.vmem %s0, %s209
        %p211 = pneg %p40
        %p212 = pneg %p37
        %p213 = scmp.lt.s32.totalorder %s19, 1
        %s214 = scalar_select %p213, %s19, 1
        %s215 = smul.addr %s214, 32
        %s216 = smul.addr %s215, 8
        %s217 = scalar_lea.vmem %s1, %s216
        %p218 = pneg %p66
        %p219 = pneg %p63
        %p220 = pneg %p87
        %p221 = pneg %p84
        %p222 = pneg %p108
        %p223 = pneg %p105
        %p224 = pneg %p129
        %p225 = pneg %p126
        %p226 = pneg %p155
        %p227 = pneg %p152
        %s228 = sand.u32 %s142, 1
        %s229 = scalar_lea.sflag [#allocation3], %s228
        %s230 = sand.u32 %s142, 1
        %s231 = smul.addr %s230, 256
        %s232 = scalar_lea.vmem [#allocation2], %s231
        %p233 = scmp.lt.s32.totalorder %s19, 1
        %s234 = scalar_select %p233, %s19, 1
        %s235 = smul.addr %s234, 41
        %s236 = smul.addr %s235, 4
        %s237 = scalar_lea.vmem %s0, %s236
        %p238 = scmp.lt.s32.totalorder %s19, 1
        %s239 = scalar_select %p238, %s19, 1
        %s240 = smul.addr %s239, 32
        %s241 = smul.addr %s240, 8
        %s242 = scalar_lea.vmem %s1, %s241
        %v243 = vld [vmem:[%s237] sm:$0xf]
        %v244 = vld [vmem:[%s237 + $0x4] sm:$0xf]
        %v245 = vld [vmem:[%s237 + $0x8] sm:$0xf]
        %v246 = vld [vmem:[%s237 + $0xc] sm:$0xf]
        %v247 = vld [vmem:[%s237 + $0x10] sm:$0xf]
        %v248 = vld [vmem:[%s237 + $0x14] sm:$0xf]
        %v249 = vld [vmem:[%s237 + $0x18] sm:$0xf]
        %v250 = vld [vmem:[%s237 + $0x1c] sm:$0xf]
        %v251 = vld [vmem:[%s237 + $0x20] sm:$0xf]
        %v252 = vld [vmem:[%s237 + $0x24] sm:$0xf]
        %v253 = vld [vmem:[%s237 + $0x28] sm:$0xf]
        %v254 = vld [vmem:[%s237 + $0x2c] sm:$0xf]
        %v255 = vld [vmem:[%s237 + $0x30] sm:$0xf]
        %v256 = vld [vmem:[%s237 + $0x34] sm:$0xf]
        %v257 = vld [vmem:[%s237 + $0x38] sm:$0xf]
        %v258 = vld [vmem:[%s237 + $0x3c] sm:$0xf]
        %v259 = vld [vmem:[%s237 + $0x40] sm:$0xf]
        %v260 = vld [vmem:[%s237 + $0x44] sm:$0xf]
        %v261 = vld [vmem:[%s237 + $0x48] sm:$0xf]
        %v262 = vld [vmem:[%s237 + $0x4c] sm:$0xf]
        %v263 = vld [vmem:[%s237 + $0x50] sm:$0xf]
        %v264 = vld [vmem:[%s237 + $0x54] sm:$0xf]
        %v265 = vld [vmem:[%s237 + $0x58] sm:$0xf]
        %v266 = vld [vmem:[%s237 + $0x5c] sm:$0xf]
        %v267 = vld [vmem:[%s237 + $0x60] sm:$0xf]
        %v268 = vld [vmem:[%s237 + $0x64] sm:$0xf]
        %v269 = vld [vmem:[%s237 + $0x68] sm:$0xf]
        %v270 = vld [vmem:[%s237 + $0x6c] sm:$0xf]
        %v271 = vld [vmem:[%s237 + $0x70] sm:$0xf]
        %v272 = vld [vmem:[%s237 + $0x74] sm:$0xf]
        %v273 = vld [vmem:[%s237 + $0x78] sm:$0xf]
        %v274 = vld [vmem:[%s237 + $0x7c] sm:$0xf]
        %v275 = vld [vmem:[%s237 + $0x80] sm:$0xf]
        %v276 = vld [vmem:[%s237 + $0x84] sm:$0xf]
        %v277 = vld [vmem:[%s237 + $0x88] sm:$0xf]
        %v278 = vld [vmem:[%s237 + $0x8c] sm:$0xf]
        %v279 = vld [vmem:[%s2] sm:$0xf]
        %v280 = vld [vmem:[%s2 + $0x4] sm:$0xf]
        %v281 = vld [vmem:[%s2 + $0x8] sm:$0xf]
        %v282 = vld [vmem:[%s2 + $0xc] sm:$0xf]
        %v283 = vld [vmem:[%s2 + $0x10] sm:$0xf]
        %v284 = vld [vmem:[%s2 + $0x14] sm:$0xf]
        %v285 = vld [vmem:[%s2 + $0x18] sm:$0xf]
        %v286 = vld [vmem:[%s2 + $0x1c] sm:$0xf]
        %v287 = vld [vmem:[%s2 + $0x20] sm:$0xf]
        %v288 = vld [vmem:[%s2 + $0x24] sm:$0xf]
        %v289 = vld [vmem:[%s2 + $0x28] sm:$0xf]
        %v290 = vld [vmem:[%s2 + $0x2c] sm:$0xf]
        %v291 = vld [vmem:[%s2 + $0x30] sm:$0xf]
        %v292 = vld [vmem:[%s2 + $0x34] sm:$0xf]
        %v293 = vld [vmem:[%s2 + $0x38] sm:$0xf]
        %v294 = vld [vmem:[%s2 + $0x3c] sm:$0xf]
        %v295 = vld [vmem:[%s237 + $0x90] sm:$0x1]
        %s296 = scalar_lea.vmem %s2, 64
        %v297 = vld [vmem:[%s296] sm:$0xf]
        %v298 = vld [vmem:[%s296 + $0x4] sm:$0xf]
        %v299 = vld [vmem:[%s296 + $0x8] sm:$0xf]
        %v300 = vld [vmem:[%s296 + $0xc] sm:$0xf]
        %v301 = vld [vmem:[%s296 + $0x10] sm:$0xf]
        %v302 = vld [vmem:[%s296 + $0x14] sm:$0xf]
        %v303 = vld [vmem:[%s296 + $0x18] sm:$0xf]
        %v304 = vld [vmem:[%s296 + $0x1c] sm:$0xf]
        %v305 = vld [vmem:[%s296 + $0x20] sm:$0xf]
        %v306 = vld [vmem:[%s296 + $0x24] sm:$0xf]
        %v307 = vld [vmem:[%s296 + $0x28] sm:$0xf]
        %v308 = vld [vmem:[%s296 + $0x2c] sm:$0xf]
        %v309 = vld [vmem:[%s296 + $0x30] sm:$0xf]
        %v310 = vld [vmem:[%s296 + $0x34] sm:$0xf]
        %v311 = vld [vmem:[%s296 + $0x38] sm:$0xf]
        %v312 = vld [vmem:[%s296 + $0x3c] sm:$0xf]
        %v350 = vunpack.c.l.b16 %v243
        %v351 = vunpack.c.l.b16 %v244
        %v352 = vunpack.c.l.b16 %v245
        %v353 = vunpack.c.l.b16 %v246
        %v354 = vunpack.c.l.b16 %v247
        %v355 = vunpack.c.l.b16 %v248
        %v356 = vunpack.c.l.b16 %v249
        %v357 = vunpack.c.l.b16 %v250
        %v358 = vunpack.c.l.b16 %v251
        %v359 = vunpack.c.l.b16 %v252
        %v360 = vunpack.c.l.b16 %v253
        %v361 = vunpack.c.l.b16 %v254
        %v362 = vunpack.c.l.b16 %v255
        %v363 = vunpack.c.l.b16 %v256
        %v364 = vunpack.c.l.b16 %v257
        %v365 = vunpack.c.l.b16 %v258
        %v366 = vunpack.c.l.b16 %v259
        %v367 = vunpack.c.l.b16 %v260
        %v368 = vunpack.c.l.b16 %v261
        %v369 = vunpack.c.l.b16 %v262
        %v370 = vunpack.c.l.b16 %v263
        %v371 = vunpack.c.l.b16 %v264
        %v372 = vunpack.c.l.b16 %v265
        %v373 = vunpack.c.l.b16 %v266
        %v374 = vunpack.c.l.b16 %v267
        %v375 = vunpack.c.l.b16 %v268
        %v376 = vunpack.c.l.b16 %v269
        %v377 = vunpack.c.l.b16 %v270
        %v378 = vunpack.c.l.b16 %v271
        %v379 = vunpack.c.l.b16 %v272
        %v380 = vunpack.c.l.b16 %v273
        %v381 = vunpack.c.l.b16 %v274
        %v382 = vunpack.c.l.b16 %v275
        %v383 = vunpack.c.l.b16 %v276
        %v384 = vunpack.c.l.b16 %v277
        %v385 = vunpack.c.l.b16 %v278
        %v386 = vunpack.c.l.b16 %v295
        %v387 = vpack.c.b16 %v351, %v350
        %v388 = vpack.c.b16 %v353, %v352
        %v389 = vpack.c.b16 %v355, %v354
        %v390 = vpack.c.b16 %v357, %v356
        %v391 = vpack.c.b16 %v359, %v358
        %v392 = vpack.c.b16 %v361, %v360
        %v393 = vpack.c.b16 %v363, %v362
        %v394 = vpack.c.b16 %v365, %v364
        %v395 = vpack.c.b16 %v367, %v366
        %v396 = vpack.c.b16 %v369, %v368
        %v397 = vpack.c.b16 %v371, %v370
        %v398 = vpack.c.b16 %v373, %v372
        %v399 = vpack.c.b16 %v375, %v374
        %v400 = vpack.c.b16 %v377, %v376
        %v401 = vpack.c.b16 %v379, %v378
        %v402 = vpack.c.b16 %v381, %v380
        %v403 = vpack.c.b16 %v383, %v382
        %v404 = vpack.c.b16 %v385, %v384
        %v405 = vpack.c.b16 %v386, %v386
        %vm406 = vsmask.f32 7424
        %v408 = vshrl.u32 %v387, 16
        %v410 = vshll.u32 %v387, 16
        %v412 = vrot.slane %v410, 1
        %v413 = vor.u32 %v408, %v412
        %v415 = vshll.u32 %v388, 16
        %v417 = vrot.slane %v415, 1
        %v418 = vsel %vm406, %v413, %v417
        %v419 = vshrl.u32 %v388, 16
        %v421 = vor.u32 %v419, %v417
        %v423 = vshll.u32 %v389, 16
        %v425 = vrot.slane %v423, 1
        %v426 = vsel %vm406, %v421, %v425
        %v427 = vshrl.u32 %v389, 16
        %v429 = vor.u32 %v427, %v425
        %v431 = vshll.u32 %v390, 16
        %v433 = vrot.slane %v431, 1
        %v434 = vsel %vm406, %v429, %v433
        %v435 = vshrl.u32 %v390, 16
        %v437 = vor.u32 %v435, %v433
        %v439 = vshll.u32 %v391, 16
        %v441 = vrot.slane %v439, 1
        %v442 = vsel %vm406, %v437, %v441
        %v443 = vshrl.u32 %v391, 16
        %v445 = vor.u32 %v443, %v441
        %v447 = vshll.u32 %v392, 16
        %v449 = vrot.slane %v447, 1
        %v450 = vsel %vm406, %v445, %v449
        %v451 = vshrl.u32 %v392, 16
        %v453 = vor.u32 %v451, %v449
        %v455 = vshll.u32 %v393, 16
        %v457 = vrot.slane %v455, 1
        %v458 = vsel %vm406, %v453, %v457
        %v459 = vshrl.u32 %v393, 16
        %v461 = vor.u32 %v459, %v457
        %v463 = vshll.u32 %v394, 16
        %v465 = vrot.slane %v463, 1
        %v466 = vsel %vm406, %v461, %v465
        %v467 = vshrl.u32 %v394, 16
        %v469 = vor.u32 %v467, %v465
        %v471 = vshll.u32 %v395, 16
        %v473 = vrot.slane %v471, 1
        %v474 = vsel %vm406, %v469, %v473
        %v475 = vshrl.u32 %v395, 16
        %v477 = vor.u32 %v475, %v473
        %v479 = vshll.u32 %v396, 16
        %v481 = vrot.slane %v479, 1
        %v482 = vsel %vm406, %v477, %v481
        %v483 = vshrl.u32 %v396, 16
        %v485 = vor.u32 %v483, %v481
        %v487 = vshll.u32 %v397, 16
        %v489 = vrot.slane %v487, 1
        %v490 = vsel %vm406, %v485, %v489
        %v491 = vshrl.u32 %v397, 16
        %v493 = vor.u32 %v491, %v489
        %v495 = vshll.u32 %v398, 16
        %v497 = vrot.slane %v495, 1
        %v498 = vsel %vm406, %v493, %v497
        %v499 = vshrl.u32 %v398, 16
        %v501 = vor.u32 %v499, %v497
        %v503 = vshll.u32 %v399, 16
        %v505 = vrot.slane %v503, 1
        %v506 = vsel %vm406, %v501, %v505
        %v507 = vshrl.u32 %v399, 16
        %v509 = vor.u32 %v507, %v505
        %v511 = vshll.u32 %v400, 16
        %v513 = vrot.slane %v511, 1
        %v514 = vsel %vm406, %v509, %v513
        %v515 = vshrl.u32 %v400, 16
        %v517 = vor.u32 %v515, %v513
        %v519 = vshll.u32 %v401, 16
        %v521 = vrot.slane %v519, 1
        %v522 = vsel %vm406, %v517, %v521
        %v523 = vshrl.u32 %v401, 16
        %v525 = vor.u32 %v523, %v521
        %v527 = vshll.u32 %v402, 16
        %v529 = vrot.slane %v527, 1
        %v530 = vsel %vm406, %v525, %v529
        %v531 = vshrl.u32 %v402, 16
        %v533 = vor.u32 %v531, %v529
        %v535 = vshll.u32 %v403, 16
        %v537 = vrot.slane %v535, 1
        %v538 = vsel %vm406, %v533, %v537
        %v539 = vshrl.u32 %v403, 16
        %v541 = vor.u32 %v539, %v537
        %v543 = vshll.u32 %v404, 16
        %v545 = vrot.slane %v543, 1
        %v546 = vsel %vm406, %v541, %v545
        %v547 = vshrl.u32 %v404, 16
        %v549 = vor.u32 %v547, %v545
        %v551 = vshll.u32 %v405, 16
        %v553 = vrot.slane %v551, 1
        %v554 = vsel %vm406, %v549, %v553
        %v589 = vunpack.c.l.b16 %v297
        %v590 = vunpack.c.l.b16 %v298
        %v591 = vunpack.c.l.b16 %v299
        %v592 = vunpack.c.l.b16 %v300
        %v593 = vunpack.c.l.b16 %v301
        %v594 = vunpack.c.l.b16 %v302
        %v595 = vunpack.c.l.b16 %v303
        %v596 = vunpack.c.l.b16 %v304
        %v597 = vunpack.c.l.b16 %v305
        %v598 = vunpack.c.l.b16 %v306
        %v599 = vunpack.c.l.b16 %v307
        %v600 = vunpack.c.l.b16 %v308
        %v601 = vunpack.c.l.b16 %v309
        %v602 = vunpack.c.l.b16 %v310
        %v603 = vunpack.c.l.b16 %v311
        %v604 = vunpack.c.l.b16 %v312
        %v605 = vpack.c.b16 %v590, %v589
        %v606 = vpack.c.b16 %v592, %v591
        %v607 = vpack.c.b16 %v594, %v593
        %v608 = vpack.c.b16 %v596, %v595
        %v609 = vpack.c.b16 %v598, %v597
        %v610 = vpack.c.b16 %v600, %v599
        %v611 = vpack.c.b16 %v602, %v601
        %v612 = vpack.c.b16 %v604, %v603
        %621 = vmatpush.bf16.msra.mxu0 %v612
        %622 = vmatpush.bf16.msra.mxu0 %v611
        %623 = vmatpush.bf16.msra.mxu0 %v610
        %624 = vmatpush.bf16.msra.mxu0 %v609
        %625 = vmatpush.bf16.msra.mxu0 %v608
        %626 = vmatpush.bf16.msra.mxu0 %v607
        %627 = vmatpush.bf16.msra.mxu0 %v606
        %628 = vmatpush.bf16.msra.mxu0 %v605
        %629 = vmatmul.bf16.gmra.mxu0 %v418
        %v630 = vpop.f32.mrf.mxu0
        %v631 = vadd.f32 0.0, %v630
        %v632 = vpop.f32.mrf.mxu0
        %v633 = vadd.f32 0.0, %v632
        %634 = vmatmul.bf16.gmra.mxu0 %v426
        %v635 = vpop.f32.mrf.mxu0
        %v636 = vadd.f32 0.0, %v635
        %v637 = vpop.f32.mrf.mxu0
        %v638 = vadd.f32 0.0, %v637
        %639 = vmatmul.bf16.gmra.mxu0 %v434
        %v640 = vpop.f32.mrf.mxu0
        %v641 = vadd.f32 0.0, %v640
        %v642 = vpop.f32.mrf.mxu0
        %v643 = vadd.f32 0.0, %v642
        %644 = vmatmul.bf16.gmra.mxu0 %v442
        %v645 = vpop.f32.mrf.mxu0
        %v646 = vadd.f32 0.0, %v645
        %v647 = vpop.f32.mrf.mxu0
        %v648 = vadd.f32 0.0, %v647
        %649 = vmatmul.bf16.gmra.mxu0 %v450
        %v650 = vpop.f32.mrf.mxu0
        %v651 = vadd.f32 0.0, %v650
        %v652 = vpop.f32.mrf.mxu0
        %v653 = vadd.f32 0.0, %v652
        %654 = vmatmul.bf16.gmra.mxu0 %v458
        %v655 = vpop.f32.mrf.mxu0
        %v656 = vadd.f32 0.0, %v655
        %v657 = vpop.f32.mrf.mxu0
        %v658 = vadd.f32 0.0, %v657
        %659 = vmatmul.bf16.gmra.mxu0 %v466
        %v660 = vpop.f32.mrf.mxu0
        %v661 = vadd.f32 0.0, %v660
        %v662 = vpop.f32.mrf.mxu0
        %v663 = vadd.f32 0.0, %v662
        %664 = vmatmul.bf16.gmra.mxu0 %v474
        %v665 = vpop.f32.mrf.mxu0
        %v666 = vadd.f32 0.0, %v665
        %v667 = vpop.f32.mrf.mxu0
        %v668 = vadd.f32 0.0, %v667
        %669 = vmatmul.bf16.gmra.mxu0 %v482
        %v670 = vpop.f32.mrf.mxu0
        %v671 = vadd.f32 0.0, %v670
        %v672 = vpop.f32.mrf.mxu0
        %v673 = vadd.f32 0.0, %v672
        %674 = vmatmul.bf16.gmra.mxu0 %v490
        %v675 = vpop.f32.mrf.mxu0
        %v676 = vadd.f32 0.0, %v675
        %v677 = vpop.f32.mrf.mxu0
        %v678 = vadd.f32 0.0, %v677
        %679 = vmatmul.bf16.gmra.mxu0 %v498
        %v680 = vpop.f32.mrf.mxu0
        %v681 = vadd.f32 0.0, %v680
        %v682 = vpop.f32.mrf.mxu0
        %v683 = vadd.f32 0.0, %v682
        %684 = vmatmul.bf16.gmra.mxu0 %v506
        %v685 = vpop.f32.mrf.mxu0
        %v686 = vadd.f32 0.0, %v685
        %v687 = vpop.f32.mrf.mxu0
        %v688 = vadd.f32 0.0, %v687
        %689 = vmatmul.bf16.gmra.mxu0 %v514
        %v690 = vpop.f32.mrf.mxu0
        %v691 = vadd.f32 0.0, %v690
        %v692 = vpop.f32.mrf.mxu0
        %v693 = vadd.f32 0.0, %v692
        %694 = vmatmul.bf16.gmra.mxu0 %v522
        %v695 = vpop.f32.mrf.mxu0
        %v696 = vadd.f32 0.0, %v695
        %v697 = vpop.f32.mrf.mxu0
        %v698 = vadd.f32 0.0, %v697
        %699 = vmatmul.bf16.gmra.mxu0 %v530
        %v700 = vpop.f32.mrf.mxu0
        %v701 = vadd.f32 0.0, %v700
        %v702 = vpop.f32.mrf.mxu0
        %v703 = vadd.f32 0.0, %v702
        %704 = vmatmul.bf16.gmra.mxu0 %v538
        %v705 = vpop.f32.mrf.mxu0
        %v706 = vadd.f32 0.0, %v705
        %v707 = vpop.f32.mrf.mxu0
        %v708 = vadd.f32 0.0, %v707
        %709 = vmatmul.bf16.gmra.mxu0 %v546
        %v710 = vpop.f32.mrf.mxu0
        %v711 = vadd.f32 0.0, %v710
        %v712 = vpop.f32.mrf.mxu0
        %v713 = vadd.f32 0.0, %v712
        %714 = vmatmul.bf16.gmra.mxu0 %v554
        %v715 = vpop.f32.mrf.mxu0
        %v716 = vadd.f32 0.0, %v715
        %v717 = vpop.f32.mrf.mxu0
        %v718 = vadd.f32 0.0, %v717
        %719 = vdwg.mxu0
        %v754 = vunpack.c.l.b16 %v279
        %v755 = vunpack.c.l.b16 %v280
        %v756 = vunpack.c.l.b16 %v281
        %v757 = vunpack.c.l.b16 %v282
        %v758 = vunpack.c.l.b16 %v283
        %v759 = vunpack.c.l.b16 %v284
        %v760 = vunpack.c.l.b16 %v285
        %v761 = vunpack.c.l.b16 %v286
        %v762 = vunpack.c.l.b16 %v287
        %v763 = vunpack.c.l.b16 %v288
        %v764 = vunpack.c.l.b16 %v289
        %v765 = vunpack.c.l.b16 %v290
        %v766 = vunpack.c.l.b16 %v291
        %v767 = vunpack.c.l.b16 %v292
        %v768 = vunpack.c.l.b16 %v293
        %v769 = vunpack.c.l.b16 %v294
        %v770 = vpack.c.b16 %v755, %v754
        %v771 = vpack.c.b16 %v757, %v756
        %v772 = vpack.c.b16 %v759, %v758
        %v773 = vpack.c.b16 %v761, %v760
        %v774 = vpack.c.b16 %v763, %v762
        %v775 = vpack.c.b16 %v765, %v764
        %v776 = vpack.c.b16 %v767, %v766
        %v777 = vpack.c.b16 %v769, %v768
        %786 = vmatpush.bf16.msra.mxu0 %v777
        %787 = vmatpush.bf16.msra.mxu0 %v776
        %788 = vmatpush.bf16.msra.mxu0 %v775
        %789 = vmatpush.bf16.msra.mxu0 %v774
        %790 = vmatpush.bf16.msra.mxu0 %v773
        %791 = vmatpush.bf16.msra.mxu0 %v772
        %792 = vmatpush.bf16.msra.mxu0 %v771
        %793 = vmatpush.bf16.msra.mxu0 %v770
        %794 = vmatmul.bf16.gmra.mxu0 %v387
        %v795 = vpop.f32.mrf.mxu0
        %v796 = vadd.f32 %v631, %v795
        %v797 = vpop.f32.mrf.mxu0
        %v798 = vadd.f32 %v633, %v797
        %799 = vmatmul.bf16.gmra.mxu0 %v388
        %v800 = vpop.f32.mrf.mxu0
        %v801 = vadd.f32 %v636, %v800
        %v802 = vpop.f32.mrf.mxu0
        %v803 = vadd.f32 %v638, %v802
        %804 = vmatmul.bf16.gmra.mxu0 %v389
        %v805 = vpop.f32.mrf.mxu0
        %v806 = vadd.f32 %v641, %v805
        %v807 = vpop.f32.mrf.mxu0
        %v808 = vadd.f32 %v643, %v807
        %809 = vmatmul.bf16.gmra.mxu0 %v390
        %v810 = vpop.f32.mrf.mxu0
        %v811 = vadd.f32 %v646, %v810
        %v812 = vpop.f32.mrf.mxu0
        %v813 = vadd.f32 %v648, %v812
        %814 = vmatmul.bf16.gmra.mxu0 %v391
        %v815 = vpop.f32.mrf.mxu0
        %v816 = vadd.f32 %v651, %v815
        %v817 = vpop.f32.mrf.mxu0
        %v818 = vadd.f32 %v653, %v817
        %819 = vmatmul.bf16.gmra.mxu0 %v392
        %v820 = vpop.f32.mrf.mxu0
        %v821 = vadd.f32 %v656, %v820
        %v822 = vpop.f32.mrf.mxu0
        %v823 = vadd.f32 %v658, %v822
        %824 = vmatmul.bf16.gmra.mxu0 %v393
        %v825 = vpop.f32.mrf.mxu0
        %v826 = vadd.f32 %v661, %v825
        %v827 = vpop.f32.mrf.mxu0
        %v828 = vadd.f32 %v663, %v827
        %829 = vmatmul.bf16.gmra.mxu0 %v394
        %v830 = vpop.f32.mrf.mxu0
        %v831 = vadd.f32 %v666, %v830
        %v832 = vpop.f32.mrf.mxu0
        %v833 = vadd.f32 %v668, %v832
        %834 = vmatmul.bf16.gmra.mxu0 %v395
        %v835 = vpop.f32.mrf.mxu0
        %v836 = vadd.f32 %v671, %v835
        %v837 = vpop.f32.mrf.mxu0
        %v838 = vadd.f32 %v673, %v837
        %839 = vmatmul.bf16.gmra.mxu0 %v396
        %v840 = vpop.f32.mrf.mxu0
        %v841 = vadd.f32 %v676, %v840
        %v842 = vpop.f32.mrf.mxu0
        %v843 = vadd.f32 %v678, %v842
        %844 = vmatmul.bf16.gmra.mxu0 %v397
        %v845 = vpop.f32.mrf.mxu0
        %v846 = vadd.f32 %v681, %v845
        %v847 = vpop.f32.mrf.mxu0
        %v848 = vadd.f32 %v683, %v847
        %849 = vmatmul.bf16.gmra.mxu0 %v398
        %v850 = vpop.f32.mrf.mxu0
        %v851 = vadd.f32 %v686, %v850
        %v852 = vpop.f32.mrf.mxu0
        %v853 = vadd.f32 %v688, %v852
        %854 = vmatmul.bf16.gmra.mxu0 %v399
        %v855 = vpop.f32.mrf.mxu0
        %v856 = vadd.f32 %v691, %v855
        %v857 = vpop.f32.mrf.mxu0
        %v858 = vadd.f32 %v693, %v857
        %859 = vmatmul.bf16.gmra.mxu0 %v400
        %v860 = vpop.f32.mrf.mxu0
        %v861 = vadd.f32 %v696, %v860
        %v862 = vpop.f32.mrf.mxu0
        %v863 = vadd.f32 %v698, %v862
        %864 = vmatmul.bf16.gmra.mxu0 %v401
        %v865 = vpop.f32.mrf.mxu0
        %v866 = vadd.f32 %v701, %v865
        %v867 = vpop.f32.mrf.mxu0
        %v868 = vadd.f32 %v703, %v867
        %869 = vmatmul.bf16.gmra.mxu0 %v402
        %v870 = vpop.f32.mrf.mxu0
        %v871 = vadd.f32 %v706, %v870
        %v872 = vpop.f32.mrf.mxu0
        %v873 = vadd.f32 %v708, %v872
        %874 = vmatmul.bf16.gmra.mxu0 %v403
        %v875 = vpop.f32.mrf.mxu0
        %v876 = vadd.f32 %v711, %v875
        %v877 = vpop.f32.mrf.mxu0
        %v878 = vadd.f32 %v713, %v877
        %879 = vmatmul.bf16.gmra.mxu0 %v404
        %v880 = vpop.f32.mrf.mxu0
        %v881 = vadd.f32 %v716, %v880
        %v882 = vpop.f32.mrf.mxu0
        %v883 = vadd.f32 %v718, %v882
        %884 = vdwg.mxu0
        %v885 = vld [vmem:[%s237] sm:$0xe]
        %s886 = scalar_lea.vmem %s2, 128
        %v887 = vld [vmem:[%s886] sm:$0xf]
        %v888 = vld [vmem:[%s886 + $0x4] sm:$0xf]
        %v889 = vld [vmem:[%s886 + $0x8] sm:$0xf]
        %v890 = vld [vmem:[%s886 + $0xc] sm:$0xf]
        %v891 = vld [vmem:[%s886 + $0x10] sm:$0xf]
        %v892 = vld [vmem:[%s886 + $0x14] sm:$0xf]
        %v893 = vld [vmem:[%s886 + $0x18] sm:$0xf]
        %v894 = vld [vmem:[%s886 + $0x1c] sm:$0xf]
        %v895 = vld [vmem:[%s886 + $0x20] sm:$0xf]
        %v896 = vld [vmem:[%s886 + $0x24] sm:$0xf]
        %v897 = vld [vmem:[%s886 + $0x28] sm:$0xf]
        %v898 = vld [vmem:[%s886 + $0x2c] sm:$0xf]
        %v899 = vld [vmem:[%s886 + $0x30] sm:$0xf]
        %v900 = vld [vmem:[%s886 + $0x34] sm:$0xf]
        %v901 = vld [vmem:[%s886 + $0x38] sm:$0xf]
        %v902 = vld [vmem:[%s886 + $0x3c] sm:$0xf]
        %v904 = vunpack.c.l.b16 %v885
        %v905 = vpack.c.b16 %v351, %v904
        %vm906 = vcmask 1046528
        %v907 = vrot.slane %v905, 1
        %v908 = vrot.slane %v388, 1
        %v909 = vsel %vm906, %v907, %v908
        %v910 = vrot.slane %v389, 1
        %v911 = vsel %vm906, %v908, %v910
        %v912 = vrot.slane %v390, 1
        %v913 = vsel %vm906, %v910, %v912
        %v914 = vrot.slane %v391, 1
        %v915 = vsel %vm906, %v912, %v914
        %v916 = vrot.slane %v392, 1
        %v917 = vsel %vm906, %v914, %v916
        %v918 = vrot.slane %v393, 1
        %v919 = vsel %vm906, %v916, %v918
        %v920 = vrot.slane %v394, 1
        %v921 = vsel %vm906, %v918, %v920
        %v922 = vrot.slane %v395, 1
        %v923 = vsel %vm906, %v920, %v922
        %v924 = vrot.slane %v396, 1
        %v925 = vsel %vm906, %v922, %v924
        %v926 = vrot.slane %v397, 1
        %v927 = vsel %vm906, %v924, %v926
        %v928 = vrot.slane %v398, 1
        %v929 = vsel %vm906, %v926, %v928
        %v930 = vrot.slane %v399, 1
        %v931 = vsel %vm906, %v928, %v930
        %v932 = vrot.slane %v400, 1
        %v933 = vsel %vm906, %v930, %v932
        %v934 = vrot.slane %v401, 1
        %v935 = vsel %vm906, %v932, %v934
        %v936 = vrot.slane %v402, 1
        %v937 = vsel %vm906, %v934, %v936
        %v938 = vrot.slane %v403, 1
        %v939 = vsel %vm906, %v936, %v938
        %v940 = vrot.slane %v404, 1
        %v941 = vsel %vm906, %v938, %v940
        %v942 = vrot.slane %v405, 1
        %v943 = vsel %vm906, %v940, %v942
        %v978 = vunpack.c.l.b16 %v887
        %v979 = vunpack.c.l.b16 %v888
        %v980 = vunpack.c.l.b16 %v889
        %v981 = vunpack.c.l.b16 %v890
        %v982 = vunpack.c.l.b16 %v891
        %v983 = vunpack.c.l.b16 %v892
        %v984 = vunpack.c.l.b16 %v893
        %v985 = vunpack.c.l.b16 %v894
        %v986 = vunpack.c.l.b16 %v895
        %v987 = vunpack.c.l.b16 %v896
        %v988 = vunpack.c.l.b16 %v897
        %v989 = vunpack.c.l.b16 %v898
        %v990 = vunpack.c.l.b16 %v899
        %v991 = vunpack.c.l.b16 %v900
        %v992 = vunpack.c.l.b16 %v901
        %v993 = vunpack.c.l.b16 %v902
        %v994 = vpack.c.b16 %v979, %v978
        %v995 = vpack.c.b16 %v981, %v980
        %v996 = vpack.c.b16 %v983, %v982
        %v997 = vpack.c.b16 %v985, %v984
        %v998 = vpack.c.b16 %v987, %v986
        %v999 = vpack.c.b16 %v989, %v988
        %v1000 = vpack.c.b16 %v991, %v990
        %v1001 = vpack.c.b16 %v993, %v992
        %1010 = vmatpush.bf16.msra.mxu0 %v1001
        %1011 = vmatpush.bf16.msra.mxu0 %v1000
        %1012 = vmatpush.bf16.msra.mxu0 %v999
        %1013 = vmatpush.bf16.msra.mxu0 %v998
        %1014 = vmatpush.bf16.msra.mxu0 %v997
        %1015 = vmatpush.bf16.msra.mxu0 %v996
        %1016 = vmatpush.bf16.msra.mxu0 %v995
        %1017 = vmatpush.bf16.msra.mxu0 %v994
        %1018 = vmatmul.bf16.gmra.mxu0 %v909
        %v1019 = vpop.f32.mrf.mxu0
        %v1020 = vadd.f32 0.0, %v1019
        %v1021 = vpop.f32.mrf.mxu0
        %v1022 = vadd.f32 0.0, %v1021
        %1023 = vmatmul.bf16.gmra.mxu0 %v911
        %v1024 = vpop.f32.mrf.mxu0
        %v1025 = vadd.f32 0.0, %v1024
        %v1026 = vpop.f32.mrf.mxu0
        %v1027 = vadd.f32 0.0, %v1026
        %1028 = vmatmul.bf16.gmra.mxu0 %v913
        %v1029 = vpop.f32.mrf.mxu0
        %v1030 = vadd.f32 0.0, %v1029
        %v1031 = vpop.f32.mrf.mxu0
        %v1032 = vadd.f32 0.0, %v1031
        %1033 = vmatmul.bf16.gmra.mxu0 %v915
        %v1034 = vpop.f32.mrf.mxu0
        %v1035 = vadd.f32 0.0, %v1034
        %v1036 = vpop.f32.mrf.mxu0
        %v1037 = vadd.f32 0.0, %v1036
        %1038 = vmatmul.bf16.gmra.mxu0 %v917
        %v1039 = vpop.f32.mrf.mxu0
        %v1040 = vadd.f32 0.0, %v1039
        %v1041 = vpop.f32.mrf.mxu0
        %v1042 = vadd.f32 0.0, %v1041
        %1043 = vmatmul.bf16.gmra.mxu0 %v919
        %v1044 = vpop.f32.mrf.mxu0
        %v1045 = vadd.f32 0.0, %v1044
        %v1046 = vpop.f32.mrf.mxu0
        %v1047 = vadd.f32 0.0, %v1046
        %1048 = vmatmul.bf16.gmra.mxu0 %v921
        %v1049 = vpop.f32.mrf.mxu0
        %v1050 = vadd.f32 0.0, %v1049
        %v1051 = vpop.f32.mrf.mxu0
        %v1052 = vadd.f32 0.0, %v1051
        %1053 = vmatmul.bf16.gmra.mxu0 %v923
        %v1054 = vpop.f32.mrf.mxu0
        %v1055 = vadd.f32 0.0, %v1054
        %v1056 = vpop.f32.mrf.mxu0
        %v1057 = vadd.f32 0.0, %v1056
        %1058 = vmatmul.bf16.gmra.mxu0 %v925
        %v1059 = vpop.f32.mrf.mxu0
        %v1060 = vadd.f32 0.0, %v1059
        %v1061 = vpop.f32.mrf.mxu0
        %v1062 = vadd.f32 0.0, %v1061
        %1063 = vmatmul.bf16.gmra.mxu0 %v927
        %v1064 = vpop.f32.mrf.mxu0
        %v1065 = vadd.f32 0.0, %v1064
        %v1066 = vpop.f32.mrf.mxu0
        %v1067 = vadd.f32 0.0, %v1066
        %1068 = vmatmul.bf16.gmra.mxu0 %v929
        %v1069 = vpop.f32.mrf.mxu0
        %v1070 = vadd.f32 0.0, %v1069
        %v1071 = vpop.f32.mrf.mxu0
        %v1072 = vadd.f32 0.0, %v1071
        %1073 = vmatmul.bf16.gmra.mxu0 %v931
        %v1074 = vpop.f32.mrf.mxu0
        %v1075 = vadd.f32 0.0, %v1074
        %v1076 = vpop.f32.mrf.mxu0
        %v1077 = vadd.f32 0.0, %v1076
        %1078 = vmatmul.bf16.gmra.mxu0 %v933
        %v1079 = vpop.f32.mrf.mxu0
        %v1080 = vadd.f32 0.0, %v1079
        %v1081 = vpop.f32.mrf.mxu0
        %v1082 = vadd.f32 0.0, %v1081
        %1083 = vmatmul.bf16.gmra.mxu0 %v935
        %v1084 = vpop.f32.mrf.mxu0
        %v1085 = vadd.f32 0.0, %v1084
        %v1086 = vpop.f32.mrf.mxu0
        %v1087 = vadd.f32 0.0, %v1086
        %1088 = vmatmul.bf16.gmra.mxu0 %v937
        %v1089 = vpop.f32.mrf.mxu0
        %v1090 = vadd.f32 0.0, %v1089
        %v1091 = vpop.f32.mrf.mxu0
        %v1092 = vadd.f32 0.0, %v1091
        %1093 = vmatmul.bf16.gmra.mxu0 %v939
        %v1094 = vpop.f32.mrf.mxu0
        %v1095 = vadd.f32 0.0, %v1094
        %v1096 = vpop.f32.mrf.mxu0
        %v1097 = vadd.f32 0.0, %v1096
        %1098 = vmatmul.bf16.gmra.mxu0 %v941
        %v1099 = vpop.f32.mrf.mxu0
        %v1100 = vadd.f32 0.0, %v1099
        %v1101 = vpop.f32.mrf.mxu0
        %v1102 = vadd.f32 0.0, %v1101
        %1103 = vmatmul.bf16.gmra.mxu0 %v943
        %v1104 = vpop.f32.mrf.mxu0
        %v1105 = vadd.f32 0.0, %v1104
        %v1106 = vpop.f32.mrf.mxu0
        %v1107 = vadd.f32 0.0, %v1106
        %1108 = vdwg.mxu0
        %v1109 = vadd.f32 %v796, %v1020
        %v1110 = vadd.f32 %v798, %v1022
        %v1111 = vadd.f32 %v801, %v1025
        %v1112 = vadd.f32 %v803, %v1027
        %v1113 = vadd.f32 %v806, %v1030
        %v1114 = vadd.f32 %v808, %v1032
        %v1115 = vadd.f32 %v811, %v1035
        %v1116 = vadd.f32 %v813, %v1037
        %v1117 = vadd.f32 %v816, %v1040
        %v1118 = vadd.f32 %v818, %v1042
        %v1119 = vadd.f32 %v821, %v1045
        %v1120 = vadd.f32 %v823, %v1047
        %v1121 = vadd.f32 %v826, %v1050
        %v1122 = vadd.f32 %v828, %v1052
        %v1123 = vadd.f32 %v831, %v1055
        %v1124 = vadd.f32 %v833, %v1057
        %v1125 = vadd.f32 %v836, %v1060
        %v1126 = vadd.f32 %v838, %v1062
        %v1127 = vadd.f32 %v841, %v1065
        %v1128 = vadd.f32 %v843, %v1067
        %v1129 = vadd.f32 %v846, %v1070
        %v1130 = vadd.f32 %v848, %v1072
        %v1131 = vadd.f32 %v851, %v1075
        %v1132 = vadd.f32 %v853, %v1077
        %v1133 = vadd.f32 %v856, %v1080
        %v1134 = vadd.f32 %v858, %v1082
        %v1135 = vadd.f32 %v861, %v1085
        %v1136 = vadd.f32 %v863, %v1087
        %v1137 = vadd.f32 %v866, %v1090
        %v1138 = vadd.f32 %v868, %v1092
        %v1139 = vadd.f32 %v871, %v1095
        %v1140 = vadd.f32 %v873, %v1097
        %v1141 = vadd.f32 %v876, %v1100
        %v1142 = vadd.f32 %v878, %v1102
        %v1143 = vadd.f32 %v881, %v1105
        %v1144 = vadd.f32 %v883, %v1107
        %v1145 = vld [vmem:[%s237 + $0x8] sm:$0xe]
        %v1146 = vld [vmem:[%s237 + $0xc] sm:$0xf]
        %v1147 = vld [vmem:[%s237 + $0x10] sm:$0xf]
        %v1148 = vld [vmem:[%s237 + $0x14] sm:$0xf]
        %v1149 = vld [vmem:[%s237 + $0x18] sm:$0xf]
        %v1150 = vld [vmem:[%s237 + $0x1c] sm:$0xf]
        %v1151 = vld [vmem:[%s237 + $0x20] sm:$0xf]
        %v1152 = vld [vmem:[%s237 + $0x24] sm:$0xf]
        %v1153 = vld [vmem:[%s237 + $0x28] sm:$0xf]
        %v1154 = vld [vmem:[%s237 + $0x2c] sm:$0xf]
        %v1155 = vld [vmem:[%s237 + $0x30] sm:$0xf]
        %v1156 = vld [vmem:[%s237 + $0x34] sm:$0xf]
        %v1157 = vld [vmem:[%s237 + $0x38] sm:$0xf]
        %v1158 = vld [vmem:[%s237 + $0x3c] sm:$0xf]
        %v1159 = vld [vmem:[%s237 + $0x40] sm:$0xf]
        %v1160 = vld [vmem:[%s237 + $0x44] sm:$0xf]
        %v1161 = vld [vmem:[%s237 + $0x48] sm:$0xf]
        %v1162 = vld [vmem:[%s237 + $0x4c] sm:$0xf]
        %v1163 = vld [vmem:[%s237 + $0x50] sm:$0xf]
        %v1164 = vld [vmem:[%s237 + $0x54] sm:$0xf]
        %v1165 = vld [vmem:[%s237 + $0x58] sm:$0xf]
        %v1166 = vld [vmem:[%s237 + $0x5c] sm:$0xf]
        %v1167 = vld [vmem:[%s237 + $0x60] sm:$0xf]
        %v1168 = vld [vmem:[%s237 + $0x64] sm:$0xf]
        %v1169 = vld [vmem:[%s237 + $0x68] sm:$0xf]
        %v1170 = vld [vmem:[%s237 + $0x6c] sm:$0xf]
        %v1171 = vld [vmem:[%s237 + $0x70] sm:$0xf]
        %v1172 = vld [vmem:[%s237 + $0x74] sm:$0xf]
        %v1173 = vld [vmem:[%s237 + $0x78] sm:$0xf]
        %v1174 = vld [vmem:[%s237 + $0x7c] sm:$0xf]
        %v1175 = vld [vmem:[%s237 + $0x80] sm:$0xf]
        %v1176 = vld [vmem:[%s237 + $0x84] sm:$0xf]
        %v1177 = vld [vmem:[%s237 + $0x88] sm:$0xf]
        %v1178 = vld [vmem:[%s237 + $0x8c] sm:$0xf]
        %v1179 = vld [vmem:[%s237 + $0x90] sm:$0xf]
        %v1180 = vld [vmem:[%s237 + $0x94] sm:$0xf]
        %v1181 = vld [vmem:[%s237 + $0x98] sm:$0x1]
        %s1182 = scalar_lea.vmem %s2, 192
        %v1183 = vld [vmem:[%s1182] sm:$0xf]
        %v1184 = vld [vmem:[%s1182 + $0x4] sm:$0xf]
        %v1185 = vld [vmem:[%s1182 + $0x8] sm:$0xf]
        %v1186 = vld [vmem:[%s1182 + $0xc] sm:$0xf]
        %v1187 = vld [vmem:[%s1182 + $0x10] sm:$0xf]
        %v1188 = vld [vmem:[%s1182 + $0x14] sm:$0xf]
        %v1189 = vld [vmem:[%s1182 + $0x18] sm:$0xf]
        %v1190 = vld [vmem:[%s1182 + $0x1c] sm:$0xf]
        %v1191 = vld [vmem:[%s1182 + $0x20] sm:$0xf]
        %v1192 = vld [vmem:[%s1182 + $0x24] sm:$0xf]
        %v1193 = vld [vmem:[%s1182 + $0x28] sm:$0xf]
        %v1194 = vld [vmem:[%s1182 + $0x2c] sm:$0xf]
        %v1195 = vld [vmem:[%s1182 + $0x30] sm:$0xf]
        %v1196 = vld [vmem:[%s1182 + $0x34] sm:$0xf]
        %v1197 = vld [vmem:[%s1182 + $0x38] sm:$0xf]
        %v1198 = vld [vmem:[%s1182 + $0x3c] sm:$0xf]
        %v1236 = vunpack.c.l.b16 %v1145
        %v1237 = vunpack.c.l.b16 %v1146
        %v1238 = vunpack.c.l.b16 %v1147
        %v1239 = vunpack.c.l.b16 %v1148
        %v1240 = vunpack.c.l.b16 %v1149
        %v1241 = vunpack.c.l.b16 %v1150
        %v1242 = vunpack.c.l.b16 %v1151
        %v1243 = vunpack.c.l.b16 %v1152
        %v1244 = vunpack.c.l.b16 %v1153
        %v1245 = vunpack.c.l.b16 %v1154
        %v1246 = vunpack.c.l.b16 %v1155
        %v1247 = vunpack.c.l.b16 %v1156
        %v1248 = vunpack.c.l.b16 %v1157
        %v1249 = vunpack.c.l.b16 %v1158
        %v1250 = vunpack.c.l.b16 %v1159
        %v1251 = vunpack.c.l.b16 %v1160
        %v1252 = vunpack.c.l.b16 %v1161
        %v1253 = vunpack.c.l.b16 %v1162
        %v1254 = vunpack.c.l.b16 %v1163
        %v1255 = vunpack.c.l.b16 %v1164
        %v1256 = vunpack.c.l.b16 %v1165
        %v1257 = vunpack.c.l.b16 %v1166
        %v1258 = vunpack.c.l.b16 %v1167
        %v1259 = vunpack.c.l.b16 %v1168
        %v1260 = vunpack.c.l.b16 %v1169
        %v1261 = vunpack.c.l.b16 %v1170
        %v1262 = vunpack.c.l.b16 %v1171
        %v1263 = vunpack.c.l.b16 %v1172
        %v1264 = vunpack.c.l.b16 %v1173
        %v1265 = vunpack.c.l.b16 %v1174
        %v1266 = vunpack.c.l.b16 %v1175
        %v1267 = vunpack.c.l.b16 %v1176
        %v1268 = vunpack.c.l.b16 %v1177
        %v1269 = vunpack.c.l.b16 %v1178
        %v1270 = vunpack.c.l.b16 %v1179
        %v1271 = vunpack.c.l.b16 %v1180
        %v1272 = vunpack.c.l.b16 %v1181
        %v1273 = vpack.c.b16 %v1237, %v1236
        %v1274 = vpack.c.b16 %v1239, %v1238
        %v1275 = vpack.c.b16 %v1241, %v1240
        %v1276 = vpack.c.b16 %v1243, %v1242
        %v1277 = vpack.c.b16 %v1245, %v1244
        %v1278 = vpack.c.b16 %v1247, %v1246
        %v1279 = vpack.c.b16 %v1249, %v1248
        %v1280 = vpack.c.b16 %v1251, %v1250
        %v1281 = vpack.c.b16 %v1253, %v1252
        %v1282 = vpack.c.b16 %v1255, %v1254
        %v1283 = vpack.c.b16 %v1257, %v1256
        %v1284 = vpack.c.b16 %v1259, %v1258
        %v1285 = vpack.c.b16 %v1261, %v1260
        %v1286 = vpack.c.b16 %v1263, %v1262
        %v1287 = vpack.c.b16 %v1265, %v1264
        %v1288 = vpack.c.b16 %v1267, %v1266
        %v1289 = vpack.c.b16 %v1269, %v1268
        %v1290 = vpack.c.b16 %v1271, %v1270
        %v1291 = vpack.c.b16 %v1272, %v1272
        %v1292 = vrot.slane %v1273, 1
        %v1293 = vrot.slane %v1274, 1
        %v1294 = vsel %vm906, %v1292, %v1293
        %v1295 = vrot.slane %v1275, 1
        %v1296 = vsel %vm906, %v1293, %v1295
        %v1297 = vrot.slane %v1276, 1
        %v1298 = vsel %vm906, %v1295, %v1297
        %v1299 = vrot.slane %v1277, 1
        %v1300 = vsel %vm906, %v1297, %v1299
        %v1301 = vrot.slane %v1278, 1
        %v1302 = vsel %vm906, %v1299, %v1301
        %v1303 = vrot.slane %v1279, 1
        %v1304 = vsel %vm906, %v1301, %v1303
        %v1305 = vrot.slane %v1280, 1
        %v1306 = vsel %vm906, %v1303, %v1305
        %v1307 = vrot.slane %v1281, 1
        %v1308 = vsel %vm906, %v1305, %v1307
        %v1309 = vrot.slane %v1282, 1
        %v1310 = vsel %vm906, %v1307, %v1309
        %v1311 = vrot.slane %v1283, 1
        %v1312 = vsel %vm906, %v1309, %v1311
        %v1313 = vrot.slane %v1284, 1
        %v1314 = vsel %vm906, %v1311, %v1313
        %v1315 = vrot.slane %v1285, 1
        %v1316 = vsel %vm906, %v1313, %v1315
        %v1317 = vrot.slane %v1286, 1
        %v1318 = vsel %vm906, %v1315, %v1317
        %v1319 = vrot.slane %v1287, 1
        %v1320 = vsel %vm906, %v1317, %v1319
        %v1321 = vrot.slane %v1288, 1
        %v1322 = vsel %vm906, %v1319, %v1321
        %v1323 = vrot.slane %v1289, 1
        %v1324 = vsel %vm906, %v1321, %v1323
        %v1325 = vrot.slane %v1290, 1
        %v1326 = vsel %vm906, %v1323, %v1325
        %v1327 = vrot.slane %v1291, 1
        %v1328 = vsel %vm906, %v1325, %v1327
        %v1363 = vunpack.c.l.b16 %v1183
        %v1364 = vunpack.c.l.b16 %v1184
        %v1365 = vunpack.c.l.b16 %v1185
        %v1366 = vunpack.c.l.b16 %v1186
        %v1367 = vunpack.c.l.b16 %v1187
        %v1368 = vunpack.c.l.b16 %v1188
        %v1369 = vunpack.c.l.b16 %v1189
        %v1370 = vunpack.c.l.b16 %v1190
        %v1371 = vunpack.c.l.b16 %v1191
        %v1372 = vunpack.c.l.b16 %v1192
        %v1373 = vunpack.c.l.b16 %v1193
        %v1374 = vunpack.c.l.b16 %v1194
        %v1375 = vunpack.c.l.b16 %v1195
        %v1376 = vunpack.c.l.b16 %v1196
        %v1377 = vunpack.c.l.b16 %v1197
        %v1378 = vunpack.c.l.b16 %v1198
        %v1379 = vpack.c.b16 %v1364, %v1363
        %v1380 = vpack.c.b16 %v1366, %v1365
        %v1381 = vpack.c.b16 %v1368, %v1367
        %v1382 = vpack.c.b16 %v1370, %v1369
        %v1383 = vpack.c.b16 %v1372, %v1371
        %v1384 = vpack.c.b16 %v1374, %v1373
        %v1385 = vpack.c.b16 %v1376, %v1375
        %v1386 = vpack.c.b16 %v1378, %v1377
        %1395 = vmatpush.bf16.msra.mxu0 %v1386
        %1396 = vmatpush.bf16.msra.mxu0 %v1385
        %1397 = vmatpush.bf16.msra.mxu0 %v1384
        %1398 = vmatpush.bf16.msra.mxu0 %v1383
        %1399 = vmatpush.bf16.msra.mxu0 %v1382
        %1400 = vmatpush.bf16.msra.mxu0 %v1381
        %1401 = vmatpush.bf16.msra.mxu0 %v1380
        %1402 = vmatpush.bf16.msra.mxu0 %v1379
        %1403 = vmatmul.bf16.gmra.mxu0 %v1294
        %v1404 = vpop.f32.mrf.mxu0
        %v1405 = vadd.f32 0.0, %v1404
        %v1406 = vpop.f32.mrf.mxu0
        %v1407 = vadd.f32 0.0, %v1406
        %1408 = vmatmul.bf16.gmra.mxu0 %v1296
        %v1409 = vpop.f32.mrf.mxu0
        %v1410 = vadd.f32 0.0, %v1409
        %v1411 = vpop.f32.mrf.mxu0
        %v1412 = vadd.f32 0.0, %v1411
        %1413 = vmatmul.bf16.gmra.mxu0 %v1298
        %v1414 = vpop.f32.mrf.mxu0
        %v1415 = vadd.f32 0.0, %v1414
        %v1416 = vpop.f32.mrf.mxu0
        %v1417 = vadd.f32 0.0, %v1416
        %1418 = vmatmul.bf16.gmra.mxu0 %v1300
        %v1419 = vpop.f32.mrf.mxu0
        %v1420 = vadd.f32 0.0, %v1419
        %v1421 = vpop.f32.mrf.mxu0
        %v1422 = vadd.f32 0.0, %v1421
        %1423 = vmatmul.bf16.gmra.mxu0 %v1302
        %v1424 = vpop.f32.mrf.mxu0
        %v1425 = vadd.f32 0.0, %v1424
        %v1426 = vpop.f32.mrf.mxu0
        %v1427 = vadd.f32 0.0, %v1426
        %1428 = vmatmul.bf16.gmra.mxu0 %v1304
        %v1429 = vpop.f32.mrf.mxu0
        %v1430 = vadd.f32 0.0, %v1429
        %v1431 = vpop.f32.mrf.mxu0
        %v1432 = vadd.f32 0.0, %v1431
        %1433 = vmatmul.bf16.gmra.mxu0 %v1306
        %v1434 = vpop.f32.mrf.mxu0
        %v1435 = vadd.f32 0.0, %v1434
        %v1436 = vpop.f32.mrf.mxu0
        %v1437 = vadd.f32 0.0, %v1436
        %1438 = vmatmul.bf16.gmra.mxu0 %v1308
        %v1439 = vpop.f32.mrf.mxu0
        %v1440 = vadd.f32 0.0, %v1439
        %v1441 = vpop.f32.mrf.mxu0
        %v1442 = vadd.f32 0.0, %v1441
        %1443 = vmatmul.bf16.gmra.mxu0 %v1310
        %v1444 = vpop.f32.mrf.mxu0
        %v1445 = vadd.f32 0.0, %v1444
        %v1446 = vpop.f32.mrf.mxu0
        %v1447 = vadd.f32 0.0, %v1446
        %1448 = vmatmul.bf16.gmra.mxu0 %v1312
        %v1449 = vpop.f32.mrf.mxu0
        %v1450 = vadd.f32 0.0, %v1449
        %v1451 = vpop.f32.mrf.mxu0
        %v1452 = vadd.f32 0.0, %v1451
        %1453 = vmatmul.bf16.gmra.mxu0 %v1314
        %v1454 = vpop.f32.mrf.mxu0
        %v1455 = vadd.f32 0.0, %v1454
        %v1456 = vpop.f32.mrf.mxu0
        %v1457 = vadd.f32 0.0, %v1456
        %1458 = vmatmul.bf16.gmra.mxu0 %v1316
        %v1459 = vpop.f32.mrf.mxu0
        %v1460 = vadd.f32 0.0, %v1459
        %v1461 = vpop.f32.mrf.mxu0
        %v1462 = vadd.f32 0.0, %v1461
        %1463 = vmatmul.bf16.gmra.mxu0 %v1318
        %v1464 = vpop.f32.mrf.mxu0
        %v1465 = vadd.f32 0.0, %v1464
        %v1466 = vpop.f32.mrf.mxu0
        %v1467 = vadd.f32 0.0, %v1466
        %1468 = vmatmul.bf16.gmra.mxu0 %v1320
        %v1469 = vpop.f32.mrf.mxu0
        %v1470 = vadd.f32 0.0, %v1469
        %v1471 = vpop.f32.mrf.mxu0
        %v1472 = vadd.f32 0.0, %v1471
        %1473 = vmatmul.bf16.gmra.mxu0 %v1322
        %v1474 = vpop.f32.mrf.mxu0
        %v1475 = vadd.f32 0.0, %v1474
        %v1476 = vpop.f32.mrf.mxu0
        %v1477 = vadd.f32 0.0, %v1476
        %1478 = vmatmul.bf16.gmra.mxu0 %v1324
        %v1479 = vpop.f32.mrf.mxu0
        %v1480 = vadd.f32 0.0, %v1479
        %v1481 = vpop.f32.mrf.mxu0
        %v1482 = vadd.f32 0.0, %v1481
        %1483 = vmatmul.bf16.gmra.mxu0 %v1326
        %v1484 = vpop.f32.mrf.mxu0
        %v1485 = vadd.f32 0.0, %v1484
        %v1486 = vpop.f32.mrf.mxu0
        %v1487 = vadd.f32 0.0, %v1486
        %1488 = vmatmul.bf16.gmra.mxu0 %v1328
        %v1489 = vpop.f32.mrf.mxu0
        %v1490 = vadd.f32 0.0, %v1489
        %v1491 = vpop.f32.mrf.mxu0
        %v1492 = vadd.f32 0.0, %v1491
        %1493 = vdwg.mxu0
        %v1494 = vadd.f32 %v1109, %v1405
        %v1495 = vadd.f32 %v1110, %v1407
        %v1496 = vadd.f32 %v1111, %v1410
        %v1497 = vadd.f32 %v1112, %v1412
        %v1498 = vadd.f32 %v1113, %v1415
        %v1499 = vadd.f32 %v1114, %v1417
        %v1500 = vadd.f32 %v1115, %v1420
        %v1501 = vadd.f32 %v1116, %v1422
        %v1502 = vadd.f32 %v1117, %v1425
        %v1503 = vadd.f32 %v1118, %v1427
        %v1504 = vadd.f32 %v1119, %v1430
        %v1505 = vadd.f32 %v1120, %v1432
        %v1506 = vadd.f32 %v1121, %v1435
        %v1507 = vadd.f32 %v1122, %v1437
        %v1508 = vadd.f32 %v1123, %v1440
        %v1509 = vadd.f32 %v1124, %v1442
        %v1510 = vadd.f32 %v1125, %v1445
        %v1511 = vadd.f32 %v1126, %v1447
        %v1512 = vadd.f32 %v1127, %v1450
        %v1513 = vadd.f32 %v1128, %v1452
        %v1514 = vadd.f32 %v1129, %v1455
        %v1515 = vadd.f32 %v1130, %v1457
        %v1516 = vadd.f32 %v1131, %v1460
        %v1517 = vadd.f32 %v1132, %v1462
        %v1518 = vadd.f32 %v1133, %v1465
        %v1519 = vadd.f32 %v1134, %v1467
        %v1520 = vadd.f32 %v1135, %v1470
        %v1521 = vadd.f32 %v1136, %v1472
        %v1522 = vadd.f32 %v1137, %v1475
        %v1523 = vadd.f32 %v1138, %v1477
        %v1524 = vadd.f32 %v1139, %v1480
        %v1525 = vadd.f32 %v1140, %v1482
        %v1526 = vadd.f32 %v1141, %v1485
        %v1527 = vadd.f32 %v1142, %v1487
        %v1528 = vadd.f32 %v1143, %v1490
        %v1529 = vadd.f32 %v1144, %v1492
        %v1530 = vld [vmem:[%s237 + $0x98] sm:$0x3]
        %s1531 = scalar_lea.vmem %s2, 256
        %v1532 = vld [vmem:[%s1531] sm:$0xf]
        %v1533 = vld [vmem:[%s1531 + $0x4] sm:$0xf]
        %v1534 = vld [vmem:[%s1531 + $0x8] sm:$0xf]
        %v1535 = vld [vmem:[%s1531 + $0xc] sm:$0xf]
        %v1536 = vld [vmem:[%s1531 + $0x10] sm:$0xf]
        %v1537 = vld [vmem:[%s1531 + $0x14] sm:$0xf]
        %v1538 = vld [vmem:[%s1531 + $0x18] sm:$0xf]
        %v1539 = vld [vmem:[%s1531 + $0x1c] sm:$0xf]
        %v1540 = vld [vmem:[%s1531 + $0x20] sm:$0xf]
        %v1541 = vld [vmem:[%s1531 + $0x24] sm:$0xf]
        %v1542 = vld [vmem:[%s1531 + $0x28] sm:$0xf]
        %v1543 = vld [vmem:[%s1531 + $0x2c] sm:$0xf]
        %v1544 = vld [vmem:[%s1531 + $0x30] sm:$0xf]
        %v1545 = vld [vmem:[%s1531 + $0x34] sm:$0xf]
        %v1546 = vld [vmem:[%s1531 + $0x38] sm:$0xf]
        %v1547 = vld [vmem:[%s1531 + $0x3c] sm:$0xf]
        %v1549 = vunpack.c.l.b16 %v1530
        %v1550 = vpack.c.b16 %v1549, %v1549
        %vm1551 = vsmask.f32 6400
        %v1553 = vshrl.u32 %v1273, 16
        %v1555 = vrot.slane %v1553, 1
        %v1556 = vshll.u32 %v1273, 16
        %v1558 = vrot.slane %v1556, 2
        %v1559 = vor.u32 %v1555, %v1558
        %v1561 = vshrl.u32 %v1274, 16
        %v1563 = vrot.slane %v1561, 1
        %v1564 = vshll.u32 %v1274, 16
        %v1566 = vrot.slane %v1564, 2
        %v1567 = vor.u32 %v1563, %v1566
        %v1568 = vsel %vm1551, %v1559, %v1567
        %v1570 = vshrl.u32 %v1275, 16
        %v1572 = vrot.slane %v1570, 1
        %v1573 = vshll.u32 %v1275, 16
        %v1575 = vrot.slane %v1573, 2
        %v1576 = vor.u32 %v1572, %v1575
        %v1577 = vsel %vm1551, %v1567, %v1576
        %v1579 = vshrl.u32 %v1276, 16
        %v1581 = vrot.slane %v1579, 1
        %v1582 = vshll.u32 %v1276, 16
        %v1584 = vrot.slane %v1582, 2
        %v1585 = vor.u32 %v1581, %v1584
        %v1586 = vsel %vm1551, %v1576, %v1585
        %v1588 = vshrl.u32 %v1277, 16
        %v1590 = vrot.slane %v1588, 1
        %v1591 = vshll.u32 %v1277, 16
        %v1593 = vrot.slane %v1591, 2
        %v1594 = vor.u32 %v1590, %v1593
        %v1595 = vsel %vm1551, %v1585, %v1594
        %v1597 = vshrl.u32 %v1278, 16
        %v1599 = vrot.slane %v1597, 1
        %v1600 = vshll.u32 %v1278, 16
        %v1602 = vrot.slane %v1600, 2
        %v1603 = vor.u32 %v1599, %v1602
        %v1604 = vsel %vm1551, %v1594, %v1603
        %v1606 = vshrl.u32 %v1279, 16
        %v1608 = vrot.slane %v1606, 1
        %v1609 = vshll.u32 %v1279, 16
        %v1611 = vrot.slane %v1609, 2
        %v1612 = vor.u32 %v1608, %v1611
        %v1613 = vsel %vm1551, %v1603, %v1612
        %v1615 = vshrl.u32 %v1280, 16
        %v1617 = vrot.slane %v1615, 1
        %v1618 = vshll.u32 %v1280, 16
        %v1620 = vrot.slane %v1618, 2
        %v1621 = vor.u32 %v1617, %v1620
        %v1622 = vsel %vm1551, %v1612, %v1621
        %v1624 = vshrl.u32 %v1281, 16
        %v1626 = vrot.slane %v1624, 1
        %v1627 = vshll.u32 %v1281, 16
        %v1629 = vrot.slane %v1627, 2
        %v1630 = vor.u32 %v1626, %v1629
        %v1631 = vsel %vm1551, %v1621, %v1630
        %v1633 = vshrl.u32 %v1282, 16
        %v1635 = vrot.slane %v1633, 1
        %v1636 = vshll.u32 %v1282, 16
        %v1638 = vrot.slane %v1636, 2
        %v1639 = vor.u32 %v1635, %v1638
        %v1640 = vsel %vm1551, %v1630, %v1639
        %v1642 = vshrl.u32 %v1283, 16
        %v1644 = vrot.slane %v1642, 1
        %v1645 = vshll.u32 %v1283, 16
        %v1647 = vrot.slane %v1645, 2
        %v1648 = vor.u32 %v1644, %v1647
        %v1649 = vsel %vm1551, %v1639, %v1648
        %v1651 = vshrl.u32 %v1284, 16
        %v1653 = vrot.slane %v1651, 1
        %v1654 = vshll.u32 %v1284, 16
        %v1656 = vrot.slane %v1654, 2
        %v1657 = vor.u32 %v1653, %v1656
        %v1658 = vsel %vm1551, %v1648, %v1657
        %v1660 = vshrl.u32 %v1285, 16
        %v1662 = vrot.slane %v1660, 1
        %v1663 = vshll.u32 %v1285, 16
        %v1665 = vrot.slane %v1663, 2
        %v1666 = vor.u32 %v1662, %v1665
        %v1667 = vsel %vm1551, %v1657, %v1666
        %v1669 = vshrl.u32 %v1286, 16
        %v1671 = vrot.slane %v1669, 1
        %v1672 = vshll.u32 %v1286, 16
        %v1674 = vrot.slane %v1672, 2
        %v1675 = vor.u32 %v1671, %v1674
        %v1676 = vsel %vm1551, %v1666, %v1675
        %v1678 = vshrl.u32 %v1287, 16
        %v1680 = vrot.slane %v1678, 1
        %v1681 = vshll.u32 %v1287, 16
        %v1683 = vrot.slane %v1681, 2
        %v1684 = vor.u32 %v1680, %v1683
        %v1685 = vsel %vm1551, %v1675, %v1684
        %v1687 = vshrl.u32 %v1288, 16
        %v1689 = vrot.slane %v1687, 1
        %v1690 = vshll.u32 %v1288, 16
        %v1692 = vrot.slane %v1690, 2
        %v1693 = vor.u32 %v1689, %v1692
        %v1694 = vsel %vm1551, %v1684, %v1693
        %v1696 = vshrl.u32 %v1289, 16
        %v1698 = vrot.slane %v1696, 1
        %v1699 = vshll.u32 %v1289, 16
        %v1701 = vrot.slane %v1699, 2
        %v1702 = vor.u32 %v1698, %v1701
        %v1703 = vsel %vm1551, %v1693, %v1702
        %v1705 = vshrl.u32 %v1290, 16
        %v1707 = vrot.slane %v1705, 1
        %v1708 = vshll.u32 %v1290, 16
        %v1710 = vrot.slane %v1708, 2
        %v1711 = vor.u32 %v1707, %v1710
        %v1712 = vsel %vm1551, %v1702, %v1711
        %v1714 = vshrl.u32 %v1550, 16
        %v1716 = vrot.slane %v1714, 1
        %v1717 = vshll.u32 %v1550, 16
        %v1719 = vrot.slane %v1717, 2
        %v1720 = vor.u32 %v1716, %v1719
        %v1721 = vsel %vm1551, %v1711, %v1720
        %v1756 = vunpack.c.l.b16 %v1532
        %v1757 = vunpack.c.l.b16 %v1533
        %v1758 = vunpack.c.l.b16 %v1534
        %v1759 = vunpack.c.l.b16 %v1535
        %v1760 = vunpack.c.l.b16 %v1536
        %v1761 = vunpack.c.l.b16 %v1537
        %v1762 = vunpack.c.l.b16 %v1538
        %v1763 = vunpack.c.l.b16 %v1539
        %v1764 = vunpack.c.l.b16 %v1540
        %v1765 = vunpack.c.l.b16 %v1541
        %v1766 = vunpack.c.l.b16 %v1542
        %v1767 = vunpack.c.l.b16 %v1543
        %v1768 = vunpack.c.l.b16 %v1544
        %v1769 = vunpack.c.l.b16 %v1545
        %v1770 = vunpack.c.l.b16 %v1546
        %v1771 = vunpack.c.l.b16 %v1547
        %v1772 = vpack.c.b16 %v1757, %v1756
        %v1773 = vpack.c.b16 %v1759, %v1758
        %v1774 = vpack.c.b16 %v1761, %v1760
        %v1775 = vpack.c.b16 %v1763, %v1762
        %v1776 = vpack.c.b16 %v1765, %v1764
        %v1777 = vpack.c.b16 %v1767, %v1766
        %v1778 = vpack.c.b16 %v1769, %v1768
        %v1779 = vpack.c.b16 %v1771, %v1770
        %1788 = vmatpush.bf16.msra.mxu0 %v1779
        %1789 = vmatpush.bf16.msra.mxu0 %v1778
        %1790 = vmatpush.bf16.msra.mxu0 %v1777
        %1791 = vmatpush.bf16.msra.mxu0 %v1776
        %1792 = vmatpush.bf16.msra.mxu0 %v1775
        %1793 = vmatpush.bf16.msra.mxu0 %v1774
        %1794 = vmatpush.bf16.msra.mxu0 %v1773
        %1795 = vmatpush.bf16.msra.mxu0 %v1772
        %1796 = vmatmul.bf16.gmra.mxu0 %v1568
        %v1797 = vpop.f32.mrf.mxu0
        %v1798 = vadd.f32 0.0, %v1797
        %v1799 = vpop.f32.mrf.mxu0
        %v1800 = vadd.f32 0.0, %v1799
        %1801 = vmatmul.bf16.gmra.mxu0 %v1577
        %v1802 = vpop.f32.mrf.mxu0
        %v1803 = vadd.f32 0.0, %v1802
        %v1804 = vpop.f32.mrf.mxu0
        %v1805 = vadd.f32 0.0, %v1804
        %1806 = vmatmul.bf16.gmra.mxu0 %v1586
        %v1807 = vpop.f32.mrf.mxu0
        %v1808 = vadd.f32 0.0, %v1807
        %v1809 = vpop.f32.mrf.mxu0
        %v1810 = vadd.f32 0.0, %v1809
        %1811 = vmatmul.bf16.gmra.mxu0 %v1595
        %v1812 = vpop.f32.mrf.mxu0
        %v1813 = vadd.f32 0.0, %v1812
        %v1814 = vpop.f32.mrf.mxu0
        %v1815 = vadd.f32 0.0, %v1814
        %1816 = vmatmul.bf16.gmra.mxu0 %v1604
        %v1817 = vpop.f32.mrf.mxu0
        %v1818 = vadd.f32 0.0, %v1817
        %v1819 = vpop.f32.mrf.mxu0
        %v1820 = vadd.f32 0.0, %v1819
        %1821 = vmatmul.bf16.gmra.mxu0 %v1613
        %v1822 = vpop.f32.mrf.mxu0
        %v1823 = vadd.f32 0.0, %v1822
        %v1824 = vpop.f32.mrf.mxu0
        %v1825 = vadd.f32 0.0, %v1824
        %1826 = vmatmul.bf16.gmra.mxu0 %v1622
        %v1827 = vpop.f32.mrf.mxu0
        %v1828 = vadd.f32 0.0, %v1827
        %v1829 = vpop.f32.mrf.mxu0
        %v1830 = vadd.f32 0.0, %v1829
        %1831 = vmatmul.bf16.gmra.mxu0 %v1631
        %v1832 = vpop.f32.mrf.mxu0
        %v1833 = vadd.f32 0.0, %v1832
        %v1834 = vpop.f32.mrf.mxu0
        %v1835 = vadd.f32 0.0, %v1834
        %1836 = vmatmul.bf16.gmra.mxu0 %v1640
        %v1837 = vpop.f32.mrf.mxu0
        %v1838 = vadd.f32 0.0, %v1837
        %v1839 = vpop.f32.mrf.mxu0
        %v1840 = vadd.f32 0.0, %v1839
        %1841 = vmatmul.bf16.gmra.mxu0 %v1649
        %v1842 = vpop.f32.mrf.mxu0
        %v1843 = vadd.f32 0.0, %v1842
        %v1844 = vpop.f32.mrf.mxu0
        %v1845 = vadd.f32 0.0, %v1844
        %1846 = vmatmul.bf16.gmra.mxu0 %v1658
        %v1847 = vpop.f32.mrf.mxu0
        %v1848 = vadd.f32 0.0, %v1847
        %v1849 = vpop.f32.mrf.mxu0
        %v1850 = vadd.f32 0.0, %v1849
        %1851 = vmatmul.bf16.gmra.mxu0 %v1667
        %v1852 = vpop.f32.mrf.mxu0
        %v1853 = vadd.f32 0.0, %v1852
        %v1854 = vpop.f32.mrf.mxu0
        %v1855 = vadd.f32 0.0, %v1854
        %1856 = vmatmul.bf16.gmra.mxu0 %v1676
        %v1857 = vpop.f32.mrf.mxu0
        %v1858 = vadd.f32 0.0, %v1857
        %v1859 = vpop.f32.mrf.mxu0
        %v1860 = vadd.f32 0.0, %v1859
        %1861 = vmatmul.bf16.gmra.mxu0 %v1685
        %v1862 = vpop.f32.mrf.mxu0
        %v1863 = vadd.f32 0.0, %v1862
        %v1864 = vpop.f32.mrf.mxu0
        %v1865 = vadd.f32 0.0, %v1864
        %1866 = vmatmul.bf16.gmra.mxu0 %v1694
        %v1867 = vpop.f32.mrf.mxu0
        %v1868 = vadd.f32 0.0, %v1867
        %v1869 = vpop.f32.mrf.mxu0
        %v1870 = vadd.f32 0.0, %v1869
        %1871 = vmatmul.bf16.gmra.mxu0 %v1703
        %v1872 = vpop.f32.mrf.mxu0
        %v1873 = vadd.f32 0.0, %v1872
        %v1874 = vpop.f32.mrf.mxu0
        %v1875 = vadd.f32 0.0, %v1874
        %1876 = vmatmul.bf16.gmra.mxu0 %v1712
        %v1877 = vpop.f32.mrf.mxu0
        %v1878 = vadd.f32 0.0, %v1877
        %v1879 = vpop.f32.mrf.mxu0
        %v1880 = vadd.f32 0.0, %v1879
        %1881 = vmatmul.bf16.gmra.mxu0 %v1721
        %v1882 = vpop.f32.mrf.mxu0
        %v1883 = vadd.f32 0.0, %v1882
        %v1884 = vpop.f32.mrf.mxu0
        %v1885 = vadd.f32 0.0, %v1884
        %1886 = vdwg.mxu0
        %v1887 = vadd.f32 %v1494, %v1798
        %v1888 = vadd.f32 %v1495, %v1800
        %v1889 = vadd.f32 %v1496, %v1803
        %v1890 = vadd.f32 %v1497, %v1805
        %v1891 = vadd.f32 %v1498, %v1808
        %v1892 = vadd.f32 %v1499, %v1810
        %v1893 = vadd.f32 %v1500, %v1813
        %v1894 = vadd.f32 %v1501, %v1815
        %v1895 = vadd.f32 %v1502, %v1818
        %v1896 = vadd.f32 %v1503, %v1820
        %v1897 = vadd.f32 %v1504, %v1823
        %v1898 = vadd.f32 %v1505, %v1825
        %v1899 = vadd.f32 %v1506, %v1828
        %v1900 = vadd.f32 %v1507, %v1830
        %v1901 = vadd.f32 %v1508, %v1833
        %v1902 = vadd.f32 %v1509, %v1835
        %v1903 = vadd.f32 %v1510, %v1838
        %v1904 = vadd.f32 %v1511, %v1840
        %v1905 = vadd.f32 %v1512, %v1843
        %v1906 = vadd.f32 %v1513, %v1845
        %v1907 = vadd.f32 %v1514, %v1848
        %v1908 = vadd.f32 %v1515, %v1850
        %v1909 = vadd.f32 %v1516, %v1853
        %v1910 = vadd.f32 %v1517, %v1855
        %v1911 = vadd.f32 %v1518, %v1858
        %v1912 = vadd.f32 %v1519, %v1860
        %v1913 = vadd.f32 %v1520, %v1863
        %v1914 = vadd.f32 %v1521, %v1865
        %v1915 = vadd.f32 %v1522, %v1868
        %v1916 = vadd.f32 %v1523, %v1870
        %v1917 = vadd.f32 %v1524, %v1873
        %v1918 = vadd.f32 %v1525, %v1875
        %v1919 = vadd.f32 %v1526, %v1878
        %v1920 = vadd.f32 %v1527, %v1880
        %v1921 = vadd.f32 %v1528, %v1883
        %v1922 = vadd.f32 %v1529, %v1885
        %v1923 = vld [vmem:[%s237 + $0x8] sm:$0xc]
        %s1924 = scalar_lea.vmem %s2, 320
        %v1925 = vld [vmem:[%s1924] sm:$0xf]
        %v1926 = vld [vmem:[%s1924 + $0x4] sm:$0xf]
        %v1927 = vld [vmem:[%s1924 + $0x8] sm:$0xf]
        %v1928 = vld [vmem:[%s1924 + $0xc] sm:$0xf]
        %v1929 = vld [vmem:[%s1924 + $0x10] sm:$0xf]
        %v1930 = vld [vmem:[%s1924 + $0x14] sm:$0xf]
        %v1931 = vld [vmem:[%s1924 + $0x18] sm:$0xf]
        %v1932 = vld [vmem:[%s1924 + $0x1c] sm:$0xf]
        %v1933 = vld [vmem:[%s1924 + $0x20] sm:$0xf]
        %v1934 = vld [vmem:[%s1924 + $0x24] sm:$0xf]
        %v1935 = vld [vmem:[%s1924 + $0x28] sm:$0xf]
        %v1936 = vld [vmem:[%s1924 + $0x2c] sm:$0xf]
        %v1937 = vld [vmem:[%s1924 + $0x30] sm:$0xf]
        %v1938 = vld [vmem:[%s1924 + $0x34] sm:$0xf]
        %v1939 = vld [vmem:[%s1924 + $0x38] sm:$0xf]
        %v1940 = vld [vmem:[%s1924 + $0x3c] sm:$0xf]
        %v1942 = vunpack.c.l.b16 %v1923
        %v1943 = vpack.c.b16 %v1237, %v1942
        %vm1944 = vcmask 1045504
        %v1945 = vrot.slane %v1943, 2
        %v1946 = vrot.slane %v1274, 2
        %v1947 = vsel %vm1944, %v1945, %v1946
        %v1948 = vrot.slane %v1275, 2
        %v1949 = vsel %vm1944, %v1946, %v1948
        %v1950 = vrot.slane %v1276, 2
        %v1951 = vsel %vm1944, %v1948, %v1950
        %v1952 = vrot.slane %v1277, 2
        %v1953 = vsel %vm1944, %v1950, %v1952
        %v1954 = vrot.slane %v1278, 2
        %v1955 = vsel %vm1944, %v1952, %v1954
        %v1956 = vrot.slane %v1279, 2
        %v1957 = vsel %vm1944, %v1954, %v1956
        %v1958 = vrot.slane %v1280, 2
        %v1959 = vsel %vm1944, %v1956, %v1958
        %v1960 = vrot.slane %v1281, 2
        %v1961 = vsel %vm1944, %v1958, %v1960
        %v1962 = vrot.slane %v1282, 2
        %v1963 = vsel %vm1944, %v1960, %v1962
        %v1964 = vrot.slane %v1283, 2
        %v1965 = vsel %vm1944, %v1962, %v1964
        %v1966 = vrot.slane %v1284, 2
        %v1967 = vsel %vm1944, %v1964, %v1966
        %v1968 = vrot.slane %v1285, 2
        %v1969 = vsel %vm1944, %v1966, %v1968
        %v1970 = vrot.slane %v1286, 2
        %v1971 = vsel %vm1944, %v1968, %v1970
        %v1972 = vrot.slane %v1287, 2
        %v1973 = vsel %vm1944, %v1970, %v1972
        %v1974 = vrot.slane %v1288, 2
        %v1975 = vsel %vm1944, %v1972, %v1974
        %v1976 = vrot.slane %v1289, 2
        %v1977 = vsel %vm1944, %v1974, %v1976
        %v1978 = vrot.slane %v1290, 2
        %v1979 = vsel %vm1944, %v1976, %v1978
        %v1980 = vrot.slane %v1550, 2
        %v1981 = vsel %vm1944, %v1978, %v1980
        %v2016 = vunpack.c.l.b16 %v1925
        %v2017 = vunpack.c.l.b16 %v1926
        %v2018 = vunpack.c.l.b16 %v1927
        %v2019 = vunpack.c.l.b16 %v1928
        %v2020 = vunpack.c.l.b16 %v1929
        %v2021 = vunpack.c.l.b16 %v1930
        %v2022 = vunpack.c.l.b16 %v1931
        %v2023 = vunpack.c.l.b16 %v1932
        %v2024 = vunpack.c.l.b16 %v1933
        %v2025 = vunpack.c.l.b16 %v1934
        %v2026 = vunpack.c.l.b16 %v1935
        %v2027 = vunpack.c.l.b16 %v1936
        %v2028 = vunpack.c.l.b16 %v1937
        %v2029 = vunpack.c.l.b16 %v1938
        %v2030 = vunpack.c.l.b16 %v1939
        %v2031 = vunpack.c.l.b16 %v1940
        %v2032 = vpack.c.b16 %v2017, %v2016
        %v2033 = vpack.c.b16 %v2019, %v2018
        %v2034 = vpack.c.b16 %v2021, %v2020
        %v2035 = vpack.c.b16 %v2023, %v2022
        %v2036 = vpack.c.b16 %v2025, %v2024
        %v2037 = vpack.c.b16 %v2027, %v2026
        %v2038 = vpack.c.b16 %v2029, %v2028
        %v2039 = vpack.c.b16 %v2031, %v2030
        %2048 = vmatpush.bf16.msra.mxu0 %v2039
        %2049 = vmatpush.bf16.msra.mxu0 %v2038
        %2050 = vmatpush.bf16.msra.mxu0 %v2037
        %2051 = vmatpush.bf16.msra.mxu0 %v2036
        %2052 = vmatpush.bf16.msra.mxu0 %v2035
        %2053 = vmatpush.bf16.msra.mxu0 %v2034
        %2054 = vmatpush.bf16.msra.mxu0 %v2033
        %2055 = vmatpush.bf16.msra.mxu0 %v2032
        %2056 = vmatmul.bf16.gmra.mxu0 %v1947
        %v2057 = vpop.f32.mrf.mxu0
        %v2058 = vadd.f32 0.0, %v2057
        %v2059 = vpop.f32.mrf.mxu0
        %v2060 = vadd.f32 0.0, %v2059
        %2061 = vmatmul.bf16.gmra.mxu0 %v1949
        %v2062 = vpop.f32.mrf.mxu0
        %v2063 = vadd.f32 0.0, %v2062
        %v2064 = vpop.f32.mrf.mxu0
        %v2065 = vadd.f32 0.0, %v2064
        %2066 = vmatmul.bf16.gmra.mxu0 %v1951
        %v2067 = vpop.f32.mrf.mxu0
        %v2068 = vadd.f32 0.0, %v2067
        %v2069 = vpop.f32.mrf.mxu0
        %v2070 = vadd.f32 0.0, %v2069
        %2071 = vmatmul.bf16.gmra.mxu0 %v1953
        %v2072 = vpop.f32.mrf.mxu0
        %v2073 = vadd.f32 0.0, %v2072
        %v2074 = vpop.f32.mrf.mxu0
        %v2075 = vadd.f32 0.0, %v2074
        %2076 = vmatmul.bf16.gmra.mxu0 %v1955
        %v2077 = vpop.f32.mrf.mxu0
        %v2078 = vadd.f32 0.0, %v2077
        %v2079 = vpop.f32.mrf.mxu0
        %v2080 = vadd.f32 0.0, %v2079
        %2081 = vmatmul.bf16.gmra.mxu0 %v1957
        %v2082 = vpop.f32.mrf.mxu0
        %v2083 = vadd.f32 0.0, %v2082
        %v2084 = vpop.f32.mrf.mxu0
        %v2085 = vadd.f32 0.0, %v2084
        %2086 = vmatmul.bf16.gmra.mxu0 %v1959
        %v2087 = vpop.f32.mrf.mxu0
        %v2088 = vadd.f32 0.0, %v2087
        %v2089 = vpop.f32.mrf.mxu0
        %v2090 = vadd.f32 0.0, %v2089
        %2091 = vmatmul.bf16.gmra.mxu0 %v1961
        %v2092 = vpop.f32.mrf.mxu0
        %v2093 = vadd.f32 0.0, %v2092
        %v2094 = vpop.f32.mrf.mxu0
        %v2095 = vadd.f32 0.0, %v2094
        %2096 = vmatmul.bf16.gmra.mxu0 %v1963
        %v2097 = vpop.f32.mrf.mxu0
        %v2098 = vadd.f32 0.0, %v2097
        %v2099 = vpop.f32.mrf.mxu0
        %v2100 = vadd.f32 0.0, %v2099
        %2101 = vmatmul.bf16.gmra.mxu0 %v1965
        %v2102 = vpop.f32.mrf.mxu0
        %v2103 = vadd.f32 0.0, %v2102
        %v2104 = vpop.f32.mrf.mxu0
        %v2105 = vadd.f32 0.0, %v2104
        %2106 = vmatmul.bf16.gmra.mxu0 %v1967
        %v2107 = vpop.f32.mrf.mxu0
        %v2108 = vadd.f32 0.0, %v2107
        %v2109 = vpop.f32.mrf.mxu0
        %v2110 = vadd.f32 0.0, %v2109
        %2111 = vmatmul.bf16.gmra.mxu0 %v1969
        %v2112 = vpop.f32.mrf.mxu0
        %v2113 = vadd.f32 0.0, %v2112
        %v2114 = vpop.f32.mrf.mxu0
        %v2115 = vadd.f32 0.0, %v2114
        %2116 = vmatmul.bf16.gmra.mxu0 %v1971
        %v2117 = vpop.f32.mrf.mxu0
        %v2118 = vadd.f32 0.0, %v2117
        %v2119 = vpop.f32.mrf.mxu0
        %v2120 = vadd.f32 0.0, %v2119
        %2121 = vmatmul.bf16.gmra.mxu0 %v1973
        %v2122 = vpop.f32.mrf.mxu0
        %v2123 = vadd.f32 0.0, %v2122
        %v2124 = vpop.f32.mrf.mxu0
        %v2125 = vadd.f32 0.0, %v2124
        %2126 = vmatmul.bf16.gmra.mxu0 %v1975
        %v2127 = vpop.f32.mrf.mxu0
        %v2128 = vadd.f32 0.0, %v2127
        %v2129 = vpop.f32.mrf.mxu0
        %v2130 = vadd.f32 0.0, %v2129
        %2131 = vmatmul.bf16.gmra.mxu0 %v1977
        %v2132 = vpop.f32.mrf.mxu0
        %v2133 = vadd.f32 0.0, %v2132
        %v2134 = vpop.f32.mrf.mxu0
        %v2135 = vadd.f32 0.0, %v2134
        %2136 = vmatmul.bf16.gmra.mxu0 %v1979
        %v2137 = vpop.f32.mrf.mxu0
        %v2138 = vadd.f32 0.0, %v2137
        %v2139 = vpop.f32.mrf.mxu0
        %v2140 = vadd.f32 0.0, %v2139
        %2141 = vmatmul.bf16.gmra.mxu0 %v1981
        %v2142 = vpop.f32.mrf.mxu0
        %v2143 = vadd.f32 0.0, %v2142
        %v2144 = vpop.f32.mrf.mxu0
        %v2145 = vadd.f32 0.0, %v2144
        %2146 = vdwg.mxu0
        %v2147 = vadd.f32 %v1887, %v2058
        %v2148 = vadd.f32 %v1888, %v2060
        %v2149 = vadd.f32 %v1889, %v2063
        %v2150 = vadd.f32 %v1890, %v2065
        %v2151 = vadd.f32 %v1891, %v2068
        %v2152 = vadd.f32 %v1892, %v2070
        %v2153 = vadd.f32 %v1893, %v2073
        %v2154 = vadd.f32 %v1894, %v2075
        %v2155 = vadd.f32 %v1895, %v2078
        %v2156 = vadd.f32 %v1896, %v2080
        %v2157 = vadd.f32 %v1897, %v2083
        %v2158 = vadd.f32 %v1898, %v2085
        %v2159 = vadd.f32 %v1899, %v2088
        %v2160 = vadd.f32 %v1900, %v2090
        %v2161 = vadd.f32 %v1901, %v2093
        %v2162 = vadd.f32 %v1902, %v2095
        %v2163 = vadd.f32 %v1903, %v2098
        %v2164 = vadd.f32 %v1904, %v2100
        %v2165 = vadd.f32 %v1905, %v2103
        %v2166 = vadd.f32 %v1906, %v2105
        %v2167 = vadd.f32 %v1907, %v2108
        %v2168 = vadd.f32 %v1908, %v2110
        %v2169 = vadd.f32 %v1909, %v2113
        %v2170 = vadd.f32 %v1910, %v2115
        %v2171 = vadd.f32 %v1911, %v2118
        %v2172 = vadd.f32 %v1912, %v2120
        %v2173 = vadd.f32 %v1913, %v2123
        %v2174 = vadd.f32 %v1914, %v2125
        %v2175 = vadd.f32 %v1915, %v2128
        %v2176 = vadd.f32 %v1916, %v2130
        %v2177 = vadd.f32 %v1917, %v2133
        %v2178 = vadd.f32 %v1918, %v2135
        %v2179 = vadd.f32 %v1919, %v2138
        %v2180 = vadd.f32 %v1920, %v2140
        %v2181 = vadd.f32 %v1921, %v2143
        %v2182 = vadd.f32 %v1922, %v2145
        %v2183 = vld [vmem:[%s237 + $0x10] sm:$0xc]
        %v2184 = vld [vmem:[%s237 + $0x14] sm:$0xf]
        %v2185 = vld [vmem:[%s237 + $0x18] sm:$0xf]
        %v2186 = vld [vmem:[%s237 + $0x1c] sm:$0xf]
        %v2187 = vld [vmem:[%s237 + $0x20] sm:$0xf]
        %v2188 = vld [vmem:[%s237 + $0x24] sm:$0xf]
        %v2189 = vld [vmem:[%s237 + $0x28] sm:$0xf]
        %v2190 = vld [vmem:[%s237 + $0x2c] sm:$0xf]
        %v2191 = vld [vmem:[%s237 + $0x30] sm:$0xf]
        %v2192 = vld [vmem:[%s237 + $0x34] sm:$0xf]
        %v2193 = vld [vmem:[%s237 + $0x38] sm:$0xf]
        %v2194 = vld [vmem:[%s237 + $0x3c] sm:$0xf]
        %v2195 = vld [vmem:[%s237 + $0x40] sm:$0xf]
        %v2196 = vld [vmem:[%s237 + $0x44] sm:$0xf]
        %v2197 = vld [vmem:[%s237 + $0x48] sm:$0xf]
        %v2198 = vld [vmem:[%s237 + $0x4c] sm:$0xf]
        %v2199 = vld [vmem:[%s237 + $0x50] sm:$0xf]
        %v2200 = vld [vmem:[%s237 + $0x54] sm:$0xf]
        %v2201 = vld [vmem:[%s237 + $0x58] sm:$0xf]
        %v2202 = vld [vmem:[%s237 + $0x5c] sm:$0xf]
        %v2203 = vld [vmem:[%s237 + $0x60] sm:$0xf]
        %v2204 = vld [vmem:[%s237 + $0x64] sm:$0xf]
        %v2205 = vld [vmem:[%s237 + $0x68] sm:$0xf]
        %v2206 = vld [vmem:[%s237 + $0x6c] sm:$0xf]
        %v2207 = vld [vmem:[%s237 + $0x70] sm:$0xf]
        %v2208 = vld [vmem:[%s237 + $0x74] sm:$0xf]
        %v2209 = vld [vmem:[%s237 + $0x78] sm:$0xf]
        %v2210 = vld [vmem:[%s237 + $0x7c] sm:$0xf]
        %v2211 = vld [vmem:[%s237 + $0x80] sm:$0xf]
        %v2212 = vld [vmem:[%s237 + $0x84] sm:$0xf]
        %v2213 = vld [vmem:[%s237 + $0x88] sm:$0xf]
        %v2214 = vld [vmem:[%s237 + $0x8c] sm:$0xf]
        %v2215 = vld [vmem:[%s237 + $0x90] sm:$0xf]
        %v2216 = vld [vmem:[%s237 + $0x94] sm:$0xf]
        %v2217 = vld [vmem:[%s237 + $0x98] sm:$0xf]
        %v2218 = vld [vmem:[%s237 + $0x9c] sm:$0xf]
        %v2219 = vld [vmem:[%s237 + $0xa0] sm:$0x3]
        %s2220 = scalar_lea.vmem %s2, 384
        %v2221 = vld [vmem:[%s2220] sm:$0xf]
        %v2222 = vld [vmem:[%s2220 + $0x4] sm:$0xf]
        %v2223 = vld [vmem:[%s2220 + $0x8] sm:$0xf]
        %v2224 = vld [vmem:[%s2220 + $0xc] sm:$0xf]
        %v2225 = vld [vmem:[%s2220 + $0x10] sm:$0xf]
        %v2226 = vld [vmem:[%s2220 + $0x14] sm:$0xf]
        %v2227 = vld [vmem:[%s2220 + $0x18] sm:$0xf]
        %v2228 = vld [vmem:[%s2220 + $0x1c] sm:$0xf]
        %v2229 = vld [vmem:[%s2220 + $0x20] sm:$0xf]
        %v2230 = vld [vmem:[%s2220 + $0x24] sm:$0xf]
        %v2231 = vld [vmem:[%s2220 + $0x28] sm:$0xf]
        %v2232 = vld [vmem:[%s2220 + $0x2c] sm:$0xf]
        %v2233 = vld [vmem:[%s2220 + $0x30] sm:$0xf]
        %v2234 = vld [vmem:[%s2220 + $0x34] sm:$0xf]
        %v2235 = vld [vmem:[%s2220 + $0x38] sm:$0xf]
        %v2236 = vld [vmem:[%s2220 + $0x3c] sm:$0xf]
        %v2274 = vunpack.c.l.b16 %v2183
        %v2275 = vunpack.c.l.b16 %v2184
        %v2276 = vunpack.c.l.b16 %v2185
        %v2277 = vunpack.c.l.b16 %v2186
        %v2278 = vunpack.c.l.b16 %v2187
        %v2279 = vunpack.c.l.b16 %v2188
        %v2280 = vunpack.c.l.b16 %v2189
        %v2281 = vunpack.c.l.b16 %v2190
        %v2282 = vunpack.c.l.b16 %v2191
        %v2283 = vunpack.c.l.b16 %v2192
        %v2284 = vunpack.c.l.b16 %v2193
        %v2285 = vunpack.c.l.b16 %v2194
        %v2286 = vunpack.c.l.b16 %v2195
        %v2287 = vunpack.c.l.b16 %v2196
        %v2288 = vunpack.c.l.b16 %v2197
        %v2289 = vunpack.c.l.b16 %v2198
        %v2290 = vunpack.c.l.b16 %v2199
        %v2291 = vunpack.c.l.b16 %v2200
        %v2292 = vunpack.c.l.b16 %v2201
        %v2293 = vunpack.c.l.b16 %v2202
        %v2294 = vunpack.c.l.b16 %v2203
        %v2295 = vunpack.c.l.b16 %v2204
        %v2296 = vunpack.c.l.b16 %v2205
        %v2297 = vunpack.c.l.b16 %v2206
        %v2298 = vunpack.c.l.b16 %v2207
        %v2299 = vunpack.c.l.b16 %v2208
        %v2300 = vunpack.c.l.b16 %v2209
        %v2301 = vunpack.c.l.b16 %v2210
        %v2302 = vunpack.c.l.b16 %v2211
        %v2303 = vunpack.c.l.b16 %v2212
        %v2304 = vunpack.c.l.b16 %v2213
        %v2305 = vunpack.c.l.b16 %v2214
        %v2306 = vunpack.c.l.b16 %v2215
        %v2307 = vunpack.c.l.b16 %v2216
        %v2308 = vunpack.c.l.b16 %v2217
        %v2309 = vunpack.c.l.b16 %v2218
        %v2310 = vunpack.c.l.b16 %v2219
        %v2311 = vpack.c.b16 %v2275, %v2274
        %v2312 = vpack.c.b16 %v2277, %v2276
        %v2313 = vpack.c.b16 %v2279, %v2278
        %v2314 = vpack.c.b16 %v2281, %v2280
        %v2315 = vpack.c.b16 %v2283, %v2282
        %v2316 = vpack.c.b16 %v2285, %v2284
        %v2317 = vpack.c.b16 %v2287, %v2286
        %v2318 = vpack.c.b16 %v2289, %v2288
        %v2319 = vpack.c.b16 %v2291, %v2290
        %v2320 = vpack.c.b16 %v2293, %v2292
        %v2321 = vpack.c.b16 %v2295, %v2294
        %v2322 = vpack.c.b16 %v2297, %v2296
        %v2323 = vpack.c.b16 %v2299, %v2298
        %v2324 = vpack.c.b16 %v2301, %v2300
        %v2325 = vpack.c.b16 %v2303, %v2302
        %v2326 = vpack.c.b16 %v2305, %v2304
        %v2327 = vpack.c.b16 %v2307, %v2306
        %v2328 = vpack.c.b16 %v2309, %v2308
        %v2329 = vpack.c.b16 %v2310, %v2310
        %v2330 = vrot.slane %v2311, 2
        %v2331 = vrot.slane %v2312, 2
        %v2332 = vsel %vm1944, %v2330, %v2331
        %v2333 = vrot.slane %v2313, 2
        %v2334 = vsel %vm1944, %v2331, %v2333
        %v2335 = vrot.slane %v2314, 2
        %v2336 = vsel %vm1944, %v2333, %v2335
        %v2337 = vrot.slane %v2315, 2
        %v2338 = vsel %vm1944, %v2335, %v2337
        %v2339 = vrot.slane %v2316, 2
        %v2340 = vsel %vm1944, %v2337, %v2339
        %v2341 = vrot.slane %v2317, 2
        %v2342 = vsel %vm1944, %v2339, %v2341
        %v2343 = vrot.slane %v2318, 2
        %v2344 = vsel %vm1944, %v2341, %v2343
        %v2345 = vrot.slane %v2319, 2
        %v2346 = vsel %vm1944, %v2343, %v2345
        %v2347 = vrot.slane %v2320, 2
        %v2348 = vsel %vm1944, %v2345, %v2347
        %v2349 = vrot.slane %v2321, 2
        %v2350 = vsel %vm1944, %v2347, %v2349
        %v2351 = vrot.slane %v2322, 2
        %v2352 = vsel %vm1944, %v2349, %v2351
        %v2353 = vrot.slane %v2323, 2
        %v2354 = vsel %vm1944, %v2351, %v2353
        %v2355 = vrot.slane %v2324, 2
        %v2356 = vsel %vm1944, %v2353, %v2355
        %v2357 = vrot.slane %v2325, 2
        %v2358 = vsel %vm1944, %v2355, %v2357
        %v2359 = vrot.slane %v2326, 2
        %v2360 = vsel %vm1944, %v2357, %v2359
        %v2361 = vrot.slane %v2327, 2
        %v2362 = vsel %vm1944, %v2359, %v2361
        %v2363 = vrot.slane %v2328, 2
        %v2364 = vsel %vm1944, %v2361, %v2363
        %v2365 = vrot.slane %v2329, 2
        %v2366 = vsel %vm1944, %v2363, %v2365
        %v2401 = vunpack.c.l.b16 %v2221
        %v2402 = vunpack.c.l.b16 %v2222
        %v2403 = vunpack.c.l.b16 %v2223
        %v2404 = vunpack.c.l.b16 %v2224
        %v2405 = vunpack.c.l.b16 %v2225
        %v2406 = vunpack.c.l.b16 %v2226
        %v2407 = vunpack.c.l.b16 %v2227
        %v2408 = vunpack.c.l.b16 %v2228
        %v2409 = vunpack.c.l.b16 %v2229
        %v2410 = vunpack.c.l.b16 %v2230
        %v2411 = vunpack.c.l.b16 %v2231
        %v2412 = vunpack.c.l.b16 %v2232
        %v2413 = vunpack.c.l.b16 %v2233
        %v2414 = vunpack.c.l.b16 %v2234
        %v2415 = vunpack.c.l.b16 %v2235
        %v2416 = vunpack.c.l.b16 %v2236
        %v2417 = vpack.c.b16 %v2402, %v2401
        %v2418 = vpack.c.b16 %v2404, %v2403
        %v2419 = vpack.c.b16 %v2406, %v2405
        %v2420 = vpack.c.b16 %v2408, %v2407
        %v2421 = vpack.c.b16 %v2410, %v2409
        %v2422 = vpack.c.b16 %v2412, %v2411
        %v2423 = vpack.c.b16 %v2414, %v2413
        %v2424 = vpack.c.b16 %v2416, %v2415
        %2433 = vmatpush.bf16.msra.mxu0 %v2424
        %2434 = vmatpush.bf16.msra.mxu0 %v2423
        %2435 = vmatpush.bf16.msra.mxu0 %v2422
        %2436 = vmatpush.bf16.msra.mxu0 %v2421
        %2437 = vmatpush.bf16.msra.mxu0 %v2420
        %2438 = vmatpush.bf16.msra.mxu0 %v2419
        %2439 = vmatpush.bf16.msra.mxu0 %v2418
        %2440 = vmatpush.bf16.msra.mxu0 %v2417
        %2441 = vmatmul.bf16.gmra.mxu0 %v2332
        %v2442 = vpop.f32.mrf.mxu0
        %v2443 = vadd.f32 0.0, %v2442
        %v2444 = vpop.f32.mrf.mxu0
        %v2445 = vadd.f32 0.0, %v2444
        %2446 = vmatmul.bf16.gmra.mxu0 %v2334
        %v2447 = vpop.f32.mrf.mxu0
        %v2448 = vadd.f32 0.0, %v2447
        %v2449 = vpop.f32.mrf.mxu0
        %v2450 = vadd.f32 0.0, %v2449
        %2451 = vmatmul.bf16.gmra.mxu0 %v2336
        %v2452 = vpop.f32.mrf.mxu0
        %v2453 = vadd.f32 0.0, %v2452
        %v2454 = vpop.f32.mrf.mxu0
        %v2455 = vadd.f32 0.0, %v2454
        %2456 = vmatmul.bf16.gmra.mxu0 %v2338
        %v2457 = vpop.f32.mrf.mxu0
        %v2458 = vadd.f32 0.0, %v2457
        %v2459 = vpop.f32.mrf.mxu0
        %v2460 = vadd.f32 0.0, %v2459
        %2461 = vmatmul.bf16.gmra.mxu0 %v2340
        %v2462 = vpop.f32.mrf.mxu0
        %v2463 = vadd.f32 0.0, %v2462
        %v2464 = vpop.f32.mrf.mxu0
        %v2465 = vadd.f32 0.0, %v2464
        %2466 = vmatmul.bf16.gmra.mxu0 %v2342
        %v2467 = vpop.f32.mrf.mxu0
        %v2468 = vadd.f32 0.0, %v2467
        %v2469 = vpop.f32.mrf.mxu0
        %v2470 = vadd.f32 0.0, %v2469
        %2471 = vmatmul.bf16.gmra.mxu0 %v2344
        %v2472 = vpop.f32.mrf.mxu0
        %v2473 = vadd.f32 0.0, %v2472
        %v2474 = vpop.f32.mrf.mxu0
        %v2475 = vadd.f32 0.0, %v2474
        %2476 = vmatmul.bf16.gmra.mxu0 %v2346
        %v2477 = vpop.f32.mrf.mxu0
        %v2478 = vadd.f32 0.0, %v2477
        %v2479 = vpop.f32.mrf.mxu0
        %v2480 = vadd.f32 0.0, %v2479
        %2481 = vmatmul.bf16.gmra.mxu0 %v2348
        %v2482 = vpop.f32.mrf.mxu0
        %v2483 = vadd.f32 0.0, %v2482
        %v2484 = vpop.f32.mrf.mxu0
        %v2485 = vadd.f32 0.0, %v2484
        %2486 = vmatmul.bf16.gmra.mxu0 %v2350
        %v2487 = vpop.f32.mrf.mxu0
        %v2488 = vadd.f32 0.0, %v2487
        %v2489 = vpop.f32.mrf.mxu0
        %v2490 = vadd.f32 0.0, %v2489
        %2491 = vmatmul.bf16.gmra.mxu0 %v2352
        %v2492 = vpop.f32.mrf.mxu0
        %v2493 = vadd.f32 0.0, %v2492
        %v2494 = vpop.f32.mrf.mxu0
        %v2495 = vadd.f32 0.0, %v2494
        %2496 = vmatmul.bf16.gmra.mxu0 %v2354
        %v2497 = vpop.f32.mrf.mxu0
        %v2498 = vadd.f32 0.0, %v2497
        %v2499 = vpop.f32.mrf.mxu0
        %v2500 = vadd.f32 0.0, %v2499
        %2501 = vmatmul.bf16.gmra.mxu0 %v2356
        %v2502 = vpop.f32.mrf.mxu0
        %v2503 = vadd.f32 0.0, %v2502
        %v2504 = vpop.f32.mrf.mxu0
        %v2505 = vadd.f32 0.0, %v2504
        %2506 = vmatmul.bf16.gmra.mxu0 %v2358
        %v2507 = vpop.f32.mrf.mxu0
        %v2508 = vadd.f32 0.0, %v2507
        %v2509 = vpop.f32.mrf.mxu0
        %v2510 = vadd.f32 0.0, %v2509
        %2511 = vmatmul.bf16.gmra.mxu0 %v2360
        %v2512 = vpop.f32.mrf.mxu0
        %v2513 = vadd.f32 0.0, %v2512
        %v2514 = vpop.f32.mrf.mxu0
        %v2515 = vadd.f32 0.0, %v2514
        %2516 = vmatmul.bf16.gmra.mxu0 %v2362
        %v2517 = vpop.f32.mrf.mxu0
        %v2518 = vadd.f32 0.0, %v2517
        %v2519 = vpop.f32.mrf.mxu0
        %v2520 = vadd.f32 0.0, %v2519
        %2521 = vmatmul.bf16.gmra.mxu0 %v2364
        %v2522 = vpop.f32.mrf.mxu0
        %v2523 = vadd.f32 0.0, %v2522
        %v2524 = vpop.f32.mrf.mxu0
        %v2525 = vadd.f32 0.0, %v2524
        %2526 = vmatmul.bf16.gmra.mxu0 %v2366
        %v2527 = vpop.f32.mrf.mxu0
        %v2528 = vadd.f32 0.0, %v2527
        %v2529 = vpop.f32.mrf.mxu0
        %v2530 = vadd.f32 0.0, %v2529
        %2531 = vdwg.mxu0
        %v2532 = vadd.f32 %v2147, %v2443
        %v2533 = vadd.f32 %v2148, %v2445
        %v2534 = vadd.f32 %v2149, %v2448
        %v2535 = vadd.f32 %v2150, %v2450
        %v2536 = vadd.f32 %v2151, %v2453
        %v2537 = vadd.f32 %v2152, %v2455
        %v2538 = vadd.f32 %v2153, %v2458
        %v2539 = vadd.f32 %v2154, %v2460
        %v2540 = vadd.f32 %v2155, %v2463
        %v2541 = vadd.f32 %v2156, %v2465
        %v2542 = vadd.f32 %v2157, %v2468
        %v2543 = vadd.f32 %v2158, %v2470
        %v2544 = vadd.f32 %v2159, %v2473
        %v2545 = vadd.f32 %v2160, %v2475
        %v2546 = vadd.f32 %v2161, %v2478
        %v2547 = vadd.f32 %v2162, %v2480
        %v2548 = vadd.f32 %v2163, %v2483
        %v2549 = vadd.f32 %v2164, %v2485
        %v2550 = vadd.f32 %v2165, %v2488
        %v2551 = vadd.f32 %v2166, %v2490
        %v2552 = vadd.f32 %v2167, %v2493
        %v2553 = vadd.f32 %v2168, %v2495
        %v2554 = vadd.f32 %v2169, %v2498
        %v2555 = vadd.f32 %v2170, %v2500
        %v2556 = vadd.f32 %v2171, %v2503
        %v2557 = vadd.f32 %v2172, %v2505
        %v2558 = vadd.f32 %v2173, %v2508
        %v2559 = vadd.f32 %v2174, %v2510
        %v2560 = vadd.f32 %v2175, %v2513
        %v2561 = vadd.f32 %v2176, %v2515
        %v2562 = vadd.f32 %v2177, %v2518
        %v2563 = vadd.f32 %v2178, %v2520
        %v2564 = vadd.f32 %v2179, %v2523
        %v2565 = vadd.f32 %v2180, %v2525
        %v2566 = vadd.f32 %v2181, %v2528
        %v2567 = vadd.f32 %v2182, %v2530
        %v2568 = vld [vmem:[%s237 + $0xa0] sm:$0x7]
        %s2569 = scalar_lea.vmem %s2, 448
        %v2570 = vld [vmem:[%s2569] sm:$0xf]
        %v2571 = vld [vmem:[%s2569 + $0x4] sm:$0xf]
        %v2572 = vld [vmem:[%s2569 + $0x8] sm:$0xf]
        %v2573 = vld [vmem:[%s2569 + $0xc] sm:$0xf]
        %v2574 = vld [vmem:[%s2569 + $0x10] sm:$0xf]
        %v2575 = vld [vmem:[%s2569 + $0x14] sm:$0xf]
        %v2576 = vld [vmem:[%s2569 + $0x18] sm:$0xf]
        %v2577 = vld [vmem:[%s2569 + $0x1c] sm:$0xf]
        %v2578 = vld [vmem:[%s2569 + $0x20] sm:$0xf]
        %v2579 = vld [vmem:[%s2569 + $0x24] sm:$0xf]
        %v2580 = vld [vmem:[%s2569 + $0x28] sm:$0xf]
        %v2581 = vld [vmem:[%s2569 + $0x2c] sm:$0xf]
        %v2582 = vld [vmem:[%s2569 + $0x30] sm:$0xf]
        %v2583 = vld [vmem:[%s2569 + $0x34] sm:$0xf]
        %v2584 = vld [vmem:[%s2569 + $0x38] sm:$0xf]
        %v2585 = vld [vmem:[%s2569 + $0x3c] sm:$0xf]
        %v2587 = vunpack.c.l.b16 %v2568
        %v2588 = vpack.c.b16 %v2587, %v2587
        %vm2589 = vsmask.f32 5376
        %v2591 = vshrl.u32 %v2311, 16
        %v2593 = vrot.slane %v2591, 2
        %v2594 = vshll.u32 %v2311, 16
        %v2596 = vrot.slane %v2594, 3
        %v2597 = vor.u32 %v2593, %v2596
        %v2599 = vshrl.u32 %v2312, 16
        %v2601 = vrot.slane %v2599, 2
        %v2602 = vshll.u32 %v2312, 16
        %v2604 = vrot.slane %v2602, 3
        %v2605 = vor.u32 %v2601, %v2604
        %v2606 = vsel %vm2589, %v2597, %v2605
        %v2608 = vshrl.u32 %v2313, 16
        %v2610 = vrot.slane %v2608, 2
        %v2611 = vshll.u32 %v2313, 16
        %v2613 = vrot.slane %v2611, 3
        %v2614 = vor.u32 %v2610, %v2613
        %v2615 = vsel %vm2589, %v2605, %v2614
        %v2617 = vshrl.u32 %v2314, 16
        %v2619 = vrot.slane %v2617, 2
        %v2620 = vshll.u32 %v2314, 16
        %v2622 = vrot.slane %v2620, 3
        %v2623 = vor.u32 %v2619, %v2622
        %v2624 = vsel %vm2589, %v2614, %v2623
        %v2626 = vshrl.u32 %v2315, 16
        %v2628 = vrot.slane %v2626, 2
        %v2629 = vshll.u32 %v2315, 16
        %v2631 = vrot.slane %v2629, 3
        %v2632 = vor.u32 %v2628, %v2631
        %v2633 = vsel %vm2589, %v2623, %v2632
        %v2635 = vshrl.u32 %v2316, 16
        %v2637 = vrot.slane %v2635, 2
        %v2638 = vshll.u32 %v2316, 16
        %v2640 = vrot.slane %v2638, 3
        %v2641 = vor.u32 %v2637, %v2640
        %v2642 = vsel %vm2589, %v2632, %v2641
        %v2644 = vshrl.u32 %v2317, 16
        %v2646 = vrot.slane %v2644, 2
        %v2647 = vshll.u32 %v2317, 16
        %v2649 = vrot.slane %v2647, 3
        %v2650 = vor.u32 %v2646, %v2649
        %v2651 = vsel %vm2589, %v2641, %v2650
        %v2653 = vshrl.u32 %v2318, 16
        %v2655 = vrot.slane %v2653, 2
        %v2656 = vshll.u32 %v2318, 16
        %v2658 = vrot.slane %v2656, 3
        %v2659 = vor.u32 %v2655, %v2658
        %v2660 = vsel %vm2589, %v2650, %v2659
        %v2662 = vshrl.u32 %v2319, 16
        %v2664 = vrot.slane %v2662, 2
        %v2665 = vshll.u32 %v2319, 16
        %v2667 = vrot.slane %v2665, 3
        %v2668 = vor.u32 %v2664, %v2667
        %v2669 = vsel %vm2589, %v2659, %v2668
        %v2671 = vshrl.u32 %v2320, 16
        %v2673 = vrot.slane %v2671, 2
        %v2674 = vshll.u32 %v2320, 16
        %v2676 = vrot.slane %v2674, 3
        %v2677 = vor.u32 %v2673, %v2676
        %v2678 = vsel %vm2589, %v2668, %v2677
        %v2680 = vshrl.u32 %v2321, 16
        %v2682 = vrot.slane %v2680, 2
        %v2683 = vshll.u32 %v2321, 16
        %v2685 = vrot.slane %v2683, 3
        %v2686 = vor.u32 %v2682, %v2685
        %v2687 = vsel %vm2589, %v2677, %v2686
        %v2689 = vshrl.u32 %v2322, 16
        %v2691 = vrot.slane %v2689, 2
        %v2692 = vshll.u32 %v2322, 16
        %v2694 = vrot.slane %v2692, 3
        %v2695 = vor.u32 %v2691, %v2694
        %v2696 = vsel %vm2589, %v2686, %v2695
        %v2698 = vshrl.u32 %v2323, 16
        %v2700 = vrot.slane %v2698, 2
        %v2701 = vshll.u32 %v2323, 16
        %v2703 = vrot.slane %v2701, 3
        %v2704 = vor.u32 %v2700, %v2703
        %v2705 = vsel %vm2589, %v2695, %v2704
        %v2707 = vshrl.u32 %v2324, 16
        %v2709 = vrot.slane %v2707, 2
        %v2710 = vshll.u32 %v2324, 16
        %v2712 = vrot.slane %v2710, 3
        %v2713 = vor.u32 %v2709, %v2712
        %v2714 = vsel %vm2589, %v2704, %v2713
        %v2716 = vshrl.u32 %v2325, 16
        %v2718 = vrot.slane %v2716, 2
        %v2719 = vshll.u32 %v2325, 16
        %v2721 = vrot.slane %v2719, 3
        %v2722 = vor.u32 %v2718, %v2721
        %v2723 = vsel %vm2589, %v2713, %v2722
        %v2725 = vshrl.u32 %v2326, 16
        %v2727 = vrot.slane %v2725, 2
        %v2728 = vshll.u32 %v2326, 16
        %v2730 = vrot.slane %v2728, 3
        %v2731 = vor.u32 %v2727, %v2730
        %v2732 = vsel %vm2589, %v2722, %v2731
        %v2734 = vshrl.u32 %v2327, 16
        %v2736 = vrot.slane %v2734, 2
        %v2737 = vshll.u32 %v2327, 16
        %v2739 = vrot.slane %v2737, 3
        %v2740 = vor.u32 %v2736, %v2739
        %v2741 = vsel %vm2589, %v2731, %v2740
        %v2743 = vshrl.u32 %v2328, 16
        %v2745 = vrot.slane %v2743, 2
        %v2746 = vshll.u32 %v2328, 16
        %v2748 = vrot.slane %v2746, 3
        %v2749 = vor.u32 %v2745, %v2748
        %v2750 = vsel %vm2589, %v2740, %v2749
        %v2752 = vshrl.u32 %v2588, 16
        %v2754 = vrot.slane %v2752, 2
        %v2755 = vshll.u32 %v2588, 16
        %v2757 = vrot.slane %v2755, 3
        %v2758 = vor.u32 %v2754, %v2757
        %v2759 = vsel %vm2589, %v2749, %v2758
        %v2794 = vunpack.c.l.b16 %v2570
        %v2795 = vunpack.c.l.b16 %v2571
        %v2796 = vunpack.c.l.b16 %v2572
        %v2797 = vunpack.c.l.b16 %v2573
        %v2798 = vunpack.c.l.b16 %v2574
        %v2799 = vunpack.c.l.b16 %v2575
        %v2800 = vunpack.c.l.b16 %v2576
        %v2801 = vunpack.c.l.b16 %v2577
        %v2802 = vunpack.c.l.b16 %v2578
        %v2803 = vunpack.c.l.b16 %v2579
        %v2804 = vunpack.c.l.b16 %v2580
        %v2805 = vunpack.c.l.b16 %v2581
        %v2806 = vunpack.c.l.b16 %v2582
        %v2807 = vunpack.c.l.b16 %v2583
        %v2808 = vunpack.c.l.b16 %v2584
        %v2809 = vunpack.c.l.b16 %v2585
        %v2810 = vpack.c.b16 %v2795, %v2794
        %v2811 = vpack.c.b16 %v2797, %v2796
        %v2812 = vpack.c.b16 %v2799, %v2798
        %v2813 = vpack.c.b16 %v2801, %v2800
        %v2814 = vpack.c.b16 %v2803, %v2802
        %v2815 = vpack.c.b16 %v2805, %v2804
        %v2816 = vpack.c.b16 %v2807, %v2806
        %v2817 = vpack.c.b16 %v2809, %v2808
        %2826 = vmatpush.bf16.msra.mxu0 %v2817
        %2827 = vmatpush.bf16.msra.mxu0 %v2816
        %2828 = vmatpush.bf16.msra.mxu0 %v2815
        %2829 = vmatpush.bf16.msra.mxu0 %v2814
        %2830 = vmatpush.bf16.msra.mxu0 %v2813
        %2831 = vmatpush.bf16.msra.mxu0 %v2812
        %2832 = vmatpush.bf16.msra.mxu0 %v2811
        %2833 = vmatpush.bf16.msra.mxu0 %v2810
        %2834 = vmatmul.bf16.gmra.mxu0 %v2606
        %v2835 = vpop.f32.mrf.mxu0
        %v2836 = vadd.f32 0.0, %v2835
        %v2837 = vpop.f32.mrf.mxu0
        %v2838 = vadd.f32 0.0, %v2837
        %2839 = vmatmul.bf16.gmra.mxu0 %v2615
        %v2840 = vpop.f32.mrf.mxu0
        %v2841 = vadd.f32 0.0, %v2840
        %v2842 = vpop.f32.mrf.mxu0
        %v2843 = vadd.f32 0.0, %v2842
        %2844 = vmatmul.bf16.gmra.mxu0 %v2624
        %v2845 = vpop.f32.mrf.mxu0
        %v2846 = vadd.f32 0.0, %v2845
        %v2847 = vpop.f32.mrf.mxu0
        %v2848 = vadd.f32 0.0, %v2847
        %2849 = vmatmul.bf16.gmra.mxu0 %v2633
        %v2850 = vpop.f32.mrf.mxu0
        %v2851 = vadd.f32 0.0, %v2850
        %v2852 = vpop.f32.mrf.mxu0
        %v2853 = vadd.f32 0.0, %v2852
        %2854 = vmatmul.bf16.gmra.mxu0 %v2642
        %v2855 = vpop.f32.mrf.mxu0
        %v2856 = vadd.f32 0.0, %v2855
        %v2857 = vpop.f32.mrf.mxu0
        %v2858 = vadd.f32 0.0, %v2857
        %2859 = vmatmul.bf16.gmra.mxu0 %v2651
        %v2860 = vpop.f32.mrf.mxu0
        %v2861 = vadd.f32 0.0, %v2860
        %v2862 = vpop.f32.mrf.mxu0
        %v2863 = vadd.f32 0.0, %v2862
        %2864 = vmatmul.bf16.gmra.mxu0 %v2660
        %v2865 = vpop.f32.mrf.mxu0
        %v2866 = vadd.f32 0.0, %v2865
        %v2867 = vpop.f32.mrf.mxu0
        %v2868 = vadd.f32 0.0, %v2867
        %2869 = vmatmul.bf16.gmra.mxu0 %v2669
        %v2870 = vpop.f32.mrf.mxu0
        %v2871 = vadd.f32 0.0, %v2870
        %v2872 = vpop.f32.mrf.mxu0
        %v2873 = vadd.f32 0.0, %v2872
        %2874 = vmatmul.bf16.gmra.mxu0 %v2678
        %v2875 = vpop.f32.mrf.mxu0
        %v2876 = vadd.f32 0.0, %v2875
        %v2877 = vpop.f32.mrf.mxu0
        %v2878 = vadd.f32 0.0, %v2877
        %2879 = vmatmul.bf16.gmra.mxu0 %v2687
        %v2880 = vpop.f32.mrf.mxu0
        %v2881 = vadd.f32 0.0, %v2880
        %v2882 = vpop.f32.mrf.mxu0
        %v2883 = vadd.f32 0.0, %v2882
        %2884 = vmatmul.bf16.gmra.mxu0 %v2696
        %v2885 = vpop.f32.mrf.mxu0
        %v2886 = vadd.f32 0.0, %v2885
        %v2887 = vpop.f32.mrf.mxu0
        %v2888 = vadd.f32 0.0, %v2887
        %2889 = vmatmul.bf16.gmra.mxu0 %v2705
        %v2890 = vpop.f32.mrf.mxu0
        %v2891 = vadd.f32 0.0, %v2890
        %v2892 = vpop.f32.mrf.mxu0
        %v2893 = vadd.f32 0.0, %v2892
        %2894 = vmatmul.bf16.gmra.mxu0 %v2714
        %v2895 = vpop.f32.mrf.mxu0
        %v2896 = vadd.f32 0.0, %v2895
        %v2897 = vpop.f32.mrf.mxu0
        %v2898 = vadd.f32 0.0, %v2897
        %2899 = vmatmul.bf16.gmra.mxu0 %v2723
        %v2900 = vpop.f32.mrf.mxu0
        %v2901 = vadd.f32 0.0, %v2900
        %v2902 = vpop.f32.mrf.mxu0
        %v2903 = vadd.f32 0.0, %v2902
        %2904 = vmatmul.bf16.gmra.mxu0 %v2732
        %v2905 = vpop.f32.mrf.mxu0
        %v2906 = vadd.f32 0.0, %v2905
        %v2907 = vpop.f32.mrf.mxu0
        %v2908 = vadd.f32 0.0, %v2907
        %2909 = vmatmul.bf16.gmra.mxu0 %v2741
        %v2910 = vpop.f32.mrf.mxu0
        %v2911 = vadd.f32 0.0, %v2910
        %v2912 = vpop.f32.mrf.mxu0
        %v2913 = vadd.f32 0.0, %v2912
        %2914 = vmatmul.bf16.gmra.mxu0 %v2750
        %v2915 = vpop.f32.mrf.mxu0
        %v2916 = vadd.f32 0.0, %v2915
        %v2917 = vpop.f32.mrf.mxu0
        %v2918 = vadd.f32 0.0, %v2917
        %2919 = vmatmul.bf16.gmra.mxu0 %v2759
        %v2920 = vpop.f32.mrf.mxu0
        %v2921 = vadd.f32 0.0, %v2920
        %v2922 = vpop.f32.mrf.mxu0
        %v2923 = vadd.f32 0.0, %v2922
        %2924 = vdwg.mxu0
        %v2925 = vadd.f32 %v2532, %v2836
        %v2926 = vadd.f32 %v2533, %v2838
        %v2927 = vadd.f32 %v2534, %v2841
        %v2928 = vadd.f32 %v2535, %v2843
        %v2929 = vadd.f32 %v2536, %v2846
        %v2930 = vadd.f32 %v2537, %v2848
        %v2931 = vadd.f32 %v2538, %v2851
        %v2932 = vadd.f32 %v2539, %v2853
        %v2933 = vadd.f32 %v2540, %v2856
        %v2934 = vadd.f32 %v2541, %v2858
        %v2935 = vadd.f32 %v2542, %v2861
        %v2936 = vadd.f32 %v2543, %v2863
        %v2937 = vadd.f32 %v2544, %v2866
        %v2938 = vadd.f32 %v2545, %v2868
        %v2939 = vadd.f32 %v2546, %v2871
        %v2940 = vadd.f32 %v2547, %v2873
        %v2941 = vadd.f32 %v2548, %v2876
        %v2942 = vadd.f32 %v2549, %v2878
        %v2943 = vadd.f32 %v2550, %v2881
        %v2944 = vadd.f32 %v2551, %v2883
        %v2945 = vadd.f32 %v2552, %v2886
        %v2946 = vadd.f32 %v2553, %v2888
        %v2947 = vadd.f32 %v2554, %v2891
        %v2948 = vadd.f32 %v2555, %v2893
        %v2949 = vadd.f32 %v2556, %v2896
        %v2950 = vadd.f32 %v2557, %v2898
        %v2951 = vadd.f32 %v2558, %v2901
        %v2952 = vadd.f32 %v2559, %v2903
        %v2953 = vadd.f32 %v2560, %v2906
        %v2954 = vadd.f32 %v2561, %v2908
        %v2955 = vadd.f32 %v2562, %v2911
        %v2956 = vadd.f32 %v2563, %v2913
        %v2957 = vadd.f32 %v2564, %v2916
        %v2958 = vadd.f32 %v2565, %v2918
        %v2959 = vadd.f32 %v2566, %v2921
        %v2960 = vadd.f32 %v2567, %v2923
        %v2961 = vld [vmem:[%s237 + $0x10] sm:$0x8]
        %s2962 = scalar_lea.vmem %s2, 512
        %v2963 = vld [vmem:[%s2962] sm:$0xf]
        %v2964 = vld [vmem:[%s2962 + $0x4] sm:$0xf]
        %v2965 = vld [vmem:[%s2962 + $0x8] sm:$0xf]
        %v2966 = vld [vmem:[%s2962 + $0xc] sm:$0xf]
        %v2967 = vld [vmem:[%s2962 + $0x10] sm:$0xf]
        %v2968 = vld [vmem:[%s2962 + $0x14] sm:$0xf]
        %v2969 = vld [vmem:[%s2962 + $0x18] sm:$0xf]
        %v2970 = vld [vmem:[%s2962 + $0x1c] sm:$0xf]
        %v2971 = vld [vmem:[%s2962 + $0x20] sm:$0xf]
        %v2972 = vld [vmem:[%s2962 + $0x24] sm:$0xf]
        %v2973 = vld [vmem:[%s2962 + $0x28] sm:$0xf]
        %v2974 = vld [vmem:[%s2962 + $0x2c] sm:$0xf]
        %v2975 = vld [vmem:[%s2962 + $0x30] sm:$0xf]
        %v2976 = vld [vmem:[%s2962 + $0x34] sm:$0xf]
        %v2977 = vld [vmem:[%s2962 + $0x38] sm:$0xf]
        %v2978 = vld [vmem:[%s2962 + $0x3c] sm:$0xf]
        %v2980 = vunpack.c.l.b16 %v2961
        %v2981 = vpack.c.b16 %v2275, %v2980
        %vm2982 = vcmask 1044480
        %v2983 = vrot.slane %v2981, 3
        %v2984 = vrot.slane %v2312, 3
        %v2985 = vsel %vm2982, %v2983, %v2984
        %v2986 = vrot.slane %v2313, 3
        %v2987 = vsel %vm2982, %v2984, %v2986
        %v2988 = vrot.slane %v2314, 3
        %v2989 = vsel %vm2982, %v2986, %v2988
        %v2990 = vrot.slane %v2315, 3
        %v2991 = vsel %vm2982, %v2988, %v2990
        %v2992 = vrot.slane %v2316, 3
        %v2993 = vsel %vm2982, %v2990, %v2992
        %v2994 = vrot.slane %v2317, 3
        %v2995 = vsel %vm2982, %v2992, %v2994
        %v2996 = vrot.slane %v2318, 3
        %v2997 = vsel %vm2982, %v2994, %v2996
        %v2998 = vrot.slane %v2319, 3
        %v2999 = vsel %vm2982, %v2996, %v2998
        %v3000 = vrot.slane %v2320, 3
        %v3001 = vsel %vm2982, %v2998, %v3000
        %v3002 = vrot.slane %v2321, 3
        %v3003 = vsel %vm2982, %v3000, %v3002
        %v3004 = vrot.slane %v2322, 3
        %v3005 = vsel %vm2982, %v3002, %v3004
        %v3006 = vrot.slane %v2323, 3
        %v3007 = vsel %vm2982, %v3004, %v3006
        %v3008 = vrot.slane %v2324, 3
        %v3009 = vsel %vm2982, %v3006, %v3008
        %v3010 = vrot.slane %v2325, 3
        %v3011 = vsel %vm2982, %v3008, %v3010
        %v3012 = vrot.slane %v2326, 3
        %v3013 = vsel %vm2982, %v3010, %v3012
        %v3014 = vrot.slane %v2327, 3
        %v3015 = vsel %vm2982, %v3012, %v3014
        %v3016 = vrot.slane %v2328, 3
        %v3017 = vsel %vm2982, %v3014, %v3016
        %v3018 = vrot.slane %v2588, 3
        %v3019 = vsel %vm2982, %v3016, %v3018
        %v3054 = vunpack.c.l.b16 %v2963
        %v3055 = vunpack.c.l.b16 %v2964
        %v3056 = vunpack.c.l.b16 %v2965
        %v3057 = vunpack.c.l.b16 %v2966
        %v3058 = vunpack.c.l.b16 %v2967
        %v3059 = vunpack.c.l.b16 %v2968
        %v3060 = vunpack.c.l.b16 %v2969
        %v3061 = vunpack.c.l.b16 %v2970
        %v3062 = vunpack.c.l.b16 %v2971
        %v3063 = vunpack.c.l.b16 %v2972
        %v3064 = vunpack.c.l.b16 %v2973
        %v3065 = vunpack.c.l.b16 %v2974
        %v3066 = vunpack.c.l.b16 %v2975
        %v3067 = vunpack.c.l.b16 %v2976
        %v3068 = vunpack.c.l.b16 %v2977
        %v3069 = vunpack.c.l.b16 %v2978
        %v3070 = vpack.c.b16 %v3055, %v3054
        %v3071 = vpack.c.b16 %v3057, %v3056
        %v3072 = vpack.c.b16 %v3059, %v3058
        %v3073 = vpack.c.b16 %v3061, %v3060
        %v3074 = vpack.c.b16 %v3063, %v3062
        %v3075 = vpack.c.b16 %v3065, %v3064
        %v3076 = vpack.c.b16 %v3067, %v3066
        %v3077 = vpack.c.b16 %v3069, %v3068
        %3086 = vmatpush.bf16.msra.mxu0 %v3077
        %3087 = vmatpush.bf16.msra.mxu0 %v3076
        %3088 = vmatpush.bf16.msra.mxu0 %v3075
        %3089 = vmatpush.bf16.msra.mxu0 %v3074
        %3090 = vmatpush.bf16.msra.mxu0 %v3073
        %3091 = vmatpush.bf16.msra.mxu0 %v3072
        %3092 = vmatpush.bf16.msra.mxu0 %v3071
        %3093 = vmatpush.bf16.msra.mxu0 %v3070
        %3094 = vmatmul.bf16.gmra.mxu0 %v2985
        %v3095 = vpop.f32.mrf.mxu0
        %v3096 = vadd.f32 0.0, %v3095
        %v3097 = vpop.f32.mrf.mxu0
        %v3098 = vadd.f32 0.0, %v3097
        %3099 = vmatmul.bf16.gmra.mxu0 %v2987
        %v3100 = vpop.f32.mrf.mxu0
        %v3101 = vadd.f32 0.0, %v3100
        %v3102 = vpop.f32.mrf.mxu0
        %v3103 = vadd.f32 0.0, %v3102
        %3104 = vmatmul.bf16.gmra.mxu0 %v2989
        %v3105 = vpop.f32.mrf.mxu0
        %v3106 = vadd.f32 0.0, %v3105
        %v3107 = vpop.f32.mrf.mxu0
        %v3108 = vadd.f32 0.0, %v3107
        %3109 = vmatmul.bf16.gmra.mxu0 %v2991
        %v3110 = vpop.f32.mrf.mxu0
        %v3111 = vadd.f32 0.0, %v3110
        %v3112 = vpop.f32.mrf.mxu0
        %v3113 = vadd.f32 0.0, %v3112
        %3114 = vmatmul.bf16.gmra.mxu0 %v2993
        %v3115 = vpop.f32.mrf.mxu0
        %v3116 = vadd.f32 0.0, %v3115
        %v3117 = vpop.f32.mrf.mxu0
        %v3118 = vadd.f32 0.0, %v3117
        %3119 = vmatmul.bf16.gmra.mxu0 %v2995
        %v3120 = vpop.f32.mrf.mxu0
        %v3121 = vadd.f32 0.0, %v3120
        %v3122 = vpop.f32.mrf.mxu0
        %v3123 = vadd.f32 0.0, %v3122
        %3124 = vmatmul.bf16.gmra.mxu0 %v2997
        %v3125 = vpop.f32.mrf.mxu0
        %v3126 = vadd.f32 0.0, %v3125
        %v3127 = vpop.f32.mrf.mxu0
        %v3128 = vadd.f32 0.0, %v3127
        %3129 = vmatmul.bf16.gmra.mxu0 %v2999
        %v3130 = vpop.f32.mrf.mxu0
        %v3131 = vadd.f32 0.0, %v3130
        %v3132 = vpop.f32.mrf.mxu0
        %v3133 = vadd.f32 0.0, %v3132
        %3134 = vmatmul.bf16.gmra.mxu0 %v3001
        %v3135 = vpop.f32.mrf.mxu0
        %v3136 = vadd.f32 0.0, %v3135
        %v3137 = vpop.f32.mrf.mxu0
        %v3138 = vadd.f32 0.0, %v3137
        %3139 = vmatmul.bf16.gmra.mxu0 %v3003
        %v3140 = vpop.f32.mrf.mxu0
        %v3141 = vadd.f32 0.0, %v3140
        %v3142 = vpop.f32.mrf.mxu0
        %v3143 = vadd.f32 0.0, %v3142
        %3144 = vmatmul.bf16.gmra.mxu0 %v3005
        %v3145 = vpop.f32.mrf.mxu0
        %v3146 = vadd.f32 0.0, %v3145
        %v3147 = vpop.f32.mrf.mxu0
        %v3148 = vadd.f32 0.0, %v3147
        %3149 = vmatmul.bf16.gmra.mxu0 %v3007
        %v3150 = vpop.f32.mrf.mxu0
        %v3151 = vadd.f32 0.0, %v3150
        %v3152 = vpop.f32.mrf.mxu0
        %v3153 = vadd.f32 0.0, %v3152
        %3154 = vmatmul.bf16.gmra.mxu0 %v3009
        %v3155 = vpop.f32.mrf.mxu0
        %v3156 = vadd.f32 0.0, %v3155
        %v3157 = vpop.f32.mrf.mxu0
        %v3158 = vadd.f32 0.0, %v3157
        %3159 = vmatmul.bf16.gmra.mxu0 %v3011
        %v3160 = vpop.f32.mrf.mxu0
        %v3161 = vadd.f32 0.0, %v3160
        %v3162 = vpop.f32.mrf.mxu0
        %v3163 = vadd.f32 0.0, %v3162
        %3164 = vmatmul.bf16.gmra.mxu0 %v3013
        %v3165 = vpop.f32.mrf.mxu0
        %v3166 = vadd.f32 0.0, %v3165
        %v3167 = vpop.f32.mrf.mxu0
        %v3168 = vadd.f32 0.0, %v3167
        %3169 = vmatmul.bf16.gmra.mxu0 %v3015
        %v3170 = vpop.f32.mrf.mxu0
        %v3171 = vadd.f32 0.0, %v3170
        %v3172 = vpop.f32.mrf.mxu0
        %v3173 = vadd.f32 0.0, %v3172
        %3174 = vmatmul.bf16.gmra.mxu0 %v3017
        %v3175 = vpop.f32.mrf.mxu0
        %v3176 = vadd.f32 0.0, %v3175
        %v3177 = vpop.f32.mrf.mxu0
        %v3178 = vadd.f32 0.0, %v3177
        %3179 = vmatmul.bf16.gmra.mxu0 %v3019
        %v3180 = vpop.f32.mrf.mxu0
        %v3181 = vadd.f32 0.0, %v3180
        %v3182 = vpop.f32.mrf.mxu0
        %v3183 = vadd.f32 0.0, %v3182
        %3184 = vdwg.mxu0
        %v3185 = vadd.f32 %v2925, %v3096
        %v3186 = vadd.f32 %v2926, %v3098
        %v3187 = vadd.f32 %v2927, %v3101
        %v3188 = vadd.f32 %v2928, %v3103
        %v3189 = vadd.f32 %v2929, %v3106
        %v3190 = vadd.f32 %v2930, %v3108
        %v3191 = vadd.f32 %v2931, %v3111
        %v3192 = vadd.f32 %v2932, %v3113
        %v3193 = vadd.f32 %v2933, %v3116
        %v3194 = vadd.f32 %v2934, %v3118
        %v3195 = vadd.f32 %v2935, %v3121
        %v3196 = vadd.f32 %v2936, %v3123
        %v3197 = vadd.f32 %v2937, %v3126
        %v3198 = vadd.f32 %v2938, %v3128
        %v3199 = vadd.f32 %v2939, %v3131
        %v3200 = vadd.f32 %v2940, %v3133
        %v3201 = vadd.f32 %v2941, %v3136
        %v3202 = vadd.f32 %v2942, %v3138
        %v3203 = vadd.f32 %v2943, %v3141
        %v3204 = vadd.f32 %v2944, %v3143
        %v3205 = vadd.f32 %v2945, %v3146
        %v3206 = vadd.f32 %v2946, %v3148
        %v3207 = vadd.f32 %v2947, %v3151
        %v3208 = vadd.f32 %v2948, %v3153
        %v3209 = vadd.f32 %v2949, %v3156
        %v3210 = vadd.f32 %v2950, %v3158
        %v3211 = vadd.f32 %v2951, %v3161
        %v3212 = vadd.f32 %v2952, %v3163
        %v3213 = vadd.f32 %v2953, %v3166
        %v3214 = vadd.f32 %v2954, %v3168
        %v3215 = vadd.f32 %v2955, %v3171
        %v3216 = vadd.f32 %v2956, %v3173
        %v3217 = vadd.f32 %v2957, %v3176
        %v3218 = vadd.f32 %v2958, %v3178
        %v3219 = vadd.f32 %v2959, %v3181
        %v3220 = vadd.f32 %v2960, %v3183
        %v3257 = vrot.slane %v3185, 2
        %v3258 = vrot.slane %v3185, 4
        %v3259 = vrot.slane %v3185, 6
        %v3260 = vrot.slane %v3186, 2
        %v3261 = vrot.slane %v3186, 4
        %v3262 = vrot.slane %v3186, 6
        %v3263 = vrot.slane %v3187, 2
        %v3264 = vrot.slane %v3187, 4
        %v3265 = vrot.slane %v3187, 6
        %v3266 = vrot.slane %v3188, 2
        %v3267 = vrot.slane %v3188, 4
        %v3268 = vrot.slane %v3188, 6
        %v3269 = vrot.slane %v3189, 4
        %v3270 = vrot.slane %v3189, 6
        %v3271 = vrot.slane %v3190, 2
        %v3272 = vrot.slane %v3190, 4
        %v3273 = vrot.slane %v3190, 6
        %v3274 = vrot.slane %v3191, 2
        %v3275 = vrot.slane %v3191, 6
        %v3276 = vrot.slane %v3192, 2
        %v3277 = vrot.slane %v3192, 4
        %v3278 = vrot.slane %v3192, 6
        %v3279 = vrot.slane %v3193, 2
        %v3280 = vrot.slane %v3193, 4
        %v3281 = vrot.slane %v3194, 2
        %v3282 = vrot.slane %v3194, 4
        %v3283 = vrot.slane %v3194, 6
        %v3284 = vrot.slane %v3195, 2
        %v3285 = vrot.slane %v3195, 4
        %v3286 = vrot.slane %v3195, 6
        %v3287 = vrot.slane %v3196, 2
        %v3288 = vrot.slane %v3196, 4
        %v3289 = vrot.slane %v3196, 6
        %v3290 = vrot.slane %v3197, 2
        %v3291 = vrot.slane %v3197, 4
        %v3292 = vrot.slane %v3197, 6
        %v3293 = vrot.slane %v3198, 4
        %v3294 = vrot.slane %v3198, 6
        %v3295 = vrot.slane %v3199, 2
        %v3296 = vrot.slane %v3199, 4
        %v3297 = vrot.slane %v3199, 6
        %v3298 = vrot.slane %v3200, 2
        %v3299 = vrot.slane %v3200, 6
        %v3300 = vrot.slane %v3201, 2
        %v3301 = vrot.slane %v3201, 4
        %v3302 = vrot.slane %v3201, 6
        %v3303 = vrot.slane %v3202, 2
        %v3304 = vrot.slane %v3202, 4
        %v3305 = vrot.slane %v3203, 2
        %v3306 = vrot.slane %v3203, 4
        %v3307 = vrot.slane %v3203, 6
        %v3308 = vrot.slane %v3204, 2
        %v3309 = vrot.slane %v3204, 4
        %v3310 = vrot.slane %v3204, 6
        %v3311 = vrot.slane %v3205, 2
        %v3312 = vrot.slane %v3205, 4
        %v3313 = vrot.slane %v3205, 6
        %v3314 = vrot.slane %v3206, 2
        %v3315 = vrot.slane %v3206, 4
        %v3316 = vrot.slane %v3206, 6
        %v3317 = vrot.slane %v3207, 4
        %v3318 = vrot.slane %v3207, 6
        %v3319 = vrot.slane %v3208, 2
        %v3320 = vrot.slane %v3208, 4
        %v3321 = vrot.slane %v3208, 6
        %v3322 = vrot.slane %v3209, 2
        %v3323 = vrot.slane %v3209, 6
        %v3324 = vrot.slane %v3210, 2
        %v3325 = vrot.slane %v3210, 4
        %v3326 = vrot.slane %v3210, 6
        %v3327 = vrot.slane %v3211, 2
        %v3328 = vrot.slane %v3211, 4
        %v3329 = vrot.slane %v3212, 2
        %v3330 = vrot.slane %v3212, 4
        %v3331 = vrot.slane %v3212, 6
        %v3332 = vrot.slane %v3213, 2
        %v3333 = vrot.slane %v3213, 4
        %v3334 = vrot.slane %v3213, 6
        %v3335 = vrot.slane %v3214, 2
        %v3336 = vrot.slane %v3214, 4
        %v3337 = vrot.slane %v3214, 6
        %v3338 = vrot.slane %v3215, 2
        %v3339 = vrot.slane %v3215, 4
        %v3340 = vrot.slane %v3215, 6
        %v3341 = vrot.slane %v3216, 4
        %v3342 = vrot.slane %v3216, 6
        %v3343 = vrot.slane %v3217, 2
        %v3344 = vrot.slane %v3217, 4
        %v3345 = vrot.slane %v3217, 6
        %v3346 = vrot.slane %v3218, 2
        %v3347 = vrot.slane %v3218, 6
        %v3348 = vrot.slane %v3219, 2
        %v3349 = vrot.slane %v3219, 4
        %v3350 = vrot.slane %v3219, 6
        %v3351 = vrot.slane %v3220, 2
        %v3352 = vrot.slane %v3220, 4
        %3449 = vst [vmem:[#allocation1] ss:$4 sm:$0xff] %v3185
        %s3450 = scalar_lea.vmem [#allocation1], 1
        %3451 = vst [vmem:[%s3450] ss:$4 sm:$0xff] %v3257
        %s3452 = scalar_lea.vmem [#allocation1], 2
        %3453 = vst [vmem:[%s3452] ss:$4 sm:$0xff] %v3258
        %s3454 = scalar_lea.vmem [#allocation1], 3
        %3455 = vst [vmem:[%s3454] ss:$4 sm:$0xff] %v3259
        %s3456 = scalar_lea.vmem [#allocation1], 32
        %3457 = vst [vmem:[%s3456] ss:$4 sm:$0xff] %v3186
        %s3458 = scalar_lea.vmem [#allocation1], 33
        %3459 = vst [vmem:[%s3458] ss:$4 sm:$0xff] %v3260
        %s3460 = scalar_lea.vmem [#allocation1], 34
        %3461 = vst [vmem:[%s3460] ss:$4 sm:$0xff] %v3261
        %s3462 = scalar_lea.vmem [#allocation1], 35
        %3463 = vst [vmem:[%s3462] ss:$4 sm:$0xff] %v3262
        %v3464 = vld.sshfl [vmem:[#allocation1] sm:$0xff pattern:$0x73625140]
        %v3465 = vld.sshfl [vmem:[#allocation1 + $0x20] sm:$0xff pattern:$0x73625140]
        %3466 = vst [vmem:[#allocation1] ss:$4 sm:$0xff] %v3263
        %3467 = vst [vmem:[%s3450] ss:$4 sm:$0xff] %v3264
        %3468 = vst [vmem:[%s3452] ss:$4 sm:$0xff] %v3265
        %3469 = vst [vmem:[%s3454] ss:$4 sm:$0xff] %v3188
        %3470 = vst [vmem:[%s3456] ss:$4 sm:$0xff] %v3266
        %3471 = vst [vmem:[%s3458] ss:$4 sm:$0xff] %v3267
        %3472 = vst [vmem:[%s3460] ss:$4 sm:$0xff] %v3268
        %3473 = vst [vmem:[%s3462] ss:$4 sm:$0xff] %v3189
        %v3474 = vld.sshfl [vmem:[#allocation1] sm:$0xff pattern:$0x73625140]
        %v3475 = vld.sshfl [vmem:[#allocation1 + $0x20] sm:$0xff pattern:$0x73625140]
        %3476 = vst [vmem:[#allocation1] ss:$4 sm:$0xff] %v3269
        %3477 = vst [vmem:[%s3450] ss:$4 sm:$0xff] %v3270
        %3478 = vst [vmem:[%s3452] ss:$4 sm:$0xff] %v3190
        %3479 = vst [vmem:[%s3454] ss:$4 sm:$0xff] %v3271
        %3480 = vst [vmem:[%s3456] ss:$4 sm:$0xff] %v3272
        %3481 = vst [vmem:[%s3458] ss:$4 sm:$0xff] %v3273
        %3482 = vst [vmem:[%s3460] ss:$4 sm:$0xff] %v3191
        %3483 = vst [vmem:[%s3462] ss:$4 sm:$0xff] %v3274
        %v3484 = vld.sshfl [vmem:[#allocation1] sm:$0xff pattern:$0x73625140]
        %v3485 = vld.sshfl [vmem:[#allocation1 + $0x20] sm:$0xff pattern:$0x73625140]
        %3486 = vst [vmem:[#allocation1] ss:$4 sm:$0xff] %v3275
        %3487 = vst [vmem:[%s3450] ss:$4 sm:$0xff] %v3192
        %3488 = vst [vmem:[%s3452] ss:$4 sm:$0xff] %v3276
        %3489 = vst [vmem:[%s3454] ss:$4 sm:$0xff] %v3277
        %3490 = vst [vmem:[%s3456] ss:$4 sm:$0xff] %v3278
        %3491 = vst [vmem:[%s3458] ss:$4 sm:$0xff] %v3193
        %3492 = vst [vmem:[%s3460] ss:$4 sm:$0xff] %v3279
        %3493 = vst [vmem:[%s3462] ss:$4 sm:$0xff] %v3280
        %v3494 = vld.sshfl [vmem:[#allocation1] sm:$0xff pattern:$0x73625140]
        %v3495 = vld.sshfl [vmem:[#allocation1 + $0x20] sm:$0xff pattern:$0x73625140]
        %3496 = vst [vmem:[#allocation1] ss:$4 sm:$0xff] %v3194
        %3497 = vst [vmem:[%s3450] ss:$4 sm:$0xff] %v3281
        %3498 = vst [vmem:[%s3452] ss:$4 sm:$0xff] %v3282
        %3499 = vst [vmem:[%s3454] ss:$4 sm:$0xff] %v3283
        %3500 = vst [vmem:[%s3456] ss:$4 sm:$0xff] %v3195
        %3501 = vst [vmem:[%s3458] ss:$4 sm:$0xff] %v3284
        %3502 = vst [vmem:[%s3460] ss:$4 sm:$0xff] %v3285
        %3503 = vst [vmem:[%s3462] ss:$4 sm:$0xff] %v3286
        %v3504 = vld.sshfl [vmem:[#allocation1] sm:$0xff pattern:$0x73625140]
        %v3505 = vld.sshfl [vmem:[#allocation1 + $0x20] sm:$0xff pattern:$0x73625140]
        %3506 = vst [vmem:[#allocation1] ss:$4 sm:$0xff] %v3287
        %3507 = vst [vmem:[%s3450] ss:$4 sm:$0xff] %v3288
        %3508 = vst [vmem:[%s3452] ss:$4 sm:$0xff] %v3289
        %3509 = vst [vmem:[%s3454] ss:$4 sm:$0xff] %v3197
        %3510 = vst [vmem:[%s3456] ss:$4 sm:$0xff] %v3290
        %3511 = vst [vmem:[%s3458] ss:$4 sm:$0xff] %v3291
        %3512 = vst [vmem:[%s3460] ss:$4 sm:$0xff] %v3292
        %3513 = vst [vmem:[%s3462] ss:$4 sm:$0xff] %v3198
        %v3514 = vld.sshfl [vmem:[#allocation1] sm:$0xff pattern:$0x73625140]
        %v3515 = vld.sshfl [vmem:[#allocation1 + $0x20] sm:$0xff pattern:$0x73625140]
        %3516 = vst [vmem:[#allocation1] ss:$4 sm:$0xff] %v3293
        %3517 = vst [vmem:[%s3450] ss:$4 sm:$0xff] %v3294
        %3518 = vst [vmem:[%s3452] ss:$4 sm:$0xff] %v3199
        %3519 = vst [vmem:[%s3454] ss:$4 sm:$0xff] %v3295
        %3520 = vst [vmem:[%s3456] ss:$4 sm:$0xff] %v3296
        %3521 = vst [vmem:[%s3458] ss:$4 sm:$0xff] %v3297
        %3522 = vst [vmem:[%s3460] ss:$4 sm:$0xff] %v3200
        %3523 = vst [vmem:[%s3462] ss:$4 sm:$0xff] %v3298
        %v3524 = vld.sshfl [vmem:[#allocation1] sm:$0xff pattern:$0x73625140]
        %v3525 = vld.sshfl [vmem:[#allocation1 + $0x20] sm:$0xff pattern:$0x73625140]
        %3526 = vst [vmem:[#allocation1] ss:$4 sm:$0xff] %v3299
        %3527 = vst [vmem:[%s3450] ss:$4 sm:$0xff] %v3201
        %3528 = vst [vmem:[%s3452] ss:$4 sm:$0xff] %v3300
        %3529 = vst [vmem:[%s3454] ss:$4 sm:$0xff] %v3301
        %3530 = vst [vmem:[%s3456] ss:$4 sm:$0xff] %v3302
        %3531 = vst [vmem:[%s3458] ss:$4 sm:$0xff] %v3202
        %3532 = vst [vmem:[%s3460] ss:$4 sm:$0xff] %v3303
        %3533 = vst [vmem:[%s3462] ss:$4 sm:$0xff] %v3304
        %v3534 = vld.sshfl [vmem:[#allocation1] sm:$0xff pattern:$0x73625140]
        %v3535 = vld.sshfl [vmem:[#allocation1 + $0x20] sm:$0xff pattern:$0x73625140]
        %3536 = vst [vmem:[#allocation1] ss:$4 sm:$0xff] %v3203
        %3537 = vst [vmem:[%s3450] ss:$4 sm:$0xff] %v3305
        %3538 = vst [vmem:[%s3452] ss:$4 sm:$0xff] %v3306
        %3539 = vst [vmem:[%s3454] ss:$4 sm:$0xff] %v3307
        %3540 = vst [vmem:[%s3456] ss:$4 sm:$0xff] %v3204
        %3541 = vst [vmem:[%s3458] ss:$4 sm:$0xff] %v3308
        %3542 = vst [vmem:[%s3460] ss:$4 sm:$0xff] %v3309
        %3543 = vst [vmem:[%s3462] ss:$4 sm:$0xff] %v3310
        %v3544 = vld.sshfl [vmem:[#allocation1] sm:$0xff pattern:$0x73625140]
        %v3545 = vld.sshfl [vmem:[#allocation1 + $0x20] sm:$0xff pattern:$0x73625140]
        %3546 = vst [vmem:[#allocation1] ss:$4 sm:$0xff] %v3311
        %3547 = vst [vmem:[%s3450] ss:$4 sm:$0xff] %v3312
        %3548 = vst [vmem:[%s3452] ss:$4 sm:$0xff] %v3313
        %3549 = vst [vmem:[%s3454] ss:$4 sm:$0xff] %v3206
        %3550 = vst [vmem:[%s3456] ss:$4 sm:$0xff] %v3314
        %3551 = vst [vmem:[%s3458] ss:$4 sm:$0xff] %v3315
        %3552 = vst [vmem:[%s3460] ss:$4 sm:$0xff] %v3316
        %3553 = vst [vmem:[%s3462] ss:$4 sm:$0xff] %v3207
        %v3554 = vld.sshfl [vmem:[#allocation1] sm:$0xff pattern:$0x73625140]
        %v3555 = vld.sshfl [vmem:[#allocation1 + $0x20] sm:$0xff pattern:$0x73625140]
        %3556 = vst [vmem:[#allocation1] ss:$4 sm:$0xff] %v3317
        %3557 = vst [vmem:[%s3450] ss:$4 sm:$0xff] %v3318
        %3558 = vst [vmem:[%s3452] ss:$4 sm:$0xff] %v3208
        %3559 = vst [vmem:[%s3454] ss:$4 sm:$0xff] %v3319
        %3560 = vst [vmem:[%s3456] ss:$4 sm:$0xff] %v3320
        %3561 = vst [vmem:[%s3458] ss:$4 sm:$0xff] %v3321
        %3562 = vst [vmem:[%s3460] ss:$4 sm:$0xff] %v3209
        %3563 = vst [vmem:[%s3462] ss:$4 sm:$0xff] %v3322
        %v3564 = vld.sshfl [vmem:[#allocation1] sm:$0xff pattern:$0x73625140]
        %v3565 = vld.sshfl [vmem:[#allocation1 + $0x20] sm:$0xff pattern:$0x73625140]
        %3566 = vst [vmem:[#allocation1] ss:$4 sm:$0xff] %v3323
        %3567 = vst [vmem:[%s3450] ss:$4 sm:$0xff] %v3210
        %3568 = vst [vmem:[%s3452] ss:$4 sm:$0xff] %v3324
        %3569 = vst [vmem:[%s3454] ss:$4 sm:$0xff] %v3325
        %3570 = vst [vmem:[%s3456] ss:$4 sm:$0xff] %v3326
        %3571 = vst [vmem:[%s3458] ss:$4 sm:$0xff] %v3211
        %3572 = vst [vmem:[%s3460] ss:$4 sm:$0xff] %v3327
        %3573 = vst [vmem:[%s3462] ss:$4 sm:$0xff] %v3328
        %v3574 = vld.sshfl [vmem:[#allocation1] sm:$0xff pattern:$0x73625140]
        %v3575 = vld.sshfl [vmem:[#allocation1 + $0x20] sm:$0xff pattern:$0x73625140]
        %3576 = vst [vmem:[#allocation1] ss:$4 sm:$0xff] %v3212
        %3577 = vst [vmem:[%s3450] ss:$4 sm:$0xff] %v3329
        %3578 = vst [vmem:[%s3452] ss:$4 sm:$0xff] %v3330
        %3579 = vst [vmem:[%s3454] ss:$4 sm:$0xff] %v3331
        %3580 = vst [vmem:[%s3456] ss:$4 sm:$0xff] %v3213
        %3581 = vst [vmem:[%s3458] ss:$4 sm:$0xff] %v3332
        %3582 = vst [vmem:[%s3460] ss:$4 sm:$0xff] %v3333
        %3583 = vst [vmem:[%s3462] ss:$4 sm:$0xff] %v3334
        %v3584 = vld.sshfl [vmem:[#allocation1] sm:$0xff pattern:$0x73625140]
        %v3585 = vld.sshfl [vmem:[#allocation1 + $0x20] sm:$0xff pattern:$0x73625140]
        %3586 = vst [vmem:[#allocation1] ss:$4 sm:$0xff] %v3335
        %3587 = vst [vmem:[%s3450] ss:$4 sm:$0xff] %v3336
        %3588 = vst [vmem:[%s3452] ss:$4 sm:$0xff] %v3337
        %3589 = vst [vmem:[%s3454] ss:$4 sm:$0xff] %v3215
        %3590 = vst [vmem:[%s3456] ss:$4 sm:$0xff] %v3338
        %3591 = vst [vmem:[%s3458] ss:$4 sm:$0xff] %v3339
        %3592 = vst [vmem:[%s3460] ss:$4 sm:$0xff] %v3340
        %3593 = vst [vmem:[%s3462] ss:$4 sm:$0xff] %v3216
        %v3594 = vld.sshfl [vmem:[#allocation1] sm:$0xff pattern:$0x73625140]
        %v3595 = vld.sshfl [vmem:[#allocation1 + $0x20] sm:$0xff pattern:$0x73625140]
        %3596 = vst [vmem:[#allocation1] ss:$4 sm:$0xff] %v3341
        %3597 = vst [vmem:[%s3450] ss:$4 sm:$0xff] %v3342
        %3598 = vst [vmem:[%s3452] ss:$4 sm:$0xff] %v3217
        %3599 = vst [vmem:[%s3454] ss:$4 sm:$0xff] %v3343
        %3600 = vst [vmem:[%s3456] ss:$4 sm:$0xff] %v3344
        %3601 = vst [vmem:[%s3458] ss:$4 sm:$0xff] %v3345
        %3602 = vst [vmem:[%s3460] ss:$4 sm:$0xff] %v3218
        %3603 = vst [vmem:[%s3462] ss:$4 sm:$0xff] %v3346
        %v3604 = vld.sshfl [vmem:[#allocation1] sm:$0xff pattern:$0x73625140]
        %v3605 = vld.sshfl [vmem:[#allocation1 + $0x20] sm:$0xff pattern:$0x73625140]
        %3606 = vst [vmem:[#allocation1] ss:$4 sm:$0xff] %v3347
        %3607 = vst [vmem:[%s3450] ss:$4 sm:$0xff] %v3219
        %3608 = vst [vmem:[%s3452] ss:$4 sm:$0xff] %v3348
        %3609 = vst [vmem:[%s3454] ss:$4 sm:$0xff] %v3349
        %3610 = vst [vmem:[%s3456] ss:$4 sm:$0xff] %v3350
        %3611 = vst [vmem:[%s3458] ss:$4 sm:$0xff] %v3220
        %3612 = vst [vmem:[%s3460] ss:$4 sm:$0xff] %v3351
        %3613 = vst [vmem:[%s3462] ss:$4 sm:$0xff] %v3352
        %v3614 = vld.sshfl [vmem:[#allocation1] sm:$0xff pattern:$0x73625140]
        %v3615 = vld.sshfl [vmem:[#allocation1 + $0x20] sm:$0xff pattern:$0x73625140]
        %v3648 = vadd.f32 %v3464, %v3465
        %v3649 = vadd.f32 %v3648, %v3474
        %v3650 = vadd.f32 %v3649, %v3475
        %v3651 = vadd.f32 %v3650, %v3484
        %v3652 = vadd.f32 %v3651, %v3485
        %v3653 = vadd.f32 %v3652, %v3494
        %v3654 = vadd.f32 %v3653, %v3495
        %v3655 = vadd.f32 %v3654, %v3504
        %v3656 = vadd.f32 %v3655, %v3505
        %v3657 = vadd.f32 %v3656, %v3514
        %v3658 = vadd.f32 %v3657, %v3515
        %v3659 = vadd.f32 %v3658, %v3524
        %v3660 = vadd.f32 %v3659, %v3525
        %v3661 = vadd.f32 %v3660, %v3534
        %v3662 = vadd.f32 %v3661, %v3535
        %v3663 = vadd.f32 %v3662, %v3544
        %v3664 = vadd.f32 %v3663, %v3545
        %v3665 = vadd.f32 %v3664, %v3554
        %v3666 = vadd.f32 %v3665, %v3555
        %v3667 = vadd.f32 %v3666, %v3564
        %v3668 = vadd.f32 %v3667, %v3565
        %v3669 = vadd.f32 %v3668, %v3574
        %v3670 = vadd.f32 %v3669, %v3575
        %v3671 = vadd.f32 %v3670, %v3584
        %v3672 = vadd.f32 %v3671, %v3585
        %v3673 = vadd.f32 %v3672, %v3594
        %v3674 = vadd.f32 %v3673, %v3595
        %v3675 = vadd.f32 %v3674, %v3604
        %v3676 = vadd.f32 %v3675, %v3605
        %v3677 = vadd.f32 %v3676, %v3614
        %v3678 = vadd.f32 %v3677, %v3615
        %v3679 = vrot.slane %v3678, 4
        %v3680 = vadd.f32 %v3678, %v3679
        %v3681 = vrot.slane %v3680, 2
        %v3682 = vadd.f32 %v3680, %v3681
        %v3683 = vrot.slane %v3682, 1
        %v3684 = vadd.f32 %v3682, %v3683
        %v3685 = vmul.f32 %v3684, 0.00390625
        %v3687 = vrot.slane %v3685, 2
        %v3688 = vrot.slane %v3685, 4
        %v3689 = vrot.slane %v3685, 6
        %v3693 = vsub.f32 %v3185, %v3685
        %v3694 = vsub.f32 %v3257, %v3687
        %v3695 = vsub.f32 %v3258, %v3688
        %v3696 = vsub.f32 %v3259, %v3689
        %v3697 = vsub.f32 %v3186, %v3685
        %v3698 = vsub.f32 %v3260, %v3687
        %v3699 = vsub.f32 %v3261, %v3688
        %v3700 = vsub.f32 %v3262, %v3689
        %v3701 = vsub.f32 %v3263, %v3685
        %v3702 = vsub.f32 %v3264, %v3687
        %v3703 = vsub.f32 %v3265, %v3688
        %v3704 = vsub.f32 %v3188, %v3689
        %v3705 = vsub.f32 %v3266, %v3685
        %v3706 = vsub.f32 %v3267, %v3687
        %v3707 = vsub.f32 %v3268, %v3688
        %v3708 = vsub.f32 %v3189, %v3689
        %v3709 = vsub.f32 %v3269, %v3685
        %v3710 = vsub.f32 %v3270, %v3687
        %v3711 = vsub.f32 %v3190, %v3688
        %v3712 = vsub.f32 %v3271, %v3689
        %v3713 = vsub.f32 %v3272, %v3685
        %v3714 = vsub.f32 %v3273, %v3687
        %v3715 = vsub.f32 %v3191, %v3688
        %v3716 = vsub.f32 %v3274, %v3689
        %v3717 = vsub.f32 %v3275, %v3685
        %v3718 = vsub.f32 %v3192, %v3687
        %v3719 = vsub.f32 %v3276, %v3688
        %v3720 = vsub.f32 %v3277, %v3689
        %v3721 = vsub.f32 %v3278, %v3685
        %v3722 = vsub.f32 %v3193, %v3687
        %v3723 = vsub.f32 %v3279, %v3688
        %v3724 = vsub.f32 %v3280, %v3689
        %v3725 = vsub.f32 %v3194, %v3685
        %v3726 = vsub.f32 %v3281, %v3687
        %v3727 = vsub.f32 %v3282, %v3688
        %v3728 = vsub.f32 %v3283, %v3689
        %v3729 = vsub.f32 %v3195, %v3685
        %v3730 = vsub.f32 %v3284, %v3687
        %v3731 = vsub.f32 %v3285, %v3688
        %v3732 = vsub.f32 %v3286, %v3689
        %v3733 = vsub.f32 %v3287, %v3685
        %v3734 = vsub.f32 %v3288, %v3687
        %v3735 = vsub.f32 %v3289, %v3688
        %v3736 = vsub.f32 %v3197, %v3689
        %v3737 = vsub.f32 %v3290, %v3685
        %v3738 = vsub.f32 %v3291, %v3687
        %v3739 = vsub.f32 %v3292, %v3688
        %v3740 = vsub.f32 %v3198, %v3689
        %v3741 = vsub.f32 %v3293, %v3685
        %v3742 = vsub.f32 %v3294, %v3687
        %v3743 = vsub.f32 %v3199, %v3688
        %v3744 = vsub.f32 %v3295, %v3689
        %v3745 = vsub.f32 %v3296, %v3685
        %v3746 = vsub.f32 %v3297, %v3687
        %v3747 = vsub.f32 %v3200, %v3688
        %v3748 = vsub.f32 %v3298, %v3689
        %v3749 = vsub.f32 %v3299, %v3685
        %v3750 = vsub.f32 %v3201, %v3687
        %v3751 = vsub.f32 %v3300, %v3688
        %v3752 = vsub.f32 %v3301, %v3689
        %v3753 = vsub.f32 %v3302, %v3685
        %v3754 = vsub.f32 %v3202, %v3687
        %v3755 = vsub.f32 %v3303, %v3688
        %v3756 = vsub.f32 %v3304, %v3689
        %v3757 = vsub.f32 %v3203, %v3685
        %v3758 = vsub.f32 %v3305, %v3687
        %v3759 = vsub.f32 %v3306, %v3688
        %v3760 = vsub.f32 %v3307, %v3689
        %v3761 = vsub.f32 %v3204, %v3685
        %v3762 = vsub.f32 %v3308, %v3687
        %v3763 = vsub.f32 %v3309, %v3688
        %v3764 = vsub.f32 %v3310, %v3689
        %v3765 = vsub.f32 %v3311, %v3685
        %v3766 = vsub.f32 %v3312, %v3687
        %v3767 = vsub.f32 %v3313, %v3688
        %v3768 = vsub.f32 %v3206, %v3689
        %v3769 = vsub.f32 %v3314, %v3685
        %v3770 = vsub.f32 %v3315, %v3687
        %v3771 = vsub.f32 %v3316, %v3688
        %v3772 = vsub.f32 %v3207, %v3689
        %v3773 = vsub.f32 %v3317, %v3685
        %v3774 = vsub.f32 %v3318, %v3687
        %v3775 = vsub.f32 %v3208, %v3688
        %v3776 = vsub.f32 %v3319, %v3689
        %v3777 = vsub.f32 %v3320, %v3685
        %v3778 = vsub.f32 %v3321, %v3687
        %v3779 = vsub.f32 %v3209, %v3688
        %v3780 = vsub.f32 %v3322, %v3689
        %v3781 = vsub.f32 %v3323, %v3685
        %v3782 = vsub.f32 %v3210, %v3687
        %v3783 = vsub.f32 %v3324, %v3688
        %v3784 = vsub.f32 %v3325, %v3689
        %v3785 = vsub.f32 %v3326, %v3685
        %v3786 = vsub.f32 %v3211, %v3687
        %v3787 = vsub.f32 %v3327, %v3688
        %v3788 = vsub.f32 %v3328, %v3689
        %v3789 = vsub.f32 %v3212, %v3685
        %v3790 = vsub.f32 %v3329, %v3687
        %v3791 = vsub.f32 %v3330, %v3688
        %v3792 = vsub.f32 %v3331, %v3689
        %v3793 = vsub.f32 %v3213, %v3685
        %v3794 = vsub.f32 %v3332, %v3687
        %v3795 = vsub.f32 %v3333, %v3688
        %v3796 = vsub.f32 %v3334, %v3689
        %v3797 = vsub.f32 %v3335, %v3685
        %v3798 = vsub.f32 %v3336, %v3687
        %v3799 = vsub.f32 %v3337, %v3688
        %v3800 = vsub.f32 %v3215, %v3689
        %v3801 = vsub.f32 %v3338, %v3685
        %v3802 = vsub.f32 %v3339, %v3687
        %v3803 = vsub.f32 %v3340, %v3688
        %v3804 = vsub.f32 %v3216, %v3689
        %v3805 = vsub.f32 %v3341, %v3685
        %v3806 = vsub.f32 %v3342, %v3687
        %v3807 = vsub.f32 %v3217, %v3688
        %v3808 = vsub.f32 %v3343, %v3689
        %v3809 = vsub.f32 %v3344, %v3685
        %v3810 = vsub.f32 %v3345, %v3687
        %v3811 = vsub.f32 %v3218, %v3688
        %v3812 = vsub.f32 %v3346, %v3689
        %v3813 = vsub.f32 %v3347, %v3685
        %v3814 = vsub.f32 %v3219, %v3687
        %v3815 = vsub.f32 %v3348, %v3688
        %v3816 = vsub.f32 %v3349, %v3689
        %v3817 = vsub.f32 %v3350, %v3685
        %v3818 = vsub.f32 %v3220, %v3687
        %v3819 = vsub.f32 %v3351, %v3688
        %v3820 = vsub.f32 %v3352, %v3689
        %v3821 = vmul.f32 %v3693, %v3693
        %v3822 = vmul.f32 %v3694, %v3694
        %v3823 = vmul.f32 %v3695, %v3695
        %v3824 = vmul.f32 %v3696, %v3696
        %v3825 = vmul.f32 %v3697, %v3697
        %v3826 = vmul.f32 %v3698, %v3698
        %v3827 = vmul.f32 %v3699, %v3699
        %v3828 = vmul.f32 %v3700, %v3700
        %v3829 = vmul.f32 %v3701, %v3701
        %v3830 = vmul.f32 %v3702, %v3702
        %v3831 = vmul.f32 %v3703, %v3703
        %v3832 = vmul.f32 %v3704, %v3704
        %v3833 = vmul.f32 %v3705, %v3705
        %v3834 = vmul.f32 %v3706, %v3706
        %v3835 = vmul.f32 %v3707, %v3707
        %v3836 = vmul.f32 %v3708, %v3708
        %v3837 = vmul.f32 %v3709, %v3709
        %v3838 = vmul.f32 %v3710, %v3710
        %v3839 = vmul.f32 %v3711, %v3711
        %v3840 = vmul.f32 %v3712, %v3712
        %v3841 = vmul.f32 %v3713, %v3713
        %v3842 = vmul.f32 %v3714, %v3714
        %v3843 = vmul.f32 %v3715, %v3715
        %v3844 = vmul.f32 %v3716, %v3716
        %v3845 = vmul.f32 %v3717, %v3717
        %v3846 = vmul.f32 %v3718, %v3718
        %v3847 = vmul.f32 %v3719, %v3719
        %v3848 = vmul.f32 %v3720, %v3720
        %v3849 = vmul.f32 %v3721, %v3721
        %v3850 = vmul.f32 %v3722, %v3722
        %v3851 = vmul.f32 %v3723, %v3723
        %v3852 = vmul.f32 %v3724, %v3724
        %v3853 = vmul.f32 %v3725, %v3725
        %v3854 = vmul.f32 %v3726, %v3726
        %v3855 = vmul.f32 %v3727, %v3727
        %v3856 = vmul.f32 %v3728, %v3728
        %v3857 = vmul.f32 %v3729, %v3729
        %v3858 = vmul.f32 %v3730, %v3730
        %v3859 = vmul.f32 %v3731, %v3731
        %v3860 = vmul.f32 %v3732, %v3732
        %v3861 = vmul.f32 %v3733, %v3733
        %v3862 = vmul.f32 %v3734, %v3734
        %v3863 = vmul.f32 %v3735, %v3735
        %v3864 = vmul.f32 %v3736, %v3736
        %v3865 = vmul.f32 %v3737, %v3737
        %v3866 = vmul.f32 %v3738, %v3738
        %v3867 = vmul.f32 %v3739, %v3739
        %v3868 = vmul.f32 %v3740, %v3740
        %v3869 = vmul.f32 %v3741, %v3741
        %v3870 = vmul.f32 %v3742, %v3742
        %v3871 = vmul.f32 %v3743, %v3743
        %v3872 = vmul.f32 %v3744, %v3744
        %v3873 = vmul.f32 %v3745, %v3745
        %v3874 = vmul.f32 %v3746, %v3746
        %v3875 = vmul.f32 %v3747, %v3747
        %v3876 = vmul.f32 %v3748, %v3748
        %v3877 = vmul.f32 %v3749, %v3749
        %v3878 = vmul.f32 %v3750, %v3750
        %v3879 = vmul.f32 %v3751, %v3751
        %v3880 = vmul.f32 %v3752, %v3752
        %v3881 = vmul.f32 %v3753, %v3753
        %v3882 = vmul.f32 %v3754, %v3754
        %v3883 = vmul.f32 %v3755, %v3755
        %v3884 = vmul.f32 %v3756, %v3756
        %v3885 = vmul.f32 %v3757, %v3757
        %v3886 = vmul.f32 %v3758, %v3758
        %v3887 = vmul.f32 %v3759, %v3759
        %v3888 = vmul.f32 %v3760, %v3760
        %v3889 = vmul.f32 %v3761, %v3761
        %v3890 = vmul.f32 %v3762, %v3762
        %v3891 = vmul.f32 %v3763, %v3763
        %v3892 = vmul.f32 %v3764, %v3764
        %v3893 = vmul.f32 %v3765, %v3765
        %v3894 = vmul.f32 %v3766, %v3766
        %v3895 = vmul.f32 %v3767, %v3767
        %v3896 = vmul.f32 %v3768, %v3768
        %v3897 = vmul.f32 %v3769, %v3769
        %v3898 = vmul.f32 %v3770, %v3770
        %v3899 = vmul.f32 %v3771, %v3771
        %v3900 = vmul.f32 %v3772, %v3772
        %v3901 = vmul.f32 %v3773, %v3773
        %v3902 = vmul.f32 %v3774, %v3774
        %v3903 = vmul.f32 %v3775, %v3775
        %v3904 = vmul.f32 %v3776, %v3776
        %v3905 = vmul.f32 %v3777, %v3777
        %v3906 = vmul.f32 %v3778, %v3778
        %v3907 = vmul.f32 %v3779, %v3779
        %v3908 = vmul.f32 %v3780, %v3780
        %v3909 = vmul.f32 %v3781, %v3781
        %v3910 = vmul.f32 %v3782, %v3782
        %v3911 = vmul.f32 %v3783, %v3783
        %v3912 = vmul.f32 %v3784, %v3784
        %v3913 = vmul.f32 %v3785, %v3785
        %v3914 = vmul.f32 %v3786, %v3786
        %v3915 = vmul.f32 %v3787, %v3787
        %v3916 = vmul.f32 %v3788, %v3788
        %v3917 = vmul.f32 %v3789, %v3789
        %v3918 = vmul.f32 %v3790, %v3790
        %v3919 = vmul.f32 %v3791, %v3791
        %v3920 = vmul.f32 %v3792, %v3792
        %v3921 = vmul.f32 %v3793, %v3793
        %v3922 = vmul.f32 %v3794, %v3794
        %v3923 = vmul.f32 %v3795, %v3795
        %v3924 = vmul.f32 %v3796, %v3796
        %v3925 = vmul.f32 %v3797, %v3797
        %v3926 = vmul.f32 %v3798, %v3798
        %v3927 = vmul.f32 %v3799, %v3799
        %v3928 = vmul.f32 %v3800, %v3800
        %v3929 = vmul.f32 %v3801, %v3801
        %v3930 = vmul.f32 %v3802, %v3802
        %v3931 = vmul.f32 %v3803, %v3803
        %v3932 = vmul.f32 %v3804, %v3804
        %v3933 = vmul.f32 %v3805, %v3805
        %v3934 = vmul.f32 %v3806, %v3806
        %v3935 = vmul.f32 %v3807, %v3807
        %v3936 = vmul.f32 %v3808, %v3808
        %v3937 = vmul.f32 %v3809, %v3809
        %v3938 = vmul.f32 %v3810, %v3810
        %v3939 = vmul.f32 %v3811, %v3811
        %v3940 = vmul.f32 %v3812, %v3812
        %v3941 = vmul.f32 %v3813, %v3813
        %v3942 = vmul.f32 %v3814, %v3814
        %v3943 = vmul.f32 %v3815, %v3815
        %v3944 = vmul.f32 %v3816, %v3816
        %v3945 = vmul.f32 %v3817, %v3817
        %v3946 = vmul.f32 %v3818, %v3818
        %v3947 = vmul.f32 %v3819, %v3819
        %v3948 = vmul.f32 %v3820, %v3820
        %4077 = vst [vmem:[#allocation1] ss:$4 sm:$0xff] %v3821
        %s4078 = scalar_lea.vmem [#allocation1], 1
        %4079 = vst [vmem:[%s4078] ss:$4 sm:$0xff] %v3822
        %s4080 = scalar_lea.vmem [#allocation1], 2
        %4081 = vst [vmem:[%s4080] ss:$4 sm:$0xff] %v3823
        %s4082 = scalar_lea.vmem [#allocation1], 3
        %4083 = vst [vmem:[%s4082] ss:$4 sm:$0xff] %v3824
        %s4084 = scalar_lea.vmem [#allocation1], 32
        %4085 = vst [vmem:[%s4084] ss:$4 sm:$0xff] %v3825
        %s4086 = scalar_lea.vmem [#allocation1], 33
        %4087 = vst [vmem:[%s4086] ss:$4 sm:$0xff] %v3826
        %s4088 = scalar_lea.vmem [#allocation1], 34
        %4089 = vst [vmem:[%s4088] ss:$4 sm:$0xff] %v3827
        %s4090 = scalar_lea.vmem [#allocation1], 35
        %4091 = vst [vmem:[%s4090] ss:$4 sm:$0xff] %v3828
        %v4092 = vld.sshfl [vmem:[#allocation1] sm:$0xff pattern:$0x73625140]
        %v4093 = vld.sshfl [vmem:[#allocation1 + $0x20] sm:$0xff pattern:$0x73625140]
        %4094 = vst [vmem:[#allocation1] ss:$4 sm:$0xff] %v3829
        %4095 = vst [vmem:[%s4078] ss:$4 sm:$0xff] %v3830
        %4096 = vst [vmem:[%s4080] ss:$4 sm:$0xff] %v3831
        %4097 = vst [vmem:[%s4082] ss:$4 sm:$0xff] %v3832
        %4098 = vst [vmem:[%s4084] ss:$4 sm:$0xff] %v3833
        %4099 = vst [vmem:[%s4086] ss:$4 sm:$0xff] %v3834
        %4100 = vst [vmem:[%s4088] ss:$4 sm:$0xff] %v3835
        %4101 = vst [vmem:[%s4090] ss:$4 sm:$0xff] %v3836
        %v4102 = vld.sshfl [vmem:[#allocation1] sm:$0xff pattern:$0x73625140]
        %v4103 = vld.sshfl [vmem:[#allocation1 + $0x20] sm:$0xff pattern:$0x73625140]
        %4104 = vst [vmem:[#allocation1] ss:$4 sm:$0xff] %v3837
        %4105 = vst [vmem:[%s4078] ss:$4 sm:$0xff] %v3838
        %4106 = vst [vmem:[%s4080] ss:$4 sm:$0xff] %v3839
        %4107 = vst [vmem:[%s4082] ss:$4 sm:$0xff] %v3840
        %4108 = vst [vmem:[%s4084] ss:$4 sm:$0xff] %v3841
        %4109 = vst [vmem:[%s4086] ss:$4 sm:$0xff] %v3842
        %4110 = vst [vmem:[%s4088] ss:$4 sm:$0xff] %v3843
        %4111 = vst [vmem:[%s4090] ss:$4 sm:$0xff] %v3844
        %v4112 = vld.sshfl [vmem:[#allocation1] sm:$0xff pattern:$0x73625140]
        %v4113 = vld.sshfl [vmem:[#allocation1 + $0x20] sm:$0xff pattern:$0x73625140]
        %4114 = vst [vmem:[#allocation1] ss:$4 sm:$0xff] %v3845
        %4115 = vst [vmem:[%s4078] ss:$4 sm:$0xff] %v3846
        %4116 = vst [vmem:[%s4080] ss:$4 sm:$0xff] %v3847
        %4117 = vst [vmem:[%s4082] ss:$4 sm:$0xff] %v3848
        %4118 = vst [vmem:[%s4084] ss:$4 sm:$0xff] %v3849
        %4119 = vst [vmem:[%s4086] ss:$4 sm:$0xff] %v3850
        %4120 = vst [vmem:[%s4088] ss:$4 sm:$0xff] %v3851
        %4121 = vst [vmem:[%s4090] ss:$4 sm:$0xff] %v3852
        %v4122 = vld.sshfl [vmem:[#allocation1] sm:$0xff pattern:$0x73625140]
        %v4123 = vld.sshfl [vmem:[#allocation1 + $0x20] sm:$0xff pattern:$0x73625140]
        %4124 = vst [vmem:[#allocation1] ss:$4 sm:$0xff] %v3853
        %4125 = vst [vmem:[%s4078] ss:$4 sm:$0xff] %v3854
        %4126 = vst [vmem:[%s4080] ss:$4 sm:$0xff] %v3855
        %4127 = vst [vmem:[%s4082] ss:$4 sm:$0xff] %v3856
        %4128 = vst [vmem:[%s4084] ss:$4 sm:$0xff] %v3857
        %4129 = vst [vmem:[%s4086] ss:$4 sm:$0xff] %v3858
        %4130 = vst [vmem:[%s4088] ss:$4 sm:$0xff] %v3859
        %4131 = vst [vmem:[%s4090] ss:$4 sm:$0xff] %v3860
        %v4132 = vld.sshfl [vmem:[#allocation1] sm:$0xff pattern:$0x73625140]
        %v4133 = vld.sshfl [vmem:[#allocation1 + $0x20] sm:$0xff pattern:$0x73625140]
        %4134 = vst [vmem:[#allocation1] ss:$4 sm:$0xff] %v3861
        %4135 = vst [vmem:[%s4078] ss:$4 sm:$0xff] %v3862
        %4136 = vst [vmem:[%s4080] ss:$4 sm:$0xff] %v3863
        %4137 = vst [vmem:[%s4082] ss:$4 sm:$0xff] %v3864
        %4138 = vst [vmem:[%s4084] ss:$4 sm:$0xff] %v3865
        %4139 = vst [vmem:[%s4086] ss:$4 sm:$0xff] %v3866
        %4140 = vst [vmem:[%s4088] ss:$4 sm:$0xff] %v3867
        %4141 = vst [vmem:[%s4090] ss:$4 sm:$0xff] %v3868
        %v4142 = vld.sshfl [vmem:[#allocation1] sm:$0xff pattern:$0x73625140]
        %v4143 = vld.sshfl [vmem:[#allocation1 + $0x20] sm:$0xff pattern:$0x73625140]
        %4144 = vst [vmem:[#allocation1] ss:$4 sm:$0xff] %v3869
        %4145 = vst [vmem:[%s4078] ss:$4 sm:$0xff] %v3870
        %4146 = vst [vmem:[%s4080] ss:$4 sm:$0xff] %v3871
        %4147 = vst [vmem:[%s4082] ss:$4 sm:$0xff] %v3872
        %4148 = vst [vmem:[%s4084] ss:$4 sm:$0xff] %v3873
        %4149 = vst [vmem:[%s4086] ss:$4 sm:$0xff] %v3874
        %4150 = vst [vmem:[%s4088] ss:$4 sm:$0xff] %v3875
        %4151 = vst [vmem:[%s4090] ss:$4 sm:$0xff] %v3876
        %v4152 = vld.sshfl [vmem:[#allocation1] sm:$0xff pattern:$0x73625140]
        %v4153 = vld.sshfl [vmem:[#allocation1 + $0x20] sm:$0xff pattern:$0x73625140]
        %4154 = vst [vmem:[#allocation1] ss:$4 sm:$0xff] %v3877
        %4155 = vst [vmem:[%s4078] ss:$4 sm:$0xff] %v3878
        %4156 = vst [vmem:[%s4080] ss:$4 sm:$0xff] %v3879
        %4157 = vst [vmem:[%s4082] ss:$4 sm:$0xff] %v3880
        %4158 = vst [vmem:[%s4084] ss:$4 sm:$0xff] %v3881
        %4159 = vst [vmem:[%s4086] ss:$4 sm:$0xff] %v3882
        %4160 = vst [vmem:[%s4088] ss:$4 sm:$0xff] %v3883
        %4161 = vst [vmem:[%s4090] ss:$4 sm:$0xff] %v3884
        %v4162 = vld.sshfl [vmem:[#allocation1] sm:$0xff pattern:$0x73625140]
        %v4163 = vld.sshfl [vmem:[#allocation1 + $0x20] sm:$0xff pattern:$0x73625140]
        %4164 = vst [vmem:[#allocation1] ss:$4 sm:$0xff] %v3885
        %4165 = vst [vmem:[%s4078] ss:$4 sm:$0xff] %v3886
        %4166 = vst [vmem:[%s4080] ss:$4 sm:$0xff] %v3887
        %4167 = vst [vmem:[%s4082] ss:$4 sm:$0xff] %v3888
        %4168 = vst [vmem:[%s4084] ss:$4 sm:$0xff] %v3889
        %4169 = vst [vmem:[%s4086] ss:$4 sm:$0xff] %v3890
        %4170 = vst [vmem:[%s4088] ss:$4 sm:$0xff] %v3891
        %4171 = vst [vmem:[%s4090] ss:$4 sm:$0xff] %v3892
        %v4172 = vld.sshfl [vmem:[#allocation1] sm:$0xff pattern:$0x73625140]
        %v4173 = vld.sshfl [vmem:[#allocation1 + $0x20] sm:$0xff pattern:$0x73625140]
        %4174 = vst [vmem:[#allocation1] ss:$4 sm:$0xff] %v3893
        %4175 = vst [vmem:[%s4078] ss:$4 sm:$0xff] %v3894
        %4176 = vst [vmem:[%s4080] ss:$4 sm:$0xff] %v3895
        %4177 = vst [vmem:[%s4082] ss:$4 sm:$0xff] %v3896
        %4178 = vst [vmem:[%s4084] ss:$4 sm:$0xff] %v3897
        %4179 = vst [vmem:[%s4086] ss:$4 sm:$0xff] %v3898
        %4180 = vst [vmem:[%s4088] ss:$4 sm:$0xff] %v3899
        %4181 = vst [vmem:[%s4090] ss:$4 sm:$0xff] %v3900
        %v4182 = vld.sshfl [vmem:[#allocation1] sm:$0xff pattern:$0x73625140]
        %v4183 = vld.sshfl [vmem:[#allocation1 + $0x20] sm:$0xff pattern:$0x73625140]
        %4184 = vst [vmem:[#allocation1] ss:$4 sm:$0xff] %v3901
        %4185 = vst [vmem:[%s4078] ss:$4 sm:$0xff] %v3902
        %4186 = vst [vmem:[%s4080] ss:$4 sm:$0xff] %v3903
        %4187 = vst [vmem:[%s4082] ss:$4 sm:$0xff] %v3904
        %4188 = vst [vmem:[%s4084] ss:$4 sm:$0xff] %v3905
        %4189 = vst [vmem:[%s4086] ss:$4 sm:$0xff] %v3906
        %4190 = vst [vmem:[%s4088] ss:$4 sm:$0xff] %v3907
        %4191 = vst [vmem:[%s4090] ss:$4 sm:$0xff] %v3908
        %v4192 = vld.sshfl [vmem:[#allocation1] sm:$0xff pattern:$0x73625140]
        %v4193 = vld.sshfl [vmem:[#allocation1 + $0x20] sm:$0xff pattern:$0x73625140]
        %4194 = vst [vmem:[#allocation1] ss:$4 sm:$0xff] %v3909
        %4195 = vst [vmem:[%s4078] ss:$4 sm:$0xff] %v3910
        %4196 = vst [vmem:[%s4080] ss:$4 sm:$0xff] %v3911
        %4197 = vst [vmem:[%s4082] ss:$4 sm:$0xff] %v3912
        %4198 = vst [vmem:[%s4084] ss:$4 sm:$0xff] %v3913
        %4199 = vst [vmem:[%s4086] ss:$4 sm:$0xff] %v3914
        %4200 = vst [vmem:[%s4088] ss:$4 sm:$0xff] %v3915
        %4201 = vst [vmem:[%s4090] ss:$4 sm:$0xff] %v3916
        %v4202 = vld.sshfl [vmem:[#allocation1] sm:$0xff pattern:$0x73625140]
        %v4203 = vld.sshfl [vmem:[#allocation1 + $0x20] sm:$0xff pattern:$0x73625140]
        %4204 = vst [vmem:[#allocation1] ss:$4 sm:$0xff] %v3917
        %4205 = vst [vmem:[%s4078] ss:$4 sm:$0xff] %v3918
        %4206 = vst [vmem:[%s4080] ss:$4 sm:$0xff] %v3919
        %4207 = vst [vmem:[%s4082] ss:$4 sm:$0xff] %v3920
        %4208 = vst [vmem:[%s4084] ss:$4 sm:$0xff] %v3921
        %4209 = vst [vmem:[%s4086] ss:$4 sm:$0xff] %v3922
        %4210 = vst [vmem:[%s4088] ss:$4 sm:$0xff] %v3923
        %4211 = vst [vmem:[%s4090] ss:$4 sm:$0xff] %v3924
        %v4212 = vld.sshfl [vmem:[#allocation1] sm:$0xff pattern:$0x73625140]
        %v4213 = vld.sshfl [vmem:[#allocation1 + $0x20] sm:$0xff pattern:$0x73625140]
        %4214 = vst [vmem:[#allocation1] ss:$4 sm:$0xff] %v3925
        %4215 = vst [vmem:[%s4078] ss:$4 sm:$0xff] %v3926
        %4216 = vst [vmem:[%s4080] ss:$4 sm:$0xff] %v3927
        %4217 = vst [vmem:[%s4082] ss:$4 sm:$0xff] %v3928
        %4218 = vst [vmem:[%s4084] ss:$4 sm:$0xff] %v3929
        %4219 = vst [vmem:[%s4086] ss:$4 sm:$0xff] %v3930
        %4220 = vst [vmem:[%s4088] ss:$4 sm:$0xff] %v3931
        %4221 = vst [vmem:[%s4090] ss:$4 sm:$0xff] %v3932
        %v4222 = vld.sshfl [vmem:[#allocation1] sm:$0xff pattern:$0x73625140]
        %v4223 = vld.sshfl [vmem:[#allocation1 + $0x20] sm:$0xff pattern:$0x73625140]
        %4224 = vst [vmem:[#allocation1] ss:$4 sm:$0xff] %v3933
        %4225 = vst [vmem:[%s4078] ss:$4 sm:$0xff] %v3934
        %4226 = vst [vmem:[%s4080] ss:$4 sm:$0xff] %v3935
        %4227 = vst [vmem:[%s4082] ss:$4 sm:$0xff] %v3936
        %4228 = vst [vmem:[%s4084] ss:$4 sm:$0xff] %v3937
        %4229 = vst [vmem:[%s4086] ss:$4 sm:$0xff] %v3938
        %4230 = vst [vmem:[%s4088] ss:$4 sm:$0xff] %v3939
        %4231 = vst [vmem:[%s4090] ss:$4 sm:$0xff] %v3940
        %v4232 = vld.sshfl [vmem:[#allocation1] sm:$0xff pattern:$0x73625140]
        %v4233 = vld.sshfl [vmem:[#allocation1 + $0x20] sm:$0xff pattern:$0x73625140]
        %4234 = vst [vmem:[#allocation1] ss:$4 sm:$0xff] %v3941
        %4235 = vst [vmem:[%s4078] ss:$4 sm:$0xff] %v3942
        %4236 = vst [vmem:[%s4080] ss:$4 sm:$0xff] %v3943
        %4237 = vst [vmem:[%s4082] ss:$4 sm:$0xff] %v3944
        %4238 = vst [vmem:[%s4084] ss:$4 sm:$0xff] %v3945
        %4239 = vst [vmem:[%s4086] ss:$4 sm:$0xff] %v3946
        %4240 = vst [vmem:[%s4088] ss:$4 sm:$0xff] %v3947
        %4241 = vst [vmem:[%s4090] ss:$4 sm:$0xff] %v3948
        %v4242 = vld.sshfl [vmem:[#allocation1] sm:$0xff pattern:$0x73625140]
        %v4243 = vld.sshfl [vmem:[#allocation1 + $0x20] sm:$0xff pattern:$0x73625140]
        %v4276 = vadd.f32 %v4092, %v4093
        %v4277 = vadd.f32 %v4276, %v4102
        %v4278 = vadd.f32 %v4277, %v4103
        %v4279 = vadd.f32 %v4278, %v4112
        %v4280 = vadd.f32 %v4279, %v4113
        %v4281 = vadd.f32 %v4280, %v4122
        %v4282 = vadd.f32 %v4281, %v4123
        %v4283 = vadd.f32 %v4282, %v4132
        %v4284 = vadd.f32 %v4283, %v4133
        %v4285 = vadd.f32 %v4284, %v4142
        %v4286 = vadd.f32 %v4285, %v4143
        %v4287 = vadd.f32 %v4286, %v4152
        %v4288 = vadd.f32 %v4287, %v4153
        %v4289 = vadd.f32 %v4288, %v4162
        %v4290 = vadd.f32 %v4289, %v4163
        %v4291 = vadd.f32 %v4290, %v4172
        %v4292 = vadd.f32 %v4291, %v4173
        %v4293 = vadd.f32 %v4292, %v4182
        %v4294 = vadd.f32 %v4293, %v4183
        %v4295 = vadd.f32 %v4294, %v4192
        %v4296 = vadd.f32 %v4295, %v4193
        %v4297 = vadd.f32 %v4296, %v4202
        %v4298 = vadd.f32 %v4297, %v4203
        %v4299 = vadd.f32 %v4298, %v4212
        %v4300 = vadd.f32 %v4299, %v4213
        %v4301 = vadd.f32 %v4300, %v4222
        %v4302 = vadd.f32 %v4301, %v4223
        %v4303 = vadd.f32 %v4302, %v4232
        %v4304 = vadd.f32 %v4303, %v4233
        %v4305 = vadd.f32 %v4304, %v4242
        %v4306 = vadd.f32 %v4305, %v4243
        %v4307 = vrot.slane %v4306, 4
        %v4308 = vadd.f32 %v4306, %v4307
        %v4309 = vrot.slane %v4308, 2
        %v4310 = vadd.f32 %v4308, %v4309
        %v4311 = vrot.slane %v4310, 1
        %v4312 = vadd.f32 %v4310, %v4311
        %v4313 = vmul.f32 %v4312, 0.00390625
        %v4314 = vld [vmem:[%s3] sm:$0x1]
        %v4315 = vadd.f32 %v4313, 1e-05
        %v4316 = vrsqrt.pop %v4315
        %v4317 = vmul.f32 %v4316, %v4315
        %v4318 = vmul.f32 %v4317, %v4316
        %v4319 = vmul.f32 0.5, %v4318
        %v4320 = vsub.f32 1.5, %v4319
        %v4321 = vmul.f32 %v4316, %v4320
        %vm4322 = vweird.f32 %v4315
        %vm4323 = vweird.f32 %v4316
        %vm4324 = vmor %vm4322, %vm4323
        %v4325 = vsel %vm4324, %v4316, %v4321
        %v4326 = vmul.f32 %v4314, %v4325
        %v4327 = vld [vmem:[%s4] sm:$0x1]
        %v4328 = vmul.f32 %v3685, %v4326
        %v4329 = vsub.f32 %v4327, %v4328
        %v4331 = vperm.slane %v4326, 0
        %v4333 = vrot.slane %v4331, 2
        %v4334 = vrot.slane %v4331, 4
        %v4335 = vrot.slane %v4331, 6
        %v4339 = vmul.f32 %v3185, %v4331
        %v4340 = vmul.f32 %v3257, %v4333
        %v4341 = vmul.f32 %v3258, %v4334
        %v4342 = vmul.f32 %v3259, %v4335
        %v4343 = vmul.f32 %v3186, %v4331
        %v4344 = vmul.f32 %v3260, %v4333
        %v4345 = vmul.f32 %v3261, %v4334
        %v4346 = vmul.f32 %v3262, %v4335
        %v4347 = vmul.f32 %v3263, %v4331
        %v4348 = vmul.f32 %v3264, %v4333
        %v4349 = vmul.f32 %v3265, %v4334
        %v4350 = vmul.f32 %v3188, %v4335
        %v4351 = vmul.f32 %v3266, %v4331
        %v4352 = vmul.f32 %v3267, %v4333
        %v4353 = vmul.f32 %v3268, %v4334
        %v4354 = vmul.f32 %v3189, %v4335
        %v4355 = vmul.f32 %v3269, %v4331
        %v4356 = vmul.f32 %v3270, %v4333
        %v4357 = vmul.f32 %v3190, %v4334
        %v4358 = vmul.f32 %v3271, %v4335
        %v4359 = vmul.f32 %v3272, %v4331
        %v4360 = vmul.f32 %v3273, %v4333
        %v4361 = vmul.f32 %v3191, %v4334
        %v4362 = vmul.f32 %v3274, %v4335
        %v4363 = vmul.f32 %v3275, %v4331
        %v4364 = vmul.f32 %v3192, %v4333
        %v4365 = vmul.f32 %v3276, %v4334
        %v4366 = vmul.f32 %v3277, %v4335
        %v4367 = vmul.f32 %v3278, %v4331
        %v4368 = vmul.f32 %v3193, %v4333
        %v4369 = vmul.f32 %v3279, %v4334
        %v4370 = vmul.f32 %v3280, %v4335
        %v4371 = vmul.f32 %v3194, %v4331
        %v4372 = vmul.f32 %v3281, %v4333
        %v4373 = vmul.f32 %v3282, %v4334
        %v4374 = vmul.f32 %v3283, %v4335
        %v4375 = vmul.f32 %v3195, %v4331
        %v4376 = vmul.f32 %v3284, %v4333
        %v4377 = vmul.f32 %v3285, %v4334
        %v4378 = vmul.f32 %v3286, %v4335
        %v4379 = vmul.f32 %v3287, %v4331
        %v4380 = vmul.f32 %v3288, %v4333
        %v4381 = vmul.f32 %v3289, %v4334
        %v4382 = vmul.f32 %v3197, %v4335
        %v4383 = vmul.f32 %v3290, %v4331
        %v4384 = vmul.f32 %v3291, %v4333
        %v4385 = vmul.f32 %v3292, %v4334
        %v4386 = vmul.f32 %v3198, %v4335
        %v4387 = vmul.f32 %v3293, %v4331
        %v4388 = vmul.f32 %v3294, %v4333
        %v4389 = vmul.f32 %v3199, %v4334
        %v4390 = vmul.f32 %v3295, %v4335
        %v4391 = vmul.f32 %v3296, %v4331
        %v4392 = vmul.f32 %v3297, %v4333
        %v4393 = vmul.f32 %v3200, %v4334
        %v4394 = vmul.f32 %v3298, %v4335
        %v4395 = vmul.f32 %v3299, %v4331
        %v4396 = vmul.f32 %v3201, %v4333
        %v4397 = vmul.f32 %v3300, %v4334
        %v4398 = vmul.f32 %v3301, %v4335
        %v4399 = vmul.f32 %v3302, %v4331
        %v4400 = vmul.f32 %v3202, %v4333
        %v4401 = vmul.f32 %v3303, %v4334
        %v4402 = vmul.f32 %v3304, %v4335
        %v4403 = vmul.f32 %v3203, %v4331
        %v4404 = vmul.f32 %v3305, %v4333
        %v4405 = vmul.f32 %v3306, %v4334
        %v4406 = vmul.f32 %v3307, %v4335
        %v4407 = vmul.f32 %v3204, %v4331
        %v4408 = vmul.f32 %v3308, %v4333
        %v4409 = vmul.f32 %v3309, %v4334
        %v4410 = vmul.f32 %v3310, %v4335
        %v4411 = vmul.f32 %v3311, %v4331
        %v4412 = vmul.f32 %v3312, %v4333
        %v4413 = vmul.f32 %v3313, %v4334
        %v4414 = vmul.f32 %v3206, %v4335
        %v4415 = vmul.f32 %v3314, %v4331
        %v4416 = vmul.f32 %v3315, %v4333
        %v4417 = vmul.f32 %v3316, %v4334
        %v4418 = vmul.f32 %v3207, %v4335
        %v4419 = vmul.f32 %v3317, %v4331
        %v4420 = vmul.f32 %v3318, %v4333
        %v4421 = vmul.f32 %v3208, %v4334
        %v4422 = vmul.f32 %v3319, %v4335
        %v4423 = vmul.f32 %v3320, %v4331
        %v4424 = vmul.f32 %v3321, %v4333
        %v4425 = vmul.f32 %v3209, %v4334
        %v4426 = vmul.f32 %v3322, %v4335
        %v4427 = vmul.f32 %v3323, %v4331
        %v4428 = vmul.f32 %v3210, %v4333
        %v4429 = vmul.f32 %v3324, %v4334
        %v4430 = vmul.f32 %v3325, %v4335
        %v4431 = vmul.f32 %v3326, %v4331
        %v4432 = vmul.f32 %v3211, %v4333
        %v4433 = vmul.f32 %v3327, %v4334
        %v4434 = vmul.f32 %v3328, %v4335
        %v4435 = vmul.f32 %v3212, %v4331
        %v4436 = vmul.f32 %v3329, %v4333
        %v4437 = vmul.f32 %v3330, %v4334
        %v4438 = vmul.f32 %v3331, %v4335
        %v4439 = vmul.f32 %v3213, %v4331
        %v4440 = vmul.f32 %v3332, %v4333
        %v4441 = vmul.f32 %v3333, %v4334
        %v4442 = vmul.f32 %v3334, %v4335
        %v4443 = vmul.f32 %v3335, %v4331
        %v4444 = vmul.f32 %v3336, %v4333
        %v4445 = vmul.f32 %v3337, %v4334
        %v4446 = vmul.f32 %v3215, %v4335
        %v4447 = vmul.f32 %v3338, %v4331
        %v4448 = vmul.f32 %v3339, %v4333
        %v4449 = vmul.f32 %v3340, %v4334
        %v4450 = vmul.f32 %v3216, %v4335
        %v4451 = vmul.f32 %v3341, %v4331
        %v4452 = vmul.f32 %v3342, %v4333
        %v4453 = vmul.f32 %v3217, %v4334
        %v4454 = vmul.f32 %v3343, %v4335
        %v4455 = vmul.f32 %v3344, %v4331
        %v4456 = vmul.f32 %v3345, %v4333
        %v4457 = vmul.f32 %v3218, %v4334
        %v4458 = vmul.f32 %v3346, %v4335
        %v4459 = vmul.f32 %v3347, %v4331
        %v4460 = vmul.f32 %v3219, %v4333
        %v4461 = vmul.f32 %v3348, %v4334
        %v4462 = vmul.f32 %v3349, %v4335
        %v4463 = vmul.f32 %v3350, %v4331
        %v4464 = vmul.f32 %v3220, %v4333
        %v4465 = vmul.f32 %v3351, %v4334
        %v4466 = vmul.f32 %v3352, %v4335
        %v4468 = vperm.slane %v4329, 0
        %v4470 = vrot.slane %v4468, 2
        %v4471 = vrot.slane %v4468, 4
        %v4472 = vrot.slane %v4468, 6
        %v4476 = vadd.f32 %v4339, %v4468
        %v4477 = vadd.f32 %v4340, %v4470
        %v4478 = vadd.f32 %v4341, %v4471
        %v4479 = vadd.f32 %v4342, %v4472
        %v4480 = vadd.f32 %v4343, %v4468
        %v4481 = vadd.f32 %v4344, %v4470
        %v4482 = vadd.f32 %v4345, %v4471
        %v4483 = vadd.f32 %v4346, %v4472
        %v4484 = vadd.f32 %v4347, %v4468
        %v4485 = vadd.f32 %v4348, %v4470
        %v4486 = vadd.f32 %v4349, %v4471
        %v4487 = vadd.f32 %v4350, %v4472
        %v4488 = vadd.f32 %v4351, %v4468
        %v4489 = vadd.f32 %v4352, %v4470
        %v4490 = vadd.f32 %v4353, %v4471
        %v4491 = vadd.f32 %v4354, %v4472
        %v4492 = vadd.f32 %v4355, %v4468
        %v4493 = vadd.f32 %v4356, %v4470
        %v4494 = vadd.f32 %v4357, %v4471
        %v4495 = vadd.f32 %v4358, %v4472
        %v4496 = vadd.f32 %v4359, %v4468
        %v4497 = vadd.f32 %v4360, %v4470
        %v4498 = vadd.f32 %v4361, %v4471
        %v4499 = vadd.f32 %v4362, %v4472
        %v4500 = vadd.f32 %v4363, %v4468
        %v4501 = vadd.f32 %v4364, %v4470
        %v4502 = vadd.f32 %v4365, %v4471
        %v4503 = vadd.f32 %v4366, %v4472
        %v4504 = vadd.f32 %v4367, %v4468
        %v4505 = vadd.f32 %v4368, %v4470
        %v4506 = vadd.f32 %v4369, %v4471
        %v4507 = vadd.f32 %v4370, %v4472
        %v4508 = vadd.f32 %v4371, %v4468
        %v4509 = vadd.f32 %v4372, %v4470
        %v4510 = vadd.f32 %v4373, %v4471
        %v4511 = vadd.f32 %v4374, %v4472
        %v4512 = vadd.f32 %v4375, %v4468
        %v4513 = vadd.f32 %v4376, %v4470
        %v4514 = vadd.f32 %v4377, %v4471
        %v4515 = vadd.f32 %v4378, %v4472
        %v4516 = vadd.f32 %v4379, %v4468
        %v4517 = vadd.f32 %v4380, %v4470
        %v4518 = vadd.f32 %v4381, %v4471
        %v4519 = vadd.f32 %v4382, %v4472
        %v4520 = vadd.f32 %v4383, %v4468
        %v4521 = vadd.f32 %v4384, %v4470
        %v4522 = vadd.f32 %v4385, %v4471
        %v4523 = vadd.f32 %v4386, %v4472
        %v4524 = vadd.f32 %v4387, %v4468
        %v4525 = vadd.f32 %v4388, %v4470
        %v4526 = vadd.f32 %v4389, %v4471
        %v4527 = vadd.f32 %v4390, %v4472
        %v4528 = vadd.f32 %v4391, %v4468
        %v4529 = vadd.f32 %v4392, %v4470
        %v4530 = vadd.f32 %v4393, %v4471
        %v4531 = vadd.f32 %v4394, %v4472
        %v4532 = vadd.f32 %v4395, %v4468
        %v4533 = vadd.f32 %v4396, %v4470
        %v4534 = vadd.f32 %v4397, %v4471
        %v4535 = vadd.f32 %v4398, %v4472
        %v4536 = vadd.f32 %v4399, %v4468
        %v4537 = vadd.f32 %v4400, %v4470
        %v4538 = vadd.f32 %v4401, %v4471
        %v4539 = vadd.f32 %v4402, %v4472
        %v4540 = vadd.f32 %v4403, %v4468
        %v4541 = vadd.f32 %v4404, %v4470
        %v4542 = vadd.f32 %v4405, %v4471
        %v4543 = vadd.f32 %v4406, %v4472
        %v4544 = vadd.f32 %v4407, %v4468
        %v4545 = vadd.f32 %v4408, %v4470
        %v4546 = vadd.f32 %v4409, %v4471
        %v4547 = vadd.f32 %v4410, %v4472
        %v4548 = vadd.f32 %v4411, %v4468
        %v4549 = vadd.f32 %v4412, %v4470
        %v4550 = vadd.f32 %v4413, %v4471
        %v4551 = vadd.f32 %v4414, %v4472
        %v4552 = vadd.f32 %v4415, %v4468
        %v4553 = vadd.f32 %v4416, %v4470
        %v4554 = vadd.f32 %v4417, %v4471
        %v4555 = vadd.f32 %v4418, %v4472
        %v4556 = vadd.f32 %v4419, %v4468
        %v4557 = vadd.f32 %v4420, %v4470
        %v4558 = vadd.f32 %v4421, %v4471
        %v4559 = vadd.f32 %v4422, %v4472
        %v4560 = vadd.f32 %v4423, %v4468
        %v4561 = vadd.f32 %v4424, %v4470
        %v4562 = vadd.f32 %v4425, %v4471
        %v4563 = vadd.f32 %v4426, %v4472
        %v4564 = vadd.f32 %v4427, %v4468
        %v4565 = vadd.f32 %v4428, %v4470
        %v4566 = vadd.f32 %v4429, %v4471
        %v4567 = vadd.f32 %v4430, %v4472
        %v4568 = vadd.f32 %v4431, %v4468
        %v4569 = vadd.f32 %v4432, %v4470
        %v4570 = vadd.f32 %v4433, %v4471
        %v4571 = vadd.f32 %v4434, %v4472
        %v4572 = vadd.f32 %v4435, %v4468
        %v4573 = vadd.f32 %v4436, %v4470
        %v4574 = vadd.f32 %v4437, %v4471
        %v4575 = vadd.f32 %v4438, %v4472
        %v4576 = vadd.f32 %v4439, %v4468
        %v4577 = vadd.f32 %v4440, %v4470
        %v4578 = vadd.f32 %v4441, %v4471
        %v4579 = vadd.f32 %v4442, %v4472
        %v4580 = vadd.f32 %v4443, %v4468
        %v4581 = vadd.f32 %v4444, %v4470
        %v4582 = vadd.f32 %v4445, %v4471
        %v4583 = vadd.f32 %v4446, %v4472
        %v4584 = vadd.f32 %v4447, %v4468
        %v4585 = vadd.f32 %v4448, %v4470
        %v4586 = vadd.f32 %v4449, %v4471
        %v4587 = vadd.f32 %v4450, %v4472
        %v4588 = vadd.f32 %v4451, %v4468
        %v4589 = vadd.f32 %v4452, %v4470
        %v4590 = vadd.f32 %v4453, %v4471
        %v4591 = vadd.f32 %v4454, %v4472
        %v4592 = vadd.f32 %v4455, %v4468
        %v4593 = vadd.f32 %v4456, %v4470
        %v4594 = vadd.f32 %v4457, %v4471
        %v4595 = vadd.f32 %v4458, %v4472
        %v4596 = vadd.f32 %v4459, %v4468
        %v4597 = vadd.f32 %v4460, %v4470
        %v4598 = vadd.f32 %v4461, %v4471
        %v4599 = vadd.f32 %v4462, %v4472
        %v4600 = vadd.f32 %v4463, %v4468
        %v4601 = vadd.f32 %v4464, %v4470
        %v4602 = vadd.f32 %v4465, %v4471
        %v4603 = vadd.f32 %v4466, %v4472
        %v4604 = vld [vmem:[%s242] sm:$0xff]
        %v4605 = vld [vmem:[%s242 + $0x8] sm:$0xff]
        %v4606 = vld [vmem:[%s242 + $0x10] sm:$0xff]
        %v4607 = vld [vmem:[%s242 + $0x18] sm:$0xff]
        %v4608 = vld [vmem:[%s242 + $0x20] sm:$0xff]
        %v4609 = vld [vmem:[%s242 + $0x28] sm:$0xff]
        %v4610 = vld [vmem:[%s242 + $0x30] sm:$0xff]
        %v4611 = vld [vmem:[%s242 + $0x38] sm:$0xff]
        %v4612 = vld [vmem:[%s242 + $0x40] sm:$0xff]
        %v4613 = vld [vmem:[%s242 + $0x48] sm:$0xff]
        %v4614 = vld [vmem:[%s242 + $0x50] sm:$0xff]
        %v4615 = vld [vmem:[%s242 + $0x58] sm:$0xff]
        %v4616 = vld [vmem:[%s242 + $0x60] sm:$0xff]
        %v4617 = vld [vmem:[%s242 + $0x68] sm:$0xff]
        %v4618 = vld [vmem:[%s242 + $0x70] sm:$0xff]
        %v4619 = vld [vmem:[%s242 + $0x78] sm:$0xff]
        %v4620 = vld [vmem:[%s242 + $0x80] sm:$0xff]
        %v4621 = vld [vmem:[%s242 + $0x88] sm:$0xff]
        %v4622 = vld [vmem:[%s242 + $0x90] sm:$0xff]
        %v4623 = vld [vmem:[%s242 + $0x98] sm:$0xff]
        %v4624 = vld [vmem:[%s242 + $0xa0] sm:$0xff]
        %v4625 = vld [vmem:[%s242 + $0xa8] sm:$0xff]
        %v4626 = vld [vmem:[%s242 + $0xb0] sm:$0xff]
        %v4627 = vld [vmem:[%s242 + $0xb8] sm:$0xff]
        %v4628 = vld [vmem:[%s242 + $0xc0] sm:$0xff]
        %v4629 = vld [vmem:[%s242 + $0xc8] sm:$0xff]
        %v4630 = vld [vmem:[%s242 + $0xd0] sm:$0xff]
        %v4631 = vld [vmem:[%s242 + $0xd8] sm:$0xff]
        %v4632 = vld [vmem:[%s242 + $0xe0] sm:$0xff]
        %v4633 = vld [vmem:[%s242 + $0xe8] sm:$0xff]
        %v4634 = vld [vmem:[%s242 + $0xf0] sm:$0xff]
        %v4635 = vld [vmem:[%s242 + $0xf8] sm:$0xff]
        %v4668 = vrot.slane %v4604, 2
        %v4669 = vrot.slane %v4604, 4
        %v4670 = vrot.slane %v4604, 6
        %v4671 = vrot.slane %v4605, 2
        %v4672 = vrot.slane %v4605, 4
        %v4673 = vrot.slane %v4605, 6
        %v4674 = vrot.slane %v4606, 2
        %v4675 = vrot.slane %v4606, 4
        %v4676 = vrot.slane %v4606, 6
        %v4677 = vrot.slane %v4607, 2
        %v4678 = vrot.slane %v4607, 4
        %v4679 = vrot.slane %v4607, 6
        %v4680 = vrot.slane %v4608, 2
        %v4681 = vrot.slane %v4608, 4
        %v4682 = vrot.slane %v4608, 6
        %v4683 = vrot.slane %v4609, 2
        %v4684 = vrot.slane %v4609, 4
        %v4685 = vrot.slane %v4609, 6
        %v4686 = vrot.slane %v4610, 2
        %v4687 = vrot.slane %v4610, 4
        %v4688 = vrot.slane %v4610, 6
        %v4689 = vrot.slane %v4611, 2
        %v4690 = vrot.slane %v4611, 4
        %v4691 = vrot.slane %v4611, 6
        %v4692 = vrot.slane %v4612, 2
        %v4693 = vrot.slane %v4612, 4
        %v4694 = vrot.slane %v4612, 6
        %v4695 = vrot.slane %v4613, 2
        %v4696 = vrot.slane %v4613, 4
        %v4697 = vrot.slane %v4613, 6
        %v4698 = vrot.slane %v4614, 2
        %v4699 = vrot.slane %v4614, 4
        %v4700 = vrot.slane %v4614, 6
        %v4701 = vrot.slane %v4615, 2
        %v4702 = vrot.slane %v4615, 4
        %v4703 = vrot.slane %v4615, 6
        %v4704 = vrot.slane %v4616, 2
        %v4705 = vrot.slane %v4616, 4
        %v4706 = vrot.slane %v4616, 6
        %v4707 = vrot.slane %v4617, 2
        %v4708 = vrot.slane %v4617, 4
        %v4709 = vrot.slane %v4617, 6
        %v4710 = vrot.slane %v4618, 2
        %v4711 = vrot.slane %v4618, 4
        %v4712 = vrot.slane %v4618, 6
        %v4713 = vrot.slane %v4619, 2
        %v4714 = vrot.slane %v4619, 4
        %v4715 = vrot.slane %v4619, 6
        %v4716 = vrot.slane %v4620, 2
        %v4717 = vrot.slane %v4620, 4
        %v4718 = vrot.slane %v4620, 6
        %v4719 = vrot.slane %v4621, 2
        %v4720 = vrot.slane %v4621, 4
        %v4721 = vrot.slane %v4621, 6
        %v4722 = vrot.slane %v4622, 2
        %v4723 = vrot.slane %v4622, 4
        %v4724 = vrot.slane %v4622, 6
        %v4725 = vrot.slane %v4623, 2
        %v4726 = vrot.slane %v4623, 4
        %v4727 = vrot.slane %v4623, 6
        %v4728 = vrot.slane %v4624, 2
        %v4729 = vrot.slane %v4624, 4
        %v4730 = vrot.slane %v4624, 6
        %v4731 = vrot.slane %v4625, 2
        %v4732 = vrot.slane %v4625, 4
        %v4733 = vrot.slane %v4625, 6
        %v4734 = vrot.slane %v4626, 2
        %v4735 = vrot.slane %v4626, 4
        %v4736 = vrot.slane %v4626, 6
        %v4737 = vrot.slane %v4627, 2
        %v4738 = vrot.slane %v4627, 4
        %v4739 = vrot.slane %v4627, 6
        %v4740 = vrot.slane %v4628, 2
        %v4741 = vrot.slane %v4628, 4
        %v4742 = vrot.slane %v4628, 6
        %v4743 = vrot.slane %v4629, 2
        %v4744 = vrot.slane %v4629, 4
        %v4745 = vrot.slane %v4629, 6
        %v4746 = vrot.slane %v4630, 2
        %v4747 = vrot.slane %v4630, 4
        %v4748 = vrot.slane %v4630, 6
        %v4749 = vrot.slane %v4631, 2
        %v4750 = vrot.slane %v4631, 4
        %v4751 = vrot.slane %v4631, 6
        %v4752 = vrot.slane %v4632, 2
        %v4753 = vrot.slane %v4632, 4
        %v4754 = vrot.slane %v4632, 6
        %v4755 = vrot.slane %v4633, 2
        %v4756 = vrot.slane %v4633, 4
        %v4757 = vrot.slane %v4633, 6
        %v4758 = vrot.slane %v4634, 2
        %v4759 = vrot.slane %v4634, 4
        %v4760 = vrot.slane %v4634, 6
        %v4761 = vrot.slane %v4635, 2
        %v4762 = vrot.slane %v4635, 4
        %v4763 = vrot.slane %v4635, 6
        %v4860 = vadd.f32 %v4476, %v4604
        %v4861 = vadd.f32 %v4477, %v4668
        %v4862 = vadd.f32 %v4478, %v4669
        %v4863 = vadd.f32 %v4479, %v4670
        %v4864 = vadd.f32 %v4480, %v4605
        %v4865 = vadd.f32 %v4481, %v4671
        %v4866 = vadd.f32 %v4482, %v4672
        %v4867 = vadd.f32 %v4483, %v4673
        %v4868 = vadd.f32 %v4484, %v4606
        %v4869 = vadd.f32 %v4485, %v4674
        %v4870 = vadd.f32 %v4486, %v4675
        %v4871 = vadd.f32 %v4487, %v4676
        %v4872 = vadd.f32 %v4488, %v4607
        %v4873 = vadd.f32 %v4489, %v4677
        %v4874 = vadd.f32 %v4490, %v4678
        %v4875 = vadd.f32 %v4491, %v4679
        %v4876 = vadd.f32 %v4492, %v4608
        %v4877 = vadd.f32 %v4493, %v4680
        %v4878 = vadd.f32 %v4494, %v4681
        %v4879 = vadd.f32 %v4495, %v4682
        %v4880 = vadd.f32 %v4496, %v4609
        %v4881 = vadd.f32 %v4497, %v4683
        %v4882 = vadd.f32 %v4498, %v4684
        %v4883 = vadd.f32 %v4499, %v4685
        %v4884 = vadd.f32 %v4500, %v4610
        %v4885 = vadd.f32 %v4501, %v4686
        %v4886 = vadd.f32 %v4502, %v4687
        %v4887 = vadd.f32 %v4503, %v4688
        %v4888 = vadd.f32 %v4504, %v4611
        %v4889 = vadd.f32 %v4505, %v4689
        %v4890 = vadd.f32 %v4506, %v4690
        %v4891 = vadd.f32 %v4507, %v4691
        %v4892 = vadd.f32 %v4508, %v4612
        %v4893 = vadd.f32 %v4509, %v4692
        %v4894 = vadd.f32 %v4510, %v4693
        %v4895 = vadd.f32 %v4511, %v4694
        %v4896 = vadd.f32 %v4512, %v4613
        %v4897 = vadd.f32 %v4513, %v4695
        %v4898 = vadd.f32 %v4514, %v4696
        %v4899 = vadd.f32 %v4515, %v4697
        %v4900 = vadd.f32 %v4516, %v4614
        %v4901 = vadd.f32 %v4517, %v4698
        %v4902 = vadd.f32 %v4518, %v4699
        %v4903 = vadd.f32 %v4519, %v4700
        %v4904 = vadd.f32 %v4520, %v4615
        %v4905 = vadd.f32 %v4521, %v4701
        %v4906 = vadd.f32 %v4522, %v4702
        %v4907 = vadd.f32 %v4523, %v4703
        %v4908 = vadd.f32 %v4524, %v4616
        %v4909 = vadd.f32 %v4525, %v4704
        %v4910 = vadd.f32 %v4526, %v4705
        %v4911 = vadd.f32 %v4527, %v4706
        %v4912 = vadd.f32 %v4528, %v4617
        %v4913 = vadd.f32 %v4529, %v4707
        %v4914 = vadd.f32 %v4530, %v4708
        %v4915 = vadd.f32 %v4531, %v4709
        %v4916 = vadd.f32 %v4532, %v4618
        %v4917 = vadd.f32 %v4533, %v4710
        %v4918 = vadd.f32 %v4534, %v4711
        %v4919 = vadd.f32 %v4535, %v4712
        %v4920 = vadd.f32 %v4536, %v4619
        %v4921 = vadd.f32 %v4537, %v4713
        %v4922 = vadd.f32 %v4538, %v4714
        %v4923 = vadd.f32 %v4539, %v4715
        %v4924 = vadd.f32 %v4540, %v4620
        %v4925 = vadd.f32 %v4541, %v4716
        %v4926 = vadd.f32 %v4542, %v4717
        %v4927 = vadd.f32 %v4543, %v4718
        %v4928 = vadd.f32 %v4544, %v4621
        %v4929 = vadd.f32 %v4545, %v4719
        %v4930 = vadd.f32 %v4546, %v4720
        %v4931 = vadd.f32 %v4547, %v4721
        %v4932 = vadd.f32 %v4548, %v4622
        %v4933 = vadd.f32 %v4549, %v4722
        %v4934 = vadd.f32 %v4550, %v4723
        %v4935 = vadd.f32 %v4551, %v4724
        %v4936 = vadd.f32 %v4552, %v4623
        %v4937 = vadd.f32 %v4553, %v4725
        %v4938 = vadd.f32 %v4554, %v4726
        %v4939 = vadd.f32 %v4555, %v4727
        %v4940 = vadd.f32 %v4556, %v4624
        %v4941 = vadd.f32 %v4557, %v4728
        %v4942 = vadd.f32 %v4558, %v4729
        %v4943 = vadd.f32 %v4559, %v4730
        %v4944 = vadd.f32 %v4560, %v4625
        %v4945 = vadd.f32 %v4561, %v4731
        %v4946 = vadd.f32 %v4562, %v4732
        %v4947 = vadd.f32 %v4563, %v4733
        %v4948 = vadd.f32 %v4564, %v4626
        %v4949 = vadd.f32 %v4565, %v4734
        %v4950 = vadd.f32 %v4566, %v4735
        %v4951 = vadd.f32 %v4567, %v4736
        %v4952 = vadd.f32 %v4568, %v4627
        %v4953 = vadd.f32 %v4569, %v4737
        %v4954 = vadd.f32 %v4570, %v4738
        %v4955 = vadd.f32 %v4571, %v4739
        %v4956 = vadd.f32 %v4572, %v4628
        %v4957 = vadd.f32 %v4573, %v4740
        %v4958 = vadd.f32 %v4574, %v4741
        %v4959 = vadd.f32 %v4575, %v4742
        %v4960 = vadd.f32 %v4576, %v4629
        %v4961 = vadd.f32 %v4577, %v4743
        %v4962 = vadd.f32 %v4578, %v4744
        %v4963 = vadd.f32 %v4579, %v4745
        %v4964 = vadd.f32 %v4580, %v4630
        %v4965 = vadd.f32 %v4581, %v4746
        %v4966 = vadd.f32 %v4582, %v4747
        %v4967 = vadd.f32 %v4583, %v4748
        %v4968 = vadd.f32 %v4584, %v4631
        %v4969 = vadd.f32 %v4585, %v4749
        %v4970 = vadd.f32 %v4586, %v4750
        %v4971 = vadd.f32 %v4587, %v4751
        %v4972 = vadd.f32 %v4588, %v4632
        %v4973 = vadd.f32 %v4589, %v4752
        %v4974 = vadd.f32 %v4590, %v4753
        %v4975 = vadd.f32 %v4591, %v4754
        %v4976 = vadd.f32 %v4592, %v4633
        %v4977 = vadd.f32 %v4593, %v4755
        %v4978 = vadd.f32 %v4594, %v4756
        %v4979 = vadd.f32 %v4595, %v4757
        %v4980 = vadd.f32 %v4596, %v4634
        %v4981 = vadd.f32 %v4597, %v4758
        %v4982 = vadd.f32 %v4598, %v4759
        %v4983 = vadd.f32 %v4599, %v4760
        %v4984 = vadd.f32 %v4600, %v4635
        %v4985 = vadd.f32 %v4601, %v4761
        %v4986 = vadd.f32 %v4602, %v4762
        %v4987 = vadd.f32 %v4603, %v4763
        %5116 = vst [vmem:[#allocation1] ss:$4 sm:$0xff] %v4860
        %s5117 = scalar_lea.vmem [#allocation1], 1
        %5118 = vst [vmem:[%s5117] ss:$4 sm:$0xff] %v4861
        %s5119 = scalar_lea.vmem [#allocation1], 2
        %5120 = vst [vmem:[%s5119] ss:$4 sm:$0xff] %v4862
        %s5121 = scalar_lea.vmem [#allocation1], 3
        %5122 = vst [vmem:[%s5121] ss:$4 sm:$0xff] %v4863
        %s5123 = scalar_lea.vmem [#allocation1], 32
        %5124 = vst [vmem:[%s5123] ss:$4 sm:$0xff] %v4864
        %s5125 = scalar_lea.vmem [#allocation1], 33
        %5126 = vst [vmem:[%s5125] ss:$4 sm:$0xff] %v4865
        %s5127 = scalar_lea.vmem [#allocation1], 34
        %5128 = vst [vmem:[%s5127] ss:$4 sm:$0xff] %v4866
        %s5129 = scalar_lea.vmem [#allocation1], 35
        %5130 = vst [vmem:[%s5129] ss:$4 sm:$0xff] %v4867
        %v5131 = vld.sshfl [vmem:[#allocation1] sm:$0xff pattern:$0x73625140]
        %v5132 = vld.sshfl [vmem:[#allocation1 + $0x20] sm:$0xff pattern:$0x73625140]
        %5133 = vst [vmem:[#allocation1] ss:$4 sm:$0xff] %v4868
        %5134 = vst [vmem:[%s5117] ss:$4 sm:$0xff] %v4869
        %5135 = vst [vmem:[%s5119] ss:$4 sm:$0xff] %v4870
        %5136 = vst [vmem:[%s5121] ss:$4 sm:$0xff] %v4871
        %5137 = vst [vmem:[%s5123] ss:$4 sm:$0xff] %v4872
        %5138 = vst [vmem:[%s5125] ss:$4 sm:$0xff] %v4873
        %5139 = vst [vmem:[%s5127] ss:$4 sm:$0xff] %v4874
        %5140 = vst [vmem:[%s5129] ss:$4 sm:$0xff] %v4875
        %v5141 = vld.sshfl [vmem:[#allocation1] sm:$0xff pattern:$0x73625140]
        %v5142 = vld.sshfl [vmem:[#allocation1 + $0x20] sm:$0xff pattern:$0x73625140]
        %5143 = vst [vmem:[#allocation1] ss:$4 sm:$0xff] %v4876
        %5144 = vst [vmem:[%s5117] ss:$4 sm:$0xff] %v4877
        %5145 = vst [vmem:[%s5119] ss:$4 sm:$0xff] %v4878
        %5146 = vst [vmem:[%s5121] ss:$4 sm:$0xff] %v4879
        %5147 = vst [vmem:[%s5123] ss:$4 sm:$0xff] %v4880
        %5148 = vst [vmem:[%s5125] ss:$4 sm:$0xff] %v4881
        %5149 = vst [vmem:[%s5127] ss:$4 sm:$0xff] %v4882
        %5150 = vst [vmem:[%s5129] ss:$4 sm:$0xff] %v4883
        %v5151 = vld.sshfl [vmem:[#allocation1] sm:$0xff pattern:$0x73625140]
        %v5152 = vld.sshfl [vmem:[#allocation1 + $0x20] sm:$0xff pattern:$0x73625140]
        %5153 = vst [vmem:[#allocation1] ss:$4 sm:$0xff] %v4884
        %5154 = vst [vmem:[%s5117] ss:$4 sm:$0xff] %v4885
        %5155 = vst [vmem:[%s5119] ss:$4 sm:$0xff] %v4886
        %5156 = vst [vmem:[%s5121] ss:$4 sm:$0xff] %v4887
        %5157 = vst [vmem:[%s5123] ss:$4 sm:$0xff] %v4888
        %5158 = vst [vmem:[%s5125] ss:$4 sm:$0xff] %v4889
        %5159 = vst [vmem:[%s5127] ss:$4 sm:$0xff] %v4890
        %5160 = vst [vmem:[%s5129] ss:$4 sm:$0xff] %v4891
        %v5161 = vld.sshfl [vmem:[#allocation1] sm:$0xff pattern:$0x73625140]
        %v5162 = vld.sshfl [vmem:[#allocation1 + $0x20] sm:$0xff pattern:$0x73625140]
        %5163 = vst [vmem:[#allocation1] ss:$4 sm:$0xff] %v4892
        %5164 = vst [vmem:[%s5117] ss:$4 sm:$0xff] %v4893
        %5165 = vst [vmem:[%s5119] ss:$4 sm:$0xff] %v4894
        %5166 = vst [vmem:[%s5121] ss:$4 sm:$0xff] %v4895
        %5167 = vst [vmem:[%s5123] ss:$4 sm:$0xff] %v4896
        %5168 = vst [vmem:[%s5125] ss:$4 sm:$0xff] %v4897
        %5169 = vst [vmem:[%s5127] ss:$4 sm:$0xff] %v4898
        %5170 = vst [vmem:[%s5129] ss:$4 sm:$0xff] %v4899
        %v5171 = vld.sshfl [vmem:[#allocation1] sm:$0xff pattern:$0x73625140]
        %v5172 = vld.sshfl [vmem:[#allocation1 + $0x20] sm:$0xff pattern:$0x73625140]
        %5173 = vst [vmem:[#allocation1] ss:$4 sm:$0xff] %v4900
        %5174 = vst [vmem:[%s5117] ss:$4 sm:$0xff] %v4901
        %5175 = vst [vmem:[%s5119] ss:$4 sm:$0xff] %v4902
        %5176 = vst [vmem:[%s5121] ss:$4 sm:$0xff] %v4903
        %5177 = vst [vmem:[%s5123] ss:$4 sm:$0xff] %v4904
        %5178 = vst [vmem:[%s5125] ss:$4 sm:$0xff] %v4905
        %5179 = vst [vmem:[%s5127] ss:$4 sm:$0xff] %v4906
        %5180 = vst [vmem:[%s5129] ss:$4 sm:$0xff] %v4907
        %v5181 = vld.sshfl [vmem:[#allocation1] sm:$0xff pattern:$0x73625140]
        %v5182 = vld.sshfl [vmem:[#allocation1 + $0x20] sm:$0xff pattern:$0x73625140]
        %5183 = vst [vmem:[#allocation1] ss:$4 sm:$0xff] %v4908
        %5184 = vst [vmem:[%s5117] ss:$4 sm:$0xff] %v4909
        %5185 = vst [vmem:[%s5119] ss:$4 sm:$0xff] %v4910
        %5186 = vst [vmem:[%s5121] ss:$4 sm:$0xff] %v4911
        %5187 = vst [vmem:[%s5123] ss:$4 sm:$0xff] %v4912
        %5188 = vst [vmem:[%s5125] ss:$4 sm:$0xff] %v4913
        %5189 = vst [vmem:[%s5127] ss:$4 sm:$0xff] %v4914
        %5190 = vst [vmem:[%s5129] ss:$4 sm:$0xff] %v4915
        %v5191 = vld.sshfl [vmem:[#allocation1] sm:$0xff pattern:$0x73625140]
        %v5192 = vld.sshfl [vmem:[#allocation1 + $0x20] sm:$0xff pattern:$0x73625140]
        %5193 = vst [vmem:[#allocation1] ss:$4 sm:$0xff] %v4916
        %5194 = vst [vmem:[%s5117] ss:$4 sm:$0xff] %v4917
        %5195 = vst [vmem:[%s5119] ss:$4 sm:$0xff] %v4918
        %5196 = vst [vmem:[%s5121] ss:$4 sm:$0xff] %v4919
        %5197 = vst [vmem:[%s5123] ss:$4 sm:$0xff] %v4920
        %5198 = vst [vmem:[%s5125] ss:$4 sm:$0xff] %v4921
        %5199 = vst [vmem:[%s5127] ss:$4 sm:$0xff] %v4922
        %5200 = vst [vmem:[%s5129] ss:$4 sm:$0xff] %v4923
        %v5201 = vld.sshfl [vmem:[#allocation1] sm:$0xff pattern:$0x73625140]
        %v5202 = vld.sshfl [vmem:[#allocation1 + $0x20] sm:$0xff pattern:$0x73625140]
        %5203 = vst [vmem:[#allocation1] ss:$4 sm:$0xff] %v4924
        %5204 = vst [vmem:[%s5117] ss:$4 sm:$0xff] %v4925
        %5205 = vst [vmem:[%s5119] ss:$4 sm:$0xff] %v4926
        %5206 = vst [vmem:[%s5121] ss:$4 sm:$0xff] %v4927
        %5207 = vst [vmem:[%s5123] ss:$4 sm:$0xff] %v4928
        %5208 = vst [vmem:[%s5125] ss:$4 sm:$0xff] %v4929
        %5209 = vst [vmem:[%s5127] ss:$4 sm:$0xff] %v4930
        %5210 = vst [vmem:[%s5129] ss:$4 sm:$0xff] %v4931
        %v5211 = vld.sshfl [vmem:[#allocation1] sm:$0xff pattern:$0x73625140]
        %v5212 = vld.sshfl [vmem:[#allocation1 + $0x20] sm:$0xff pattern:$0x73625140]
        %5213 = vst [vmem:[#allocation1] ss:$4 sm:$0xff] %v4932
        %5214 = vst [vmem:[%s5117] ss:$4 sm:$0xff] %v4933
        %5215 = vst [vmem:[%s5119] ss:$4 sm:$0xff] %v4934
        %5216 = vst [vmem:[%s5121] ss:$4 sm:$0xff] %v4935
        %5217 = vst [vmem:[%s5123] ss:$4 sm:$0xff] %v4936
        %5218 = vst [vmem:[%s5125] ss:$4 sm:$0xff] %v4937
        %5219 = vst [vmem:[%s5127] ss:$4 sm:$0xff] %v4938
        %5220 = vst [vmem:[%s5129] ss:$4 sm:$0xff] %v4939
        %v5221 = vld.sshfl [vmem:[#allocation1] sm:$0xff pattern:$0x73625140]
        %v5222 = vld.sshfl [vmem:[#allocation1 + $0x20] sm:$0xff pattern:$0x73625140]
        %5223 = vst [vmem:[#allocation1] ss:$4 sm:$0xff] %v4940
        %5224 = vst [vmem:[%s5117] ss:$4 sm:$0xff] %v4941
        %5225 = vst [vmem:[%s5119] ss:$4 sm:$0xff] %v4942
        %5226 = vst [vmem:[%s5121] ss:$4 sm:$0xff] %v4943
        %5227 = vst [vmem:[%s5123] ss:$4 sm:$0xff] %v4944
        %5228 = vst [vmem:[%s5125] ss:$4 sm:$0xff] %v4945
        %5229 = vst [vmem:[%s5127] ss:$4 sm:$0xff] %v4946
        %5230 = vst [vmem:[%s5129] ss:$4 sm:$0xff] %v4947
        %v5231 = vld.sshfl [vmem:[#allocation1] sm:$0xff pattern:$0x73625140]
        %v5232 = vld.sshfl [vmem:[#allocation1 + $0x20] sm:$0xff pattern:$0x73625140]
        %5233 = vst [vmem:[#allocation1] ss:$4 sm:$0xff] %v4948
        %5234 = vst [vmem:[%s5117] ss:$4 sm:$0xff] %v4949
        %5235 = vst [vmem:[%s5119] ss:$4 sm:$0xff] %v4950
        %5236 = vst [vmem:[%s5121] ss:$4 sm:$0xff] %v4951
        %5237 = vst [vmem:[%s5123] ss:$4 sm:$0xff] %v4952
        %5238 = vst [vmem:[%s5125] ss:$4 sm:$0xff] %v4953
        %5239 = vst [vmem:[%s5127] ss:$4 sm:$0xff] %v4954
        %5240 = vst [vmem:[%s5129] ss:$4 sm:$0xff] %v4955
        %v5241 = vld.sshfl [vmem:[#allocation1] sm:$0xff pattern:$0x73625140]
        %v5242 = vld.sshfl [vmem:[#allocation1 + $0x20] sm:$0xff pattern:$0x73625140]
        %5243 = vst [vmem:[#allocation1] ss:$4 sm:$0xff] %v4956
        %5244 = vst [vmem:[%s5117] ss:$4 sm:$0xff] %v4957
        %5245 = vst [vmem:[%s5119] ss:$4 sm:$0xff] %v4958
        %5246 = vst [vmem:[%s5121] ss:$4 sm:$0xff] %v4959
        %5247 = vst [vmem:[%s5123] ss:$4 sm:$0xff] %v4960
        %5248 = vst [vmem:[%s5125] ss:$4 sm:$0xff] %v4961
        %5249 = vst [vmem:[%s5127] ss:$4 sm:$0xff] %v4962
        %5250 = vst [vmem:[%s5129] ss:$4 sm:$0xff] %v4963
        %v5251 = vld.sshfl [vmem:[#allocation1] sm:$0xff pattern:$0x73625140]
        %v5252 = vld.sshfl [vmem:[#allocation1 + $0x20] sm:$0xff pattern:$0x73625140]
        %5253 = vst [vmem:[#allocation1] ss:$4 sm:$0xff] %v4964
        %5254 = vst [vmem:[%s5117] ss:$4 sm:$0xff] %v4965
        %5255 = vst [vmem:[%s5119] ss:$4 sm:$0xff] %v4966
        %5256 = vst [vmem:[%s5121] ss:$4 sm:$0xff] %v4967
        %5257 = vst [vmem:[%s5123] ss:$4 sm:$0xff] %v4968
        %5258 = vst [vmem:[%s5125] ss:$4 sm:$0xff] %v4969
        %5259 = vst [vmem:[%s5127] ss:$4 sm:$0xff] %v4970
        %5260 = vst [vmem:[%s5129] ss:$4 sm:$0xff] %v4971
        %v5261 = vld.sshfl [vmem:[#allocation1] sm:$0xff pattern:$0x73625140]
        %v5262 = vld.sshfl [vmem:[#allocation1 + $0x20] sm:$0xff pattern:$0x73625140]
        %5263 = vst [vmem:[#allocation1] ss:$4 sm:$0xff] %v4972
        %5264 = vst [vmem:[%s5117] ss:$4 sm:$0xff] %v4973
        %5265 = vst [vmem:[%s5119] ss:$4 sm:$0xff] %v4974
        %5266 = vst [vmem:[%s5121] ss:$4 sm:$0xff] %v4975
        %5267 = vst [vmem:[%s5123] ss:$4 sm:$0xff] %v4976
        %5268 = vst [vmem:[%s5125] ss:$4 sm:$0xff] %v4977
        %5269 = vst [vmem:[%s5127] ss:$4 sm:$0xff] %v4978
        %5270 = vst [vmem:[%s5129] ss:$4 sm:$0xff] %v4979
        %v5271 = vld.sshfl [vmem:[#allocation1] sm:$0xff pattern:$0x73625140]
        %v5272 = vld.sshfl [vmem:[#allocation1 + $0x20] sm:$0xff pattern:$0x73625140]
        %5273 = vst [vmem:[#allocation1] ss:$4 sm:$0xff] %v4980
        %5274 = vst [vmem:[%s5117] ss:$4 sm:$0xff] %v4981
        %5275 = vst [vmem:[%s5119] ss:$4 sm:$0xff] %v4982
        %5276 = vst [vmem:[%s5121] ss:$4 sm:$0xff] %v4983
        %5277 = vst [vmem:[%s5123] ss:$4 sm:$0xff] %v4984
        %5278 = vst [vmem:[%s5125] ss:$4 sm:$0xff] %v4985
        %5279 = vst [vmem:[%s5127] ss:$4 sm:$0xff] %v4986
        %5280 = vst [vmem:[%s5129] ss:$4 sm:$0xff] %v4987
        %v5281 = vld.sshfl [vmem:[#allocation1] sm:$0xff pattern:$0x73625140]
        %v5282 = vld.sshfl [vmem:[#allocation1 + $0x20] sm:$0xff pattern:$0x73625140]
        %5315 = vst [vmem:[%s232] sm:$0xff] %v5131
        %5316 = vst [vmem:[%s232 + $0x8] sm:$0xff] %v5132
        %5317 = vst [vmem:[%s232 + $0x10] sm:$0xff] %v5141
        %5318 = vst [vmem:[%s232 + $0x18] sm:$0xff] %v5142
        %5319 = vst [vmem:[%s232 + $0x20] sm:$0xff] %v5151
        %5320 = vst [vmem:[%s232 + $0x28] sm:$0xff] %v5152
        %5321 = vst [vmem:[%s232 + $0x30] sm:$0xff] %v5161
        %5322 = vst [vmem:[%s232 + $0x38] sm:$0xff] %v5162
        %5323 = vst [vmem:[%s232 + $0x40] sm:$0xff] %v5171
        %5324 = vst [vmem:[%s232 + $0x48] sm:$0xff] %v5172
        %5325 = vst [vmem:[%s232 + $0x50] sm:$0xff] %v5181
        %5326 = vst [vmem:[%s232 + $0x58] sm:$0xff] %v5182
        %5327 = vst [vmem:[%s232 + $0x60] sm:$0xff] %v5191
        %5328 = vst [vmem:[%s232 + $0x68] sm:$0xff] %v5192
        %5329 = vst [vmem:[%s232 + $0x70] sm:$0xff] %v5201
        %5330 = vst [vmem:[%s232 + $0x78] sm:$0xff] %v5202
        %5331 = vst [vmem:[%s232 + $0x80] sm:$0xff] %v5211
        %5332 = vst [vmem:[%s232 + $0x88] sm:$0xff] %v5212
        %5333 = vst [vmem:[%s232 + $0x90] sm:$0xff] %v5221
        %5334 = vst [vmem:[%s232 + $0x98] sm:$0xff] %v5222
        %5335 = vst [vmem:[%s232 + $0xa0] sm:$0xff] %v5231
        %5336 = vst [vmem:[%s232 + $0xa8] sm:$0xff] %v5232
        %5337 = vst [vmem:[%s232 + $0xb0] sm:$0xff] %v5241
        %5338 = vst [vmem:[%s232 + $0xb8] sm:$0xff] %v5242
        %5339 = vst [vmem:[%s232 + $0xc0] sm:$0xff] %v5251
        %5340 = vst [vmem:[%s232 + $0xc8] sm:$0xff] %v5252
        %5341 = vst [vmem:[%s232 + $0xd0] sm:$0xff] %v5261
        %5342 = vst [vmem:[%s232 + $0xd8] sm:$0xff] %v5262
        %5343 = vst [vmem:[%s232 + $0xe0] sm:$0xff] %v5271
        %5344 = vst [vmem:[%s232 + $0xe8] sm:$0xff] %v5272
        %5345 = vst [vmem:[%s232 + $0xf0] sm:$0xff] %v5281
        %5346 = vst [vmem:[%s232 + $0xf8] sm:$0xff] %v5282
        %s5347 = sand.u32 %s142, 1
        %s5348 = scalar_lea.sflag [#allocation3], %s5347
        %s5349 = sand.u32 %s142, 1
        %s5350 = smul.addr %s5349, 256
        %s5351 = scalar_lea.vmem [#allocation2], %s5350
        // Predicated region
        $region41: #{residual_block_forward.3} parent=39 // pred_check
          %p5352 = pneg %p152
        $region42: #{residual_block_forward.3} parent=39 // pred_check_branch
          %5354 = sbr.rel (%p5352) target = $region44
        $region43: #{residual_block_forward.3} parent=39 // pred_region
          %5356 = vsyncadd %s5348, 0
          %s5357 = smul.addr %s19, 32
          %s5358 = smul.addr %s5357, 8
          %s5359 = scalar_lea.hbm %s5, %s5358
          %s5360 = sshll.u32 %s5351, 4
          %s5361 = int_to_ptr.vmem [resolvable:$true] %s5360
          %s5362 = sshll.u32 %s5359, 4
          %s5363 = int_to_ptr.hbm [resolvable:$true] %s5362
          %5368 = dma.vmem_to_hbm [thread:$0]  %s5361, 4096, %s5363, %s5348, 128, 128, 8
        $region44: #{residual_block_forward.3} parent=39 // pred_fallthru
          _
      $region40: #{residual_block_forward.3} parent=5 // pred_fallthru
        _
      %p5369 = scmp.le.s32.totalorder 2, %s14
      // Predicated region
      $region45: #{residual_block_forward.3} parent=5 // pred_check
        %p5370 = pneg %p5369
      $region46: #{residual_block_forward.3} parent=5 // pred_check_branch
        %5372 = sbr.rel (%p5370) target = $region48
      $region47: #{residual_block_forward.3} parent=5 // pred_region
        %s5373 = ssub.s32 %s14, 2
        // Predicated region
        $region49: #{residual_block_forward.3} parent=47 // pred_check
          %p5374 = pneg %p158
        $region50: #{residual_block_forward.3} parent=47 // pred_check_branch
          %5376 = sbr.rel (%p5374) target = $region52
        $region51: #{residual_block_forward.3} parent=47 // pred_region
          %s5377 = sand.u32 %s143, 1
          %s5378 = scalar_lea.sflag [#allocation3], %s5377
          %s5379 = sand.u32 %s143, 1
          %s5380 = smul.addr %s5379, 256
          %s5381 = scalar_lea.vmem [#allocation2], %s5380
          %5383 = dma.done %s5378, 4096
        $region52: #{residual_block_forward.3} parent=47 // pred_fallthru
          _
      $region48: #{residual_block_forward.3} parent=5 // pred_fallthru
        _
    $region6: #{residual_block_forward.3} parent=1 // loop_footer
      %s18 = sadd.s32 1, %s14
    $region7: #{residual_block_forward.3} parent=1 // loop_footer_branch
      %13 = sbr.rel target = $region3
    $region8: #{residual_block_forward.3} parent=1 // loop_exit
      _
    %5384 = vsyncpa [#allocation3], 1
    %s5385 = scalar_lea.sflag [#allocation3], 1
    %5386 = vsyncpa %s5385, 1

// kernel: residual_block_forward.2
$region0: #{residual_block_forward.2}
  #allocation0 [shape = 'u32[]', space=smem, size = 0x4, offset = 0x4, fixed_abs, tag = 'smem constant byte address 0x4 - core index']
  #allocation1 [shape = 'u32[72,128]{1,0:T(1,128)}', space=vmem, size = 0x9000, scoped, tag = 'internal scratch']
  %s0 = inlined_call_operand.vmem [shape: bf16[2,328,128], index: 0, kind: input, shape index: {}]
  %s1 = inlined_call_operand.vmem [shape: bf16[3,3,128,128], index: 1, kind: input, shape index: {}]
  %s2 = inlined_call_operand.vmem [shape: f32[1,128], index: 2, kind: input, shape index: {}]
  %s3 = inlined_call_operand.vmem [shape: f32[1,128], index: 3, kind: input, shape index: {}]
  %s4 = inlined_call_operand.vmem [shape: bf16[2,328,128], index: 4, kind: output, shape index: {}]
  %s5 = sld [smem:[#allocation0]]
  $region49: #{residual_block_forward.2} parent=0
    _
  %s7 = ssub.s32 1, %s5
  %s8 = scalar_select 0, %s7, %s5
  loop: start=0, step=1, limit=4
  $region2: #{residual_block_forward.2} parent=0 // loop_pre_header
    _
  $region3: #{residual_block_forward.2} parent=0 // loop_header
    %s10 = sphi 0, %s14
    %p11 = scmp.ge.s32.totalorder %s10, 4
    %s20 = sphi 0, %s22
    %s23 = sphi 0, %s20
    %s24 = sphi 0, %s23
    %s40 = sphi 0, %s24
    %s44 = sphi 0, %s44
    %s46 = sphi 0, %s44
    %s47 = sphi 0, %s46
    %s61 = sphi 0, %s47
    %s65 = sphi 0, %s65
    %s67 = sphi 0, %s65
    %s68 = sphi 0, %s67
    %s82 = sphi 0, %s68
    %s86 = sphi 0, %s86
    %s88 = sphi 0, %s86
    %s89 = sphi 0, %s88
    %s103 = sphi 0, %s89
    %s109 = sphi 0, %s111
    %s112 = sphi 0, %s109
    %s113 = sphi 0, %s112
    %s129 = sphi 0, %s113
  $region4: #{residual_block_forward.2} parent=0 // loop_header_branch
    %13 = sbr.rel (%p11) target = $region8
  $region5: #{residual_block_forward.2} parent=0 // loop_body
    %s15 = ssub.s32 %s10, 1
    %s16 = ssub.s32 %s10, 2
    %s17 = sadd.s32 %s10, 1
    %s18 = ssub.s32 %s10, %s17
    %p19 = scmp.eq.s32.totalorder %s18, 0
    %s21 = sadd.s32 %s20, 1
    %s22 = scalar_select %p19, %s20, %s21
    %p25 = pneg %p19
    %p26 = scmp.eq.s32.totalorder %s10, 1
    %p27 = por %p25, %p26
    %p28 = scmp.ne.s32.totalorder %s20, %s23
    %p29 = scmp.eq.s32.totalorder %s10, 0
    %p30 = por %p28, %p29
    %p31 = scmp.ne.s32.totalorder %s20, %s23
    %p32 = scmp.eq.s32.totalorder %s15, 1
    %p33 = por %p31, %p32
    %p34 = scmp.ne.s32.totalorder %s23, %s24
    %p35 = scmp.eq.s32.totalorder %s15, 0
    %p36 = por %p34, %p35
    %p37 = scmp.ne.s32.totalorder %s23, %s24
    %p38 = scmp.eq.s32.totalorder %s16, 1
    %p39 = por %p37, %p38
    %p41 = scmp.ne.s32.totalorder %s24, %s40
    %p42 = scmp.eq.s32.totalorder %s16, 0
    %p43 = por %p41, %p42
    %s45 = sadd.s32 %s44, 1
    %p48 = scmp.eq.s32.totalorder %s10, 1
    %p49 = scmp.ne.s32.totalorder %s44, %s46
    %p50 = scmp.eq.s32.totalorder %s10, 0
    %p51 = por %p49, %p50
    %p52 = scmp.ne.s32.totalorder %s44, %s46
    %p53 = scmp.eq.s32.totalorder %s15, 1
    %p54 = por %p52, %p53
    %p55 = scmp.ne.s32.totalorder %s46, %s47
    %p56 = scmp.eq.s32.totalorder %s15, 0
    %p57 = por %p55, %p56
    %p58 = scmp.ne.s32.totalorder %s46, %s47
    %p59 = scmp.eq.s32.totalorder %s16, 1
    %p60 = por %p58, %p59
    %p62 = scmp.ne.s32.totalorder %s47, %s61
    %p63 = scmp.eq.s32.totalorder %s16, 0
    %p64 = por %p62, %p63
    %s66 = sadd.s32 %s65, 1
    %p69 = scmp.eq.s32.totalorder %s10, 1
    %p70 = scmp.ne.s32.totalorder %s65, %s67
    %p71 = scmp.eq.s32.totalorder %s10, 0
    %p72 = por %p70, %p71
    %p73 = scmp.ne.s32.totalorder %s65, %s67
    %p74 = scmp.eq.s32.totalorder %s15, 1
    %p75 = por %p73, %p74
    %p76 = scmp.ne.s32.totalorder %s67, %s68
    %p77 = scmp.eq.s32.totalorder %s15, 0
    %p78 = por %p76, %p77
    %p79 = scmp.ne.s32.totalorder %s67, %s68
    %p80 = scmp.eq.s32.totalorder %s16, 1
    %p81 = por %p79, %p80
    %p83 = scmp.ne.s32.totalorder %s68, %s82
    %p84 = scmp.eq.s32.totalorder %s16, 0
    %p85 = por %p83, %p84
    %s87 = sadd.s32 %s86, 1
    %p90 = scmp.eq.s32.totalorder %s10, 1
    %p91 = scmp.ne.s32.totalorder %s86, %s88
    %p92 = scmp.eq.s32.totalorder %s10, 0
    %p93 = por %p91, %p92
    %p94 = scmp.ne.s32.totalorder %s86, %s88
    %p95 = scmp.eq.s32.totalorder %s15, 1
    %p96 = por %p94, %p95
    %p97 = scmp.ne.s32.totalorder %s88, %s89
    %p98 = scmp.eq.s32.totalorder %s15, 0
    %p99 = por %p97, %p98
    %p100 = scmp.ne.s32.totalorder %s88, %s89
    %p101 = scmp.eq.s32.totalorder %s16, 1
    %p102 = por %p100, %p101
    %p104 = scmp.ne.s32.totalorder %s89, %s103
    %p105 = scmp.eq.s32.totalorder %s16, 0
    %p106 = por %p104, %p105
    %s107 = ssub.s32 %s10, %s17
    %p108 = scmp.eq.s32.totalorder %s107, 0
    %s110 = sadd.s32 %s109, 1
    %s111 = scalar_select %p108, %s109, %s110
    %p114 = pneg %p108
    %p115 = scmp.eq.s32.totalorder %s10, 1
    %p116 = por %p114, %p115
    %p117 = scmp.ne.s32.totalorder %s109, %s112
    %p118 = scmp.eq.s32.totalorder %s10, 0
    %p119 = por %p117, %p118
    %p120 = scmp.ne.s32.totalorder %s109, %s112
    %p121 = scmp.eq.s32.totalorder %s15, 1
    %p122 = por %p120, %p121
    %p123 = scmp.ne.s32.totalorder %s112, %s113
    %p124 = scmp.eq.s32.totalorder %s15, 0
    %p125 = por %p123, %p124
    %p126 = scmp.ne.s32.totalorder %s112, %s113
    %p127 = scmp.eq.s32.totalorder %s16, 1
    %p128 = por %p126, %p127
    %p130 = scmp.ne.s32.totalorder %s113, %s129
    %p131 = scmp.eq.s32.totalorder %s16, 0
    %p132 = por %p130, %p131
    %p133 = scmp.le.s32.totalorder 1, %s10
    %p134 = scmp.lt.s32.totalorder %s10, 3
    %p135 = pnand %p133, %p134
    %p136 = pneg %p135
    // Predicated region
    $region9: #{residual_block_forward.2} parent=5 // pred_check
      _
    $region10: #{residual_block_forward.2} parent=5 // pred_check_branch
      %138 = sbr.rel (%p135) target = $region12
    $region11: #{residual_block_forward.2} parent=5 // pred_region
      %s139 = ssub.s32 %s10, 1
      // Predicated region
      $region13: #{residual_block_forward.2} parent=11 // pred_check
        %p140 = pneg %p57
      $region14: #{residual_block_forward.2} parent=11 // pred_check_branch
        %142 = sbr.rel (%p140) target = $region16
      $region15: #{residual_block_forward.2} parent=11 // pred_region
        _
      $region16: #{residual_block_forward.2} parent=11 // pred_fallthru
        _
      // Predicated region
      $region17: #{residual_block_forward.2} parent=11 // pred_check
        %p143 = pneg %p78
      $region18: #{residual_block_forward.2} parent=11 // pred_check_branch
        %145 = sbr.rel (%p143) target = $region20
      $region19: #{residual_block_forward.2} parent=11 // pred_region
        _
      $region20: #{residual_block_forward.2} parent=11 // pred_fallthru
        _
      // Predicated region
      $region21: #{residual_block_forward.2} parent=11 // pred_check
        %p146 = pneg %p99
      $region22: #{residual_block_forward.2} parent=11 // pred_check_branch
        %148 = sbr.rel (%p146) target = $region24
      $region23: #{residual_block_forward.2} parent=11 // pred_region
        _
      $region24: #{residual_block_forward.2} parent=11 // pred_fallthru
        _
    $region12: #{residual_block_forward.2} parent=5 // pred_fallthru
      _
    %p149 = scmp.lt.s32.totalorder %s10, 2
    // Predicated region
    $region25: #{residual_block_forward.2} parent=5 // pred_check
      %p150 = pneg %p149
    $region26: #{residual_block_forward.2} parent=5 // pred_check_branch
      %152 = sbr.rel (%p150) target = $region28
    $region27: #{residual_block_forward.2} parent=5 // pred_region
      // Predicated region
      $region29: #{residual_block_forward.2} parent=27 // pred_check
        %p153 = pneg %p30
      $region30: #{residual_block_forward.2} parent=27 // pred_check_branch
        %155 = sbr.rel (%p153) target = $region32
      $region31: #{residual_block_forward.2} parent=27 // pred_region
        %p156 = scmp.lt.s32.totalorder %s10, 1
        %s157 = scalar_select %p156, %s10, 1
        %s158 = smul.addr %s157, 41
        %s159 = smul.addr %s158, 4
        %s160 = scalar_lea.vmem %s0, %s159
      $region32: #{residual_block_forward.2} parent=27 // pred_fallthru
        _
    $region28: #{residual_block_forward.2} parent=5 // pred_fallthru
      _
    %p161 = scmp.le.s32.totalorder 1, %s10
    %p162 = scmp.lt.s32.totalorder %s10, 3
    %p163 = pnand %p161, %p162
    %p164 = pneg %p163
    // Predicated region
    $region33: #{residual_block_forward.2} parent=5 // pred_check
      _
    $region34: #{residual_block_forward.2} parent=5 // pred_check_branch
      %166 = sbr.rel (%p163) target = $region36
    $region35: #{residual_block_forward.2} parent=5 // pred_region
      %s167 = ssub.s32 %s10, 1
      %p168 = scmp.lt.s32.totalorder %s15, 1
      %s169 = scalar_select %p168, %s15, 1
      %s170 = smul.addr %s169, 41
      %s171 = smul.addr %s170, 4
      %s172 = scalar_lea.vmem %s0, %s171
      %p173 = pneg %p36
      %p174 = pneg %p33
      %p175 = pneg %p57
      %p176 = pneg %p54
      %p177 = pneg %p78
      %p178 = pneg %p75
      %p179 = pneg %p99
      %p180 = pneg %p96
      %p181 = pneg %p125
      %p182 = pneg %p122
      %p183 = scmp.lt.s32.totalorder %s15, 1
      %s184 = scalar_select %p183, %s15, 1
      %s185 = smul.addr %s184, 41
      %s186 = smul.addr %s185, 4
      %s187 = scalar_lea.vmem %s4, %s186
      %p188 = scmp.lt.s32.totalorder %s15, 1
      %s189 = scalar_select %p188, %s15, 1
      %s190 = smul.addr %s189, 41
      %s191 = smul.addr %s190, 4
      %s192 = scalar_lea.vmem %s0, %s191
      %p193 = scmp.lt.s32.totalorder %s15, 1
      %s194 = scalar_select %p193, %s15, 1
      %s195 = smul.addr %s194, 41
      %s196 = smul.addr %s195, 4
      %s197 = scalar_lea.vmem %s4, %s196
      %v199 = vld [vmem:[%s192] sm:$0xf]
      %v200 = vld [vmem:[%s192 + $0x4] sm:$0xf]
      %v201 = vld [vmem:[%s192 + $0x8] sm:$0xf]
      %v202 = vld [vmem:[%s192 + $0xc] sm:$0xf]
      %v203 = vld [vmem:[%s192 + $0x10] sm:$0xf]
      %v204 = vld [vmem:[%s192 + $0x14] sm:$0xf]
      %v205 = vld [vmem:[%s192 + $0x18] sm:$0xf]
      %v206 = vld [vmem:[%s192 + $0x1c] sm:$0xf]
      %v207 = vld [vmem:[%s192 + $0x20] sm:$0xf]
      %v208 = vld [vmem:[%s192 + $0x24] sm:$0xf]
      %v209 = vld [vmem:[%s192 + $0x28] sm:$0xf]
      %v210 = vld [vmem:[%s192 + $0x2c] sm:$0xf]
      %v211 = vld [vmem:[%s192 + $0x30] sm:$0xf]
      %v212 = vld [vmem:[%s192 + $0x34] sm:$0xf]
      %v213 = vld [vmem:[%s192 + $0x38] sm:$0xf]
      %v214 = vld [vmem:[%s192 + $0x3c] sm:$0xf]
      %v215 = vld [vmem:[%s192 + $0x40] sm:$0xf]
      %v216 = vld [vmem:[%s192 + $0x44] sm:$0xf]
      %v217 = vld [vmem:[%s192 + $0x48] sm:$0xf]
      %v218 = vld [vmem:[%s192 + $0x4c] sm:$0xf]
      %v219 = vld [vmem:[%s192 + $0x50] sm:$0xf]
      %v220 = vld [vmem:[%s192 + $0x54] sm:$0xf]
      %v221 = vld [vmem:[%s192 + $0x58] sm:$0xf]
      %v222 = vld [vmem:[%s192 + $0x5c] sm:$0xf]
      %v223 = vld [vmem:[%s192 + $0x60] sm:$0xf]
      %v224 = vld [vmem:[%s192 + $0x64] sm:$0xf]
      %v225 = vld [vmem:[%s192 + $0x68] sm:$0xf]
      %v226 = vld [vmem:[%s192 + $0x6c] sm:$0xf]
      %v227 = vld [vmem:[%s192 + $0x70] sm:$0xf]
      %v228 = vld [vmem:[%s192 + $0x74] sm:$0xf]
      %v229 = vld [vmem:[%s192 + $0x78] sm:$0xf]
      %v230 = vld [vmem:[%s192 + $0x7c] sm:$0xf]
      %v231 = vld [vmem:[%s192 + $0x80] sm:$0xf]
      %v232 = vld [vmem:[%s192 + $0x84] sm:$0xf]
      %v233 = vld [vmem:[%s192 + $0x88] sm:$0xf]
      %v234 = vld [vmem:[%s192 + $0x8c] sm:$0xf]
      %v235 = vld [vmem:[%s1] sm:$0xf]
      %v236 = vld [vmem:[%s1 + $0x4] sm:$0xf]
      %v237 = vld [vmem:[%s1 + $0x8] sm:$0xf]
      %v238 = vld [vmem:[%s1 + $0xc] sm:$0xf]
      %v239 = vld [vmem:[%s1 + $0x10] sm:$0xf]
      %v240 = vld [vmem:[%s1 + $0x14] sm:$0xf]
      %v241 = vld [vmem:[%s1 + $0x18] sm:$0xf]
      %v242 = vld [vmem:[%s1 + $0x1c] sm:$0xf]
      %v243 = vld [vmem:[%s1 + $0x20] sm:$0xf]
      %v244 = vld [vmem:[%s1 + $0x24] sm:$0xf]
      %v245 = vld [vmem:[%s1 + $0x28] sm:$0xf]
      %v246 = vld [vmem:[%s1 + $0x2c] sm:$0xf]
      %v247 = vld [vmem:[%s1 + $0x30] sm:$0xf]
      %v248 = vld [vmem:[%s1 + $0x34] sm:$0xf]
      %v249 = vld [vmem:[%s1 + $0x38] sm:$0xf]
      %v250 = vld [vmem:[%s1 + $0x3c] sm:$0xf]
      %v251 = vld [vmem:[%s192 + $0x90] sm:$0x1]
      %s252 = scalar_lea.vmem %s1, 64
      %v253 = vld [vmem:[%s252] sm:$0xf]
      %v254 = vld [vmem:[%s252 + $0x4] sm:$0xf]
      %v255 = vld [vmem:[%s252 + $0x8] sm:$0xf]
      %v256 = vld [vmem:[%s252 + $0xc] sm:$0xf]
      %v257 = vld [vmem:[%s252 + $0x10] sm:$0xf]
      %v258 = vld [vmem:[%s252 + $0x14] sm:$0xf]
      %v259 = vld [vmem:[%s252 + $0x18] sm:$0xf]
      %v260 = vld [vmem:[%s252 + $0x1c] sm:$0xf]
      %v261 = vld [vmem:[%s252 + $0x20] sm:$0xf]
      %v262 = vld [vmem:[%s252 + $0x24] sm:$0xf]
      %v263 = vld [vmem:[%s252 + $0x28] sm:$0xf]
      %v264 = vld [vmem:[%s252 + $0x2c] sm:$0xf]
      %v265 = vld [vmem:[%s252 + $0x30] sm:$0xf]
      %v266 = vld [vmem:[%s252 + $0x34] sm:$0xf]
      %v267 = vld [vmem:[%s252 + $0x38] sm:$0xf]
      %v268 = vld [vmem:[%s252 + $0x3c] sm:$0xf]
      %v306 = vunpack.c.l.b16 %v199
      %v307 = vunpack.c.l.b16 %v200
      %v308 = vunpack.c.l.b16 %v201
      %v309 = vunpack.c.l.b16 %v202
      %v310 = vunpack.c.l.b16 %v203
      %v311 = vunpack.c.l.b16 %v204
      %v312 = vunpack.c.l.b16 %v205
      %v313 = vunpack.c.l.b16 %v206
      %v314 = vunpack.c.l.b16 %v207
      %v315 = vunpack.c.l.b16 %v208
      %v316 = vunpack.c.l.b16 %v209
      %v317 = vunpack.c.l.b16 %v210
      %v318 = vunpack.c.l.b16 %v211
      %v319 = vunpack.c.l.b16 %v212
      %v320 = vunpack.c.l.b16 %v213
      %v321 = vunpack.c.l.b16 %v214
      %v322 = vunpack.c.l.b16 %v215
      %v323 = vunpack.c.l.b16 %v216
      %v324 = vunpack.c.l.b16 %v217
      %v325 = vunpack.c.l.b16 %v218
      %v326 = vunpack.c.l.b16 %v219
      %v327 = vunpack.c.l.b16 %v220
      %v328 = vunpack.c.l.b16 %v221
      %v329 = vunpack.c.l.b16 %v222
      %v330 = vunpack.c.l.b16 %v223
      %v331 = vunpack.c.l.b16 %v224
      %v332 = vunpack.c.l.b16 %v225
      %v333 = vunpack.c.l.b16 %v226
      %v334 = vunpack.c.l.b16 %v227
      %v335 = vunpack.c.l.b16 %v228
      %v336 = vunpack.c.l.b16 %v229
      %v337 = vunpack.c.l.b16 %v230
      %v338 = vunpack.c.l.b16 %v231
      %v339 = vunpack.c.l.b16 %v232
      %v340 = vunpack.c.l.b16 %v233
      %v341 = vunpack.c.l.b16 %v234
      %v342 = vunpack.c.l.b16 %v251
      %v343 = vpack.c.b16 %v307, %v306
      %v344 = vpack.c.b16 %v309, %v308
      %v345 = vpack.c.b16 %v311, %v310
      %v346 = vpack.c.b16 %v313, %v312
      %v347 = vpack.c.b16 %v315, %v314
      %v348 = vpack.c.b16 %v317, %v316
      %v349 = vpack.c.b16 %v319, %v318
      %v350 = vpack.c.b16 %v321, %v320
      %v351 = vpack.c.b16 %v323, %v322
      %v352 = vpack.c.b16 %v325, %v324
      %v353 = vpack.c.b16 %v327, %v326
      %v354 = vpack.c.b16 %v329, %v328
      %v355 = vpack.c.b16 %v331, %v330
      %v356 = vpack.c.b16 %v333, %v332
      %v357 = vpack.c.b16 %v335, %v334
      %v358 = vpack.c.b16 %v337, %v336
      %v359 = vpack.c.b16 %v339, %v338
      %v360 = vpack.c.b16 %v341, %v340
      %v361 = vpack.c.b16 %v342, %v342
      %vm362 = vsmask.f32 7424
      %v364 = vshrl.u32 %v343, 16
      %v366 = vshll.u32 %v343, 16
      %v368 = vrot.slane %v366, 1
      %v369 = vor.u32 %v364, %v368
      %v371 = vshll.u32 %v344, 16
      %v373 = vrot.slane %v371, 1
      %v374 = vsel %vm362, %v369, %v373
      %v375 = vshrl.u32 %v344, 16
      %v377 = vor.u32 %v375, %v373
      %v379 = vshll.u32 %v345, 16
      %v381 = vrot.slane %v379, 1
      %v382 = vsel %vm362, %v377, %v381
      %v383 = vshrl.u32 %v345, 16
      %v385 = vor.u32 %v383, %v381
      %v387 = vshll.u32 %v346, 16
      %v389 = vrot.slane %v387, 1
      %v390 = vsel %vm362, %v385, %v389
      %v391 = vshrl.u32 %v346, 16
      %v393 = vor.u32 %v391, %v389
      %v395 = vshll.u32 %v347, 16
      %v397 = vrot.slane %v395, 1
      %v398 = vsel %vm362, %v393, %v397
      %v399 = vshrl.u32 %v347, 16
      %v401 = vor.u32 %v399, %v397
      %v403 = vshll.u32 %v348, 16
      %v405 = vrot.slane %v403, 1
      %v406 = vsel %vm362, %v401, %v405
      %v407 = vshrl.u32 %v348, 16
      %v409 = vor.u32 %v407, %v405
      %v411 = vshll.u32 %v349, 16
      %v413 = vrot.slane %v411, 1
      %v414 = vsel %vm362, %v409, %v413
      %v415 = vshrl.u32 %v349, 16
      %v417 = vor.u32 %v415, %v413
      %v419 = vshll.u32 %v350, 16
      %v421 = vrot.slane %v419, 1
      %v422 = vsel %vm362, %v417, %v421
      %v423 = vshrl.u32 %v350, 16
      %v425 = vor.u32 %v423, %v421
      %v427 = vshll.u32 %v351, 16
      %v429 = vrot.slane %v427, 1
      %v430 = vsel %vm362, %v425, %v429
      %v431 = vshrl.u32 %v351, 16
      %v433 = vor.u32 %v431, %v429
      %v435 = vshll.u32 %v352, 16
      %v437 = vrot.slane %v435, 1
      %v438 = vsel %vm362, %v433, %v437
      %v439 = vshrl.u32 %v352, 16
      %v441 = vor.u32 %v439, %v437
      %v443 = vshll.u32 %v353, 16
      %v445 = vrot.slane %v443, 1
      %v446 = vsel %vm362, %v441, %v445
      %v447 = vshrl.u32 %v353, 16
      %v449 = vor.u32 %v447, %v445
      %v451 = vshll.u32 %v354, 16
      %v453 = vrot.slane %v451, 1
      %v454 = vsel %vm362, %v449, %v453
      %v455 = vshrl.u32 %v354, 16
      %v457 = vor.u32 %v455, %v453
      %v459 = vshll.u32 %v355, 16
      %v461 = vrot.slane %v459, 1
      %v462 = vsel %vm362, %v457, %v461
      %v463 = vshrl.u32 %v355, 16
      %v465 = vor.u32 %v463, %v461
      %v467 = vshll.u32 %v356, 16
      %v469 = vrot.slane %v467, 1
      %v470 = vsel %vm362, %v465, %v469
      %v471 = vshrl.u32 %v356, 16
      %v473 = vor.u32 %v471, %v469
      %v475 = vshll.u32 %v357, 16
      %v477 = vrot.slane %v475, 1
      %v478 = vsel %vm362, %v473, %v477
      %v479 = vshrl.u32 %v357, 16
      %v481 = vor.u32 %v479, %v477
      %v483 = vshll.u32 %v358, 16
      %v485 = vrot.slane %v483, 1
      %v486 = vsel %vm362, %v481, %v485
      %v487 = vshrl.u32 %v358, 16
      %v489 = vor.u32 %v487, %v485
      %v491 = vshll.u32 %v359, 16
      %v493 = vrot.slane %v491, 1
      %v494 = vsel %vm362, %v489, %v493
      %v495 = vshrl.u32 %v359, 16
      %v497 = vor.u32 %v495, %v493
      %v499 = vshll.u32 %v360, 16
      %v501 = vrot.slane %v499, 1
      %v502 = vsel %vm362, %v497, %v501
      %v503 = vshrl.u32 %v360, 16
      %v505 = vor.u32 %v503, %v501
      %v507 = vshll.u32 %v361, 16
      %v509 = vrot.slane %v507, 1
      %v510 = vsel %vm362, %v505, %v509
      %v545 = vunpack.c.l.b16 %v253
      %v546 = vunpack.c.l.b16 %v254
      %v547 = vunpack.c.l.b16 %v255
      %v548 = vunpack.c.l.b16 %v256
      %v549 = vunpack.c.l.b16 %v257
      %v550 = vunpack.c.l.b16 %v258
      %v551 = vunpack.c.l.b16 %v259
      %v552 = vunpack.c.l.b16 %v260
      %v553 = vunpack.c.l.b16 %v261
      %v554 = vunpack.c.l.b16 %v262
      %v555 = vunpack.c.l.b16 %v263
      %v556 = vunpack.c.l.b16 %v264
      %v557 = vunpack.c.l.b16 %v265
      %v558 = vunpack.c.l.b16 %v266
      %v559 = vunpack.c.l.b16 %v267
      %v560 = vunpack.c.l.b16 %v268
      %v561 = vpack.c.b16 %v546, %v545
      %v562 = vpack.c.b16 %v548, %v547
      %v563 = vpack.c.b16 %v550, %v549
      %v564 = vpack.c.b16 %v552, %v551
      %v565 = vpack.c.b16 %v554, %v553
      %v566 = vpack.c.b16 %v556, %v555
      %v567 = vpack.c.b16 %v558, %v557
      %v568 = vpack.c.b16 %v560, %v559
      %577 = vmatpush.bf16.msra.mxu0 %v568
      %578 = vmatpush.bf16.msra.mxu0 %v567
      %579 = vmatpush.bf16.msra.mxu0 %v566
      %580 = vmatpush.bf16.msra.mxu0 %v565
      %581 = vmatpush.bf16.msra.mxu0 %v564
      %582 = vmatpush.bf16.msra.mxu0 %v563
      %583 = vmatpush.bf16.msra.mxu0 %v562
      %584 = vmatpush.bf16.msra.mxu0 %v561
      %585 = vmatmul.bf16.gmra.mxu0 %v374
      %v586 = vpop.f32.mrf.mxu0
      %v587 = vadd.f32 0.0, %v586
      %v588 = vpop.f32.mrf.mxu0
      %v589 = vadd.f32 0.0, %v588
      %590 = vmatmul.bf16.gmra.mxu0 %v382
      %v591 = vpop.f32.mrf.mxu0
      %v592 = vadd.f32 0.0, %v591
      %v593 = vpop.f32.mrf.mxu0
      %v594 = vadd.f32 0.0, %v593
      %595 = vmatmul.bf16.gmra.mxu0 %v390
      %v596 = vpop.f32.mrf.mxu0
      %v597 = vadd.f32 0.0, %v596
      %v598 = vpop.f32.mrf.mxu0
      %v599 = vadd.f32 0.0, %v598
      %600 = vmatmul.bf16.gmra.mxu0 %v398
      %v601 = vpop.f32.mrf.mxu0
      %v602 = vadd.f32 0.0, %v601
      %v603 = vpop.f32.mrf.mxu0
      %v604 = vadd.f32 0.0, %v603
      %605 = vmatmul.bf16.gmra.mxu0 %v406
      %v606 = vpop.f32.mrf.mxu0
      %v607 = vadd.f32 0.0, %v606
      %v608 = vpop.f32.mrf.mxu0
      %v609 = vadd.f32 0.0, %v608
      %610 = vmatmul.bf16.gmra.mxu0 %v414
      %v611 = vpop.f32.mrf.mxu0
      %v612 = vadd.f32 0.0, %v611
      %v613 = vpop.f32.mrf.mxu0
      %v614 = vadd.f32 0.0, %v613
      %615 = vmatmul.bf16.gmra.mxu0 %v422
      %v616 = vpop.f32.mrf.mxu0
      %v617 = vadd.f32 0.0, %v616
      %v618 = vpop.f32.mrf.mxu0
      %v619 = vadd.f32 0.0, %v618
      %620 = vmatmul.bf16.gmra.mxu0 %v430
      %v621 = vpop.f32.mrf.mxu0
      %v622 = vadd.f32 0.0, %v621
      %v623 = vpop.f32.mrf.mxu0
      %v624 = vadd.f32 0.0, %v623
      %625 = vmatmul.bf16.gmra.mxu0 %v438
      %v626 = vpop.f32.mrf.mxu0
      %v627 = vadd.f32 0.0, %v626
      %v628 = vpop.f32.mrf.mxu0
      %v629 = vadd.f32 0.0, %v628
      %630 = vmatmul.bf16.gmra.mxu0 %v446
      %v631 = vpop.f32.mrf.mxu0
      %v632 = vadd.f32 0.0, %v631
      %v633 = vpop.f32.mrf.mxu0
      %v634 = vadd.f32 0.0, %v633
      %635 = vmatmul.bf16.gmra.mxu0 %v454
      %v636 = vpop.f32.mrf.mxu0
      %v637 = vadd.f32 0.0, %v636
      %v638 = vpop.f32.mrf.mxu0
      %v639 = vadd.f32 0.0, %v638
      %640 = vmatmul.bf16.gmra.mxu0 %v462
      %v641 = vpop.f32.mrf.mxu0
      %v642 = vadd.f32 0.0, %v641
      %v643 = vpop.f32.mrf.mxu0
      %v644 = vadd.f32 0.0, %v643
      %645 = vmatmul.bf16.gmra.mxu0 %v470
      %v646 = vpop.f32.mrf.mxu0
      %v647 = vadd.f32 0.0, %v646
      %v648 = vpop.f32.mrf.mxu0
      %v649 = vadd.f32 0.0, %v648
      %650 = vmatmul.bf16.gmra.mxu0 %v478
      %v651 = vpop.f32.mrf.mxu0
      %v652 = vadd.f32 0.0, %v651
      %v653 = vpop.f32.mrf.mxu0
      %v654 = vadd.f32 0.0, %v653
      %655 = vmatmul.bf16.gmra.mxu0 %v486
      %v656 = vpop.f32.mrf.mxu0
      %v657 = vadd.f32 0.0, %v656
      %v658 = vpop.f32.mrf.mxu0
      %v659 = vadd.f32 0.0, %v658
      %660 = vmatmul.bf16.gmra.mxu0 %v494
      %v661 = vpop.f32.mrf.mxu0
      %v662 = vadd.f32 0.0, %v661
      %v663 = vpop.f32.mrf.mxu0
      %v664 = vadd.f32 0.0, %v663
      %665 = vmatmul.bf16.gmra.mxu0 %v502
      %v666 = vpop.f32.mrf.mxu0
      %v667 = vadd.f32 0.0, %v666
      %v668 = vpop.f32.mrf.mxu0
      %v669 = vadd.f32 0.0, %v668
      %670 = vmatmul.bf16.gmra.mxu0 %v510
      %v671 = vpop.f32.mrf.mxu0
      %v672 = vadd.f32 0.0, %v671
      %v673 = vpop.f32.mrf.mxu0
      %v674 = vadd.f32 0.0, %v673
      %675 = vdwg.mxu0
      %v710 = vunpack.c.l.b16 %v235
      %v711 = vunpack.c.l.b16 %v236
      %v712 = vunpack.c.l.b16 %v237
      %v713 = vunpack.c.l.b16 %v238
      %v714 = vunpack.c.l.b16 %v239
      %v715 = vunpack.c.l.b16 %v240
      %v716 = vunpack.c.l.b16 %v241
      %v717 = vunpack.c.l.b16 %v242
      %v718 = vunpack.c.l.b16 %v243
      %v719 = vunpack.c.l.b16 %v244
      %v720 = vunpack.c.l.b16 %v245
      %v721 = vunpack.c.l.b16 %v246
      %v722 = vunpack.c.l.b16 %v247
      %v723 = vunpack.c.l.b16 %v248
      %v724 = vunpack.c.l.b16 %v249
      %v725 = vunpack.c.l.b16 %v250
      %v726 = vpack.c.b16 %v711, %v710
      %v727 = vpack.c.b16 %v713, %v712
      %v728 = vpack.c.b16 %v715, %v714
      %v729 = vpack.c.b16 %v717, %v716
      %v730 = vpack.c.b16 %v719, %v718
      %v731 = vpack.c.b16 %v721, %v720
      %v732 = vpack.c.b16 %v723, %v722
      %v733 = vpack.c.b16 %v725, %v724
      %742 = vmatpush.bf16.msra.mxu0 %v733
      %743 = vmatpush.bf16.msra.mxu0 %v732
      %744 = vmatpush.bf16.msra.mxu0 %v731
      %745 = vmatpush.bf16.msra.mxu0 %v730
      %746 = vmatpush.bf16.msra.mxu0 %v729
      %747 = vmatpush.bf16.msra.mxu0 %v728
      %748 = vmatpush.bf16.msra.mxu0 %v727
      %749 = vmatpush.bf16.msra.mxu0 %v726
      %750 = vmatmul.bf16.gmra.mxu0 %v343
      %v751 = vpop.f32.mrf.mxu0
      %v752 = vadd.f32 %v587, %v751
      %v753 = vpop.f32.mrf.mxu0
      %v754 = vadd.f32 %v589, %v753
      %755 = vmatmul.bf16.gmra.mxu0 %v344
      %v756 = vpop.f32.mrf.mxu0
      %v757 = vadd.f32 %v592, %v756
      %v758 = vpop.f32.mrf.mxu0
      %v759 = vadd.f32 %v594, %v758
      %760 = vmatmul.bf16.gmra.mxu0 %v345
      %v761 = vpop.f32.mrf.mxu0
      %v762 = vadd.f32 %v597, %v761
      %v763 = vpop.f32.mrf.mxu0
      %v764 = vadd.f32 %v599, %v763
      %765 = vmatmul.bf16.gmra.mxu0 %v346
      %v766 = vpop.f32.mrf.mxu0
      %v767 = vadd.f32 %v602, %v766
      %v768 = vpop.f32.mrf.mxu0
      %v769 = vadd.f32 %v604, %v768
      %770 = vmatmul.bf16.gmra.mxu0 %v347
      %v771 = vpop.f32.mrf.mxu0
      %v772 = vadd.f32 %v607, %v771
      %v773 = vpop.f32.mrf.mxu0
      %v774 = vadd.f32 %v609, %v773
      %775 = vmatmul.bf16.gmra.mxu0 %v348
      %v776 = vpop.f32.mrf.mxu0
      %v777 = vadd.f32 %v612, %v776
      %v778 = vpop.f32.mrf.mxu0
      %v779 = vadd.f32 %v614, %v778
      %780 = vmatmul.bf16.gmra.mxu0 %v349
      %v781 = vpop.f32.mrf.mxu0
      %v782 = vadd.f32 %v617, %v781
      %v783 = vpop.f32.mrf.mxu0
      %v784 = vadd.f32 %v619, %v783
      %785 = vmatmul.bf16.gmra.mxu0 %v350
      %v786 = vpop.f32.mrf.mxu0
      %v787 = vadd.f32 %v622, %v786
      %v788 = vpop.f32.mrf.mxu0
      %v789 = vadd.f32 %v624, %v788
      %790 = vmatmul.bf16.gmra.mxu0 %v351
      %v791 = vpop.f32.mrf.mxu0
      %v792 = vadd.f32 %v627, %v791
      %v793 = vpop.f32.mrf.mxu0
      %v794 = vadd.f32 %v629, %v793
      %795 = vmatmul.bf16.gmra.mxu0 %v352
      %v796 = vpop.f32.mrf.mxu0
      %v797 = vadd.f32 %v632, %v796
      %v798 = vpop.f32.mrf.mxu0
      %v799 = vadd.f32 %v634, %v798
      %800 = vmatmul.bf16.gmra.mxu0 %v353
      %v801 = vpop.f32.mrf.mxu0
      %v802 = vadd.f32 %v637, %v801
      %v803 = vpop.f32.mrf.mxu0
      %v804 = vadd.f32 %v639, %v803
      %805 = vmatmul.bf16.gmra.mxu0 %v354
      %v806 = vpop.f32.mrf.mxu0
      %v807 = vadd.f32 %v642, %v806
      %v808 = vpop.f32.mrf.mxu0
      %v809 = vadd.f32 %v644, %v808
      %810 = vmatmul.bf16.gmra.mxu0 %v355
      %v811 = vpop.f32.mrf.mxu0
      %v812 = vadd.f32 %v647, %v811
      %v813 = vpop.f32.mrf.mxu0
      %v814 = vadd.f32 %v649, %v813
      %815 = vmatmul.bf16.gmra.mxu0 %v356
      %v816 = vpop.f32.mrf.mxu0
      %v817 = vadd.f32 %v652, %v816
      %v818 = vpop.f32.mrf.mxu0
      %v819 = vadd.f32 %v654, %v818
      %820 = vmatmul.bf16.gmra.mxu0 %v357
      %v821 = vpop.f32.mrf.mxu0
      %v822 = vadd.f32 %v657, %v821
      %v823 = vpop.f32.mrf.mxu0
      %v824 = vadd.f32 %v659, %v823
      %825 = vmatmul.bf16.gmra.mxu0 %v358
      %v826 = vpop.f32.mrf.mxu0
      %v827 = vadd.f32 %v662, %v826
      %v828 = vpop.f32.mrf.mxu0
      %v829 = vadd.f32 %v664, %v828
      %830 = vmatmul.bf16.gmra.mxu0 %v359
      %v831 = vpop.f32.mrf.mxu0
      %v832 = vadd.f32 %v667, %v831
      %v833 = vpop.f32.mrf.mxu0
      %v834 = vadd.f32 %v669, %v833
      %835 = vmatmul.bf16.gmra.mxu0 %v360
      %v836 = vpop.f32.mrf.mxu0
      %v837 = vadd.f32 %v672, %v836
      %v838 = vpop.f32.mrf.mxu0
      %v839 = vadd.f32 %v674, %v838
      %840 = vdwg.mxu0
      %v841 = vld [vmem:[%s192] sm:$0xe]
      %s842 = scalar_lea.vmem %s1, 128
      %v843 = vld [vmem:[%s842] sm:$0xf]
      %v844 = vld [vmem:[%s842 + $0x4] sm:$0xf]
      %v845 = vld [vmem:[%s842 + $0x8] sm:$0xf]
      %v846 = vld [vmem:[%s842 + $0xc] sm:$0xf]
      %v847 = vld [vmem:[%s842 + $0x10] sm:$0xf]
      %v848 = vld [vmem:[%s842 + $0x14] sm:$0xf]
      %v849 = vld [vmem:[%s842 + $0x18] sm:$0xf]
      %v850 = vld [vmem:[%s842 + $0x1c] sm:$0xf]
      %v851 = vld [vmem:[%s842 + $0x20] sm:$0xf]
      %v852 = vld [vmem:[%s842 + $0x24] sm:$0xf]
      %v853 = vld [vmem:[%s842 + $0x28] sm:$0xf]
      %v854 = vld [vmem:[%s842 + $0x2c] sm:$0xf]
      %v855 = vld [vmem:[%s842 + $0x30] sm:$0xf]
      %v856 = vld [vmem:[%s842 + $0x34] sm:$0xf]
      %v857 = vld [vmem:[%s842 + $0x38] sm:$0xf]
      %v858 = vld [vmem:[%s842 + $0x3c] sm:$0xf]
      %v860 = vunpack.c.l.b16 %v841
      %v861 = vpack.c.b16 %v307, %v860
      %vm862 = vcmask 1046528
      %v863 = vrot.slane %v861, 1
      %v864 = vrot.slane %v344, 1
      %v865 = vsel %vm862, %v863, %v864
      %v866 = vrot.slane %v345, 1
      %v867 = vsel %vm862, %v864, %v866
      %v868 = vrot.slane %v346, 1
      %v869 = vsel %vm862, %v866, %v868
      %v870 = vrot.slane %v347, 1
      %v871 = vsel %vm862, %v868, %v870
      %v872 = vrot.slane %v348, 1
      %v873 = vsel %vm862, %v870, %v872
      %v874 = vrot.slane %v349, 1
      %v875 = vsel %vm862, %v872, %v874
      %v876 = vrot.slane %v350, 1
      %v877 = vsel %vm862, %v874, %v876
      %v878 = vrot.slane %v351, 1
      %v879 = vsel %vm862, %v876, %v878
      %v880 = vrot.slane %v352, 1
      %v881 = vsel %vm862, %v878, %v880
      %v882 = vrot.slane %v353, 1
      %v883 = vsel %vm862, %v880, %v882
      %v884 = vrot.slane %v354, 1
      %v885 = vsel %vm862, %v882, %v884
      %v886 = vrot.slane %v355, 1
      %v887 = vsel %vm862, %v884, %v886
      %v888 = vrot.slane %v356, 1
      %v889 = vsel %vm862, %v886, %v888
      %v890 = vrot.slane %v357, 1
      %v891 = vsel %vm862, %v888, %v890
      %v892 = vrot.slane %v358, 1
      %v893 = vsel %vm862, %v890, %v892
      %v894 = vrot.slane %v359, 1
      %v895 = vsel %vm862, %v892, %v894
      %v896 = vrot.slane %v360, 1
      %v897 = vsel %vm862, %v894, %v896
      %v898 = vrot.slane %v361, 1
      %v899 = vsel %vm862, %v896, %v898
      %v934 = vunpack.c.l.b16 %v843
      %v935 = vunpack.c.l.b16 %v844
      %v936 = vunpack.c.l.b16 %v845
      %v937 = vunpack.c.l.b16 %v846
      %v938 = vunpack.c.l.b16 %v847
      %v939 = vunpack.c.l.b16 %v848
      %v940 = vunpack.c.l.b16 %v849
      %v941 = vunpack.c.l.b16 %v850
      %v942 = vunpack.c.l.b16 %v851
      %v943 = vunpack.c.l.b16 %v852
      %v944 = vunpack.c.l.b16 %v853
      %v945 = vunpack.c.l.b16 %v854
      %v946 = vunpack.c.l.b16 %v855
      %v947 = vunpack.c.l.b16 %v856
      %v948 = vunpack.c.l.b16 %v857
      %v949 = vunpack.c.l.b16 %v858
      %v950 = vpack.c.b16 %v935, %v934
      %v951 = vpack.c.b16 %v937, %v936
      %v952 = vpack.c.b16 %v939, %v938
      %v953 = vpack.c.b16 %v941, %v940
      %v954 = vpack.c.b16 %v943, %v942
      %v955 = vpack.c.b16 %v945, %v944
      %v956 = vpack.c.b16 %v947, %v946
      %v957 = vpack.c.b16 %v949, %v948
      %966 = vmatpush.bf16.msra.mxu0 %v957
      %967 = vmatpush.bf16.msra.mxu0 %v956
      %968 = vmatpush.bf16.msra.mxu0 %v955
      %969 = vmatpush.bf16.msra.mxu0 %v954
      %970 = vmatpush.bf16.msra.mxu0 %v953
      %971 = vmatpush.bf16.msra.mxu0 %v952
      %972 = vmatpush.bf16.msra.mxu0 %v951
      %973 = vmatpush.bf16.msra.mxu0 %v950
      %974 = vmatmul.bf16.gmra.mxu0 %v865
      %v975 = vpop.f32.mrf.mxu0
      %v976 = vadd.f32 0.0, %v975
      %v977 = vpop.f32.mrf.mxu0
      %v978 = vadd.f32 0.0, %v977
      %979 = vmatmul.bf16.gmra.mxu0 %v867
      %v980 = vpop.f32.mrf.mxu0
      %v981 = vadd.f32 0.0, %v980
      %v982 = vpop.f32.mrf.mxu0
      %v983 = vadd.f32 0.0, %v982
      %984 = vmatmul.bf16.gmra.mxu0 %v869
      %v985 = vpop.f32.mrf.mxu0
      %v986 = vadd.f32 0.0, %v985
      %v987 = vpop.f32.mrf.mxu0
      %v988 = vadd.f32 0.0, %v987
      %989 = vmatmul.bf16.gmra.mxu0 %v871
      %v990 = vpop.f32.mrf.mxu0
      %v991 = vadd.f32 0.0, %v990
      %v992 = vpop.f32.mrf.mxu0
      %v993 = vadd.f32 0.0, %v992
      %994 = vmatmul.bf16.gmra.mxu0 %v873
      %v995 = vpop.f32.mrf.mxu0
      %v996 = vadd.f32 0.0, %v995
      %v997 = vpop.f32.mrf.mxu0
      %v998 = vadd.f32 0.0, %v997
      %999 = vmatmul.bf16.gmra.mxu0 %v875
      %v1000 = vpop.f32.mrf.mxu0
      %v1001 = vadd.f32 0.0, %v1000
      %v1002 = vpop.f32.mrf.mxu0
      %v1003 = vadd.f32 0.0, %v1002
      %1004 = vmatmul.bf16.gmra.mxu0 %v877
      %v1005 = vpop.f32.mrf.mxu0
      %v1006 = vadd.f32 0.0, %v1005
      %v1007 = vpop.f32.mrf.mxu0
      %v1008 = vadd.f32 0.0, %v1007
      %1009 = vmatmul.bf16.gmra.mxu0 %v879
      %v1010 = vpop.f32.mrf.mxu0
      %v1011 = vadd.f32 0.0, %v1010
      %v1012 = vpop.f32.mrf.mxu0
      %v1013 = vadd.f32 0.0, %v1012
      %1014 = vmatmul.bf16.gmra.mxu0 %v881
      %v1015 = vpop.f32.mrf.mxu0
      %v1016 = vadd.f32 0.0, %v1015
      %v1017 = vpop.f32.mrf.mxu0
      %v1018 = vadd.f32 0.0, %v1017
      %1019 = vmatmul.bf16.gmra.mxu0 %v883
      %v1020 = vpop.f32.mrf.mxu0
      %v1021 = vadd.f32 0.0, %v1020
      %v1022 = vpop.f32.mrf.mxu0
      %v1023 = vadd.f32 0.0, %v1022
      %1024 = vmatmul.bf16.gmra.mxu0 %v885
      %v1025 = vpop.f32.mrf.mxu0
      %v1026 = vadd.f32 0.0, %v1025
      %v1027 = vpop.f32.mrf.mxu0
      %v1028 = vadd.f32 0.0, %v1027
      %1029 = vmatmul.bf16.gmra.mxu0 %v887
      %v1030 = vpop.f32.mrf.mxu0
      %v1031 = vadd.f32 0.0, %v1030
      %v1032 = vpop.f32.mrf.mxu0
      %v1033 = vadd.f32 0.0, %v1032
      %1034 = vmatmul.bf16.gmra.mxu0 %v889
      %v1035 = vpop.f32.mrf.mxu0
      %v1036 = vadd.f32 0.0, %v1035
      %v1037 = vpop.f32.mrf.mxu0
      %v1038 = vadd.f32 0.0, %v1037
      %1039 = vmatmul.bf16.gmra.mxu0 %v891
      %v1040 = vpop.f32.mrf.mxu0
      %v1041 = vadd.f32 0.0, %v1040
      %v1042 = vpop.f32.mrf.mxu0
      %v1043 = vadd.f32 0.0, %v1042
      %1044 = vmatmul.bf16.gmra.mxu0 %v893
      %v1045 = vpop.f32.mrf.mxu0
      %v1046 = vadd.f32 0.0, %v1045
      %v1047 = vpop.f32.mrf.mxu0
      %v1048 = vadd.f32 0.0, %v1047
      %1049 = vmatmul.bf16.gmra.mxu0 %v895
      %v1050 = vpop.f32.mrf.mxu0
      %v1051 = vadd.f32 0.0, %v1050
      %v1052 = vpop.f32.mrf.mxu0
      %v1053 = vadd.f32 0.0, %v1052
      %1054 = vmatmul.bf16.gmra.mxu0 %v897
      %v1055 = vpop.f32.mrf.mxu0
      %v1056 = vadd.f32 0.0, %v1055
      %v1057 = vpop.f32.mrf.mxu0
      %v1058 = vadd.f32 0.0, %v1057
      %1059 = vmatmul.bf16.gmra.mxu0 %v899
      %v1060 = vpop.f32.mrf.mxu0
      %v1061 = vadd.f32 0.0, %v1060
      %v1062 = vpop.f32.mrf.mxu0
      %v1063 = vadd.f32 0.0, %v1062
      %1064 = vdwg.mxu0
      %v1065 = vadd.f32 %v752, %v976
      %v1066 = vadd.f32 %v754, %v978
      %v1067 = vadd.f32 %v757, %v981
      %v1068 = vadd.f32 %v759, %v983
      %v1069 = vadd.f32 %v762, %v986
      %v1070 = vadd.f32 %v764, %v988
      %v1071 = vadd.f32 %v767, %v991
      %v1072 = vadd.f32 %v769, %v993
      %v1073 = vadd.f32 %v772, %v996
      %v1074 = vadd.f32 %v774, %v998
      %v1075 = vadd.f32 %v777, %v1001
      %v1076 = vadd.f32 %v779, %v1003
      %v1077 = vadd.f32 %v782, %v1006
      %v1078 = vadd.f32 %v784, %v1008
      %v1079 = vadd.f32 %v787, %v1011
      %v1080 = vadd.f32 %v789, %v1013
      %v1081 = vadd.f32 %v792, %v1016
      %v1082 = vadd.f32 %v794, %v1018
      %v1083 = vadd.f32 %v797, %v1021
      %v1084 = vadd.f32 %v799, %v1023
      %v1085 = vadd.f32 %v802, %v1026
      %v1086 = vadd.f32 %v804, %v1028
      %v1087 = vadd.f32 %v807, %v1031
      %v1088 = vadd.f32 %v809, %v1033
      %v1089 = vadd.f32 %v812, %v1036
      %v1090 = vadd.f32 %v814, %v1038
      %v1091 = vadd.f32 %v817, %v1041
      %v1092 = vadd.f32 %v819, %v1043
      %v1093 = vadd.f32 %v822, %v1046
      %v1094 = vadd.f32 %v824, %v1048
      %v1095 = vadd.f32 %v827, %v1051
      %v1096 = vadd.f32 %v829, %v1053
      %v1097 = vadd.f32 %v832, %v1056
      %v1098 = vadd.f32 %v834, %v1058
      %v1099 = vadd.f32 %v837, %v1061
      %v1100 = vadd.f32 %v839, %v1063
      %v1101 = vld [vmem:[%s192 + $0x8] sm:$0xe]
      %v1102 = vld [vmem:[%s192 + $0xc] sm:$0xf]
      %v1103 = vld [vmem:[%s192 + $0x10] sm:$0xf]
      %v1104 = vld [vmem:[%s192 + $0x14] sm:$0xf]
      %v1105 = vld [vmem:[%s192 + $0x18] sm:$0xf]
      %v1106 = vld [vmem:[%s192 + $0x1c] sm:$0xf]
      %v1107 = vld [vmem:[%s192 + $0x20] sm:$0xf]
      %v1108 = vld [vmem:[%s192 + $0x24] sm:$0xf]
      %v1109 = vld [vmem:[%s192 + $0x28] sm:$0xf]
      %v1110 = vld [vmem:[%s192 + $0x2c] sm:$0xf]
      %v1111 = vld [vmem:[%s192 + $0x30] sm:$0xf]
      %v1112 = vld [vmem:[%s192 + $0x34] sm:$0xf]
      %v1113 = vld [vmem:[%s192 + $0x38] sm:$0xf]
      %v1114 = vld [vmem:[%s192 + $0x3c] sm:$0xf]
      %v1115 = vld [vmem:[%s192 + $0x40] sm:$0xf]
      %v1116 = vld [vmem:[%s192 + $0x44] sm:$0xf]
      %v1117 = vld [vmem:[%s192 + $0x48] sm:$0xf]
      %v1118 = vld [vmem:[%s192 + $0x4c] sm:$0xf]
      %v1119 = vld [vmem:[%s192 + $0x50] sm:$0xf]
      %v1120 = vld [vmem:[%s192 + $0x54] sm:$0xf]
      %v1121 = vld [vmem:[%s192 + $0x58] sm:$0xf]
      %v1122 = vld [vmem:[%s192 + $0x5c] sm:$0xf]
      %v1123 = vld [vmem:[%s192 + $0x60] sm:$0xf]
      %v1124 = vld [vmem:[%s192 + $0x64] sm:$0xf]
      %v1125 = vld [vmem:[%s192 + $0x68] sm:$0xf]
      %v1126 = vld [vmem:[%s192 + $0x6c] sm:$0xf]
      %v1127 = vld [vmem:[%s192 + $0x70] sm:$0xf]
      %v1128 = vld [vmem:[%s192 + $0x74] sm:$0xf]
      %v1129 = vld [vmem:[%s192 + $0x78] sm:$0xf]
      %v1130 = vld [vmem:[%s192 + $0x7c] sm:$0xf]
      %v1131 = vld [vmem:[%s192 + $0x80] sm:$0xf]
      %v1132 = vld [vmem:[%s192 + $0x84] sm:$0xf]
      %v1133 = vld [vmem:[%s192 + $0x88] sm:$0xf]
      %v1134 = vld [vmem:[%s192 + $0x8c] sm:$0xf]
      %v1135 = vld [vmem:[%s192 + $0x90] sm:$0xf]
      %v1136 = vld [vmem:[%s192 + $0x94] sm:$0xf]
      %v1137 = vld [vmem:[%s192 + $0x98] sm:$0x1]
      %s1138 = scalar_lea.vmem %s1, 192
      %v1139 = vld [vmem:[%s1138] sm:$0xf]
      %v1140 = vld [vmem:[%s1138 + $0x4] sm:$0xf]
      %v1141 = vld [vmem:[%s1138 + $0x8] sm:$0xf]
      %v1142 = vld [vmem:[%s1138 + $0xc] sm:$0xf]
      %v1143 = vld [vmem:[%s1138 + $0x10] sm:$0xf]
      %v1144 = vld [vmem:[%s1138 + $0x14] sm:$0xf]
      %v1145 = vld [vmem:[%s1138 + $0x18] sm:$0xf]
      %v1146 = vld [vmem:[%s1138 + $0x1c] sm:$0xf]
      %v1147 = vld [vmem:[%s1138 + $0x20] sm:$0xf]
      %v1148 = vld [vmem:[%s1138 + $0x24] sm:$0xf]
      %v1149 = vld [vmem:[%s1138 + $0x28] sm:$0xf]
      %v1150 = vld [vmem:[%s1138 + $0x2c] sm:$0xf]
      %v1151 = vld [vmem:[%s1138 + $0x30] sm:$0xf]
      %v1152 = vld [vmem:[%s1138 + $0x34] sm:$0xf]
      %v1153 = vld [vmem:[%s1138 + $0x38] sm:$0xf]
      %v1154 = vld [vmem:[%s1138 + $0x3c] sm:$0xf]
      %v1192 = vunpack.c.l.b16 %v1101
      %v1193 = vunpack.c.l.b16 %v1102
      %v1194 = vunpack.c.l.b16 %v1103
      %v1195 = vunpack.c.l.b16 %v1104
      %v1196 = vunpack.c.l.b16 %v1105
      %v1197 = vunpack.c.l.b16 %v1106
      %v1198 = vunpack.c.l.b16 %v1107
      %v1199 = vunpack.c.l.b16 %v1108
      %v1200 = vunpack.c.l.b16 %v1109
      %v1201 = vunpack.c.l.b16 %v1110
      %v1202 = vunpack.c.l.b16 %v1111
      %v1203 = vunpack.c.l.b16 %v1112
      %v1204 = vunpack.c.l.b16 %v1113
      %v1205 = vunpack.c.l.b16 %v1114
      %v1206 = vunpack.c.l.b16 %v1115
      %v1207 = vunpack.c.l.b16 %v1116
      %v1208 = vunpack.c.l.b16 %v1117
      %v1209 = vunpack.c.l.b16 %v1118
      %v1210 = vunpack.c.l.b16 %v1119
      %v1211 = vunpack.c.l.b16 %v1120
      %v1212 = vunpack.c.l.b16 %v1121
      %v1213 = vunpack.c.l.b16 %v1122
      %v1214 = vunpack.c.l.b16 %v1123
      %v1215 = vunpack.c.l.b16 %v1124
      %v1216 = vunpack.c.l.b16 %v1125
      %v1217 = vunpack.c.l.b16 %v1126
      %v1218 = vunpack.c.l.b16 %v1127
      %v1219 = vunpack.c.l.b16 %v1128
      %v1220 = vunpack.c.l.b16 %v1129
      %v1221 = vunpack.c.l.b16 %v1130
      %v1222 = vunpack.c.l.b16 %v1131
      %v1223 = vunpack.c.l.b16 %v1132
      %v1224 = vunpack.c.l.b16 %v1133
      %v1225 = vunpack.c.l.b16 %v1134
      %v1226 = vunpack.c.l.b16 %v1135
      %v1227 = vunpack.c.l.b16 %v1136
      %v1228 = vunpack.c.l.b16 %v1137
      %v1229 = vpack.c.b16 %v1193, %v1192
      %v1230 = vpack.c.b16 %v1195, %v1194
      %v1231 = vpack.c.b16 %v1197, %v1196
      %v1232 = vpack.c.b16 %v1199, %v1198
      %v1233 = vpack.c.b16 %v1201, %v1200
      %v1234 = vpack.c.b16 %v1203, %v1202
      %v1235 = vpack.c.b16 %v1205, %v1204
      %v1236 = vpack.c.b16 %v1207, %v1206
      %v1237 = vpack.c.b16 %v1209, %v1208
      %v1238 = vpack.c.b16 %v1211, %v1210
      %v1239 = vpack.c.b16 %v1213, %v1212
      %v1240 = vpack.c.b16 %v1215, %v1214
      %v1241 = vpack.c.b16 %v1217, %v1216
      %v1242 = vpack.c.b16 %v1219, %v1218
      %v1243 = vpack.c.b16 %v1221, %v1220
      %v1244 = vpack.c.b16 %v1223, %v1222
      %v1245 = vpack.c.b16 %v1225, %v1224
      %v1246 = vpack.c.b16 %v1227, %v1226
      %v1247 = vpack.c.b16 %v1228, %v1228
      %v1248 = vrot.slane %v1229, 1
      %v1249 = vrot.slane %v1230, 1
      %v1250 = vsel %vm862, %v1248, %v1249
      %v1251 = vrot.slane %v1231, 1
      %v1252 = vsel %vm862, %v1249, %v1251
      %v1253 = vrot.slane %v1232, 1
      %v1254 = vsel %vm862, %v1251, %v1253
      %v1255 = vrot.slane %v1233, 1
      %v1256 = vsel %vm862, %v1253, %v1255
      %v1257 = vrot.slane %v1234, 1
      %v1258 = vsel %vm862, %v1255, %v1257
      %v1259 = vrot.slane %v1235, 1
      %v1260 = vsel %vm862, %v1257, %v1259
      %v1261 = vrot.slane %v1236, 1
      %v1262 = vsel %vm862, %v1259, %v1261
      %v1263 = vrot.slane %v1237, 1
      %v1264 = vsel %vm862, %v1261, %v1263
      %v1265 = vrot.slane %v1238, 1
      %v1266 = vsel %vm862, %v1263, %v1265
      %v1267 = vrot.slane %v1239, 1
      %v1268 = vsel %vm862, %v1265, %v1267
      %v1269 = vrot.slane %v1240, 1
      %v1270 = vsel %vm862, %v1267, %v1269
      %v1271 = vrot.slane %v1241, 1
      %v1272 = vsel %vm862, %v1269, %v1271
      %v1273 = vrot.slane %v1242, 1
      %v1274 = vsel %vm862, %v1271, %v1273
      %v1275 = vrot.slane %v1243, 1
      %v1276 = vsel %vm862, %v1273, %v1275
      %v1277 = vrot.slane %v1244, 1
      %v1278 = vsel %vm862, %v1275, %v1277
      %v1279 = vrot.slane %v1245, 1
      %v1280 = vsel %vm862, %v1277, %v1279
      %v1281 = vrot.slane %v1246, 1
      %v1282 = vsel %vm862, %v1279, %v1281
      %v1283 = vrot.slane %v1247, 1
      %v1284 = vsel %vm862, %v1281, %v1283
      %v1319 = vunpack.c.l.b16 %v1139
      %v1320 = vunpack.c.l.b16 %v1140
      %v1321 = vunpack.c.l.b16 %v1141
      %v1322 = vunpack.c.l.b16 %v1142
      %v1323 = vunpack.c.l.b16 %v1143
      %v1324 = vunpack.c.l.b16 %v1144
      %v1325 = vunpack.c.l.b16 %v1145
      %v1326 = vunpack.c.l.b16 %v1146
      %v1327 = vunpack.c.l.b16 %v1147
      %v1328 = vunpack.c.l.b16 %v1148
      %v1329 = vunpack.c.l.b16 %v1149
      %v1330 = vunpack.c.l.b16 %v1150
      %v1331 = vunpack.c.l.b16 %v1151
      %v1332 = vunpack.c.l.b16 %v1152
      %v1333 = vunpack.c.l.b16 %v1153
      %v1334 = vunpack.c.l.b16 %v1154
      %v1335 = vpack.c.b16 %v1320, %v1319
      %v1336 = vpack.c.b16 %v1322, %v1321
      %v1337 = vpack.c.b16 %v1324, %v1323
      %v1338 = vpack.c.b16 %v1326, %v1325
      %v1339 = vpack.c.b16 %v1328, %v1327
      %v1340 = vpack.c.b16 %v1330, %v1329
      %v1341 = vpack.c.b16 %v1332, %v1331
      %v1342 = vpack.c.b16 %v1334, %v1333
      %1351 = vmatpush.bf16.msra.mxu0 %v1342
      %1352 = vmatpush.bf16.msra.mxu0 %v1341
      %1353 = vmatpush.bf16.msra.mxu0 %v1340
      %1354 = vmatpush.bf16.msra.mxu0 %v1339
      %1355 = vmatpush.bf16.msra.mxu0 %v1338
      %1356 = vmatpush.bf16.msra.mxu0 %v1337
      %1357 = vmatpush.bf16.msra.mxu0 %v1336
      %1358 = vmatpush.bf16.msra.mxu0 %v1335
      %1359 = vmatmul.bf16.gmra.mxu0 %v1250
      %v1360 = vpop.f32.mrf.mxu0
      %v1361 = vadd.f32 0.0, %v1360
      %v1362 = vpop.f32.mrf.mxu0
      %v1363 = vadd.f32 0.0, %v1362
      %1364 = vmatmul.bf16.gmra.mxu0 %v1252
      %v1365 = vpop.f32.mrf.mxu0
      %v1366 = vadd.f32 0.0, %v1365
      %v1367 = vpop.f32.mrf.mxu0
      %v1368 = vadd.f32 0.0, %v1367
      %1369 = vmatmul.bf16.gmra.mxu0 %v1254
      %v1370 = vpop.f32.mrf.mxu0
      %v1371 = vadd.f32 0.0, %v1370
      %v1372 = vpop.f32.mrf.mxu0
      %v1373 = vadd.f32 0.0, %v1372
      %1374 = vmatmul.bf16.gmra.mxu0 %v1256
      %v1375 = vpop.f32.mrf.mxu0
      %v1376 = vadd.f32 0.0, %v1375
      %v1377 = vpop.f32.mrf.mxu0
      %v1378 = vadd.f32 0.0, %v1377
      %1379 = vmatmul.bf16.gmra.mxu0 %v1258
      %v1380 = vpop.f32.mrf.mxu0
      %v1381 = vadd.f32 0.0, %v1380
      %v1382 = vpop.f32.mrf.mxu0
      %v1383 = vadd.f32 0.0, %v1382
      %1384 = vmatmul.bf16.gmra.mxu0 %v1260
      %v1385 = vpop.f32.mrf.mxu0
      %v1386 = vadd.f32 0.0, %v1385
      %v1387 = vpop.f32.mrf.mxu0
      %v1388 = vadd.f32 0.0, %v1387
      %1389 = vmatmul.bf16.gmra.mxu0 %v1262
      %v1390 = vpop.f32.mrf.mxu0
      %v1391 = vadd.f32 0.0, %v1390
      %v1392 = vpop.f32.mrf.mxu0
      %v1393 = vadd.f32 0.0, %v1392
      %1394 = vmatmul.bf16.gmra.mxu0 %v1264
      %v1395 = vpop.f32.mrf.mxu0
      %v1396 = vadd.f32 0.0, %v1395
      %v1397 = vpop.f32.mrf.mxu0
      %v1398 = vadd.f32 0.0, %v1397
      %1399 = vmatmul.bf16.gmra.mxu0 %v1266
      %v1400 = vpop.f32.mrf.mxu0
      %v1401 = vadd.f32 0.0, %v1400
      %v1402 = vpop.f32.mrf.mxu0
      %v1403 = vadd.f32 0.0, %v1402
      %1404 = vmatmul.bf16.gmra.mxu0 %v1268
      %v1405 = vpop.f32.mrf.mxu0
      %v1406 = vadd.f32 0.0, %v1405
      %v1407 = vpop.f32.mrf.mxu0
      %v1408 = vadd.f32 0.0, %v1407
      %1409 = vmatmul.bf16.gmra.mxu0 %v1270
      %v1410 = vpop.f32.mrf.mxu0
      %v1411 = vadd.f32 0.0, %v1410
      %v1412 = vpop.f32.mrf.mxu0
      %v1413 = vadd.f32 0.0, %v1412
      %1414 = vmatmul.bf16.gmra.mxu0 %v1272
      %v1415 = vpop.f32.mrf.mxu0
      %v1416 = vadd.f32 0.0, %v1415
      %v1417 = vpop.f32.mrf.mxu0
      %v1418 = vadd.f32 0.0, %v1417
      %1419 = vmatmul.bf16.gmra.mxu0 %v1274
      %v1420 = vpop.f32.mrf.mxu0
      %v1421 = vadd.f32 0.0, %v1420
      %v1422 = vpop.f32.mrf.mxu0
      %v1423 = vadd.f32 0.0, %v1422
      %1424 = vmatmul.bf16.gmra.mxu0 %v1276
      %v1425 = vpop.f32.mrf.mxu0
      %v1426 = vadd.f32 0.0, %v1425
      %v1427 = vpop.f32.mrf.mxu0
      %v1428 = vadd.f32 0.0, %v1427
      %1429 = vmatmul.bf16.gmra.mxu0 %v1278
      %v1430 = vpop.f32.mrf.mxu0
      %v1431 = vadd.f32 0.0, %v1430
      %v1432 = vpop.f32.mrf.mxu0
      %v1433 = vadd.f32 0.0, %v1432
      %1434 = vmatmul.bf16.gmra.mxu0 %v1280
      %v1435 = vpop.f32.mrf.mxu0
      %v1436 = vadd.f32 0.0, %v1435
      %v1437 = vpop.f32.mrf.mxu0
      %v1438 = vadd.f32 0.0, %v1437
      %1439 = vmatmul.bf16.gmra.mxu0 %v1282
      %v1440 = vpop.f32.mrf.mxu0
      %v1441 = vadd.f32 0.0, %v1440
      %v1442 = vpop.f32.mrf.mxu0
      %v1443 = vadd.f32 0.0, %v1442
      %1444 = vmatmul.bf16.gmra.mxu0 %v1284
      %v1445 = vpop.f32.mrf.mxu0
      %v1446 = vadd.f32 0.0, %v1445
      %v1447 = vpop.f32.mrf.mxu0
      %v1448 = vadd.f32 0.0, %v1447
      %1449 = vdwg.mxu0
      %v1450 = vadd.f32 %v1065, %v1361
      %v1451 = vadd.f32 %v1066, %v1363
      %v1452 = vadd.f32 %v1067, %v1366
      %v1453 = vadd.f32 %v1068, %v1368
      %v1454 = vadd.f32 %v1069, %v1371
      %v1455 = vadd.f32 %v1070, %v1373
      %v1456 = vadd.f32 %v1071, %v1376
      %v1457 = vadd.f32 %v1072, %v1378
      %v1458 = vadd.f32 %v1073, %v1381
      %v1459 = vadd.f32 %v1074, %v1383
      %v1460 = vadd.f32 %v1075, %v1386
      %v1461 = vadd.f32 %v1076, %v1388
      %v1462 = vadd.f32 %v1077, %v1391
      %v1463 = vadd.f32 %v1078, %v1393
      %v1464 = vadd.f32 %v1079, %v1396
      %v1465 = vadd.f32 %v1080, %v1398
      %v1466 = vadd.f32 %v1081, %v1401
      %v1467 = vadd.f32 %v1082, %v1403
      %v1468 = vadd.f32 %v1083, %v1406
      %v1469 = vadd.f32 %v1084, %v1408
      %v1470 = vadd.f32 %v1085, %v1411
      %v1471 = vadd.f32 %v1086, %v1413
      %v1472 = vadd.f32 %v1087, %v1416
      %v1473 = vadd.f32 %v1088, %v1418
      %v1474 = vadd.f32 %v1089, %v1421
      %v1475 = vadd.f32 %v1090, %v1423
      %v1476 = vadd.f32 %v1091, %v1426
      %v1477 = vadd.f32 %v1092, %v1428
      %v1478 = vadd.f32 %v1093, %v1431
      %v1479 = vadd.f32 %v1094, %v1433
      %v1480 = vadd.f32 %v1095, %v1436
      %v1481 = vadd.f32 %v1096, %v1438
      %v1482 = vadd.f32 %v1097, %v1441
      %v1483 = vadd.f32 %v1098, %v1443
      %v1484 = vadd.f32 %v1099, %v1446
      %v1485 = vadd.f32 %v1100, %v1448
      %v1486 = vld [vmem:[%s192 + $0x98] sm:$0x3]
      %s1487 = scalar_lea.vmem %s1, 256
      %v1488 = vld [vmem:[%s1487] sm:$0xf]
      %v1489 = vld [vmem:[%s1487 + $0x4] sm:$0xf]
      %v1490 = vld [vmem:[%s1487 + $0x8] sm:$0xf]
      %v1491 = vld [vmem:[%s1487 + $0xc] sm:$0xf]
      %v1492 = vld [vmem:[%s1487 + $0x10] sm:$0xf]
      %v1493 = vld [vmem:[%s1487 + $0x14] sm:$0xf]
      %v1494 = vld [vmem:[%s1487 + $0x18] sm:$0xf]
      %v1495 = vld [vmem:[%s1487 + $0x1c] sm:$0xf]
      %v1496 = vld [vmem:[%s1487 + $0x20] sm:$0xf]
      %v1497 = vld [vmem:[%s1487 + $0x24] sm:$0xf]
      %v1498 = vld [vmem:[%s1487 + $0x28] sm:$0xf]
      %v1499 = vld [vmem:[%s1487 + $0x2c] sm:$0xf]
      %v1500 = vld [vmem:[%s1487 + $0x30] sm:$0xf]
      %v1501 = vld [vmem:[%s1487 + $0x34] sm:$0xf]
      %v1502 = vld [vmem:[%s1487 + $0x38] sm:$0xf]
      %v1503 = vld [vmem:[%s1487 + $0x3c] sm:$0xf]
      %v1505 = vunpack.c.l.b16 %v1486
      %v1506 = vpack.c.b16 %v1505, %v1505
      %vm1507 = vsmask.f32 6400
      %v1509 = vshrl.u32 %v1229, 16
      %v1511 = vrot.slane %v1509, 1
      %v1512 = vshll.u32 %v1229, 16
      %v1514 = vrot.slane %v1512, 2
      %v1515 = vor.u32 %v1511, %v1514
      %v1517 = vshrl.u32 %v1230, 16
      %v1519 = vrot.slane %v1517, 1
      %v1520 = vshll.u32 %v1230, 16
      %v1522 = vrot.slane %v1520, 2
      %v1523 = vor.u32 %v1519, %v1522
      %v1524 = vsel %vm1507, %v1515, %v1523
      %v1526 = vshrl.u32 %v1231, 16
      %v1528 = vrot.slane %v1526, 1
      %v1529 = vshll.u32 %v1231, 16
      %v1531 = vrot.slane %v1529, 2
      %v1532 = vor.u32 %v1528, %v1531
      %v1533 = vsel %vm1507, %v1523, %v1532
      %v1535 = vshrl.u32 %v1232, 16
      %v1537 = vrot.slane %v1535, 1
      %v1538 = vshll.u32 %v1232, 16
      %v1540 = vrot.slane %v1538, 2
      %v1541 = vor.u32 %v1537, %v1540
      %v1542 = vsel %vm1507, %v1532, %v1541
      %v1544 = vshrl.u32 %v1233, 16
      %v1546 = vrot.slane %v1544, 1
      %v1547 = vshll.u32 %v1233, 16
      %v1549 = vrot.slane %v1547, 2
      %v1550 = vor.u32 %v1546, %v1549
      %v1551 = vsel %vm1507, %v1541, %v1550
      %v1553 = vshrl.u32 %v1234, 16
      %v1555 = vrot.slane %v1553, 1
      %v1556 = vshll.u32 %v1234, 16
      %v1558 = vrot.slane %v1556, 2
      %v1559 = vor.u32 %v1555, %v1558
      %v1560 = vsel %vm1507, %v1550, %v1559
      %v1562 = vshrl.u32 %v1235, 16
      %v1564 = vrot.slane %v1562, 1
      %v1565 = vshll.u32 %v1235, 16
      %v1567 = vrot.slane %v1565, 2
      %v1568 = vor.u32 %v1564, %v1567
      %v1569 = vsel %vm1507, %v1559, %v1568
      %v1571 = vshrl.u32 %v1236, 16
      %v1573 = vrot.slane %v1571, 1
      %v1574 = vshll.u32 %v1236, 16
      %v1576 = vrot.slane %v1574, 2
      %v1577 = vor.u32 %v1573, %v1576
      %v1578 = vsel %vm1507, %v1568, %v1577
      %v1580 = vshrl.u32 %v1237, 16
      %v1582 = vrot.slane %v1580, 1
      %v1583 = vshll.u32 %v1237, 16
      %v1585 = vrot.slane %v1583, 2
      %v1586 = vor.u32 %v1582, %v1585
      %v1587 = vsel %vm1507, %v1577, %v1586
      %v1589 = vshrl.u32 %v1238, 16
      %v1591 = vrot.slane %v1589, 1
      %v1592 = vshll.u32 %v1238, 16
      %v1594 = vrot.slane %v1592, 2
      %v1595 = vor.u32 %v1591, %v1594
      %v1596 = vsel %vm1507, %v1586, %v1595
      %v1598 = vshrl.u32 %v1239, 16
      %v1600 = vrot.slane %v1598, 1
      %v1601 = vshll.u32 %v1239, 16
      %v1603 = vrot.slane %v1601, 2
      %v1604 = vor.u32 %v1600, %v1603
      %v1605 = vsel %vm1507, %v1595, %v1604
      %v1607 = vshrl.u32 %v1240, 16
      %v1609 = vrot.slane %v1607, 1
      %v1610 = vshll.u32 %v1240, 16
      %v1612 = vrot.slane %v1610, 2
      %v1613 = vor.u32 %v1609, %v1612
      %v1614 = vsel %vm1507, %v1604, %v1613
      %v1616 = vshrl.u32 %v1241, 16
      %v1618 = vrot.slane %v1616, 1
      %v1619 = vshll.u32 %v1241, 16
      %v1621 = vrot.slane %v1619, 2
      %v1622 = vor.u32 %v1618, %v1621
      %v1623 = vsel %vm1507, %v1613, %v1622
      %v1625 = vshrl.u32 %v1242, 16
      %v1627 = vrot.slane %v1625, 1
      %v1628 = vshll.u32 %v1242, 16
      %v1630 = vrot.slane %v1628, 2
      %v1631 = vor.u32 %v1627, %v1630
      %v1632 = vsel %vm1507, %v1622, %v1631
      %v1634 = vshrl.u32 %v1243, 16
      %v1636 = vrot.slane %v1634, 1
      %v1637 = vshll.u32 %v1243, 16
      %v1639 = vrot.slane %v1637, 2
      %v1640 = vor.u32 %v1636, %v1639
      %v1641 = vsel %vm1507, %v1631, %v1640
      %v1643 = vshrl.u32 %v1244, 16
      %v1645 = vrot.slane %v1643, 1
      %v1646 = vshll.u32 %v1244, 16
      %v1648 = vrot.slane %v1646, 2
      %v1649 = vor.u32 %v1645, %v1648
      %v1650 = vsel %vm1507, %v1640, %v1649
      %v1652 = vshrl.u32 %v1245, 16
      %v1654 = vrot.slane %v1652, 1
      %v1655 = vshll.u32 %v1245, 16
      %v1657 = vrot.slane %v1655, 2
      %v1658 = vor.u32 %v1654, %v1657
      %v1659 = vsel %vm1507, %v1649, %v1658
      %v1661 = vshrl.u32 %v1246, 16
      %v1663 = vrot.slane %v1661, 1
      %v1664 = vshll.u32 %v1246, 16
      %v1666 = vrot.slane %v1664, 2
      %v1667 = vor.u32 %v1663, %v1666
      %v1668 = vsel %vm1507, %v1658, %v1667
      %v1670 = vshrl.u32 %v1506, 16
      %v1672 = vrot.slane %v1670, 1
      %v1673 = vshll.u32 %v1506, 16
      %v1675 = vrot.slane %v1673, 2
      %v1676 = vor.u32 %v1672, %v1675
      %v1677 = vsel %vm1507, %v1667, %v1676
      %v1712 = vunpack.c.l.b16 %v1488
      %v1713 = vunpack.c.l.b16 %v1489
      %v1714 = vunpack.c.l.b16 %v1490
      %v1715 = vunpack.c.l.b16 %v1491
      %v1716 = vunpack.c.l.b16 %v1492
      %v1717 = vunpack.c.l.b16 %v1493
      %v1718 = vunpack.c.l.b16 %v1494
      %v1719 = vunpack.c.l.b16 %v1495
      %v1720 = vunpack.c.l.b16 %v1496
      %v1721 = vunpack.c.l.b16 %v1497
      %v1722 = vunpack.c.l.b16 %v1498
      %v1723 = vunpack.c.l.b16 %v1499
      %v1724 = vunpack.c.l.b16 %v1500
      %v1725 = vunpack.c.l.b16 %v1501
      %v1726 = vunpack.c.l.b16 %v1502
      %v1727 = vunpack.c.l.b16 %v1503
      %v1728 = vpack.c.b16 %v1713, %v1712
      %v1729 = vpack.c.b16 %v1715, %v1714
      %v1730 = vpack.c.b16 %v1717, %v1716
      %v1731 = vpack.c.b16 %v1719, %v1718
      %v1732 = vpack.c.b16 %v1721, %v1720
      %v1733 = vpack.c.b16 %v1723, %v1722
      %v1734 = vpack.c.b16 %v1725, %v1724
      %v1735 = vpack.c.b16 %v1727, %v1726
      %1744 = vmatpush.bf16.msra.mxu0 %v1735
      %1745 = vmatpush.bf16.msra.mxu0 %v1734
      %1746 = vmatpush.bf16.msra.mxu0 %v1733
      %1747 = vmatpush.bf16.msra.mxu0 %v1732
      %1748 = vmatpush.bf16.msra.mxu0 %v1731
      %1749 = vmatpush.bf16.msra.mxu0 %v1730
      %1750 = vmatpush.bf16.msra.mxu0 %v1729
      %1751 = vmatpush.bf16.msra.mxu0 %v1728
      %1752 = vmatmul.bf16.gmra.mxu0 %v1524
      %v1753 = vpop.f32.mrf.mxu0
      %v1754 = vadd.f32 0.0, %v1753
      %v1755 = vpop.f32.mrf.mxu0
      %v1756 = vadd.f32 0.0, %v1755
      %1757 = vmatmul.bf16.gmra.mxu0 %v1533
      %v1758 = vpop.f32.mrf.mxu0
      %v1759 = vadd.f32 0.0, %v1758
      %v1760 = vpop.f32.mrf.mxu0
      %v1761 = vadd.f32 0.0, %v1760
      %1762 = vmatmul.bf16.gmra.mxu0 %v1542
      %v1763 = vpop.f32.mrf.mxu0
      %v1764 = vadd.f32 0.0, %v1763
      %v1765 = vpop.f32.mrf.mxu0
      %v1766 = vadd.f32 0.0, %v1765
      %1767 = vmatmul.bf16.gmra.mxu0 %v1551
      %v1768 = vpop.f32.mrf.mxu0
      %v1769 = vadd.f32 0.0, %v1768
      %v1770 = vpop.f32.mrf.mxu0
      %v1771 = vadd.f32 0.0, %v1770
      %1772 = vmatmul.bf16.gmra.mxu0 %v1560
      %v1773 = vpop.f32.mrf.mxu0
      %v1774 = vadd.f32 0.0, %v1773
      %v1775 = vpop.f32.mrf.mxu0
      %v1776 = vadd.f32 0.0, %v1775
      %1777 = vmatmul.bf16.gmra.mxu0 %v1569
      %v1778 = vpop.f32.mrf.mxu0
      %v1779 = vadd.f32 0.0, %v1778
      %v1780 = vpop.f32.mrf.mxu0
      %v1781 = vadd.f32 0.0, %v1780
      %1782 = vmatmul.bf16.gmra.mxu0 %v1578
      %v1783 = vpop.f32.mrf.mxu0
      %v1784 = vadd.f32 0.0, %v1783
      %v1785 = vpop.f32.mrf.mxu0
      %v1786 = vadd.f32 0.0, %v1785
      %1787 = vmatmul.bf16.gmra.mxu0 %v1587
      %v1788 = vpop.f32.mrf.mxu0
      %v1789 = vadd.f32 0.0, %v1788
      %v1790 = vpop.f32.mrf.mxu0
      %v1791 = vadd.f32 0.0, %v1790
      %1792 = vmatmul.bf16.gmra.mxu0 %v1596
      %v1793 = vpop.f32.mrf.mxu0
      %v1794 = vadd.f32 0.0, %v1793
      %v1795 = vpop.f32.mrf.mxu0
      %v1796 = vadd.f32 0.0, %v1795
      %1797 = vmatmul.bf16.gmra.mxu0 %v1605
      %v1798 = vpop.f32.mrf.mxu0
      %v1799 = vadd.f32 0.0, %v1798
      %v1800 = vpop.f32.mrf.mxu0
      %v1801 = vadd.f32 0.0, %v1800
      %1802 = vmatmul.bf16.gmra.mxu0 %v1614
      %v1803 = vpop.f32.mrf.mxu0
      %v1804 = vadd.f32 0.0, %v1803
      %v1805 = vpop.f32.mrf.mxu0
      %v1806 = vadd.f32 0.0, %v1805
      %1807 = vmatmul.bf16.gmra.mxu0 %v1623
      %v1808 = vpop.f32.mrf.mxu0
      %v1809 = vadd.f32 0.0, %v1808
      %v1810 = vpop.f32.mrf.mxu0
      %v1811 = vadd.f32 0.0, %v1810
      %1812 = vmatmul.bf16.gmra.mxu0 %v1632
      %v1813 = vpop.f32.mrf.mxu0
      %v1814 = vadd.f32 0.0, %v1813
      %v1815 = vpop.f32.mrf.mxu0
      %v1816 = vadd.f32 0.0, %v1815
      %1817 = vmatmul.bf16.gmra.mxu0 %v1641
      %v1818 = vpop.f32.mrf.mxu0
      %v1819 = vadd.f32 0.0, %v1818
      %v1820 = vpop.f32.mrf.mxu0
      %v1821 = vadd.f32 0.0, %v1820
      %1822 = vmatmul.bf16.gmra.mxu0 %v1650
      %v1823 = vpop.f32.mrf.mxu0
      %v1824 = vadd.f32 0.0, %v1823
      %v1825 = vpop.f32.mrf.mxu0
      %v1826 = vadd.f32 0.0, %v1825
      %1827 = vmatmul.bf16.gmra.mxu0 %v1659
      %v1828 = vpop.f32.mrf.mxu0
      %v1829 = vadd.f32 0.0, %v1828
      %v1830 = vpop.f32.mrf.mxu0
      %v1831 = vadd.f32 0.0, %v1830
      %1832 = vmatmul.bf16.gmra.mxu0 %v1668
      %v1833 = vpop.f32.mrf.mxu0
      %v1834 = vadd.f32 0.0, %v1833
      %v1835 = vpop.f32.mrf.mxu0
      %v1836 = vadd.f32 0.0, %v1835
      %1837 = vmatmul.bf16.gmra.mxu0 %v1677
      %v1838 = vpop.f32.mrf.mxu0
      %v1839 = vadd.f32 0.0, %v1838
      %v1840 = vpop.f32.mrf.mxu0
      %v1841 = vadd.f32 0.0, %v1840
      %1842 = vdwg.mxu0
      %v1843 = vadd.f32 %v1450, %v1754
      %v1844 = vadd.f32 %v1451, %v1756
      %v1845 = vadd.f32 %v1452, %v1759
      %v1846 = vadd.f32 %v1453, %v1761
      %v1847 = vadd.f32 %v1454, %v1764
      %v1848 = vadd.f32 %v1455, %v1766
      %v1849 = vadd.f32 %v1456, %v1769
      %v1850 = vadd.f32 %v1457, %v1771
      %v1851 = vadd.f32 %v1458, %v1774
      %v1852 = vadd.f32 %v1459, %v1776
      %v1853 = vadd.f32 %v1460, %v1779
      %v1854 = vadd.f32 %v1461, %v1781
      %v1855 = vadd.f32 %v1462, %v1784
      %v1856 = vadd.f32 %v1463, %v1786
      %v1857 = vadd.f32 %v1464, %v1789
      %v1858 = vadd.f32 %v1465, %v1791
      %v1859 = vadd.f32 %v1466, %v1794
      %v1860 = vadd.f32 %v1467, %v1796
      %v1861 = vadd.f32 %v1468, %v1799
      %v1862 = vadd.f32 %v1469, %v1801
      %v1863 = vadd.f32 %v1470, %v1804
      %v1864 = vadd.f32 %v1471, %v1806
      %v1865 = vadd.f32 %v1472, %v1809
      %v1866 = vadd.f32 %v1473, %v1811
      %v1867 = vadd.f32 %v1474, %v1814
      %v1868 = vadd.f32 %v1475, %v1816
      %v1869 = vadd.f32 %v1476, %v1819
      %v1870 = vadd.f32 %v1477, %v1821
      %v1871 = vadd.f32 %v1478, %v1824
      %v1872 = vadd.f32 %v1479, %v1826
      %v1873 = vadd.f32 %v1480, %v1829
      %v1874 = vadd.f32 %v1481, %v1831
      %v1875 = vadd.f32 %v1482, %v1834
      %v1876 = vadd.f32 %v1483, %v1836
      %v1877 = vadd.f32 %v1484, %v1839
      %v1878 = vadd.f32 %v1485, %v1841
      %v1879 = vld [vmem:[%s192 + $0x8] sm:$0xc]
      %s1880 = scalar_lea.vmem %s1, 320
      %v1881 = vld [vmem:[%s1880] sm:$0xf]
      %v1882 = vld [vmem:[%s1880 + $0x4] sm:$0xf]
      %v1883 = vld [vmem:[%s1880 + $0x8] sm:$0xf]
      %v1884 = vld [vmem:[%s1880 + $0xc] sm:$0xf]
      %v1885 = vld [vmem:[%s1880 + $0x10] sm:$0xf]
      %v1886 = vld [vmem:[%s1880 + $0x14] sm:$0xf]
      %v1887 = vld [vmem:[%s1880 + $0x18] sm:$0xf]
      %v1888 = vld [vmem:[%s1880 + $0x1c] sm:$0xf]
      %v1889 = vld [vmem:[%s1880 + $0x20] sm:$0xf]
      %v1890 = vld [vmem:[%s1880 + $0x24] sm:$0xf]
      %v1891 = vld [vmem:[%s1880 + $0x28] sm:$0xf]
      %v1892 = vld [vmem:[%s1880 + $0x2c] sm:$0xf]
      %v1893 = vld [vmem:[%s1880 + $0x30] sm:$0xf]
      %v1894 = vld [vmem:[%s1880 + $0x34] sm:$0xf]
      %v1895 = vld [vmem:[%s1880 + $0x38] sm:$0xf]
      %v1896 = vld [vmem:[%s1880 + $0x3c] sm:$0xf]
      %v1898 = vunpack.c.l.b16 %v1879
      %v1899 = vpack.c.b16 %v1193, %v1898
      %vm1900 = vcmask 1045504
      %v1901 = vrot.slane %v1899, 2
      %v1902 = vrot.slane %v1230, 2
      %v1903 = vsel %vm1900, %v1901, %v1902
      %v1904 = vrot.slane %v1231, 2
      %v1905 = vsel %vm1900, %v1902, %v1904
      %v1906 = vrot.slane %v1232, 2
      %v1907 = vsel %vm1900, %v1904, %v1906
      %v1908 = vrot.slane %v1233, 2
      %v1909 = vsel %vm1900, %v1906, %v1908
      %v1910 = vrot.slane %v1234, 2
      %v1911 = vsel %vm1900, %v1908, %v1910
      %v1912 = vrot.slane %v1235, 2
      %v1913 = vsel %vm1900, %v1910, %v1912
      %v1914 = vrot.slane %v1236, 2
      %v1915 = vsel %vm1900, %v1912, %v1914
      %v1916 = vrot.slane %v1237, 2
      %v1917 = vsel %vm1900, %v1914, %v1916
      %v1918 = vrot.slane %v1238, 2
      %v1919 = vsel %vm1900, %v1916, %v1918
      %v1920 = vrot.slane %v1239, 2
      %v1921 = vsel %vm1900, %v1918, %v1920
      %v1922 = vrot.slane %v1240, 2
      %v1923 = vsel %vm1900, %v1920, %v1922
      %v1924 = vrot.slane %v1241, 2
      %v1925 = vsel %vm1900, %v1922, %v1924
      %v1926 = vrot.slane %v1242, 2
      %v1927 = vsel %vm1900, %v1924, %v1926
      %v1928 = vrot.slane %v1243, 2
      %v1929 = vsel %vm1900, %v1926, %v1928
      %v1930 = vrot.slane %v1244, 2
      %v1931 = vsel %vm1900, %v1928, %v1930
      %v1932 = vrot.slane %v1245, 2
      %v1933 = vsel %vm1900, %v1930, %v1932
      %v1934 = vrot.slane %v1246, 2
      %v1935 = vsel %vm1900, %v1932, %v1934
      %v1936 = vrot.slane %v1506, 2
      %v1937 = vsel %vm1900, %v1934, %v1936
      %v1972 = vunpack.c.l.b16 %v1881
      %v1973 = vunpack.c.l.b16 %v1882
      %v1974 = vunpack.c.l.b16 %v1883
      %v1975 = vunpack.c.l.b16 %v1884
      %v1976 = vunpack.c.l.b16 %v1885
      %v1977 = vunpack.c.l.b16 %v1886
      %v1978 = vunpack.c.l.b16 %v1887
      %v1979 = vunpack.c.l.b16 %v1888
      %v1980 = vunpack.c.l.b16 %v1889
      %v1981 = vunpack.c.l.b16 %v1890
      %v1982 = vunpack.c.l.b16 %v1891
      %v1983 = vunpack.c.l.b16 %v1892
      %v1984 = vunpack.c.l.b16 %v1893
      %v1985 = vunpack.c.l.b16 %v1894
      %v1986 = vunpack.c.l.b16 %v1895
      %v1987 = vunpack.c.l.b16 %v1896
      %v1988 = vpack.c.b16 %v1973, %v1972
      %v1989 = vpack.c.b16 %v1975, %v1974
      %v1990 = vpack.c.b16 %v1977, %v1976
      %v1991 = vpack.c.b16 %v1979, %v1978
      %v1992 = vpack.c.b16 %v1981, %v1980
      %v1993 = vpack.c.b16 %v1983, %v1982
      %v1994 = vpack.c.b16 %v1985, %v1984
      %v1995 = vpack.c.b16 %v1987, %v1986
      %2004 = vmatpush.bf16.msra.mxu0 %v1995
      %2005 = vmatpush.bf16.msra.mxu0 %v1994
      %2006 = vmatpush.bf16.msra.mxu0 %v1993
      %2007 = vmatpush.bf16.msra.mxu0 %v1992
      %2008 = vmatpush.bf16.msra.mxu0 %v1991
      %2009 = vmatpush.bf16.msra.mxu0 %v1990
      %2010 = vmatpush.bf16.msra.mxu0 %v1989
      %2011 = vmatpush.bf16.msra.mxu0 %v1988
      %2012 = vmatmul.bf16.gmra.mxu0 %v1903
      %v2013 = vpop.f32.mrf.mxu0
      %v2014 = vadd.f32 0.0, %v2013
      %v2015 = vpop.f32.mrf.mxu0
      %v2016 = vadd.f32 0.0, %v2015
      %2017 = vmatmul.bf16.gmra.mxu0 %v1905
      %v2018 = vpop.f32.mrf.mxu0
      %v2019 = vadd.f32 0.0, %v2018
      %v2020 = vpop.f32.mrf.mxu0
      %v2021 = vadd.f32 0.0, %v2020
      %2022 = vmatmul.bf16.gmra.mxu0 %v1907
      %v2023 = vpop.f32.mrf.mxu0
      %v2024 = vadd.f32 0.0, %v2023
      %v2025 = vpop.f32.mrf.mxu0
      %v2026 = vadd.f32 0.0, %v2025
      %2027 = vmatmul.bf16.gmra.mxu0 %v1909
      %v2028 = vpop.f32.mrf.mxu0
      %v2029 = vadd.f32 0.0, %v2028
      %v2030 = vpop.f32.mrf.mxu0
      %v2031 = vadd.f32 0.0, %v2030
      %2032 = vmatmul.bf16.gmra.mxu0 %v1911
      %v2033 = vpop.f32.mrf.mxu0
      %v2034 = vadd.f32 0.0, %v2033
      %v2035 = vpop.f32.mrf.mxu0
      %v2036 = vadd.f32 0.0, %v2035
      %2037 = vmatmul.bf16.gmra.mxu0 %v1913
      %v2038 = vpop.f32.mrf.mxu0
      %v2039 = vadd.f32 0.0, %v2038
      %v2040 = vpop.f32.mrf.mxu0
      %v2041 = vadd.f32 0.0, %v2040
      %2042 = vmatmul.bf16.gmra.mxu0 %v1915
      %v2043 = vpop.f32.mrf.mxu0
      %v2044 = vadd.f32 0.0, %v2043
      %v2045 = vpop.f32.mrf.mxu0
      %v2046 = vadd.f32 0.0, %v2045
      %2047 = vmatmul.bf16.gmra.mxu0 %v1917
      %v2048 = vpop.f32.mrf.mxu0
      %v2049 = vadd.f32 0.0, %v2048
      %v2050 = vpop.f32.mrf.mxu0
      %v2051 = vadd.f32 0.0, %v2050
      %2052 = vmatmul.bf16.gmra.mxu0 %v1919
      %v2053 = vpop.f32.mrf.mxu0
      %v2054 = vadd.f32 0.0, %v2053
      %v2055 = vpop.f32.mrf.mxu0
      %v2056 = vadd.f32 0.0, %v2055
      %2057 = vmatmul.bf16.gmra.mxu0 %v1921
      %v2058 = vpop.f32.mrf.mxu0
      %v2059 = vadd.f32 0.0, %v2058
      %v2060 = vpop.f32.mrf.mxu0
      %v2061 = vadd.f32 0.0, %v2060
      %2062 = vmatmul.bf16.gmra.mxu0 %v1923
      %v2063 = vpop.f32.mrf.mxu0
      %v2064 = vadd.f32 0.0, %v2063
      %v2065 = vpop.f32.mrf.mxu0
      %v2066 = vadd.f32 0.0, %v2065
      %2067 = vmatmul.bf16.gmra.mxu0 %v1925
      %v2068 = vpop.f32.mrf.mxu0
      %v2069 = vadd.f32 0.0, %v2068
      %v2070 = vpop.f32.mrf.mxu0
      %v2071 = vadd.f32 0.0, %v2070
      %2072 = vmatmul.bf16.gmra.mxu0 %v1927
      %v2073 = vpop.f32.mrf.mxu0
      %v2074 = vadd.f32 0.0, %v2073
      %v2075 = vpop.f32.mrf.mxu0
      %v2076 = vadd.f32 0.0, %v2075
      %2077 = vmatmul.bf16.gmra.mxu0 %v1929
      %v2078 = vpop.f32.mrf.mxu0
      %v2079 = vadd.f32 0.0, %v2078
      %v2080 = vpop.f32.mrf.mxu0
      %v2081 = vadd.f32 0.0, %v2080
      %2082 = vmatmul.bf16.gmra.mxu0 %v1931
      %v2083 = vpop.f32.mrf.mxu0
      %v2084 = vadd.f32 0.0, %v2083
      %v2085 = vpop.f32.mrf.mxu0
      %v2086 = vadd.f32 0.0, %v2085
      %2087 = vmatmul.bf16.gmra.mxu0 %v1933
      %v2088 = vpop.f32.mrf.mxu0
      %v2089 = vadd.f32 0.0, %v2088
      %v2090 = vpop.f32.mrf.mxu0
      %v2091 = vadd.f32 0.0, %v2090
      %2092 = vmatmul.bf16.gmra.mxu0 %v1935
      %v2093 = vpop.f32.mrf.mxu0
      %v2094 = vadd.f32 0.0, %v2093
      %v2095 = vpop.f32.mrf.mxu0
      %v2096 = vadd.f32 0.0, %v2095
      %2097 = vmatmul.bf16.gmra.mxu0 %v1937
      %v2098 = vpop.f32.mrf.mxu0
      %v2099 = vadd.f32 0.0, %v2098
      %v2100 = vpop.f32.mrf.mxu0
      %v2101 = vadd.f32 0.0, %v2100
      %2102 = vdwg.mxu0
      %v2103 = vadd.f32 %v1843, %v2014
      %v2104 = vadd.f32 %v1844, %v2016
      %v2105 = vadd.f32 %v1845, %v2019
      %v2106 = vadd.f32 %v1846, %v2021
      %v2107 = vadd.f32 %v1847, %v2024
      %v2108 = vadd.f32 %v1848, %v2026
      %v2109 = vadd.f32 %v1849, %v2029
      %v2110 = vadd.f32 %v1850, %v2031
      %v2111 = vadd.f32 %v1851, %v2034
      %v2112 = vadd.f32 %v1852, %v2036
      %v2113 = vadd.f32 %v1853, %v2039
      %v2114 = vadd.f32 %v1854, %v2041
      %v2115 = vadd.f32 %v1855, %v2044
      %v2116 = vadd.f32 %v1856, %v2046
      %v2117 = vadd.f32 %v1857, %v2049
      %v2118 = vadd.f32 %v1858, %v2051
      %v2119 = vadd.f32 %v1859, %v2054
      %v2120 = vadd.f32 %v1860, %v2056
      %v2121 = vadd.f32 %v1861, %v2059
      %v2122 = vadd.f32 %v1862, %v2061
      %v2123 = vadd.f32 %v1863, %v2064
      %v2124 = vadd.f32 %v1864, %v2066
      %v2125 = vadd.f32 %v1865, %v2069
      %v2126 = vadd.f32 %v1866, %v2071
      %v2127 = vadd.f32 %v1867, %v2074
      %v2128 = vadd.f32 %v1868, %v2076
      %v2129 = vadd.f32 %v1869, %v2079
      %v2130 = vadd.f32 %v1870, %v2081
      %v2131 = vadd.f32 %v1871, %v2084
      %v2132 = vadd.f32 %v1872, %v2086
      %v2133 = vadd.f32 %v1873, %v2089
      %v2134 = vadd.f32 %v1874, %v2091
      %v2135 = vadd.f32 %v1875, %v2094
      %v2136 = vadd.f32 %v1876, %v2096
      %v2137 = vadd.f32 %v1877, %v2099
      %v2138 = vadd.f32 %v1878, %v2101
      %v2139 = vld [vmem:[%s192 + $0x10] sm:$0xc]
      %v2140 = vld [vmem:[%s192 + $0x14] sm:$0xf]
      %v2141 = vld [vmem:[%s192 + $0x18] sm:$0xf]
      %v2142 = vld [vmem:[%s192 + $0x1c] sm:$0xf]
      %v2143 = vld [vmem:[%s192 + $0x20] sm:$0xf]
      %v2144 = vld [vmem:[%s192 + $0x24] sm:$0xf]
      %v2145 = vld [vmem:[%s192 + $0x28] sm:$0xf]
      %v2146 = vld [vmem:[%s192 + $0x2c] sm:$0xf]
      %v2147 = vld [vmem:[%s192 + $0x30] sm:$0xf]
      %v2148 = vld [vmem:[%s192 + $0x34] sm:$0xf]
      %v2149 = vld [vmem:[%s192 + $0x38] sm:$0xf]
      %v2150 = vld [vmem:[%s192 + $0x3c] sm:$0xf]
      %v2151 = vld [vmem:[%s192 + $0x40] sm:$0xf]
      %v2152 = vld [vmem:[%s192 + $0x44] sm:$0xf]
      %v2153 = vld [vmem:[%s192 + $0x48] sm:$0xf]
      %v2154 = vld [vmem:[%s192 + $0x4c] sm:$0xf]
      %v2155 = vld [vmem:[%s192 + $0x50] sm:$0xf]
      %v2156 = vld [vmem:[%s192 + $0x54] sm:$0xf]
      %v2157 = vld [vmem:[%s192 + $0x58] sm:$0xf]
      %v2158 = vld [vmem:[%s192 + $0x5c] sm:$0xf]
      %v2159 = vld [vmem:[%s192 + $0x60] sm:$0xf]
      %v2160 = vld [vmem:[%s192 + $0x64] sm:$0xf]
      %v2161 = vld [vmem:[%s192 + $0x68] sm:$0xf]
      %v2162 = vld [vmem:[%s192 + $0x6c] sm:$0xf]
      %v2163 = vld [vmem:[%s192 + $0x70] sm:$0xf]
      %v2164 = vld [vmem:[%s192 + $0x74] sm:$0xf]
      %v2165 = vld [vmem:[%s192 + $0x78] sm:$0xf]
      %v2166 = vld [vmem:[%s192 + $0x7c] sm:$0xf]
      %v2167 = vld [vmem:[%s192 + $0x80] sm:$0xf]
      %v2168 = vld [vmem:[%s192 + $0x84] sm:$0xf]
      %v2169 = vld [vmem:[%s192 + $0x88] sm:$0xf]
      %v2170 = vld [vmem:[%s192 + $0x8c] sm:$0xf]
      %v2171 = vld [vmem:[%s192 + $0x90] sm:$0xf]
      %v2172 = vld [vmem:[%s192 + $0x94] sm:$0xf]
      %v2173 = vld [vmem:[%s192 + $0x98] sm:$0xf]
      %v2174 = vld [vmem:[%s192 + $0x9c] sm:$0xf]
      %v2175 = vld [vmem:[%s192 + $0xa0] sm:$0x3]
      %s2176 = scalar_lea.vmem %s1, 384
      %v2177 = vld [vmem:[%s2176] sm:$0xf]
      %v2178 = vld [vmem:[%s2176 + $0x4] sm:$0xf]
      %v2179 = vld [vmem:[%s2176 + $0x8] sm:$0xf]
      %v2180 = vld [vmem:[%s2176 + $0xc] sm:$0xf]
      %v2181 = vld [vmem:[%s2176 + $0x10] sm:$0xf]
      %v2182 = vld [vmem:[%s2176 + $0x14] sm:$0xf]
      %v2183 = vld [vmem:[%s2176 + $0x18] sm:$0xf]
      %v2184 = vld [vmem:[%s2176 + $0x1c] sm:$0xf]
      %v2185 = vld [vmem:[%s2176 + $0x20] sm:$0xf]
      %v2186 = vld [vmem:[%s2176 + $0x24] sm:$0xf]
      %v2187 = vld [vmem:[%s2176 + $0x28] sm:$0xf]
      %v2188 = vld [vmem:[%s2176 + $0x2c] sm:$0xf]
      %v2189 = vld [vmem:[%s2176 + $0x30] sm:$0xf]
      %v2190 = vld [vmem:[%s2176 + $0x34] sm:$0xf]
      %v2191 = vld [vmem:[%s2176 + $0x38] sm:$0xf]
      %v2192 = vld [vmem:[%s2176 + $0x3c] sm:$0xf]
      %v2230 = vunpack.c.l.b16 %v2139
      %v2231 = vunpack.c.l.b16 %v2140
      %v2232 = vunpack.c.l.b16 %v2141
      %v2233 = vunpack.c.l.b16 %v2142
      %v2234 = vunpack.c.l.b16 %v2143
      %v2235 = vunpack.c.l.b16 %v2144
      %v2236 = vunpack.c.l.b16 %v2145
      %v2237 = vunpack.c.l.b16 %v2146
      %v2238 = vunpack.c.l.b16 %v2147
      %v2239 = vunpack.c.l.b16 %v2148
      %v2240 = vunpack.c.l.b16 %v2149
      %v2241 = vunpack.c.l.b16 %v2150
      %v2242 = vunpack.c.l.b16 %v2151
      %v2243 = vunpack.c.l.b16 %v2152
      %v2244 = vunpack.c.l.b16 %v2153
      %v2245 = vunpack.c.l.b16 %v2154
      %v2246 = vunpack.c.l.b16 %v2155
      %v2247 = vunpack.c.l.b16 %v2156
      %v2248 = vunpack.c.l.b16 %v2157
      %v2249 = vunpack.c.l.b16 %v2158
      %v2250 = vunpack.c.l.b16 %v2159
      %v2251 = vunpack.c.l.b16 %v2160
      %v2252 = vunpack.c.l.b16 %v2161
      %v2253 = vunpack.c.l.b16 %v2162
      %v2254 = vunpack.c.l.b16 %v2163
      %v2255 = vunpack.c.l.b16 %v2164
      %v2256 = vunpack.c.l.b16 %v2165
      %v2257 = vunpack.c.l.b16 %v2166
      %v2258 = vunpack.c.l.b16 %v2167
      %v2259 = vunpack.c.l.b16 %v2168
      %v2260 = vunpack.c.l.b16 %v2169
      %v2261 = vunpack.c.l.b16 %v2170
      %v2262 = vunpack.c.l.b16 %v2171
      %v2263 = vunpack.c.l.b16 %v2172
      %v2264 = vunpack.c.l.b16 %v2173
      %v2265 = vunpack.c.l.b16 %v2174
      %v2266 = vunpack.c.l.b16 %v2175
      %v2267 = vpack.c.b16 %v2231, %v2230
      %v2268 = vpack.c.b16 %v2233, %v2232
      %v2269 = vpack.c.b16 %v2235, %v2234
      %v2270 = vpack.c.b16 %v2237, %v2236
      %v2271 = vpack.c.b16 %v2239, %v2238
      %v2272 = vpack.c.b16 %v2241, %v2240
      %v2273 = vpack.c.b16 %v2243, %v2242
      %v2274 = vpack.c.b16 %v2245, %v2244
      %v2275 = vpack.c.b16 %v2247, %v2246
      %v2276 = vpack.c.b16 %v2249, %v2248
      %v2277 = vpack.c.b16 %v2251, %v2250
      %v2278 = vpack.c.b16 %v2253, %v2252
      %v2279 = vpack.c.b16 %v2255, %v2254
      %v2280 = vpack.c.b16 %v2257, %v2256
      %v2281 = vpack.c.b16 %v2259, %v2258
      %v2282 = vpack.c.b16 %v2261, %v2260
      %v2283 = vpack.c.b16 %v2263, %v2262
      %v2284 = vpack.c.b16 %v2265, %v2264
      %v2285 = vpack.c.b16 %v2266, %v2266
      %v2286 = vrot.slane %v2267, 2
      %v2287 = vrot.slane %v2268, 2
      %v2288 = vsel %vm1900, %v2286, %v2287
      %v2289 = vrot.slane %v2269, 2
      %v2290 = vsel %vm1900, %v2287, %v2289
      %v2291 = vrot.slane %v2270, 2
      %v2292 = vsel %vm1900, %v2289, %v2291
      %v2293 = vrot.slane %v2271, 2
      %v2294 = vsel %vm1900, %v2291, %v2293
      %v2295 = vrot.slane %v2272, 2
      %v2296 = vsel %vm1900, %v2293, %v2295
      %v2297 = vrot.slane %v2273, 2
      %v2298 = vsel %vm1900, %v2295, %v2297
      %v2299 = vrot.slane %v2274, 2
      %v2300 = vsel %vm1900, %v2297, %v2299
      %v2301 = vrot.slane %v2275, 2
      %v2302 = vsel %vm1900, %v2299, %v2301
      %v2303 = vrot.slane %v2276, 2
      %v2304 = vsel %vm1900, %v2301, %v2303
      %v2305 = vrot.slane %v2277, 2
      %v2306 = vsel %vm1900, %v2303, %v2305
      %v2307 = vrot.slane %v2278, 2
      %v2308 = vsel %vm1900, %v2305, %v2307
      %v2309 = vrot.slane %v2279, 2
      %v2310 = vsel %vm1900, %v2307, %v2309
      %v2311 = vrot.slane %v2280, 2
      %v2312 = vsel %vm1900, %v2309, %v2311
      %v2313 = vrot.slane %v2281, 2
      %v2314 = vsel %vm1900, %v2311, %v2313
      %v2315 = vrot.slane %v2282, 2
      %v2316 = vsel %vm1900, %v2313, %v2315
      %v2317 = vrot.slane %v2283, 2
      %v2318 = vsel %vm1900, %v2315, %v2317
      %v2319 = vrot.slane %v2284, 2
      %v2320 = vsel %vm1900, %v2317, %v2319
      %v2321 = vrot.slane %v2285, 2
      %v2322 = vsel %vm1900, %v2319, %v2321
      %v2357 = vunpack.c.l.b16 %v2177
      %v2358 = vunpack.c.l.b16 %v2178
      %v2359 = vunpack.c.l.b16 %v2179
      %v2360 = vunpack.c.l.b16 %v2180
      %v2361 = vunpack.c.l.b16 %v2181
      %v2362 = vunpack.c.l.b16 %v2182
      %v2363 = vunpack.c.l.b16 %v2183
      %v2364 = vunpack.c.l.b16 %v2184
      %v2365 = vunpack.c.l.b16 %v2185
      %v2366 = vunpack.c.l.b16 %v2186
      %v2367 = vunpack.c.l.b16 %v2187
      %v2368 = vunpack.c.l.b16 %v2188
      %v2369 = vunpack.c.l.b16 %v2189
      %v2370 = vunpack.c.l.b16 %v2190
      %v2371 = vunpack.c.l.b16 %v2191
      %v2372 = vunpack.c.l.b16 %v2192
      %v2373 = vpack.c.b16 %v2358, %v2357
      %v2374 = vpack.c.b16 %v2360, %v2359
      %v2375 = vpack.c.b16 %v2362, %v2361
      %v2376 = vpack.c.b16 %v2364, %v2363
      %v2377 = vpack.c.b16 %v2366, %v2365
      %v2378 = vpack.c.b16 %v2368, %v2367
      %v2379 = vpack.c.b16 %v2370, %v2369
      %v2380 = vpack.c.b16 %v2372, %v2371
      %2389 = vmatpush.bf16.msra.mxu0 %v2380
      %2390 = vmatpush.bf16.msra.mxu0 %v2379
      %2391 = vmatpush.bf16.msra.mxu0 %v2378
      %2392 = vmatpush.bf16.msra.mxu0 %v2377
      %2393 = vmatpush.bf16.msra.mxu0 %v2376
      %2394 = vmatpush.bf16.msra.mxu0 %v2375
      %2395 = vmatpush.bf16.msra.mxu0 %v2374
      %2396 = vmatpush.bf16.msra.mxu0 %v2373
      %2397 = vmatmul.bf16.gmra.mxu0 %v2288
      %v2398 = vpop.f32.mrf.mxu0
      %v2399 = vadd.f32 0.0, %v2398
      %v2400 = vpop.f32.mrf.mxu0
      %v2401 = vadd.f32 0.0, %v2400
      %2402 = vmatmul.bf16.gmra.mxu0 %v2290
      %v2403 = vpop.f32.mrf.mxu0
      %v2404 = vadd.f32 0.0, %v2403
      %v2405 = vpop.f32.mrf.mxu0
      %v2406 = vadd.f32 0.0, %v2405
      %2407 = vmatmul.bf16.gmra.mxu0 %v2292
      %v2408 = vpop.f32.mrf.mxu0
      %v2409 = vadd.f32 0.0, %v2408
      %v2410 = vpop.f32.mrf.mxu0
      %v2411 = vadd.f32 0.0, %v2410
      %2412 = vmatmul.bf16.gmra.mxu0 %v2294
      %v2413 = vpop.f32.mrf.mxu0
      %v2414 = vadd.f32 0.0, %v2413
      %v2415 = vpop.f32.mrf.mxu0
      %v2416 = vadd.f32 0.0, %v2415
      %2417 = vmatmul.bf16.gmra.mxu0 %v2296
      %v2418 = vpop.f32.mrf.mxu0
      %v2419 = vadd.f32 0.0, %v2418
      %v2420 = vpop.f32.mrf.mxu0
      %v2421 = vadd.f32 0.0, %v2420
      %2422 = vmatmul.bf16.gmra.mxu0 %v2298
      %v2423 = vpop.f32.mrf.mxu0
      %v2424 = vadd.f32 0.0, %v2423
      %v2425 = vpop.f32.mrf.mxu0
      %v2426 = vadd.f32 0.0, %v2425
      %2427 = vmatmul.bf16.gmra.mxu0 %v2300
      %v2428 = vpop.f32.mrf.mxu0
      %v2429 = vadd.f32 0.0, %v2428
      %v2430 = vpop.f32.mrf.mxu0
      %v2431 = vadd.f32 0.0, %v2430
      %2432 = vmatmul.bf16.gmra.mxu0 %v2302
      %v2433 = vpop.f32.mrf.mxu0
      %v2434 = vadd.f32 0.0, %v2433
      %v2435 = vpop.f32.mrf.mxu0
      %v2436 = vadd.f32 0.0, %v2435
      %2437 = vmatmul.bf16.gmra.mxu0 %v2304
      %v2438 = vpop.f32.mrf.mxu0
      %v2439 = vadd.f32 0.0, %v2438
      %v2440 = vpop.f32.mrf.mxu0
      %v2441 = vadd.f32 0.0, %v2440
      %2442 = vmatmul.bf16.gmra.mxu0 %v2306
      %v2443 = vpop.f32.mrf.mxu0
      %v2444 = vadd.f32 0.0, %v2443
      %v2445 = vpop.f32.mrf.mxu0
      %v2446 = vadd.f32 0.0, %v2445
      %2447 = vmatmul.bf16.gmra.mxu0 %v2308
      %v2448 = vpop.f32.mrf.mxu0
      %v2449 = vadd.f32 0.0, %v2448
      %v2450 = vpop.f32.mrf.mxu0
      %v2451 = vadd.f32 0.0, %v2450
      %2452 = vmatmul.bf16.gmra.mxu0 %v2310
      %v2453 = vpop.f32.mrf.mxu0
      %v2454 = vadd.f32 0.0, %v2453
      %v2455 = vpop.f32.mrf.mxu0
      %v2456 = vadd.f32 0.0, %v2455
      %2457 = vmatmul.bf16.gmra.mxu0 %v2312
      %v2458 = vpop.f32.mrf.mxu0
      %v2459 = vadd.f32 0.0, %v2458
      %v2460 = vpop.f32.mrf.mxu0
      %v2461 = vadd.f32 0.0, %v2460
      %2462 = vmatmul.bf16.gmra.mxu0 %v2314
      %v2463 = vpop.f32.mrf.mxu0
      %v2464 = vadd.f32 0.0, %v2463
      %v2465 = vpop.f32.mrf.mxu0
      %v2466 = vadd.f32 0.0, %v2465
      %2467 = vmatmul.bf16.gmra.mxu0 %v2316
      %v2468 = vpop.f32.mrf.mxu0
      %v2469 = vadd.f32 0.0, %v2468
      %v2470 = vpop.f32.mrf.mxu0
      %v2471 = vadd.f32 0.0, %v2470
      %2472 = vmatmul.bf16.gmra.mxu0 %v2318
      %v2473 = vpop.f32.mrf.mxu0
      %v2474 = vadd.f32 0.0, %v2473
      %v2475 = vpop.f32.mrf.mxu0
      %v2476 = vadd.f32 0.0, %v2475
      %2477 = vmatmul.bf16.gmra.mxu0 %v2320
      %v2478 = vpop.f32.mrf.mxu0
      %v2479 = vadd.f32 0.0, %v2478
      %v2480 = vpop.f32.mrf.mxu0
      %v2481 = vadd.f32 0.0, %v2480
      %2482 = vmatmul.bf16.gmra.mxu0 %v2322
      %v2483 = vpop.f32.mrf.mxu0
      %v2484 = vadd.f32 0.0, %v2483
      %v2485 = vpop.f32.mrf.mxu0
      %v2486 = vadd.f32 0.0, %v2485
      %2487 = vdwg.mxu0
      %v2488 = vadd.f32 %v2103, %v2399
      %v2489 = vadd.f32 %v2104, %v2401
      %v2490 = vadd.f32 %v2105, %v2404
      %v2491 = vadd.f32 %v2106, %v2406
      %v2492 = vadd.f32 %v2107, %v2409
      %v2493 = vadd.f32 %v2108, %v2411
      %v2494 = vadd.f32 %v2109, %v2414
      %v2495 = vadd.f32 %v2110, %v2416
      %v2496 = vadd.f32 %v2111, %v2419
      %v2497 = vadd.f32 %v2112, %v2421
      %v2498 = vadd.f32 %v2113, %v2424
      %v2499 = vadd.f32 %v2114, %v2426
      %v2500 = vadd.f32 %v2115, %v2429
      %v2501 = vadd.f32 %v2116, %v2431
      %v2502 = vadd.f32 %v2117, %v2434
      %v2503 = vadd.f32 %v2118, %v2436
      %v2504 = vadd.f32 %v2119, %v2439
      %v2505 = vadd.f32 %v2120, %v2441
      %v2506 = vadd.f32 %v2121, %v2444
      %v2507 = vadd.f32 %v2122, %v2446
      %v2508 = vadd.f32 %v2123, %v2449
      %v2509 = vadd.f32 %v2124, %v2451
      %v2510 = vadd.f32 %v2125, %v2454
      %v2511 = vadd.f32 %v2126, %v2456
      %v2512 = vadd.f32 %v2127, %v2459
      %v2513 = vadd.f32 %v2128, %v2461
      %v2514 = vadd.f32 %v2129, %v2464
      %v2515 = vadd.f32 %v2130, %v2466
      %v2516 = vadd.f32 %v2131, %v2469
      %v2517 = vadd.f32 %v2132, %v2471
      %v2518 = vadd.f32 %v2133, %v2474
      %v2519 = vadd.f32 %v2134, %v2476
      %v2520 = vadd.f32 %v2135, %v2479
      %v2521 = vadd.f32 %v2136, %v2481
      %v2522 = vadd.f32 %v2137, %v2484
      %v2523 = vadd.f32 %v2138, %v2486
      %v2524 = vld [vmem:[%s192 + $0xa0] sm:$0x7]
      %s2525 = scalar_lea.vmem %s1, 448
      %v2526 = vld [vmem:[%s2525] sm:$0xf]
      %v2527 = vld [vmem:[%s2525 + $0x4] sm:$0xf]
      %v2528 = vld [vmem:[%s2525 + $0x8] sm:$0xf]
      %v2529 = vld [vmem:[%s2525 + $0xc] sm:$0xf]
      %v2530 = vld [vmem:[%s2525 + $0x10] sm:$0xf]
      %v2531 = vld [vmem:[%s2525 + $0x14] sm:$0xf]
      %v2532 = vld [vmem:[%s2525 + $0x18] sm:$0xf]
      %v2533 = vld [vmem:[%s2525 + $0x1c] sm:$0xf]
      %v2534 = vld [vmem:[%s2525 + $0x20] sm:$0xf]
      %v2535 = vld [vmem:[%s2525 + $0x24] sm:$0xf]
      %v2536 = vld [vmem:[%s2525 + $0x28] sm:$0xf]
      %v2537 = vld [vmem:[%s2525 + $0x2c] sm:$0xf]
      %v2538 = vld [vmem:[%s2525 + $0x30] sm:$0xf]
      %v2539 = vld [vmem:[%s2525 + $0x34] sm:$0xf]
      %v2540 = vld [vmem:[%s2525 + $0x38] sm:$0xf]
      %v2541 = vld [vmem:[%s2525 + $0x3c] sm:$0xf]
      %v2543 = vunpack.c.l.b16 %v2524
      %v2544 = vpack.c.b16 %v2543, %v2543
      %vm2545 = vsmask.f32 5376
      %v2547 = vshrl.u32 %v2267, 16
      %v2549 = vrot.slane %v2547, 2
      %v2550 = vshll.u32 %v2267, 16
      %v2552 = vrot.slane %v2550, 3
      %v2553 = vor.u32 %v2549, %v2552
      %v2555 = vshrl.u32 %v2268, 16
      %v2557 = vrot.slane %v2555, 2
      %v2558 = vshll.u32 %v2268, 16
      %v2560 = vrot.slane %v2558, 3
      %v2561 = vor.u32 %v2557, %v2560
      %v2562 = vsel %vm2545, %v2553, %v2561
      %v2564 = vshrl.u32 %v2269, 16
      %v2566 = vrot.slane %v2564, 2
      %v2567 = vshll.u32 %v2269, 16
      %v2569 = vrot.slane %v2567, 3
      %v2570 = vor.u32 %v2566, %v2569
      %v2571 = vsel %vm2545, %v2561, %v2570
      %v2573 = vshrl.u32 %v2270, 16
      %v2575 = vrot.slane %v2573, 2
      %v2576 = vshll.u32 %v2270, 16
      %v2578 = vrot.slane %v2576, 3
      %v2579 = vor.u32 %v2575, %v2578
      %v2580 = vsel %vm2545, %v2570, %v2579
      %v2582 = vshrl.u32 %v2271, 16
      %v2584 = vrot.slane %v2582, 2
      %v2585 = vshll.u32 %v2271, 16
      %v2587 = vrot.slane %v2585, 3
      %v2588 = vor.u32 %v2584, %v2587
      %v2589 = vsel %vm2545, %v2579, %v2588
      %v2591 = vshrl.u32 %v2272, 16
      %v2593 = vrot.slane %v2591, 2
      %v2594 = vshll.u32 %v2272, 16
      %v2596 = vrot.slane %v2594, 3
      %v2597 = vor.u32 %v2593, %v2596
      %v2598 = vsel %vm2545, %v2588, %v2597
      %v2600 = vshrl.u32 %v2273, 16
      %v2602 = vrot.slane %v2600, 2
      %v2603 = vshll.u32 %v2273, 16
      %v2605 = vrot.slane %v2603, 3
      %v2606 = vor.u32 %v2602, %v2605
      %v2607 = vsel %vm2545, %v2597, %v2606
      %v2609 = vshrl.u32 %v2274, 16
      %v2611 = vrot.slane %v2609, 2
      %v2612 = vshll.u32 %v2274, 16
      %v2614 = vrot.slane %v2612, 3
      %v2615 = vor.u32 %v2611, %v2614
      %v2616 = vsel %vm2545, %v2606, %v2615
      %v2618 = vshrl.u32 %v2275, 16
      %v2620 = vrot.slane %v2618, 2
      %v2621 = vshll.u32 %v2275, 16
      %v2623 = vrot.slane %v2621, 3
      %v2624 = vor.u32 %v2620, %v2623
      %v2625 = vsel %vm2545, %v2615, %v2624
      %v2627 = vshrl.u32 %v2276, 16
      %v2629 = vrot.slane %v2627, 2
      %v2630 = vshll.u32 %v2276, 16
      %v2632 = vrot.slane %v2630, 3
      %v2633 = vor.u32 %v2629, %v2632
      %v2634 = vsel %vm2545, %v2624, %v2633
      %v2636 = vshrl.u32 %v2277, 16
      %v2638 = vrot.slane %v2636, 2
      %v2639 = vshll.u32 %v2277, 16
      %v2641 = vrot.slane %v2639, 3
      %v2642 = vor.u32 %v2638, %v2641
      %v2643 = vsel %vm2545, %v2633, %v2642
      %v2645 = vshrl.u32 %v2278, 16
      %v2647 = vrot.slane %v2645, 2
      %v2648 = vshll.u32 %v2278, 16
      %v2650 = vrot.slane %v2648, 3
      %v2651 = vor.u32 %v2647, %v2650
      %v2652 = vsel %vm2545, %v2642, %v2651
      %v2654 = vshrl.u32 %v2279, 16
      %v2656 = vrot.slane %v2654, 2
      %v2657 = vshll.u32 %v2279, 16
      %v2659 = vrot.slane %v2657, 3
      %v2660 = vor.u32 %v2656, %v2659
      %v2661 = vsel %vm2545, %v2651, %v2660
      %v2663 = vshrl.u32 %v2280, 16
      %v2665 = vrot.slane %v2663, 2
      %v2666 = vshll.u32 %v2280, 16
      %v2668 = vrot.slane %v2666, 3
      %v2669 = vor.u32 %v2665, %v2668
      %v2670 = vsel %vm2545, %v2660, %v2669
      %v2672 = vshrl.u32 %v2281, 16
      %v2674 = vrot.slane %v2672, 2
      %v2675 = vshll.u32 %v2281, 16
      %v2677 = vrot.slane %v2675, 3
      %v2678 = vor.u32 %v2674, %v2677
      %v2679 = vsel %vm2545, %v2669, %v2678
      %v2681 = vshrl.u32 %v2282, 16
      %v2683 = vrot.slane %v2681, 2
      %v2684 = vshll.u32 %v2282, 16
      %v2686 = vrot.slane %v2684, 3
      %v2687 = vor.u32 %v2683, %v2686
      %v2688 = vsel %vm2545, %v2678, %v2687
      %v2690 = vshrl.u32 %v2283, 16
      %v2692 = vrot.slane %v2690, 2
      %v2693 = vshll.u32 %v2283, 16
      %v2695 = vrot.slane %v2693, 3
      %v2696 = vor.u32 %v2692, %v2695
      %v2697 = vsel %vm2545, %v2687, %v2696
      %v2699 = vshrl.u32 %v2284, 16
      %v2701 = vrot.slane %v2699, 2
      %v2702 = vshll.u32 %v2284, 16
      %v2704 = vrot.slane %v2702, 3
      %v2705 = vor.u32 %v2701, %v2704
      %v2706 = vsel %vm2545, %v2696, %v2705
      %v2708 = vshrl.u32 %v2544, 16
      %v2710 = vrot.slane %v2708, 2
      %v2711 = vshll.u32 %v2544, 16
      %v2713 = vrot.slane %v2711, 3
      %v2714 = vor.u32 %v2710, %v2713
      %v2715 = vsel %vm2545, %v2705, %v2714
      %v2750 = vunpack.c.l.b16 %v2526
      %v2751 = vunpack.c.l.b16 %v2527
      %v2752 = vunpack.c.l.b16 %v2528
      %v2753 = vunpack.c.l.b16 %v2529
      %v2754 = vunpack.c.l.b16 %v2530
      %v2755 = vunpack.c.l.b16 %v2531
      %v2756 = vunpack.c.l.b16 %v2532
      %v2757 = vunpack.c.l.b16 %v2533
      %v2758 = vunpack.c.l.b16 %v2534
      %v2759 = vunpack.c.l.b16 %v2535
      %v2760 = vunpack.c.l.b16 %v2536
      %v2761 = vunpack.c.l.b16 %v2537
      %v2762 = vunpack.c.l.b16 %v2538
      %v2763 = vunpack.c.l.b16 %v2539
      %v2764 = vunpack.c.l.b16 %v2540
      %v2765 = vunpack.c.l.b16 %v2541
      %v2766 = vpack.c.b16 %v2751, %v2750
      %v2767 = vpack.c.b16 %v2753, %v2752
      %v2768 = vpack.c.b16 %v2755, %v2754
      %v2769 = vpack.c.b16 %v2757, %v2756
      %v2770 = vpack.c.b16 %v2759, %v2758
      %v2771 = vpack.c.b16 %v2761, %v2760
      %v2772 = vpack.c.b16 %v2763, %v2762
      %v2773 = vpack.c.b16 %v2765, %v2764
      %2782 = vmatpush.bf16.msra.mxu0 %v2773
      %2783 = vmatpush.bf16.msra.mxu0 %v2772
      %2784 = vmatpush.bf16.msra.mxu0 %v2771
      %2785 = vmatpush.bf16.msra.mxu0 %v2770
      %2786 = vmatpush.bf16.msra.mxu0 %v2769
      %2787 = vmatpush.bf16.msra.mxu0 %v2768
      %2788 = vmatpush.bf16.msra.mxu0 %v2767
      %2789 = vmatpush.bf16.msra.mxu0 %v2766
      %2790 = vmatmul.bf16.gmra.mxu0 %v2562
      %v2791 = vpop.f32.mrf.mxu0
      %v2792 = vadd.f32 0.0, %v2791
      %v2793 = vpop.f32.mrf.mxu0
      %v2794 = vadd.f32 0.0, %v2793
      %2795 = vmatmul.bf16.gmra.mxu0 %v2571
      %v2796 = vpop.f32.mrf.mxu0
      %v2797 = vadd.f32 0.0, %v2796
      %v2798 = vpop.f32.mrf.mxu0
      %v2799 = vadd.f32 0.0, %v2798
      %2800 = vmatmul.bf16.gmra.mxu0 %v2580
      %v2801 = vpop.f32.mrf.mxu0
      %v2802 = vadd.f32 0.0, %v2801
      %v2803 = vpop.f32.mrf.mxu0
      %v2804 = vadd.f32 0.0, %v2803
      %2805 = vmatmul.bf16.gmra.mxu0 %v2589
      %v2806 = vpop.f32.mrf.mxu0
      %v2807 = vadd.f32 0.0, %v2806
      %v2808 = vpop.f32.mrf.mxu0
      %v2809 = vadd.f32 0.0, %v2808
      %2810 = vmatmul.bf16.gmra.mxu0 %v2598
      %v2811 = vpop.f32.mrf.mxu0
      %v2812 = vadd.f32 0.0, %v2811
      %v2813 = vpop.f32.mrf.mxu0
      %v2814 = vadd.f32 0.0, %v2813
      %2815 = vmatmul.bf16.gmra.mxu0 %v2607
      %v2816 = vpop.f32.mrf.mxu0
      %v2817 = vadd.f32 0.0, %v2816
      %v2818 = vpop.f32.mrf.mxu0
      %v2819 = vadd.f32 0.0, %v2818
      %2820 = vmatmul.bf16.gmra.mxu0 %v2616
      %v2821 = vpop.f32.mrf.mxu0
      %v2822 = vadd.f32 0.0, %v2821
      %v2823 = vpop.f32.mrf.mxu0
      %v2824 = vadd.f32 0.0, %v2823
      %2825 = vmatmul.bf16.gmra.mxu0 %v2625
      %v2826 = vpop.f32.mrf.mxu0
      %v2827 = vadd.f32 0.0, %v2826
      %v2828 = vpop.f32.mrf.mxu0
      %v2829 = vadd.f32 0.0, %v2828
      %2830 = vmatmul.bf16.gmra.mxu0 %v2634
      %v2831 = vpop.f32.mrf.mxu0
      %v2832 = vadd.f32 0.0, %v2831
      %v2833 = vpop.f32.mrf.mxu0
      %v2834 = vadd.f32 0.0, %v2833
      %2835 = vmatmul.bf16.gmra.mxu0 %v2643
      %v2836 = vpop.f32.mrf.mxu0
      %v2837 = vadd.f32 0.0, %v2836
      %v2838 = vpop.f32.mrf.mxu0
      %v2839 = vadd.f32 0.0, %v2838
      %2840 = vmatmul.bf16.gmra.mxu0 %v2652
      %v2841 = vpop.f32.mrf.mxu0
      %v2842 = vadd.f32 0.0, %v2841
      %v2843 = vpop.f32.mrf.mxu0
      %v2844 = vadd.f32 0.0, %v2843
      %2845 = vmatmul.bf16.gmra.mxu0 %v2661
      %v2846 = vpop.f32.mrf.mxu0
      %v2847 = vadd.f32 0.0, %v2846
      %v2848 = vpop.f32.mrf.mxu0
      %v2849 = vadd.f32 0.0, %v2848
      %2850 = vmatmul.bf16.gmra.mxu0 %v2670
      %v2851 = vpop.f32.mrf.mxu0
      %v2852 = vadd.f32 0.0, %v2851
      %v2853 = vpop.f32.mrf.mxu0
      %v2854 = vadd.f32 0.0, %v2853
      %2855 = vmatmul.bf16.gmra.mxu0 %v2679
      %v2856 = vpop.f32.mrf.mxu0
      %v2857 = vadd.f32 0.0, %v2856
      %v2858 = vpop.f32.mrf.mxu0
      %v2859 = vadd.f32 0.0, %v2858
      %2860 = vmatmul.bf16.gmra.mxu0 %v2688
      %v2861 = vpop.f32.mrf.mxu0
      %v2862 = vadd.f32 0.0, %v2861
      %v2863 = vpop.f32.mrf.mxu0
      %v2864 = vadd.f32 0.0, %v2863
      %2865 = vmatmul.bf16.gmra.mxu0 %v2697
      %v2866 = vpop.f32.mrf.mxu0
      %v2867 = vadd.f32 0.0, %v2866
      %v2868 = vpop.f32.mrf.mxu0
      %v2869 = vadd.f32 0.0, %v2868
      %2870 = vmatmul.bf16.gmra.mxu0 %v2706
      %v2871 = vpop.f32.mrf.mxu0
      %v2872 = vadd.f32 0.0, %v2871
      %v2873 = vpop.f32.mrf.mxu0
      %v2874 = vadd.f32 0.0, %v2873
      %2875 = vmatmul.bf16.gmra.mxu0 %v2715
      %v2876 = vpop.f32.mrf.mxu0
      %v2877 = vadd.f32 0.0, %v2876
      %v2878 = vpop.f32.mrf.mxu0
      %v2879 = vadd.f32 0.0, %v2878
      %2880 = vdwg.mxu0
      %v2881 = vadd.f32 %v2488, %v2792
      %v2882 = vadd.f32 %v2489, %v2794
      %v2883 = vadd.f32 %v2490, %v2797
      %v2884 = vadd.f32 %v2491, %v2799
      %v2885 = vadd.f32 %v2492, %v2802
      %v2886 = vadd.f32 %v2493, %v2804
      %v2887 = vadd.f32 %v2494, %v2807
      %v2888 = vadd.f32 %v2495, %v2809
      %v2889 = vadd.f32 %v2496, %v2812
      %v2890 = vadd.f32 %v2497, %v2814
      %v2891 = vadd.f32 %v2498, %v2817
      %v2892 = vadd.f32 %v2499, %v2819
      %v2893 = vadd.f32 %v2500, %v2822
      %v2894 = vadd.f32 %v2501, %v2824
      %v2895 = vadd.f32 %v2502, %v2827
      %v2896 = vadd.f32 %v2503, %v2829
      %v2897 = vadd.f32 %v2504, %v2832
      %v2898 = vadd.f32 %v2505, %v2834
      %v2899 = vadd.f32 %v2506, %v2837
      %v2900 = vadd.f32 %v2507, %v2839
      %v2901 = vadd.f32 %v2508, %v2842
      %v2902 = vadd.f32 %v2509, %v2844
      %v2903 = vadd.f32 %v2510, %v2847
      %v2904 = vadd.f32 %v2511, %v2849
      %v2905 = vadd.f32 %v2512, %v2852
      %v2906 = vadd.f32 %v2513, %v2854
      %v2907 = vadd.f32 %v2514, %v2857
      %v2908 = vadd.f32 %v2515, %v2859
      %v2909 = vadd.f32 %v2516, %v2862
      %v2910 = vadd.f32 %v2517, %v2864
      %v2911 = vadd.f32 %v2518, %v2867
      %v2912 = vadd.f32 %v2519, %v2869
      %v2913 = vadd.f32 %v2520, %v2872
      %v2914 = vadd.f32 %v2521, %v2874
      %v2915 = vadd.f32 %v2522, %v2877
      %v2916 = vadd.f32 %v2523, %v2879
      %v2917 = vld [vmem:[%s192 + $0x10] sm:$0x8]
      %s2918 = scalar_lea.vmem %s1, 512
      %v2919 = vld [vmem:[%s2918] sm:$0xf]
      %v2920 = vld [vmem:[%s2918 + $0x4] sm:$0xf]
      %v2921 = vld [vmem:[%s2918 + $0x8] sm:$0xf]
      %v2922 = vld [vmem:[%s2918 + $0xc] sm:$0xf]
      %v2923 = vld [vmem:[%s2918 + $0x10] sm:$0xf]
      %v2924 = vld [vmem:[%s2918 + $0x14] sm:$0xf]
      %v2925 = vld [vmem:[%s2918 + $0x18] sm:$0xf]
      %v2926 = vld [vmem:[%s2918 + $0x1c] sm:$0xf]
      %v2927 = vld [vmem:[%s2918 + $0x20] sm:$0xf]
      %v2928 = vld [vmem:[%s2918 + $0x24] sm:$0xf]
      %v2929 = vld [vmem:[%s2918 + $0x28] sm:$0xf]
      %v2930 = vld [vmem:[%s2918 + $0x2c] sm:$0xf]
      %v2931 = vld [vmem:[%s2918 + $0x30] sm:$0xf]
      %v2932 = vld [vmem:[%s2918 + $0x34] sm:$0xf]
      %v2933 = vld [vmem:[%s2918 + $0x38] sm:$0xf]
      %v2934 = vld [vmem:[%s2918 + $0x3c] sm:$0xf]
      %v2936 = vunpack.c.l.b16 %v2917
      %v2937 = vpack.c.b16 %v2231, %v2936
      %vm2938 = vcmask 1044480
      %v2939 = vrot.slane %v2937, 3
      %v2940 = vrot.slane %v2268, 3
      %v2941 = vsel %vm2938, %v2939, %v2940
      %v2942 = vrot.slane %v2269, 3
      %v2943 = vsel %vm2938, %v2940, %v2942
      %v2944 = vrot.slane %v2270, 3
      %v2945 = vsel %vm2938, %v2942, %v2944
      %v2946 = vrot.slane %v2271, 3
      %v2947 = vsel %vm2938, %v2944, %v2946
      %v2948 = vrot.slane %v2272, 3
      %v2949 = vsel %vm2938, %v2946, %v2948
      %v2950 = vrot.slane %v2273, 3
      %v2951 = vsel %vm2938, %v2948, %v2950
      %v2952 = vrot.slane %v2274, 3
      %v2953 = vsel %vm2938, %v2950, %v2952
      %v2954 = vrot.slane %v2275, 3
      %v2955 = vsel %vm2938, %v2952, %v2954
      %v2956 = vrot.slane %v2276, 3
      %v2957 = vsel %vm2938, %v2954, %v2956
      %v2958 = vrot.slane %v2277, 3
      %v2959 = vsel %vm2938, %v2956, %v2958
      %v2960 = vrot.slane %v2278, 3
      %v2961 = vsel %vm2938, %v2958, %v2960
      %v2962 = vrot.slane %v2279, 3
      %v2963 = vsel %vm2938, %v2960, %v2962
      %v2964 = vrot.slane %v2280, 3
      %v2965 = vsel %vm2938, %v2962, %v2964
      %v2966 = vrot.slane %v2281, 3
      %v2967 = vsel %vm2938, %v2964, %v2966
      %v2968 = vrot.slane %v2282, 3
      %v2969 = vsel %vm2938, %v2966, %v2968
      %v2970 = vrot.slane %v2283, 3
      %v2971 = vsel %vm2938, %v2968, %v2970
      %v2972 = vrot.slane %v2284, 3
      %v2973 = vsel %vm2938, %v2970, %v2972
      %v2974 = vrot.slane %v2544, 3
      %v2975 = vsel %vm2938, %v2972, %v2974
      %v3010 = vunpack.c.l.b16 %v2919
      %v3011 = vunpack.c.l.b16 %v2920
      %v3012 = vunpack.c.l.b16 %v2921
      %v3013 = vunpack.c.l.b16 %v2922
      %v3014 = vunpack.c.l.b16 %v2923
      %v3015 = vunpack.c.l.b16 %v2924
      %v3016 = vunpack.c.l.b16 %v2925
      %v3017 = vunpack.c.l.b16 %v2926
      %v3018 = vunpack.c.l.b16 %v2927
      %v3019 = vunpack.c.l.b16 %v2928
      %v3020 = vunpack.c.l.b16 %v2929
      %v3021 = vunpack.c.l.b16 %v2930
      %v3022 = vunpack.c.l.b16 %v2931
      %v3023 = vunpack.c.l.b16 %v2932
      %v3024 = vunpack.c.l.b16 %v2933
      %v3025 = vunpack.c.l.b16 %v2934
      %v3026 = vpack.c.b16 %v3011, %v3010
      %v3027 = vpack.c.b16 %v3013, %v3012
      %v3028 = vpack.c.b16 %v3015, %v3014
      %v3029 = vpack.c.b16 %v3017, %v3016
      %v3030 = vpack.c.b16 %v3019, %v3018
      %v3031 = vpack.c.b16 %v3021, %v3020
      %v3032 = vpack.c.b16 %v3023, %v3022
      %v3033 = vpack.c.b16 %v3025, %v3024
      %3042 = vmatpush.bf16.msra.mxu0 %v3033
      %3043 = vmatpush.bf16.msra.mxu0 %v3032
      %3044 = vmatpush.bf16.msra.mxu0 %v3031
      %3045 = vmatpush.bf16.msra.mxu0 %v3030
      %3046 = vmatpush.bf16.msra.mxu0 %v3029
      %3047 = vmatpush.bf16.msra.mxu0 %v3028
      %3048 = vmatpush.bf16.msra.mxu0 %v3027
      %3049 = vmatpush.bf16.msra.mxu0 %v3026
      %3050 = vmatmul.bf16.gmra.mxu0 %v2941
      %v3051 = vpop.f32.mrf.mxu0
      %v3052 = vadd.f32 0.0, %v3051
      %v3053 = vpop.f32.mrf.mxu0
      %v3054 = vadd.f32 0.0, %v3053
      %3055 = vmatmul.bf16.gmra.mxu0 %v2943
      %v3056 = vpop.f32.mrf.mxu0
      %v3057 = vadd.f32 0.0, %v3056
      %v3058 = vpop.f32.mrf.mxu0
      %v3059 = vadd.f32 0.0, %v3058
      %3060 = vmatmul.bf16.gmra.mxu0 %v2945
      %v3061 = vpop.f32.mrf.mxu0
      %v3062 = vadd.f32 0.0, %v3061
      %v3063 = vpop.f32.mrf.mxu0
      %v3064 = vadd.f32 0.0, %v3063
      %3065 = vmatmul.bf16.gmra.mxu0 %v2947
      %v3066 = vpop.f32.mrf.mxu0
      %v3067 = vadd.f32 0.0, %v3066
      %v3068 = vpop.f32.mrf.mxu0
      %v3069 = vadd.f32 0.0, %v3068
      %3070 = vmatmul.bf16.gmra.mxu0 %v2949
      %v3071 = vpop.f32.mrf.mxu0
      %v3072 = vadd.f32 0.0, %v3071
      %v3073 = vpop.f32.mrf.mxu0
      %v3074 = vadd.f32 0.0, %v3073
      %3075 = vmatmul.bf16.gmra.mxu0 %v2951
      %v3076 = vpop.f32.mrf.mxu0
      %v3077 = vadd.f32 0.0, %v3076
      %v3078 = vpop.f32.mrf.mxu0
      %v3079 = vadd.f32 0.0, %v3078
      %3080 = vmatmul.bf16.gmra.mxu0 %v2953
      %v3081 = vpop.f32.mrf.mxu0
      %v3082 = vadd.f32 0.0, %v3081
      %v3083 = vpop.f32.mrf.mxu0
      %v3084 = vadd.f32 0.0, %v3083
      %3085 = vmatmul.bf16.gmra.mxu0 %v2955
      %v3086 = vpop.f32.mrf.mxu0
      %v3087 = vadd.f32 0.0, %v3086
      %v3088 = vpop.f32.mrf.mxu0
      %v3089 = vadd.f32 0.0, %v3088
      %3090 = vmatmul.bf16.gmra.mxu0 %v2957
      %v3091 = vpop.f32.mrf.mxu0
      %v3092 = vadd.f32 0.0, %v3091
      %v3093 = vpop.f32.mrf.mxu0
      %v3094 = vadd.f32 0.0, %v3093
      %3095 = vmatmul.bf16.gmra.mxu0 %v2959
      %v3096 = vpop.f32.mrf.mxu0
      %v3097 = vadd.f32 0.0, %v3096
      %v3098 = vpop.f32.mrf.mxu0
      %v3099 = vadd.f32 0.0, %v3098
      %3100 = vmatmul.bf16.gmra.mxu0 %v2961
      %v3101 = vpop.f32.mrf.mxu0
      %v3102 = vadd.f32 0.0, %v3101
      %v3103 = vpop.f32.mrf.mxu0
      %v3104 = vadd.f32 0.0, %v3103
      %3105 = vmatmul.bf16.gmra.mxu0 %v2963
      %v3106 = vpop.f32.mrf.mxu0
      %v3107 = vadd.f32 0.0, %v3106
      %v3108 = vpop.f32.mrf.mxu0
      %v3109 = vadd.f32 0.0, %v3108
      %3110 = vmatmul.bf16.gmra.mxu0 %v2965
      %v3111 = vpop.f32.mrf.mxu0
      %v3112 = vadd.f32 0.0, %v3111
      %v3113 = vpop.f32.mrf.mxu0
      %v3114 = vadd.f32 0.0, %v3113
      %3115 = vmatmul.bf16.gmra.mxu0 %v2967
      %v3116 = vpop.f32.mrf.mxu0
      %v3117 = vadd.f32 0.0, %v3116
      %v3118 = vpop.f32.mrf.mxu0
      %v3119 = vadd.f32 0.0, %v3118
      %3120 = vmatmul.bf16.gmra.mxu0 %v2969
      %v3121 = vpop.f32.mrf.mxu0
      %v3122 = vadd.f32 0.0, %v3121
      %v3123 = vpop.f32.mrf.mxu0
      %v3124 = vadd.f32 0.0, %v3123
      %3125 = vmatmul.bf16.gmra.mxu0 %v2971
      %v3126 = vpop.f32.mrf.mxu0
      %v3127 = vadd.f32 0.0, %v3126
      %v3128 = vpop.f32.mrf.mxu0
      %v3129 = vadd.f32 0.0, %v3128
      %3130 = vmatmul.bf16.gmra.mxu0 %v2973
      %v3131 = vpop.f32.mrf.mxu0
      %v3132 = vadd.f32 0.0, %v3131
      %v3133 = vpop.f32.mrf.mxu0
      %v3134 = vadd.f32 0.0, %v3133
      %3135 = vmatmul.bf16.gmra.mxu0 %v2975
      %v3136 = vpop.f32.mrf.mxu0
      %v3137 = vadd.f32 0.0, %v3136
      %v3138 = vpop.f32.mrf.mxu0
      %v3139 = vadd.f32 0.0, %v3138
      %3140 = vdwg.mxu0
      %v3141 = vadd.f32 %v2881, %v3052
      %v3142 = vadd.f32 %v2882, %v3054
      %v3143 = vadd.f32 %v2883, %v3057
      %v3144 = vadd.f32 %v2884, %v3059
      %v3145 = vadd.f32 %v2885, %v3062
      %v3146 = vadd.f32 %v2886, %v3064
      %v3147 = vadd.f32 %v2887, %v3067
      %v3148 = vadd.f32 %v2888, %v3069
      %v3149 = vadd.f32 %v2889, %v3072
      %v3150 = vadd.f32 %v2890, %v3074
      %v3151 = vadd.f32 %v2891, %v3077
      %v3152 = vadd.f32 %v2892, %v3079
      %v3153 = vadd.f32 %v2893, %v3082
      %v3154 = vadd.f32 %v2894, %v3084
      %v3155 = vadd.f32 %v2895, %v3087
      %v3156 = vadd.f32 %v2896, %v3089
      %v3157 = vadd.f32 %v2897, %v3092
      %v3158 = vadd.f32 %v2898, %v3094
      %v3159 = vadd.f32 %v2899, %v3097
      %v3160 = vadd.f32 %v2900, %v3099
      %v3161 = vadd.f32 %v2901, %v3102
      %v3162 = vadd.f32 %v2902, %v3104
      %v3163 = vadd.f32 %v2903, %v3107
      %v3164 = vadd.f32 %v2904, %v3109
      %v3165 = vadd.f32 %v2905, %v3112
      %v3166 = vadd.f32 %v2906, %v3114
      %v3167 = vadd.f32 %v2907, %v3117
      %v3168 = vadd.f32 %v2908, %v3119
      %v3169 = vadd.f32 %v2909, %v3122
      %v3170 = vadd.f32 %v2910, %v3124
      %v3171 = vadd.f32 %v2911, %v3127
      %v3172 = vadd.f32 %v2912, %v3129
      %v3173 = vadd.f32 %v2913, %v3132
      %v3174 = vadd.f32 %v2914, %v3134
      %v3175 = vadd.f32 %v2915, %v3137
      %v3176 = vadd.f32 %v2916, %v3139
      %v3213 = vrot.slane %v3141, 2
      %v3214 = vrot.slane %v3141, 4
      %v3215 = vrot.slane %v3141, 6
      %v3216 = vrot.slane %v3142, 2
      %v3217 = vrot.slane %v3142, 4
      %v3218 = vrot.slane %v3142, 6
      %v3219 = vrot.slane %v3143, 2
      %v3220 = vrot.slane %v3143, 4
      %v3221 = vrot.slane %v3143, 6
      %v3222 = vrot.slane %v3144, 2
      %v3223 = vrot.slane %v3144, 4
      %v3224 = vrot.slane %v3144, 6
      %v3225 = vrot.slane %v3145, 4
      %v3226 = vrot.slane %v3145, 6
      %v3227 = vrot.slane %v3146, 2
      %v3228 = vrot.slane %v3146, 4
      %v3229 = vrot.slane %v3146, 6
      %v3230 = vrot.slane %v3147, 2
      %v3231 = vrot.slane %v3147, 6
      %v3232 = vrot.slane %v3148, 2
      %v3233 = vrot.slane %v3148, 4
      %v3234 = vrot.slane %v3148, 6
      %v3235 = vrot.slane %v3149, 2
      %v3236 = vrot.slane %v3149, 4
      %v3237 = vrot.slane %v3150, 2
      %v3238 = vrot.slane %v3150, 4
      %v3239 = vrot.slane %v3150, 6
      %v3240 = vrot.slane %v3151, 2
      %v3241 = vrot.slane %v3151, 4
      %v3242 = vrot.slane %v3151, 6
      %v3243 = vrot.slane %v3152, 2
      %v3244 = vrot.slane %v3152, 4
      %v3245 = vrot.slane %v3152, 6
      %v3246 = vrot.slane %v3153, 2
      %v3247 = vrot.slane %v3153, 4
      %v3248 = vrot.slane %v3153, 6
      %v3249 = vrot.slane %v3154, 4
      %v3250 = vrot.slane %v3154, 6
      %v3251 = vrot.slane %v3155, 2
      %v3252 = vrot.slane %v3155, 4
      %v3253 = vrot.slane %v3155, 6
      %v3254 = vrot.slane %v3156, 2
      %v3255 = vrot.slane %v3156, 6
      %v3256 = vrot.slane %v3157, 2
      %v3257 = vrot.slane %v3157, 4
      %v3258 = vrot.slane %v3157, 6
      %v3259 = vrot.slane %v3158, 2
      %v3260 = vrot.slane %v3158, 4
      %v3261 = vrot.slane %v3159, 2
      %v3262 = vrot.slane %v3159, 4
      %v3263 = vrot.slane %v3159, 6
      %v3264 = vrot.slane %v3160, 2
      %v3265 = vrot.slane %v3160, 4
      %v3266 = vrot.slane %v3160, 6
      %v3267 = vrot.slane %v3161, 2
      %v3268 = vrot.slane %v3161, 4
      %v3269 = vrot.slane %v3161, 6
      %v3270 = vrot.slane %v3162, 2
      %v3271 = vrot.slane %v3162, 4
      %v3272 = vrot.slane %v3162, 6
      %v3273 = vrot.slane %v3163, 4
      %v3274 = vrot.slane %v3163, 6
      %v3275 = vrot.slane %v3164, 2
      %v3276 = vrot.slane %v3164, 4
      %v3277 = vrot.slane %v3164, 6
      %v3278 = vrot.slane %v3165, 2
      %v3279 = vrot.slane %v3165, 6
      %v3280 = vrot.slane %v3166, 2
      %v3281 = vrot.slane %v3166, 4
      %v3282 = vrot.slane %v3166, 6
      %v3283 = vrot.slane %v3167, 2
      %v3284 = vrot.slane %v3167, 4
      %v3285 = vrot.slane %v3168, 2
      %v3286 = vrot.slane %v3168, 4
      %v3287 = vrot.slane %v3168, 6
      %v3288 = vrot.slane %v3169, 2
      %v3289 = vrot.slane %v3169, 4
      %v3290 = vrot.slane %v3169, 6
      %v3291 = vrot.slane %v3170, 2
      %v3292 = vrot.slane %v3170, 4
      %v3293 = vrot.slane %v3170, 6
      %v3294 = vrot.slane %v3171, 2
      %v3295 = vrot.slane %v3171, 4
      %v3296 = vrot.slane %v3171, 6
      %v3297 = vrot.slane %v3172, 4
      %v3298 = vrot.slane %v3172, 6
      %v3299 = vrot.slane %v3173, 2
      %v3300 = vrot.slane %v3173, 4
      %v3301 = vrot.slane %v3173, 6
      %v3302 = vrot.slane %v3174, 2
      %v3303 = vrot.slane %v3174, 6
      %v3304 = vrot.slane %v3175, 2
      %v3305 = vrot.slane %v3175, 4
      %v3306 = vrot.slane %v3175, 6
      %v3307 = vrot.slane %v3176, 2
      %v3308 = vrot.slane %v3176, 4
      %3405 = vst [vmem:[#allocation1] ss:$4 sm:$0xff] %v3141
      %s3406 = scalar_lea.vmem [#allocation1], 1
      %3407 = vst [vmem:[%s3406] ss:$4 sm:$0xff] %v3213
      %s3408 = scalar_lea.vmem [#allocation1], 2
      %3409 = vst [vmem:[%s3408] ss:$4 sm:$0xff] %v3214
      %s3410 = scalar_lea.vmem [#allocation1], 3
      %3411 = vst [vmem:[%s3410] ss:$4 sm:$0xff] %v3215
      %s3412 = scalar_lea.vmem [#allocation1], 32
      %3413 = vst [vmem:[%s3412] ss:$4 sm:$0xff] %v3142
      %s3414 = scalar_lea.vmem [#allocation1], 33
      %3415 = vst [vmem:[%s3414] ss:$4 sm:$0xff] %v3216
      %s3416 = scalar_lea.vmem [#allocation1], 34
      %3417 = vst [vmem:[%s3416] ss:$4 sm:$0xff] %v3217
      %s3418 = scalar_lea.vmem [#allocation1], 35
      %3419 = vst [vmem:[%s3418] ss:$4 sm:$0xff] %v3218
      %v3420 = vld.sshfl [vmem:[#allocation1] sm:$0xff pattern:$0x73625140]
      %v3421 = vld.sshfl [vmem:[#allocation1 + $0x20] sm:$0xff pattern:$0x73625140]
      %3422 = vst [vmem:[#allocation1] ss:$4 sm:$0xff] %v3219
      %3423 = vst [vmem:[%s3406] ss:$4 sm:$0xff] %v3220
      %3424 = vst [vmem:[%s3408] ss:$4 sm:$0xff] %v3221
      %3425 = vst [vmem:[%s3410] ss:$4 sm:$0xff] %v3144
      %3426 = vst [vmem:[%s3412] ss:$4 sm:$0xff] %v3222
      %3427 = vst [vmem:[%s3414] ss:$4 sm:$0xff] %v3223
      %3428 = vst [vmem:[%s3416] ss:$4 sm:$0xff] %v3224
      %3429 = vst [vmem:[%s3418] ss:$4 sm:$0xff] %v3145
      %v3430 = vld.sshfl [vmem:[#allocation1] sm:$0xff pattern:$0x73625140]
      %v3431 = vld.sshfl [vmem:[#allocation1 + $0x20] sm:$0xff pattern:$0x73625140]
      %3432 = vst [vmem:[#allocation1] ss:$4 sm:$0xff] %v3225
      %3433 = vst [vmem:[%s3406] ss:$4 sm:$0xff] %v3226
      %3434 = vst [vmem:[%s3408] ss:$4 sm:$0xff] %v3146
      %3435 = vst [vmem:[%s3410] ss:$4 sm:$0xff] %v3227
      %3436 = vst [vmem:[%s3412] ss:$4 sm:$0xff] %v3228
      %3437 = vst [vmem:[%s3414] ss:$4 sm:$0xff] %v3229
      %3438 = vst [vmem:[%s3416] ss:$4 sm:$0xff] %v3147
      %3439 = vst [vmem:[%s3418] ss:$4 sm:$0xff] %v3230
      %v3440 = vld.sshfl [vmem:[#allocation1] sm:$0xff pattern:$0x73625140]
      %v3441 = vld.sshfl [vmem:[#allocation1 + $0x20] sm:$0xff pattern:$0x73625140]
      %3442 = vst [vmem:[#allocation1] ss:$4 sm:$0xff] %v3231
      %3443 = vst [vmem:[%s3406] ss:$4 sm:$0xff] %v3148
      %3444 = vst [vmem:[%s3408] ss:$4 sm:$0xff] %v3232
      %3445 = vst [vmem:[%s3410] ss:$4 sm:$0xff] %v3233
      %3446 = vst [vmem:[%s3412] ss:$4 sm:$0xff] %v3234
      %3447 = vst [vmem:[%s3414] ss:$4 sm:$0xff] %v3149
      %3448 = vst [vmem:[%s3416] ss:$4 sm:$0xff] %v3235
      %3449 = vst [vmem:[%s3418] ss:$4 sm:$0xff] %v3236
      %v3450 = vld.sshfl [vmem:[#allocation1] sm:$0xff pattern:$0x73625140]
      %v3451 = vld.sshfl [vmem:[#allocation1 + $0x20] sm:$0xff pattern:$0x73625140]
      %3452 = vst [vmem:[#allocation1] ss:$4 sm:$0xff] %v3150
      %3453 = vst [vmem:[%s3406] ss:$4 sm:$0xff] %v3237
      %3454 = vst [vmem:[%s3408] ss:$4 sm:$0xff] %v3238
      %3455 = vst [vmem:[%s3410] ss:$4 sm:$0xff] %v3239
      %3456 = vst [vmem:[%s3412] ss:$4 sm:$0xff] %v3151
      %3457 = vst [vmem:[%s3414] ss:$4 sm:$0xff] %v3240
      %3458 = vst [vmem:[%s3416] ss:$4 sm:$0xff] %v3241
      %3459 = vst [vmem:[%s3418] ss:$4 sm:$0xff] %v3242
      %v3460 = vld.sshfl [vmem:[#allocation1] sm:$0xff pattern:$0x73625140]
      %v3461 = vld.sshfl [vmem:[#allocation1 + $0x20] sm:$0xff pattern:$0x73625140]
      %3462 = vst [vmem:[#allocation1] ss:$4 sm:$0xff] %v3243
      %3463 = vst [vmem:[%s3406] ss:$4 sm:$0xff] %v3244
      %3464 = vst [vmem:[%s3408] ss:$4 sm:$0xff] %v3245
      %3465 = vst [vmem:[%s3410] ss:$4 sm:$0xff] %v3153
      %3466 = vst [vmem:[%s3412] ss:$4 sm:$0xff] %v3246
      %3467 = vst [vmem:[%s3414] ss:$4 sm:$0xff] %v3247
      %3468 = vst [vmem:[%s3416] ss:$4 sm:$0xff] %v3248
      %3469 = vst [vmem:[%s3418] ss:$4 sm:$0xff] %v3154
      %v3470 = vld.sshfl [vmem:[#allocation1] sm:$0xff pattern:$0x73625140]
      %v3471 = vld.sshfl [vmem:[#allocation1 + $0x20] sm:$0xff pattern:$0x73625140]
      %3472 = vst [vmem:[#allocation1] ss:$4 sm:$0xff] %v3249
      %3473 = vst [vmem:[%s3406] ss:$4 sm:$0xff] %v3250
      %3474 = vst [vmem:[%s3408] ss:$4 sm:$0xff] %v3155
      %3475 = vst [vmem:[%s3410] ss:$4 sm:$0xff] %v3251
      %3476 = vst [vmem:[%s3412] ss:$4 sm:$0xff] %v3252
      %3477 = vst [vmem:[%s3414] ss:$4 sm:$0xff] %v3253
      %3478 = vst [vmem:[%s3416] ss:$4 sm:$0xff] %v3156
      %3479 = vst [vmem:[%s3418] ss:$4 sm:$0xff] %v3254
      %v3480 = vld.sshfl [vmem:[#allocation1] sm:$0xff pattern:$0x73625140]
      %v3481 = vld.sshfl [vmem:[#allocation1 + $0x20] sm:$0xff pattern:$0x73625140]
      %3482 = vst [vmem:[#allocation1] ss:$4 sm:$0xff] %v3255
      %3483 = vst [vmem:[%s3406] ss:$4 sm:$0xff] %v3157
      %3484 = vst [vmem:[%s3408] ss:$4 sm:$0xff] %v3256
      %3485 = vst [vmem:[%s3410] ss:$4 sm:$0xff] %v3257
      %3486 = vst [vmem:[%s3412] ss:$4 sm:$0xff] %v3258
      %3487 = vst [vmem:[%s3414] ss:$4 sm:$0xff] %v3158
      %3488 = vst [vmem:[%s3416] ss:$4 sm:$0xff] %v3259
      %3489 = vst [vmem:[%s3418] ss:$4 sm:$0xff] %v3260
      %v3490 = vld.sshfl [vmem:[#allocation1] sm:$0xff pattern:$0x73625140]
      %v3491 = vld.sshfl [vmem:[#allocation1 + $0x20] sm:$0xff pattern:$0x73625140]
      %3492 = vst [vmem:[#allocation1] ss:$4 sm:$0xff] %v3159
      %3493 = vst [vmem:[%s3406] ss:$4 sm:$0xff] %v3261
      %3494 = vst [vmem:[%s3408] ss:$4 sm:$0xff] %v3262
      %3495 = vst [vmem:[%s3410] ss:$4 sm:$0xff] %v3263
      %3496 = vst [vmem:[%s3412] ss:$4 sm:$0xff] %v3160
      %3497 = vst [vmem:[%s3414] ss:$4 sm:$0xff] %v3264
      %3498 = vst [vmem:[%s3416] ss:$4 sm:$0xff] %v3265
      %3499 = vst [vmem:[%s3418] ss:$4 sm:$0xff] %v3266
      %v3500 = vld.sshfl [vmem:[#allocation1] sm:$0xff pattern:$0x73625140]
      %v3501 = vld.sshfl [vmem:[#allocation1 + $0x20] sm:$0xff pattern:$0x73625140]
      %3502 = vst [vmem:[#allocation1] ss:$4 sm:$0xff] %v3267
      %3503 = vst [vmem:[%s3406] ss:$4 sm:$0xff] %v3268
      %3504 = vst [vmem:[%s3408] ss:$4 sm:$0xff] %v3269
      %3505 = vst [vmem:[%s3410] ss:$4 sm:$0xff] %v3162
      %3506 = vst [vmem:[%s3412] ss:$4 sm:$0xff] %v3270
      %3507 = vst [vmem:[%s3414] ss:$4 sm:$0xff] %v3271
      %3508 = vst [vmem:[%s3416] ss:$4 sm:$0xff] %v3272
      %3509 = vst [vmem:[%s3418] ss:$4 sm:$0xff] %v3163
      %v3510 = vld.sshfl [vmem:[#allocation1] sm:$0xff pattern:$0x73625140]
      %v3511 = vld.sshfl [vmem:[#allocation1 + $0x20] sm:$0xff pattern:$0x73625140]
      %3512 = vst [vmem:[#allocation1] ss:$4 sm:$0xff] %v3273
      %3513 = vst [vmem:[%s3406] ss:$4 sm:$0xff] %v3274
      %3514 = vst [vmem:[%s3408] ss:$4 sm:$0xff] %v3164
      %3515 = vst [vmem:[%s3410] ss:$4 sm:$0xff] %v3275
      %3516 = vst [vmem:[%s3412] ss:$4 sm:$0xff] %v3276
      %3517 = vst [vmem:[%s3414] ss:$4 sm:$0xff] %v3277
      %3518 = vst [vmem:[%s3416] ss:$4 sm:$0xff] %v3165
      %3519 = vst [vmem:[%s3418] ss:$4 sm:$0xff] %v3278
      %v3520 = vld.sshfl [vmem:[#allocation1] sm:$0xff pattern:$0x73625140]
      %v3521 = vld.sshfl [vmem:[#allocation1 + $0x20] sm:$0xff pattern:$0x73625140]
      %3522 = vst [vmem:[#allocation1] ss:$4 sm:$0xff] %v3279
      %3523 = vst [vmem:[%s3406] ss:$4 sm:$0xff] %v3166
      %3524 = vst [vmem:[%s3408] ss:$4 sm:$0xff] %v3280
      %3525 = vst [vmem:[%s3410] ss:$4 sm:$0xff] %v3281
      %3526 = vst [vmem:[%s3412] ss:$4 sm:$0xff] %v3282
      %3527 = vst [vmem:[%s3414] ss:$4 sm:$0xff] %v3167
      %3528 = vst [vmem:[%s3416] ss:$4 sm:$0xff] %v3283
      %3529 = vst [vmem:[%s3418] ss:$4 sm:$0xff] %v3284
      %v3530 = vld.sshfl [vmem:[#allocation1] sm:$0xff pattern:$0x73625140]
      %v3531 = vld.sshfl [vmem:[#allocation1 + $0x20] sm:$0xff pattern:$0x73625140]
      %3532 = vst [vmem:[#allocation1] ss:$4 sm:$0xff] %v3168
      %3533 = vst [vmem:[%s3406] ss:$4 sm:$0xff] %v3285
      %3534 = vst [vmem:[%s3408] ss:$4 sm:$0xff] %v3286
      %3535 = vst [vmem:[%s3410] ss:$4 sm:$0xff] %v3287
      %3536 = vst [vmem:[%s3412] ss:$4 sm:$0xff] %v3169
      %3537 = vst [vmem:[%s3414] ss:$4 sm:$0xff] %v3288
      %3538 = vst [vmem:[%s3416] ss:$4 sm:$0xff] %v3289
      %3539 = vst [vmem:[%s3418] ss:$4 sm:$0xff] %v3290
      %v3540 = vld.sshfl [vmem:[#allocation1] sm:$0xff pattern:$0x73625140]
      %v3541 = vld.sshfl [vmem:[#allocation1 + $0x20] sm:$0xff pattern:$0x73625140]
      %3542 = vst [vmem:[#allocation1] ss:$4 sm:$0xff] %v3291
      %3543 = vst [vmem:[%s3406] ss:$4 sm:$0xff] %v3292
      %3544 = vst [vmem:[%s3408] ss:$4 sm:$0xff] %v3293
      %3545 = vst [vmem:[%s3410] ss:$4 sm:$0xff] %v3171
      %3546 = vst [vmem:[%s3412] ss:$4 sm:$0xff] %v3294
      %3547 = vst [vmem:[%s3414] ss:$4 sm:$0xff] %v3295
      %3548 = vst [vmem:[%s3416] ss:$4 sm:$0xff] %v3296
      %3549 = vst [vmem:[%s3418] ss:$4 sm:$0xff] %v3172
      %v3550 = vld.sshfl [vmem:[#allocation1] sm:$0xff pattern:$0x73625140]
      %v3551 = vld.sshfl [vmem:[#allocation1 + $0x20] sm:$0xff pattern:$0x73625140]
      %3552 = vst [vmem:[#allocation1] ss:$4 sm:$0xff] %v3297
      %3553 = vst [vmem:[%s3406] ss:$4 sm:$0xff] %v3298
      %3554 = vst [vmem:[%s3408] ss:$4 sm:$0xff] %v3173
      %3555 = vst [vmem:[%s3410] ss:$4 sm:$0xff] %v3299
      %3556 = vst [vmem:[%s3412] ss:$4 sm:$0xff] %v3300
      %3557 = vst [vmem:[%s3414] ss:$4 sm:$0xff] %v3301
      %3558 = vst [vmem:[%s3416] ss:$4 sm:$0xff] %v3174
      %3559 = vst [vmem:[%s3418] ss:$4 sm:$0xff] %v3302
      %v3560 = vld.sshfl [vmem:[#allocation1] sm:$0xff pattern:$0x73625140]
      %v3561 = vld.sshfl [vmem:[#allocation1 + $0x20] sm:$0xff pattern:$0x73625140]
      %3562 = vst [vmem:[#allocation1] ss:$4 sm:$0xff] %v3303
      %3563 = vst [vmem:[%s3406] ss:$4 sm:$0xff] %v3175
      %3564 = vst [vmem:[%s3408] ss:$4 sm:$0xff] %v3304
      %3565 = vst [vmem:[%s3410] ss:$4 sm:$0xff] %v3305
      %3566 = vst [vmem:[%s3412] ss:$4 sm:$0xff] %v3306
      %3567 = vst [vmem:[%s3414] ss:$4 sm:$0xff] %v3176
      %3568 = vst [vmem:[%s3416] ss:$4 sm:$0xff] %v3307
      %3569 = vst [vmem:[%s3418] ss:$4 sm:$0xff] %v3308
      %v3570 = vld.sshfl [vmem:[#allocation1] sm:$0xff pattern:$0x73625140]
      %v3571 = vld.sshfl [vmem:[#allocation1 + $0x20] sm:$0xff pattern:$0x73625140]
      %v3604 = vadd.f32 %v3420, %v3421
      %v3605 = vadd.f32 %v3604, %v3430
      %v3606 = vadd.f32 %v3605, %v3431
      %v3607 = vadd.f32 %v3606, %v3440
      %v3608 = vadd.f32 %v3607, %v3441
      %v3609 = vadd.f32 %v3608, %v3450
      %v3610 = vadd.f32 %v3609, %v3451
      %v3611 = vadd.f32 %v3610, %v3460
      %v3612 = vadd.f32 %v3611, %v3461
      %v3613 = vadd.f32 %v3612, %v3470
      %v3614 = vadd.f32 %v3613, %v3471
      %v3615 = vadd.f32 %v3614, %v3480
      %v3616 = vadd.f32 %v3615, %v3481
      %v3617 = vadd.f32 %v3616, %v3490
      %v3618 = vadd.f32 %v3617, %v3491
      %v3619 = vadd.f32 %v3618, %v3500
      %v3620 = vadd.f32 %v3619, %v3501
      %v3621 = vadd.f32 %v3620, %v3510
      %v3622 = vadd.f32 %v3621, %v3511
      %v3623 = vadd.f32 %v3622, %v3520
      %v3624 = vadd.f32 %v3623, %v3521
      %v3625 = vadd.f32 %v3624, %v3530
      %v3626 = vadd.f32 %v3625, %v3531
      %v3627 = vadd.f32 %v3626, %v3540
      %v3628 = vadd.f32 %v3627, %v3541
      %v3629 = vadd.f32 %v3628, %v3550
      %v3630 = vadd.f32 %v3629, %v3551
      %v3631 = vadd.f32 %v3630, %v3560
      %v3632 = vadd.f32 %v3631, %v3561
      %v3633 = vadd.f32 %v3632, %v3570
      %v3634 = vadd.f32 %v3633, %v3571
      %v3635 = vrot.slane %v3634, 4
      %v3636 = vadd.f32 %v3634, %v3635
      %v3637 = vrot.slane %v3636, 2
      %v3638 = vadd.f32 %v3636, %v3637
      %v3639 = vrot.slane %v3638, 1
      %v3640 = vadd.f32 %v3638, %v3639
      %v3641 = vmul.f32 %v3640, 0.00390625
      %v3643 = vrot.slane %v3641, 2
      %v3644 = vrot.slane %v3641, 4
      %v3645 = vrot.slane %v3641, 6
      %v3649 = vsub.f32 %v3141, %v3641
      %v3650 = vsub.f32 %v3213, %v3643
      %v3651 = vsub.f32 %v3214, %v3644
      %v3652 = vsub.f32 %v3215, %v3645
      %v3653 = vsub.f32 %v3142, %v3641
      %v3654 = vsub.f32 %v3216, %v3643
      %v3655 = vsub.f32 %v3217, %v3644
      %v3656 = vsub.f32 %v3218, %v3645
      %v3657 = vsub.f32 %v3219, %v3641
      %v3658 = vsub.f32 %v3220, %v3643
      %v3659 = vsub.f32 %v3221, %v3644
      %v3660 = vsub.f32 %v3144, %v3645
      %v3661 = vsub.f32 %v3222, %v3641
      %v3662 = vsub.f32 %v3223, %v3643
      %v3663 = vsub.f32 %v3224, %v3644
      %v3664 = vsub.f32 %v3145, %v3645
      %v3665 = vsub.f32 %v3225, %v3641
      %v3666 = vsub.f32 %v3226, %v3643
      %v3667 = vsub.f32 %v3146, %v3644
      %v3668 = vsub.f32 %v3227, %v3645
      %v3669 = vsub.f32 %v3228, %v3641
      %v3670 = vsub.f32 %v3229, %v3643
      %v3671 = vsub.f32 %v3147, %v3644
      %v3672 = vsub.f32 %v3230, %v3645
      %v3673 = vsub.f32 %v3231, %v3641
      %v3674 = vsub.f32 %v3148, %v3643
      %v3675 = vsub.f32 %v3232, %v3644
      %v3676 = vsub.f32 %v3233, %v3645
      %v3677 = vsub.f32 %v3234, %v3641
      %v3678 = vsub.f32 %v3149, %v3643
      %v3679 = vsub.f32 %v3235, %v3644
      %v3680 = vsub.f32 %v3236, %v3645
      %v3681 = vsub.f32 %v3150, %v3641
      %v3682 = vsub.f32 %v3237, %v3643
      %v3683 = vsub.f32 %v3238, %v3644
      %v3684 = vsub.f32 %v3239, %v3645
      %v3685 = vsub.f32 %v3151, %v3641
      %v3686 = vsub.f32 %v3240, %v3643
      %v3687 = vsub.f32 %v3241, %v3644
      %v3688 = vsub.f32 %v3242, %v3645
      %v3689 = vsub.f32 %v3243, %v3641
      %v3690 = vsub.f32 %v3244, %v3643
      %v3691 = vsub.f32 %v3245, %v3644
      %v3692 = vsub.f32 %v3153, %v3645
      %v3693 = vsub.f32 %v3246, %v3641
      %v3694 = vsub.f32 %v3247, %v3643
      %v3695 = vsub.f32 %v3248, %v3644
      %v3696 = vsub.f32 %v3154, %v3645
      %v3697 = vsub.f32 %v3249, %v3641
      %v3698 = vsub.f32 %v3250, %v3643
      %v3699 = vsub.f32 %v3155, %v3644
      %v3700 = vsub.f32 %v3251, %v3645
      %v3701 = vsub.f32 %v3252, %v3641
      %v3702 = vsub.f32 %v3253, %v3643
      %v3703 = vsub.f32 %v3156, %v3644
      %v3704 = vsub.f32 %v3254, %v3645
      %v3705 = vsub.f32 %v3255, %v3641
      %v3706 = vsub.f32 %v3157, %v3643
      %v3707 = vsub.f32 %v3256, %v3644
      %v3708 = vsub.f32 %v3257, %v3645
      %v3709 = vsub.f32 %v3258, %v3641
      %v3710 = vsub.f32 %v3158, %v3643
      %v3711 = vsub.f32 %v3259, %v3644
      %v3712 = vsub.f32 %v3260, %v3645
      %v3713 = vsub.f32 %v3159, %v3641
      %v3714 = vsub.f32 %v3261, %v3643
      %v3715 = vsub.f32 %v3262, %v3644
      %v3716 = vsub.f32 %v3263, %v3645
      %v3717 = vsub.f32 %v3160, %v3641
      %v3718 = vsub.f32 %v3264, %v3643
      %v3719 = vsub.f32 %v3265, %v3644
      %v3720 = vsub.f32 %v3266, %v3645
      %v3721 = vsub.f32 %v3267, %v3641
      %v3722 = vsub.f32 %v3268, %v3643
      %v3723 = vsub.f32 %v3269, %v3644
      %v3724 = vsub.f32 %v3162, %v3645
      %v3725 = vsub.f32 %v3270, %v3641
      %v3726 = vsub.f32 %v3271, %v3643
      %v3727 = vsub.f32 %v3272, %v3644
      %v3728 = vsub.f32 %v3163, %v3645
      %v3729 = vsub.f32 %v3273, %v3641
      %v3730 = vsub.f32 %v3274, %v3643
      %v3731 = vsub.f32 %v3164, %v3644
      %v3732 = vsub.f32 %v3275, %v3645
      %v3733 = vsub.f32 %v3276, %v3641
      %v3734 = vsub.f32 %v3277, %v3643
      %v3735 = vsub.f32 %v3165, %v3644
      %v3736 = vsub.f32 %v3278, %v3645
      %v3737 = vsub.f32 %v3279, %v3641
      %v3738 = vsub.f32 %v3166, %v3643
      %v3739 = vsub.f32 %v3280, %v3644
      %v3740 = vsub.f32 %v3281, %v3645
      %v3741 = vsub.f32 %v3282, %v3641
      %v3742 = vsub.f32 %v3167, %v3643
      %v3743 = vsub.f32 %v3283, %v3644
      %v3744 = vsub.f32 %v3284, %v3645
      %v3745 = vsub.f32 %v3168, %v3641
      %v3746 = vsub.f32 %v3285, %v3643
      %v3747 = vsub.f32 %v3286, %v3644
      %v3748 = vsub.f32 %v3287, %v3645
      %v3749 = vsub.f32 %v3169, %v3641
      %v3750 = vsub.f32 %v3288, %v3643
      %v3751 = vsub.f32 %v3289, %v3644
      %v3752 = vsub.f32 %v3290, %v3645
      %v3753 = vsub.f32 %v3291, %v3641
      %v3754 = vsub.f32 %v3292, %v3643
      %v3755 = vsub.f32 %v3293, %v3644
      %v3756 = vsub.f32 %v3171, %v3645
      %v3757 = vsub.f32 %v3294, %v3641
      %v3758 = vsub.f32 %v3295, %v3643
      %v3759 = vsub.f32 %v3296, %v3644
      %v3760 = vsub.f32 %v3172, %v3645
      %v3761 = vsub.f32 %v3297, %v3641
      %v3762 = vsub.f32 %v3298, %v3643
      %v3763 = vsub.f32 %v3173, %v3644
      %v3764 = vsub.f32 %v3299, %v3645
      %v3765 = vsub.f32 %v3300, %v3641
      %v3766 = vsub.f32 %v3301, %v3643
      %v3767 = vsub.f32 %v3174, %v3644
      %v3768 = vsub.f32 %v3302, %v3645
      %v3769 = vsub.f32 %v3303, %v3641
      %v3770 = vsub.f32 %v3175, %v3643
      %v3771 = vsub.f32 %v3304, %v3644
      %v3772 = vsub.f32 %v3305, %v3645
      %v3773 = vsub.f32 %v3306, %v3641
      %v3774 = vsub.f32 %v3176, %v3643
      %v3775 = vsub.f32 %v3307, %v3644
      %v3776 = vsub.f32 %v3308, %v3645
      %v3777 = vmul.f32 %v3649, %v3649
      %v3778 = vmul.f32 %v3650, %v3650
      %v3779 = vmul.f32 %v3651, %v3651
      %v3780 = vmul.f32 %v3652, %v3652
      %v3781 = vmul.f32 %v3653, %v3653
      %v3782 = vmul.f32 %v3654, %v3654
      %v3783 = vmul.f32 %v3655, %v3655
      %v3784 = vmul.f32 %v3656, %v3656
      %v3785 = vmul.f32 %v3657, %v3657
      %v3786 = vmul.f32 %v3658, %v3658
      %v3787 = vmul.f32 %v3659, %v3659
      %v3788 = vmul.f32 %v3660, %v3660
      %v3789 = vmul.f32 %v3661, %v3661
      %v3790 = vmul.f32 %v3662, %v3662
      %v3791 = vmul.f32 %v3663, %v3663
      %v3792 = vmul.f32 %v3664, %v3664
      %v3793 = vmul.f32 %v3665, %v3665
      %v3794 = vmul.f32 %v3666, %v3666
      %v3795 = vmul.f32 %v3667, %v3667
      %v3796 = vmul.f32 %v3668, %v3668
      %v3797 = vmul.f32 %v3669, %v3669
      %v3798 = vmul.f32 %v3670, %v3670
      %v3799 = vmul.f32 %v3671, %v3671
      %v3800 = vmul.f32 %v3672, %v3672
      %v3801 = vmul.f32 %v3673, %v3673
      %v3802 = vmul.f32 %v3674, %v3674
      %v3803 = vmul.f32 %v3675, %v3675
      %v3804 = vmul.f32 %v3676, %v3676
      %v3805 = vmul.f32 %v3677, %v3677
      %v3806 = vmul.f32 %v3678, %v3678
      %v3807 = vmul.f32 %v3679, %v3679
      %v3808 = vmul.f32 %v3680, %v3680
      %v3809 = vmul.f32 %v3681, %v3681
      %v3810 = vmul.f32 %v3682, %v3682
      %v3811 = vmul.f32 %v3683, %v3683
      %v3812 = vmul.f32 %v3684, %v3684
      %v3813 = vmul.f32 %v3685, %v3685
      %v3814 = vmul.f32 %v3686, %v3686
      %v3815 = vmul.f32 %v3687, %v3687
      %v3816 = vmul.f32 %v3688, %v3688
      %v3817 = vmul.f32 %v3689, %v3689
      %v3818 = vmul.f32 %v3690, %v3690
      %v3819 = vmul.f32 %v3691, %v3691
      %v3820 = vmul.f32 %v3692, %v3692
      %v3821 = vmul.f32 %v3693, %v3693
      %v3822 = vmul.f32 %v3694, %v3694
      %v3823 = vmul.f32 %v3695, %v3695
      %v3824 = vmul.f32 %v3696, %v3696
      %v3825 = vmul.f32 %v3697, %v3697
      %v3826 = vmul.f32 %v3698, %v3698
      %v3827 = vmul.f32 %v3699, %v3699
      %v3828 = vmul.f32 %v3700, %v3700
      %v3829 = vmul.f32 %v3701, %v3701
      %v3830 = vmul.f32 %v3702, %v3702
      %v3831 = vmul.f32 %v3703, %v3703
      %v3832 = vmul.f32 %v3704, %v3704
      %v3833 = vmul.f32 %v3705, %v3705
      %v3834 = vmul.f32 %v3706, %v3706
      %v3835 = vmul.f32 %v3707, %v3707
      %v3836 = vmul.f32 %v3708, %v3708
      %v3837 = vmul.f32 %v3709, %v3709
      %v3838 = vmul.f32 %v3710, %v3710
      %v3839 = vmul.f32 %v3711, %v3711
      %v3840 = vmul.f32 %v3712, %v3712
      %v3841 = vmul.f32 %v3713, %v3713
      %v3842 = vmul.f32 %v3714, %v3714
      %v3843 = vmul.f32 %v3715, %v3715
      %v3844 = vmul.f32 %v3716, %v3716
      %v3845 = vmul.f32 %v3717, %v3717
      %v3846 = vmul.f32 %v3718, %v3718
      %v3847 = vmul.f32 %v3719, %v3719
      %v3848 = vmul.f32 %v3720, %v3720
      %v3849 = vmul.f32 %v3721, %v3721
      %v3850 = vmul.f32 %v3722, %v3722
      %v3851 = vmul.f32 %v3723, %v3723
      %v3852 = vmul.f32 %v3724, %v3724
      %v3853 = vmul.f32 %v3725, %v3725
      %v3854 = vmul.f32 %v3726, %v3726
      %v3855 = vmul.f32 %v3727, %v3727
      %v3856 = vmul.f32 %v3728, %v3728
      %v3857 = vmul.f32 %v3729, %v3729
      %v3858 = vmul.f32 %v3730, %v3730
      %v3859 = vmul.f32 %v3731, %v3731
      %v3860 = vmul.f32 %v3732, %v3732
      %v3861 = vmul.f32 %v3733, %v3733
      %v3862 = vmul.f32 %v3734, %v3734
      %v3863 = vmul.f32 %v3735, %v3735
      %v3864 = vmul.f32 %v3736, %v3736
      %v3865 = vmul.f32 %v3737, %v3737
      %v3866 = vmul.f32 %v3738, %v3738
      %v3867 = vmul.f32 %v3739, %v3739
      %v3868 = vmul.f32 %v3740, %v3740
      %v3869 = vmul.f32 %v3741, %v3741
      %v3870 = vmul.f32 %v3742, %v3742
      %v3871 = vmul.f32 %v3743, %v3743
      %v3872 = vmul.f32 %v3744, %v3744
      %v3873 = vmul.f32 %v3745, %v3745
      %v3874 = vmul.f32 %v3746, %v3746
      %v3875 = vmul.f32 %v3747, %v3747
      %v3876 = vmul.f32 %v3748, %v3748
      %v3877 = vmul.f32 %v3749, %v3749
      %v3878 = vmul.f32 %v3750, %v3750
      %v3879 = vmul.f32 %v3751, %v3751
      %v3880 = vmul.f32 %v3752, %v3752
      %v3881 = vmul.f32 %v3753, %v3753
      %v3882 = vmul.f32 %v3754, %v3754
      %v3883 = vmul.f32 %v3755, %v3755
      %v3884 = vmul.f32 %v3756, %v3756
      %v3885 = vmul.f32 %v3757, %v3757
      %v3886 = vmul.f32 %v3758, %v3758
      %v3887 = vmul.f32 %v3759, %v3759
      %v3888 = vmul.f32 %v3760, %v3760
      %v3889 = vmul.f32 %v3761, %v3761
      %v3890 = vmul.f32 %v3762, %v3762
      %v3891 = vmul.f32 %v3763, %v3763
      %v3892 = vmul.f32 %v3764, %v3764
      %v3893 = vmul.f32 %v3765, %v3765
      %v3894 = vmul.f32 %v3766, %v3766
      %v3895 = vmul.f32 %v3767, %v3767
      %v3896 = vmul.f32 %v3768, %v3768
      %v3897 = vmul.f32 %v3769, %v3769
      %v3898 = vmul.f32 %v3770, %v3770
      %v3899 = vmul.f32 %v3771, %v3771
      %v3900 = vmul.f32 %v3772, %v3772
      %v3901 = vmul.f32 %v3773, %v3773
      %v3902 = vmul.f32 %v3774, %v3774
      %v3903 = vmul.f32 %v3775, %v3775
      %v3904 = vmul.f32 %v3776, %v3776
      %4033 = vst [vmem:[#allocation1] ss:$4 sm:$0xff] %v3777
      %s4034 = scalar_lea.vmem [#allocation1], 1
      %4035 = vst [vmem:[%s4034] ss:$4 sm:$0xff] %v3778
      %s4036 = scalar_lea.vmem [#allocation1], 2
      %4037 = vst [vmem:[%s4036] ss:$4 sm:$0xff] %v3779
      %s4038 = scalar_lea.vmem [#allocation1], 3
      %4039 = vst [vmem:[%s4038] ss:$4 sm:$0xff] %v3780
      %s4040 = scalar_lea.vmem [#allocation1], 32
      %4041 = vst [vmem:[%s4040] ss:$4 sm:$0xff] %v3781
      %s4042 = scalar_lea.vmem [#allocation1], 33
      %4043 = vst [vmem:[%s4042] ss:$4 sm:$0xff] %v3782
      %s4044 = scalar_lea.vmem [#allocation1], 34
      %4045 = vst [vmem:[%s4044] ss:$4 sm:$0xff] %v3783
      %s4046 = scalar_lea.vmem [#allocation1], 35
      %4047 = vst [vmem:[%s4046] ss:$4 sm:$0xff] %v3784
      %v4048 = vld.sshfl [vmem:[#allocation1] sm:$0xff pattern:$0x73625140]
      %v4049 = vld.sshfl [vmem:[#allocation1 + $0x20] sm:$0xff pattern:$0x73625140]
      %4050 = vst [vmem:[#allocation1] ss:$4 sm:$0xff] %v3785
      %4051 = vst [vmem:[%s4034] ss:$4 sm:$0xff] %v3786
      %4052 = vst [vmem:[%s4036] ss:$4 sm:$0xff] %v3787
      %4053 = vst [vmem:[%s4038] ss:$4 sm:$0xff] %v3788
      %4054 = vst [vmem:[%s4040] ss:$4 sm:$0xff] %v3789
      %4055 = vst [vmem:[%s4042] ss:$4 sm:$0xff] %v3790
      %4056 = vst [vmem:[%s4044] ss:$4 sm:$0xff] %v3791
      %4057 = vst [vmem:[%s4046] ss:$4 sm:$0xff] %v3792
      %v4058 = vld.sshfl [vmem:[#allocation1] sm:$0xff pattern:$0x73625140]
      %v4059 = vld.sshfl [vmem:[#allocation1 + $0x20] sm:$0xff pattern:$0x73625140]
      %4060 = vst [vmem:[#allocation1] ss:$4 sm:$0xff] %v3793
      %4061 = vst [vmem:[%s4034] ss:$4 sm:$0xff] %v3794
      %4062 = vst [vmem:[%s4036] ss:$4 sm:$0xff] %v3795
      %4063 = vst [vmem:[%s4038] ss:$4 sm:$0xff] %v3796
      %4064 = vst [vmem:[%s4040] ss:$4 sm:$0xff] %v3797
      %4065 = vst [vmem:[%s4042] ss:$4 sm:$0xff] %v3798
      %4066 = vst [vmem:[%s4044] ss:$4 sm:$0xff] %v3799
      %4067 = vst [vmem:[%s4046] ss:$4 sm:$0xff] %v3800
      %v4068 = vld.sshfl [vmem:[#allocation1] sm:$0xff pattern:$0x73625140]
      %v4069 = vld.sshfl [vmem:[#allocation1 + $0x20] sm:$0xff pattern:$0x73625140]
      %4070 = vst [vmem:[#allocation1] ss:$4 sm:$0xff] %v3801
      %4071 = vst [vmem:[%s4034] ss:$4 sm:$0xff] %v3802
      %4072 = vst [vmem:[%s4036] ss:$4 sm:$0xff] %v3803
      %4073 = vst [vmem:[%s4038] ss:$4 sm:$0xff] %v3804
      %4074 = vst [vmem:[%s4040] ss:$4 sm:$0xff] %v3805
      %4075 = vst [vmem:[%s4042] ss:$4 sm:$0xff] %v3806
      %4076 = vst [vmem:[%s4044] ss:$4 sm:$0xff] %v3807
      %4077 = vst [vmem:[%s4046] ss:$4 sm:$0xff] %v3808
      %v4078 = vld.sshfl [vmem:[#allocation1] sm:$0xff pattern:$0x73625140]
      %v4079 = vld.sshfl [vmem:[#allocation1 + $0x20] sm:$0xff pattern:$0x73625140]
      %4080 = vst [vmem:[#allocation1] ss:$4 sm:$0xff] %v3809
      %4081 = vst [vmem:[%s4034] ss:$4 sm:$0xff] %v3810
      %4082 = vst [vmem:[%s4036] ss:$4 sm:$0xff] %v3811
      %4083 = vst [vmem:[%s4038] ss:$4 sm:$0xff] %v3812
      %4084 = vst [vmem:[%s4040] ss:$4 sm:$0xff] %v3813
      %4085 = vst [vmem:[%s4042] ss:$4 sm:$0xff] %v3814
      %4086 = vst [vmem:[%s4044] ss:$4 sm:$0xff] %v3815
      %4087 = vst [vmem:[%s4046] ss:$4 sm:$0xff] %v3816
      %v4088 = vld.sshfl [vmem:[#allocation1] sm:$0xff pattern:$0x73625140]
      %v4089 = vld.sshfl [vmem:[#allocation1 + $0x20] sm:$0xff pattern:$0x73625140]
      %4090 = vst [vmem:[#allocation1] ss:$4 sm:$0xff] %v3817
      %4091 = vst [vmem:[%s4034] ss:$4 sm:$0xff] %v3818
      %4092 = vst [vmem:[%s4036] ss:$4 sm:$0xff] %v3819
      %4093 = vst [vmem:[%s4038] ss:$4 sm:$0xff] %v3820
      %4094 = vst [vmem:[%s4040] ss:$4 sm:$0xff] %v3821
      %4095 = vst [vmem:[%s4042] ss:$4 sm:$0xff] %v3822
      %4096 = vst [vmem:[%s4044] ss:$4 sm:$0xff] %v3823
      %4097 = vst [vmem:[%s4046] ss:$4 sm:$0xff] %v3824
      %v4098 = vld.sshfl [vmem:[#allocation1] sm:$0xff pattern:$0x73625140]
      %v4099 = vld.sshfl [vmem:[#allocation1 + $0x20] sm:$0xff pattern:$0x73625140]
      %4100 = vst [vmem:[#allocation1] ss:$4 sm:$0xff] %v3825
      %4101 = vst [vmem:[%s4034] ss:$4 sm:$0xff] %v3826
      %4102 = vst [vmem:[%s4036] ss:$4 sm:$0xff] %v3827
      %4103 = vst [vmem:[%s4038] ss:$4 sm:$0xff] %v3828
      %4104 = vst [vmem:[%s4040] ss:$4 sm:$0xff] %v3829
      %4105 = vst [vmem:[%s4042] ss:$4 sm:$0xff] %v3830
      %4106 = vst [vmem:[%s4044] ss:$4 sm:$0xff] %v3831
      %4107 = vst [vmem:[%s4046] ss:$4 sm:$0xff] %v3832
      %v4108 = vld.sshfl [vmem:[#allocation1] sm:$0xff pattern:$0x73625140]
      %v4109 = vld.sshfl [vmem:[#allocation1 + $0x20] sm:$0xff pattern:$0x73625140]
      %4110 = vst [vmem:[#allocation1] ss:$4 sm:$0xff] %v3833
      %4111 = vst [vmem:[%s4034] ss:$4 sm:$0xff] %v3834
      %4112 = vst [vmem:[%s4036] ss:$4 sm:$0xff] %v3835
      %4113 = vst [vmem:[%s4038] ss:$4 sm:$0xff] %v3836
      %4114 = vst [vmem:[%s4040] ss:$4 sm:$0xff] %v3837
      %4115 = vst [vmem:[%s4042] ss:$4 sm:$0xff] %v3838
      %4116 = vst [vmem:[%s4044] ss:$4 sm:$0xff] %v3839
      %4117 = vst [vmem:[%s4046] ss:$4 sm:$0xff] %v3840
      %v4118 = vld.sshfl [vmem:[#allocation1] sm:$0xff pattern:$0x73625140]
      %v4119 = vld.sshfl [vmem:[#allocation1 + $0x20] sm:$0xff pattern:$0x73625140]
      %4120 = vst [vmem:[#allocation1] ss:$4 sm:$0xff] %v3841
      %4121 = vst [vmem:[%s4034] ss:$4 sm:$0xff] %v3842
      %4122 = vst [vmem:[%s4036] ss:$4 sm:$0xff] %v3843
      %4123 = vst [vmem:[%s4038] ss:$4 sm:$0xff] %v3844
      %4124 = vst [vmem:[%s4040] ss:$4 sm:$0xff] %v3845
      %4125 = vst [vmem:[%s4042] ss:$4 sm:$0xff] %v3846
      %4126 = vst [vmem:[%s4044] ss:$4 sm:$0xff] %v3847
      %4127 = vst [vmem:[%s4046] ss:$4 sm:$0xff] %v3848
      %v4128 = vld.sshfl [vmem:[#allocation1] sm:$0xff pattern:$0x73625140]
      %v4129 = vld.sshfl [vmem:[#allocation1 + $0x20] sm:$0xff pattern:$0x73625140]
      %4130 = vst [vmem:[#allocation1] ss:$4 sm:$0xff] %v3849
      %4131 = vst [vmem:[%s4034] ss:$4 sm:$0xff] %v3850
      %4132 = vst [vmem:[%s4036] ss:$4 sm:$0xff] %v3851
      %4133 = vst [vmem:[%s4038] ss:$4 sm:$0xff] %v3852
      %4134 = vst [vmem:[%s4040] ss:$4 sm:$0xff] %v3853
      %4135 = vst [vmem:[%s4042] ss:$4 sm:$0xff] %v3854
      %4136 = vst [vmem:[%s4044] ss:$4 sm:$0xff] %v3855
      %4137 = vst [vmem:[%s4046] ss:$4 sm:$0xff] %v3856
      %v4138 = vld.sshfl [vmem:[#allocation1] sm:$0xff pattern:$0x73625140]
      %v4139 = vld.sshfl [vmem:[#allocation1 + $0x20] sm:$0xff pattern:$0x73625140]
      %4140 = vst [vmem:[#allocation1] ss:$4 sm:$0xff] %v3857
      %4141 = vst [vmem:[%s4034] ss:$4 sm:$0xff] %v3858
      %4142 = vst [vmem:[%s4036] ss:$4 sm:$0xff] %v3859
      %4143 = vst [vmem:[%s4038] ss:$4 sm:$0xff] %v3860
      %4144 = vst [vmem:[%s4040] ss:$4 sm:$0xff] %v3861
      %4145 = vst [vmem:[%s4042] ss:$4 sm:$0xff] %v3862
      %4146 = vst [vmem:[%s4044] ss:$4 sm:$0xff] %v3863
      %4147 = vst [vmem:[%s4046] ss:$4 sm:$0xff] %v3864
      %v4148 = vld.sshfl [vmem:[#allocation1] sm:$0xff pattern:$0x73625140]
      %v4149 = vld.sshfl [vmem:[#allocation1 + $0x20] sm:$0xff pattern:$0x73625140]
      %4150 = vst [vmem:[#allocation1] ss:$4 sm:$0xff] %v3865
      %4151 = vst [vmem:[%s4034] ss:$4 sm:$0xff] %v3866
      %4152 = vst [vmem:[%s4036] ss:$4 sm:$0xff] %v3867
      %4153 = vst [vmem:[%s4038] ss:$4 sm:$0xff] %v3868
      %4154 = vst [vmem:[%s4040] ss:$4 sm:$0xff] %v3869
      %4155 = vst [vmem:[%s4042] ss:$4 sm:$0xff] %v3870
      %4156 = vst [vmem:[%s4044] ss:$4 sm:$0xff] %v3871
      %4157 = vst [vmem:[%s4046] ss:$4 sm:$0xff] %v3872
      %v4158 = vld.sshfl [vmem:[#allocation1] sm:$0xff pattern:$0x73625140]
      %v4159 = vld.sshfl [vmem:[#allocation1 + $0x20] sm:$0xff pattern:$0x73625140]
      %4160 = vst [vmem:[#allocation1] ss:$4 sm:$0xff] %v3873
      %4161 = vst [vmem:[%s4034] ss:$4 sm:$0xff] %v3874
      %4162 = vst [vmem:[%s4036] ss:$4 sm:$0xff] %v3875
      %4163 = vst [vmem:[%s4038] ss:$4 sm:$0xff] %v3876
      %4164 = vst [vmem:[%s4040] ss:$4 sm:$0xff] %v3877
      %4165 = vst [vmem:[%s4042] ss:$4 sm:$0xff] %v3878
      %4166 = vst [vmem:[%s4044] ss:$4 sm:$0xff] %v3879
      %4167 = vst [vmem:[%s4046] ss:$4 sm:$0xff] %v3880
      %v4168 = vld.sshfl [vmem:[#allocation1] sm:$0xff pattern:$0x73625140]
      %v4169 = vld.sshfl [vmem:[#allocation1 + $0x20] sm:$0xff pattern:$0x73625140]
      %4170 = vst [vmem:[#allocation1] ss:$4 sm:$0xff] %v3881
      %4171 = vst [vmem:[%s4034] ss:$4 sm:$0xff] %v3882
      %4172 = vst [vmem:[%s4036] ss:$4 sm:$0xff] %v3883
      %4173 = vst [vmem:[%s4038] ss:$4 sm:$0xff] %v3884
      %4174 = vst [vmem:[%s4040] ss:$4 sm:$0xff] %v3885
      %4175 = vst [vmem:[%s4042] ss:$4 sm:$0xff] %v3886
      %4176 = vst [vmem:[%s4044] ss:$4 sm:$0xff] %v3887
      %4177 = vst [vmem:[%s4046] ss:$4 sm:$0xff] %v3888
      %v4178 = vld.sshfl [vmem:[#allocation1] sm:$0xff pattern:$0x73625140]
      %v4179 = vld.sshfl [vmem:[#allocation1 + $0x20] sm:$0xff pattern:$0x73625140]
      %4180 = vst [vmem:[#allocation1] ss:$4 sm:$0xff] %v3889
      %4181 = vst [vmem:[%s4034] ss:$4 sm:$0xff] %v3890
      %4182 = vst [vmem:[%s4036] ss:$4 sm:$0xff] %v3891
      %4183 = vst [vmem:[%s4038] ss:$4 sm:$0xff] %v3892
      %4184 = vst [vmem:[%s4040] ss:$4 sm:$0xff] %v3893
      %4185 = vst [vmem:[%s4042] ss:$4 sm:$0xff] %v3894
      %4186 = vst [vmem:[%s4044] ss:$4 sm:$0xff] %v3895
      %4187 = vst [vmem:[%s4046] ss:$4 sm:$0xff] %v3896
      %v4188 = vld.sshfl [vmem:[#allocation1] sm:$0xff pattern:$0x73625140]
      %v4189 = vld.sshfl [vmem:[#allocation1 + $0x20] sm:$0xff pattern:$0x73625140]
      %4190 = vst [vmem:[#allocation1] ss:$4 sm:$0xff] %v3897
      %4191 = vst [vmem:[%s4034] ss:$4 sm:$0xff] %v3898
      %4192 = vst [vmem:[%s4036] ss:$4 sm:$0xff] %v3899
      %4193 = vst [vmem:[%s4038] ss:$4 sm:$0xff] %v3900
      %4194 = vst [vmem:[%s4040] ss:$4 sm:$0xff] %v3901
      %4195 = vst [vmem:[%s4042] ss:$4 sm:$0xff] %v3902
      %4196 = vst [vmem:[%s4044] ss:$4 sm:$0xff] %v3903
      %4197 = vst [vmem:[%s4046] ss:$4 sm:$0xff] %v3904
      %v4198 = vld.sshfl [vmem:[#allocation1] sm:$0xff pattern:$0x73625140]
      %v4199 = vld.sshfl [vmem:[#allocation1 + $0x20] sm:$0xff pattern:$0x73625140]
      %v4232 = vadd.f32 %v4048, %v4049
      %v4233 = vadd.f32 %v4232, %v4058
      %v4234 = vadd.f32 %v4233, %v4059
      %v4235 = vadd.f32 %v4234, %v4068
      %v4236 = vadd.f32 %v4235, %v4069
      %v4237 = vadd.f32 %v4236, %v4078
      %v4238 = vadd.f32 %v4237, %v4079
      %v4239 = vadd.f32 %v4238, %v4088
      %v4240 = vadd.f32 %v4239, %v4089
      %v4241 = vadd.f32 %v4240, %v4098
      %v4242 = vadd.f32 %v4241, %v4099
      %v4243 = vadd.f32 %v4242, %v4108
      %v4244 = vadd.f32 %v4243, %v4109
      %v4245 = vadd.f32 %v4244, %v4118
      %v4246 = vadd.f32 %v4245, %v4119
      %v4247 = vadd.f32 %v4246, %v4128
      %v4248 = vadd.f32 %v4247, %v4129
      %v4249 = vadd.f32 %v4248, %v4138
      %v4250 = vadd.f32 %v4249, %v4139
      %v4251 = vadd.f32 %v4250, %v4148
      %v4252 = vadd.f32 %v4251, %v4149
      %v4253 = vadd.f32 %v4252, %v4158
      %v4254 = vadd.f32 %v4253, %v4159
      %v4255 = vadd.f32 %v4254, %v4168
      %v4256 = vadd.f32 %v4255, %v4169
      %v4257 = vadd.f32 %v4256, %v4178
      %v4258 = vadd.f32 %v4257, %v4179
      %v4259 = vadd.f32 %v4258, %v4188
      %v4260 = vadd.f32 %v4259, %v4189
      %v4261 = vadd.f32 %v4260, %v4198
      %v4262 = vadd.f32 %v4261, %v4199
      %v4263 = vrot.slane %v4262, 4
      %v4264 = vadd.f32 %v4262, %v4263
      %v4265 = vrot.slane %v4264, 2
      %v4266 = vadd.f32 %v4264, %v4265
      %v4267 = vrot.slane %v4266, 1
      %v4268 = vadd.f32 %v4266, %v4267
      %v4269 = vmul.f32 %v4268, 0.00390625
      %v4270 = vld [vmem:[%s2] sm:$0x1]
      %v4271 = vadd.f32 %v4269, 1e-05
      %v4272 = vrsqrt.pop %v4271
      %v4273 = vmul.f32 %v4272, %v4271
      %v4274 = vmul.f32 %v4273, %v4272
      %v4275 = vmul.f32 0.5, %v4274
      %v4276 = vsub.f32 1.5, %v4275
      %v4277 = vmul.f32 %v4272, %v4276
      %vm4278 = vweird.f32 %v4271
      %vm4279 = vweird.f32 %v4272
      %vm4280 = vmor %vm4278, %vm4279
      %v4281 = vsel %vm4280, %v4272, %v4277
      %v4282 = vmul.f32 %v4270, %v4281
      %v4283 = vld [vmem:[%s3] sm:$0x1]
      %v4284 = vmul.f32 %v3641, %v4282
      %v4285 = vsub.f32 %v4283, %v4284
      %v4287 = vperm.slane %v4282, 0
      %v4289 = vrot.slane %v4287, 2
      %v4290 = vrot.slane %v4287, 4
      %v4291 = vrot.slane %v4287, 6
      %v4295 = vmul.f32 %v3141, %v4287
      %v4296 = vmul.f32 %v3213, %v4289
      %v4297 = vmul.f32 %v3214, %v4290
      %v4298 = vmul.f32 %v3215, %v4291
      %v4299 = vmul.f32 %v3142, %v4287
      %v4300 = vmul.f32 %v3216, %v4289
      %v4301 = vmul.f32 %v3217, %v4290
      %v4302 = vmul.f32 %v3218, %v4291
      %v4303 = vmul.f32 %v3219, %v4287
      %v4304 = vmul.f32 %v3220, %v4289
      %v4305 = vmul.f32 %v3221, %v4290
      %v4306 = vmul.f32 %v3144, %v4291
      %v4307 = vmul.f32 %v3222, %v4287
      %v4308 = vmul.f32 %v3223, %v4289
      %v4309 = vmul.f32 %v3224, %v4290
      %v4310 = vmul.f32 %v3145, %v4291
      %v4311 = vmul.f32 %v3225, %v4287
      %v4312 = vmul.f32 %v3226, %v4289
      %v4313 = vmul.f32 %v3146, %v4290
      %v4314 = vmul.f32 %v3227, %v4291
      %v4315 = vmul.f32 %v3228, %v4287
      %v4316 = vmul.f32 %v3229, %v4289
      %v4317 = vmul.f32 %v3147, %v4290
      %v4318 = vmul.f32 %v3230, %v4291
      %v4319 = vmul.f32 %v3231, %v4287
      %v4320 = vmul.f32 %v3148, %v4289
      %v4321 = vmul.f32 %v3232, %v4290
      %v4322 = vmul.f32 %v3233, %v4291
      %v4323 = vmul.f32 %v3234, %v4287
      %v4324 = vmul.f32 %v3149, %v4289
      %v4325 = vmul.f32 %v3235, %v4290
      %v4326 = vmul.f32 %v3236, %v4291
      %v4327 = vmul.f32 %v3150, %v4287
      %v4328 = vmul.f32 %v3237, %v4289
      %v4329 = vmul.f32 %v3238, %v4290
      %v4330 = vmul.f32 %v3239, %v4291
      %v4331 = vmul.f32 %v3151, %v4287
      %v4332 = vmul.f32 %v3240, %v4289
      %v4333 = vmul.f32 %v3241, %v4290
      %v4334 = vmul.f32 %v3242, %v4291
      %v4335 = vmul.f32 %v3243, %v4287
      %v4336 = vmul.f32 %v3244, %v4289
      %v4337 = vmul.f32 %v3245, %v4290
      %v4338 = vmul.f32 %v3153, %v4291
      %v4339 = vmul.f32 %v3246, %v4287
      %v4340 = vmul.f32 %v3247, %v4289
      %v4341 = vmul.f32 %v3248, %v4290
      %v4342 = vmul.f32 %v3154, %v4291
      %v4343 = vmul.f32 %v3249, %v4287
      %v4344 = vmul.f32 %v3250, %v4289
      %v4345 = vmul.f32 %v3155, %v4290
      %v4346 = vmul.f32 %v3251, %v4291
      %v4347 = vmul.f32 %v3252, %v4287
      %v4348 = vmul.f32 %v3253, %v4289
      %v4349 = vmul.f32 %v3156, %v4290
      %v4350 = vmul.f32 %v3254, %v4291
      %v4351 = vmul.f32 %v3255, %v4287
      %v4352 = vmul.f32 %v3157, %v4289
      %v4353 = vmul.f32 %v3256, %v4290
      %v4354 = vmul.f32 %v3257, %v4291
      %v4355 = vmul.f32 %v3258, %v4287
      %v4356 = vmul.f32 %v3158, %v4289
      %v4357 = vmul.f32 %v3259, %v4290
      %v4358 = vmul.f32 %v3260, %v4291
      %v4359 = vmul.f32 %v3159, %v4287
      %v4360 = vmul.f32 %v3261, %v4289
      %v4361 = vmul.f32 %v3262, %v4290
      %v4362 = vmul.f32 %v3263, %v4291
      %v4363 = vmul.f32 %v3160, %v4287
      %v4364 = vmul.f32 %v3264, %v4289
      %v4365 = vmul.f32 %v3265, %v4290
      %v4366 = vmul.f32 %v3266, %v4291
      %v4367 = vmul.f32 %v3267, %v4287
      %v4368 = vmul.f32 %v3268, %v4289
      %v4369 = vmul.f32 %v3269, %v4290
      %v4370 = vmul.f32 %v3162, %v4291
      %v4371 = vmul.f32 %v3270, %v4287
      %v4372 = vmul.f32 %v3271, %v4289
      %v4373 = vmul.f32 %v3272, %v4290
      %v4374 = vmul.f32 %v3163, %v4291
      %v4375 = vmul.f32 %v3273, %v4287
      %v4376 = vmul.f32 %v3274, %v4289
      %v4377 = vmul.f32 %v3164, %v4290
      %v4378 = vmul.f32 %v3275, %v4291
      %v4379 = vmul.f32 %v3276, %v4287
      %v4380 = vmul.f32 %v3277, %v4289
      %v4381 = vmul.f32 %v3165, %v4290
      %v4382 = vmul.f32 %v3278, %v4291
      %v4383 = vmul.f32 %v3279, %v4287
      %v4384 = vmul.f32 %v3166, %v4289
      %v4385 = vmul.f32 %v3280, %v4290
      %v4386 = vmul.f32 %v3281, %v4291
      %v4387 = vmul.f32 %v3282, %v4287
      %v4388 = vmul.f32 %v3167, %v4289
      %v4389 = vmul.f32 %v3283, %v4290
      %v4390 = vmul.f32 %v3284, %v4291
      %v4391 = vmul.f32 %v3168, %v4287
      %v4392 = vmul.f32 %v3285, %v4289
      %v4393 = vmul.f32 %v3286, %v4290
      %v4394 = vmul.f32 %v3287, %v4291
      %v4395 = vmul.f32 %v3169, %v4287
      %v4396 = vmul.f32 %v3288, %v4289
      %v4397 = vmul.f32 %v3289, %v4290
      %v4398 = vmul.f32 %v3290, %v4291
      %v4399 = vmul.f32 %v3291, %v4287
      %v4400 = vmul.f32 %v3292, %v4289
      %v4401 = vmul.f32 %v3293, %v4290
      %v4402 = vmul.f32 %v3171, %v4291
      %v4403 = vmul.f32 %v3294, %v4287
      %v4404 = vmul.f32 %v3295, %v4289
      %v4405 = vmul.f32 %v3296, %v4290
      %v4406 = vmul.f32 %v3172, %v4291
      %v4407 = vmul.f32 %v3297, %v4287
      %v4408 = vmul.f32 %v3298, %v4289
      %v4409 = vmul.f32 %v3173, %v4290
      %v4410 = vmul.f32 %v3299, %v4291
      %v4411 = vmul.f32 %v3300, %v4287
      %v4412 = vmul.f32 %v3301, %v4289
      %v4413 = vmul.f32 %v3174, %v4290
      %v4414 = vmul.f32 %v3302, %v4291
      %v4415 = vmul.f32 %v3303, %v4287
      %v4416 = vmul.f32 %v3175, %v4289
      %v4417 = vmul.f32 %v3304, %v4290
      %v4418 = vmul.f32 %v3305, %v4291
      %v4419 = vmul.f32 %v3306, %v4287
      %v4420 = vmul.f32 %v3176, %v4289
      %v4421 = vmul.f32 %v3307, %v4290
      %v4422 = vmul.f32 %v3308, %v4291
      %v4424 = vperm.slane %v4285, 0
      %v4426 = vrot.slane %v4424, 2
      %v4427 = vrot.slane %v4424, 4
      %v4428 = vrot.slane %v4424, 6
      %v4432 = vadd.f32 %v4295, %v4424
      %v4433 = vadd.f32 %v4296, %v4426
      %v4434 = vadd.f32 %v4297, %v4427
      %v4435 = vadd.f32 %v4298, %v4428
      %v4436 = vadd.f32 %v4299, %v4424
      %v4437 = vadd.f32 %v4300, %v4426
      %v4438 = vadd.f32 %v4301, %v4427
      %v4439 = vadd.f32 %v4302, %v4428
      %v4440 = vadd.f32 %v4303, %v4424
      %v4441 = vadd.f32 %v4304, %v4426
      %v4442 = vadd.f32 %v4305, %v4427
      %v4443 = vadd.f32 %v4306, %v4428
      %v4444 = vadd.f32 %v4307, %v4424
      %v4445 = vadd.f32 %v4308, %v4426
      %v4446 = vadd.f32 %v4309, %v4427
      %v4447 = vadd.f32 %v4310, %v4428
      %v4448 = vadd.f32 %v4311, %v4424
      %v4449 = vadd.f32 %v4312, %v4426
      %v4450 = vadd.f32 %v4313, %v4427
      %v4451 = vadd.f32 %v4314, %v4428
      %v4452 = vadd.f32 %v4315, %v4424
      %v4453 = vadd.f32 %v4316, %v4426
      %v4454 = vadd.f32 %v4317, %v4427
      %v4455 = vadd.f32 %v4318, %v4428
      %v4456 = vadd.f32 %v4319, %v4424
      %v4457 = vadd.f32 %v4320, %v4426
      %v4458 = vadd.f32 %v4321, %v4427
      %v4459 = vadd.f32 %v4322, %v4428
      %v4460 = vadd.f32 %v4323, %v4424
      %v4461 = vadd.f32 %v4324, %v4426
      %v4462 = vadd.f32 %v4325, %v4427
      %v4463 = vadd.f32 %v4326, %v4428
      %v4464 = vadd.f32 %v4327, %v4424
      %v4465 = vadd.f32 %v4328, %v4426
      %v4466 = vadd.f32 %v4329, %v4427
      %v4467 = vadd.f32 %v4330, %v4428
      %v4468 = vadd.f32 %v4331, %v4424
      %v4469 = vadd.f32 %v4332, %v4426
      %v4470 = vadd.f32 %v4333, %v4427
      %v4471 = vadd.f32 %v4334, %v4428
      %v4472 = vadd.f32 %v4335, %v4424
      %v4473 = vadd.f32 %v4336, %v4426
      %v4474 = vadd.f32 %v4337, %v4427
      %v4475 = vadd.f32 %v4338, %v4428
      %v4476 = vadd.f32 %v4339, %v4424
      %v4477 = vadd.f32 %v4340, %v4426
      %v4478 = vadd.f32 %v4341, %v4427
      %v4479 = vadd.f32 %v4342, %v4428
      %v4480 = vadd.f32 %v4343, %v4424
      %v4481 = vadd.f32 %v4344, %v4426
      %v4482 = vadd.f32 %v4345, %v4427
      %v4483 = vadd.f32 %v4346, %v4428
      %v4484 = vadd.f32 %v4347, %v4424
      %v4485 = vadd.f32 %v4348, %v4426
      %v4486 = vadd.f32 %v4349, %v4427
      %v4487 = vadd.f32 %v4350, %v4428
      %v4488 = vadd.f32 %v4351, %v4424
      %v4489 = vadd.f32 %v4352, %v4426
      %v4490 = vadd.f32 %v4353, %v4427
      %v4491 = vadd.f32 %v4354, %v4428
      %v4492 = vadd.f32 %v4355, %v4424
      %v4493 = vadd.f32 %v4356, %v4426
      %v4494 = vadd.f32 %v4357, %v4427
      %v4495 = vadd.f32 %v4358, %v4428
      %v4496 = vadd.f32 %v4359, %v4424
      %v4497 = vadd.f32 %v4360, %v4426
      %v4498 = vadd.f32 %v4361, %v4427
      %v4499 = vadd.f32 %v4362, %v4428
      %v4500 = vadd.f32 %v4363, %v4424
      %v4501 = vadd.f32 %v4364, %v4426
      %v4502 = vadd.f32 %v4365, %v4427
      %v4503 = vadd.f32 %v4366, %v4428
      %v4504 = vadd.f32 %v4367, %v4424
      %v4505 = vadd.f32 %v4368, %v4426
      %v4506 = vadd.f32 %v4369, %v4427
      %v4507 = vadd.f32 %v4370, %v4428
      %v4508 = vadd.f32 %v4371, %v4424
      %v4509 = vadd.f32 %v4372, %v4426
      %v4510 = vadd.f32 %v4373, %v4427
      %v4511 = vadd.f32 %v4374, %v4428
      %v4512 = vadd.f32 %v4375, %v4424
      %v4513 = vadd.f32 %v4376, %v4426
      %v4514 = vadd.f32 %v4377, %v4427
      %v4515 = vadd.f32 %v4378, %v4428
      %v4516 = vadd.f32 %v4379, %v4424
      %v4517 = vadd.f32 %v4380, %v4426
      %v4518 = vadd.f32 %v4381, %v4427
      %v4519 = vadd.f32 %v4382, %v4428
      %v4520 = vadd.f32 %v4383, %v4424
      %v4521 = vadd.f32 %v4384, %v4426
      %v4522 = vadd.f32 %v4385, %v4427
      %v4523 = vadd.f32 %v4386, %v4428
      %v4524 = vadd.f32 %v4387, %v4424
      %v4525 = vadd.f32 %v4388, %v4426
      %v4526 = vadd.f32 %v4389, %v4427
      %v4527 = vadd.f32 %v4390, %v4428
      %v4528 = vadd.f32 %v4391, %v4424
      %v4529 = vadd.f32 %v4392, %v4426
      %v4530 = vadd.f32 %v4393, %v4427
      %v4531 = vadd.f32 %v4394, %v4428
      %v4532 = vadd.f32 %v4395, %v4424
      %v4533 = vadd.f32 %v4396, %v4426
      %v4534 = vadd.f32 %v4397, %v4427
      %v4535 = vadd.f32 %v4398, %v4428
      %v4536 = vadd.f32 %v4399, %v4424
      %v4537 = vadd.f32 %v4400, %v4426
      %v4538 = vadd.f32 %v4401, %v4427
      %v4539 = vadd.f32 %v4402, %v4428
      %v4540 = vadd.f32 %v4403, %v4424
      %v4541 = vadd.f32 %v4404, %v4426
      %v4542 = vadd.f32 %v4405, %v4427
      %v4543 = vadd.f32 %v4406, %v4428
      %v4544 = vadd.f32 %v4407, %v4424
      %v4545 = vadd.f32 %v4408, %v4426
      %v4546 = vadd.f32 %v4409, %v4427
      %v4547 = vadd.f32 %v4410, %v4428
      %v4548 = vadd.f32 %v4411, %v4424
      %v4549 = vadd.f32 %v4412, %v4426
      %v4550 = vadd.f32 %v4413, %v4427
      %v4551 = vadd.f32 %v4414, %v4428
      %v4552 = vadd.f32 %v4415, %v4424
      %v4553 = vadd.f32 %v4416, %v4426
      %v4554 = vadd.f32 %v4417, %v4427
      %v4555 = vadd.f32 %v4418, %v4428
      %v4556 = vadd.f32 %v4419, %v4424
      %v4557 = vadd.f32 %v4420, %v4426
      %v4558 = vadd.f32 %v4421, %v4427
      %v4559 = vadd.f32 %v4422, %v4428
      %v4560 = vmax.f32 %v4432, 0.0
      %v4561 = vmax.f32 %v4433, 0.0
      %v4562 = vmax.f32 %v4434, 0.0
      %v4563 = vmax.f32 %v4435, 0.0
      %v4564 = vmax.f32 %v4436, 0.0
      %v4565 = vmax.f32 %v4437, 0.0
      %v4566 = vmax.f32 %v4438, 0.0
      %v4567 = vmax.f32 %v4439, 0.0
      %v4568 = vmax.f32 %v4440, 0.0
      %v4569 = vmax.f32 %v4441, 0.0
      %v4570 = vmax.f32 %v4442, 0.0
      %v4571 = vmax.f32 %v4443, 0.0
      %v4572 = vmax.f32 %v4444, 0.0
      %v4573 = vmax.f32 %v4445, 0.0
      %v4574 = vmax.f32 %v4446, 0.0
      %v4575 = vmax.f32 %v4447, 0.0
      %v4576 = vmax.f32 %v4448, 0.0
      %v4577 = vmax.f32 %v4449, 0.0
      %v4578 = vmax.f32 %v4450, 0.0
      %v4579 = vmax.f32 %v4451, 0.0
      %v4580 = vmax.f32 %v4452, 0.0
      %v4581 = vmax.f32 %v4453, 0.0
      %v4582 = vmax.f32 %v4454, 0.0
      %v4583 = vmax.f32 %v4455, 0.0
      %v4584 = vmax.f32 %v4456, 0.0
      %v4585 = vmax.f32 %v4457, 0.0
      %v4586 = vmax.f32 %v4458, 0.0
      %v4587 = vmax.f32 %v4459, 0.0
      %v4588 = vmax.f32 %v4460, 0.0
      %v4589 = vmax.f32 %v4461, 0.0
      %v4590 = vmax.f32 %v4462, 0.0
      %v4591 = vmax.f32 %v4463, 0.0
      %v4592 = vmax.f32 %v4464, 0.0
      %v4593 = vmax.f32 %v4465, 0.0
      %v4594 = vmax.f32 %v4466, 0.0
      %v4595 = vmax.f32 %v4467, 0.0
      %v4596 = vmax.f32 %v4468, 0.0
      %v4597 = vmax.f32 %v4469, 0.0
      %v4598 = vmax.f32 %v4470, 0.0
      %v4599 = vmax.f32 %v4471, 0.0
      %v4600 = vmax.f32 %v4472, 0.0
      %v4601 = vmax.f32 %v4473, 0.0
      %v4602 = vmax.f32 %v4474, 0.0
      %v4603 = vmax.f32 %v4475, 0.0
      %v4604 = vmax.f32 %v4476, 0.0
      %v4605 = vmax.f32 %v4477, 0.0
      %v4606 = vmax.f32 %v4478, 0.0
      %v4607 = vmax.f32 %v4479, 0.0
      %v4608 = vmax.f32 %v4480, 0.0
      %v4609 = vmax.f32 %v4481, 0.0
      %v4610 = vmax.f32 %v4482, 0.0
      %v4611 = vmax.f32 %v4483, 0.0
      %v4612 = vmax.f32 %v4484, 0.0
      %v4613 = vmax.f32 %v4485, 0.0
      %v4614 = vmax.f32 %v4486, 0.0
      %v4615 = vmax.f32 %v4487, 0.0
      %v4616 = vmax.f32 %v4488, 0.0
      %v4617 = vmax.f32 %v4489, 0.0
      %v4618 = vmax.f32 %v4490, 0.0
      %v4619 = vmax.f32 %v4491, 0.0
      %v4620 = vmax.f32 %v4492, 0.0
      %v4621 = vmax.f32 %v4493, 0.0
      %v4622 = vmax.f32 %v4494, 0.0
      %v4623 = vmax.f32 %v4495, 0.0
      %v4624 = vmax.f32 %v4496, 0.0
      %v4625 = vmax.f32 %v4497, 0.0
      %v4626 = vmax.f32 %v4498, 0.0
      %v4627 = vmax.f32 %v4499, 0.0
      %v4628 = vmax.f32 %v4500, 0.0
      %v4629 = vmax.f32 %v4501, 0.0
      %v4630 = vmax.f32 %v4502, 0.0
      %v4631 = vmax.f32 %v4503, 0.0
      %v4632 = vmax.f32 %v4504, 0.0
      %v4633 = vmax.f32 %v4505, 0.0
      %v4634 = vmax.f32 %v4506, 0.0
      %v4635 = vmax.f32 %v4507, 0.0
      %v4636 = vmax.f32 %v4508, 0.0
      %v4637 = vmax.f32 %v4509, 0.0
      %v4638 = vmax.f32 %v4510, 0.0
      %v4639 = vmax.f32 %v4511, 0.0
      %v4640 = vmax.f32 %v4512, 0.0
      %v4641 = vmax.f32 %v4513, 0.0
      %v4642 = vmax.f32 %v4514, 0.0
      %v4643 = vmax.f32 %v4515, 0.0
      %v4644 = vmax.f32 %v4516, 0.0
      %v4645 = vmax.f32 %v4517, 0.0
      %v4646 = vmax.f32 %v4518, 0.0
      %v4647 = vmax.f32 %v4519, 0.0
      %v4648 = vmax.f32 %v4520, 0.0
      %v4649 = vmax.f32 %v4521, 0.0
      %v4650 = vmax.f32 %v4522, 0.0
      %v4651 = vmax.f32 %v4523, 0.0
      %v4652 = vmax.f32 %v4524, 0.0
      %v4653 = vmax.f32 %v4525, 0.0
      %v4654 = vmax.f32 %v4526, 0.0
      %v4655 = vmax.f32 %v4527, 0.0
      %v4656 = vmax.f32 %v4528, 0.0
      %v4657 = vmax.f32 %v4529, 0.0
      %v4658 = vmax.f32 %v4530, 0.0
      %v4659 = vmax.f32 %v4531, 0.0
      %v4660 = vmax.f32 %v4532, 0.0
      %v4661 = vmax.f32 %v4533, 0.0
      %v4662 = vmax.f32 %v4534, 0.0
      %v4663 = vmax.f32 %v4535, 0.0
      %v4664 = vmax.f32 %v4536, 0.0
      %v4665 = vmax.f32 %v4537, 0.0
      %v4666 = vmax.f32 %v4538, 0.0
      %v4667 = vmax.f32 %v4539, 0.0
      %v4668 = vmax.f32 %v4540, 0.0
      %v4669 = vmax.f32 %v4541, 0.0
      %v4670 = vmax.f32 %v4542, 0.0
      %v4671 = vmax.f32 %v4543, 0.0
      %v4672 = vmax.f32 %v4544, 0.0
      %v4673 = vmax.f32 %v4545, 0.0
      %v4674 = vmax.f32 %v4546, 0.0
      %v4675 = vmax.f32 %v4547, 0.0
      %v4676 = vmax.f32 %v4548, 0.0
      %v4677 = vmax.f32 %v4549, 0.0
      %v4678 = vmax.f32 %v4550, 0.0
      %v4679 = vmax.f32 %v4551, 0.0
      %v4680 = vmax.f32 %v4552, 0.0
      %v4681 = vmax.f32 %v4553, 0.0
      %v4682 = vmax.f32 %v4554, 0.0
      %v4683 = vmax.f32 %v4555, 0.0
      %v4684 = vmax.f32 %v4556, 0.0
      %v4685 = vmax.f32 %v4557, 0.0
      %v4686 = vmax.f32 %v4558, 0.0
      %v4687 = vmax.f32 %v4559, 0.0
      %4816 = vst [vmem:[#allocation1] ss:$4 sm:$0xff] %v4560
      %s4817 = scalar_lea.vmem [#allocation1], 1
      %4818 = vst [vmem:[%s4817] ss:$4 sm:$0xff] %v4561
      %s4819 = scalar_lea.vmem [#allocation1], 2
      %4820 = vst [vmem:[%s4819] ss:$4 sm:$0xff] %v4562
      %s4821 = scalar_lea.vmem [#allocation1], 3
      %4822 = vst [vmem:[%s4821] ss:$4 sm:$0xff] %v4563
      %s4823 = scalar_lea.vmem [#allocation1], 32
      %4824 = vst [vmem:[%s4823] ss:$4 sm:$0xff] %v4564
      %s4825 = scalar_lea.vmem [#allocation1], 33
      %4826 = vst [vmem:[%s4825] ss:$4 sm:$0xff] %v4565
      %s4827 = scalar_lea.vmem [#allocation1], 34
      %4828 = vst [vmem:[%s4827] ss:$4 sm:$0xff] %v4566
      %s4829 = scalar_lea.vmem [#allocation1], 35
      %4830 = vst [vmem:[%s4829] ss:$4 sm:$0xff] %v4567
      %v4831 = vld.sshfl [vmem:[#allocation1] sm:$0xff pattern:$0x73625140]
      %v4832 = vld.sshfl [vmem:[#allocation1 + $0x20] sm:$0xff pattern:$0x73625140]
      %4833 = vst [vmem:[#allocation1] ss:$4 sm:$0xff] %v4568
      %4834 = vst [vmem:[%s4817] ss:$4 sm:$0xff] %v4569
      %4835 = vst [vmem:[%s4819] ss:$4 sm:$0xff] %v4570
      %4836 = vst [vmem:[%s4821] ss:$4 sm:$0xff] %v4571
      %4837 = vst [vmem:[%s4823] ss:$4 sm:$0xff] %v4572
      %4838 = vst [vmem:[%s4825] ss:$4 sm:$0xff] %v4573
      %4839 = vst [vmem:[%s4827] ss:$4 sm:$0xff] %v4574
      %4840 = vst [vmem:[%s4829] ss:$4 sm:$0xff] %v4575
      %v4841 = vld.sshfl [vmem:[#allocation1] sm:$0xff pattern:$0x73625140]
      %v4842 = vld.sshfl [vmem:[#allocation1 + $0x20] sm:$0xff pattern:$0x73625140]
      %4843 = vst [vmem:[#allocation1] ss:$4 sm:$0xff] %v4576
      %4844 = vst [vmem:[%s4817] ss:$4 sm:$0xff] %v4577
      %4845 = vst [vmem:[%s4819] ss:$4 sm:$0xff] %v4578
      %4846 = vst [vmem:[%s4821] ss:$4 sm:$0xff] %v4579
      %4847 = vst [vmem:[%s4823] ss:$4 sm:$0xff] %v4580
      %4848 = vst [vmem:[%s4825] ss:$4 sm:$0xff] %v4581
      %4849 = vst [vmem:[%s4827] ss:$4 sm:$0xff] %v4582
      %4850 = vst [vmem:[%s4829] ss:$4 sm:$0xff] %v4583
      %v4851 = vld.sshfl [vmem:[#allocation1] sm:$0xff pattern:$0x73625140]
      %v4852 = vld.sshfl [vmem:[#allocation1 + $0x20] sm:$0xff pattern:$0x73625140]
      %4853 = vst [vmem:[#allocation1] ss:$4 sm:$0xff] %v4584
      %4854 = vst [vmem:[%s4817] ss:$4 sm:$0xff] %v4585
      %4855 = vst [vmem:[%s4819] ss:$4 sm:$0xff] %v4586
      %4856 = vst [vmem:[%s4821] ss:$4 sm:$0xff] %v4587
      %4857 = vst [vmem:[%s4823] ss:$4 sm:$0xff] %v4588
      %4858 = vst [vmem:[%s4825] ss:$4 sm:$0xff] %v4589
      %4859 = vst [vmem:[%s4827] ss:$4 sm:$0xff] %v4590
      %4860 = vst [vmem:[%s4829] ss:$4 sm:$0xff] %v4591
      %v4861 = vld.sshfl [vmem:[#allocation1] sm:$0xff pattern:$0x73625140]
      %v4862 = vld.sshfl [vmem:[#allocation1 + $0x20] sm:$0xff pattern:$0x73625140]
      %4863 = vst [vmem:[#allocation1] ss:$4 sm:$0xff] %v4592
      %4864 = vst [vmem:[%s4817] ss:$4 sm:$0xff] %v4593
      %4865 = vst [vmem:[%s4819] ss:$4 sm:$0xff] %v4594
      %4866 = vst [vmem:[%s4821] ss:$4 sm:$0xff] %v4595
      %4867 = vst [vmem:[%s4823] ss:$4 sm:$0xff] %v4596
      %4868 = vst [vmem:[%s4825] ss:$4 sm:$0xff] %v4597
      %4869 = vst [vmem:[%s4827] ss:$4 sm:$0xff] %v4598
      %4870 = vst [vmem:[%s4829] ss:$4 sm:$0xff] %v4599
      %v4871 = vld.sshfl [vmem:[#allocation1] sm:$0xff pattern:$0x73625140]
      %v4872 = vld.sshfl [vmem:[#allocation1 + $0x20] sm:$0xff pattern:$0x73625140]
      %4873 = vst [vmem:[#allocation1] ss:$4 sm:$0xff] %v4600
      %4874 = vst [vmem:[%s4817] ss:$4 sm:$0xff] %v4601
      %4875 = vst [vmem:[%s4819] ss:$4 sm:$0xff] %v4602
      %4876 = vst [vmem:[%s4821] ss:$4 sm:$0xff] %v4603
      %4877 = vst [vmem:[%s4823] ss:$4 sm:$0xff] %v4604
      %4878 = vst [vmem:[%s4825] ss:$4 sm:$0xff] %v4605
      %4879 = vst [vmem:[%s4827] ss:$4 sm:$0xff] %v4606
      %4880 = vst [vmem:[%s4829] ss:$4 sm:$0xff] %v4607
      %v4881 = vld.sshfl [vmem:[#allocation1] sm:$0xff pattern:$0x73625140]
      %v4882 = vld.sshfl [vmem:[#allocation1 + $0x20] sm:$0xff pattern:$0x73625140]
      %4883 = vst [vmem:[#allocation1] ss:$4 sm:$0xff] %v4608
      %4884 = vst [vmem:[%s4817] ss:$4 sm:$0xff] %v4609
      %4885 = vst [vmem:[%s4819] ss:$4 sm:$0xff] %v4610
      %4886 = vst [vmem:[%s4821] ss:$4 sm:$0xff] %v4611
      %4887 = vst [vmem:[%s4823] ss:$4 sm:$0xff] %v4612
      %4888 = vst [vmem:[%s4825] ss:$4 sm:$0xff] %v4613
      %4889 = vst [vmem:[%s4827] ss:$4 sm:$0xff] %v4614
      %4890 = vst [vmem:[%s4829] ss:$4 sm:$0xff] %v4615
      %v4891 = vld.sshfl [vmem:[#allocation1] sm:$0xff pattern:$0x73625140]
      %v4892 = vld.sshfl [vmem:[#allocation1 + $0x20] sm:$0xff pattern:$0x73625140]
      %4893 = vst [vmem:[#allocation1] ss:$4 sm:$0xff] %v4616
      %4894 = vst [vmem:[%s4817] ss:$4 sm:$0xff] %v4617
      %4895 = vst [vmem:[%s4819] ss:$4 sm:$0xff] %v4618
      %4896 = vst [vmem:[%s4821] ss:$4 sm:$0xff] %v4619
      %4897 = vst [vmem:[%s4823] ss:$4 sm:$0xff] %v4620
      %4898 = vst [vmem:[%s4825] ss:$4 sm:$0xff] %v4621
      %4899 = vst [vmem:[%s4827] ss:$4 sm:$0xff] %v4622
      %4900 = vst [vmem:[%s4829] ss:$4 sm:$0xff] %v4623
      %v4901 = vld.sshfl [vmem:[#allocation1] sm:$0xff pattern:$0x73625140]
      %v4902 = vld.sshfl [vmem:[#allocation1 + $0x20] sm:$0xff pattern:$0x73625140]
      %4903 = vst [vmem:[#allocation1] ss:$4 sm:$0xff] %v4624
      %4904 = vst [vmem:[%s4817] ss:$4 sm:$0xff] %v4625
      %4905 = vst [vmem:[%s4819] ss:$4 sm:$0xff] %v4626
      %4906 = vst [vmem:[%s4821] ss:$4 sm:$0xff] %v4627
      %4907 = vst [vmem:[%s4823] ss:$4 sm:$0xff] %v4628
      %4908 = vst [vmem:[%s4825] ss:$4 sm:$0xff] %v4629
      %4909 = vst [vmem:[%s4827] ss:$4 sm:$0xff] %v4630
      %4910 = vst [vmem:[%s4829] ss:$4 sm:$0xff] %v4631
      %v4911 = vld.sshfl [vmem:[#allocation1] sm:$0xff pattern:$0x73625140]
      %v4912 = vld.sshfl [vmem:[#allocation1 + $0x20] sm:$0xff pattern:$0x73625140]
      %4913 = vst [vmem:[#allocation1] ss:$4 sm:$0xff] %v4632
      %4914 = vst [vmem:[%s4817] ss:$4 sm:$0xff] %v4633
      %4915 = vst [vmem:[%s4819] ss:$4 sm:$0xff] %v4634
      %4916 = vst [vmem:[%s4821] ss:$4 sm:$0xff] %v4635
      %4917 = vst [vmem:[%s4823] ss:$4 sm:$0xff] %v4636
      %4918 = vst [vmem:[%s4825] ss:$4 sm:$0xff] %v4637
      %4919 = vst [vmem:[%s4827] ss:$4 sm:$0xff] %v4638
      %4920 = vst [vmem:[%s4829] ss:$4 sm:$0xff] %v4639
      %v4921 = vld.sshfl [vmem:[#allocation1] sm:$0xff pattern:$0x73625140]
      %v4922 = vld.sshfl [vmem:[#allocation1 + $0x20] sm:$0xff pattern:$0x73625140]
      %4923 = vst [vmem:[#allocation1] ss:$4 sm:$0xff] %v4640
      %4924 = vst [vmem:[%s4817] ss:$4 sm:$0xff] %v4641
      %4925 = vst [vmem:[%s4819] ss:$4 sm:$0xff] %v4642
      %4926 = vst [vmem:[%s4821] ss:$4 sm:$0xff] %v4643
      %4927 = vst [vmem:[%s4823] ss:$4 sm:$0xff] %v4644
      %4928 = vst [vmem:[%s4825] ss:$4 sm:$0xff] %v4645
      %4929 = vst [vmem:[%s4827] ss:$4 sm:$0xff] %v4646
      %4930 = vst [vmem:[%s4829] ss:$4 sm:$0xff] %v4647
      %v4931 = vld.sshfl [vmem:[#allocation1] sm:$0xff pattern:$0x73625140]
      %v4932 = vld.sshfl [vmem:[#allocation1 + $0x20] sm:$0xff pattern:$0x73625140]
      %4933 = vst [vmem:[#allocation1] ss:$4 sm:$0xff] %v4648
      %4934 = vst [vmem:[%s4817] ss:$4 sm:$0xff] %v4649
      %4935 = vst [vmem:[%s4819] ss:$4 sm:$0xff] %v4650
      %4936 = vst [vmem:[%s4821] ss:$4 sm:$0xff] %v4651
      %4937 = vst [vmem:[%s4823] ss:$4 sm:$0xff] %v4652
      %4938 = vst [vmem:[%s4825] ss:$4 sm:$0xff] %v4653
      %4939 = vst [vmem:[%s4827] ss:$4 sm:$0xff] %v4654
      %4940 = vst [vmem:[%s4829] ss:$4 sm:$0xff] %v4655
      %v4941 = vld.sshfl [vmem:[#allocation1] sm:$0xff pattern:$0x73625140]
      %v4942 = vld.sshfl [vmem:[#allocation1 + $0x20] sm:$0xff pattern:$0x73625140]
      %4943 = vst [vmem:[#allocation1] ss:$4 sm:$0xff] %v4656
      %4944 = vst [vmem:[%s4817] ss:$4 sm:$0xff] %v4657
      %4945 = vst [vmem:[%s4819] ss:$4 sm:$0xff] %v4658
      %4946 = vst [vmem:[%s4821] ss:$4 sm:$0xff] %v4659
      %4947 = vst [vmem:[%s4823] ss:$4 sm:$0xff] %v4660
      %4948 = vst [vmem:[%s4825] ss:$4 sm:$0xff] %v4661
      %4949 = vst [vmem:[%s4827] ss:$4 sm:$0xff] %v4662
      %4950 = vst [vmem:[%s4829] ss:$4 sm:$0xff] %v4663
      %v4951 = vld.sshfl [vmem:[#allocation1] sm:$0xff pattern:$0x73625140]
      %v4952 = vld.sshfl [vmem:[#allocation1 + $0x20] sm:$0xff pattern:$0x73625140]
      %4953 = vst [vmem:[#allocation1] ss:$4 sm:$0xff] %v4664
      %4954 = vst [vmem:[%s4817] ss:$4 sm:$0xff] %v4665
      %4955 = vst [vmem:[%s4819] ss:$4 sm:$0xff] %v4666
      %4956 = vst [vmem:[%s4821] ss:$4 sm:$0xff] %v4667
      %4957 = vst [vmem:[%s4823] ss:$4 sm:$0xff] %v4668
      %4958 = vst [vmem:[%s4825] ss:$4 sm:$0xff] %v4669
      %4959 = vst [vmem:[%s4827] ss:$4 sm:$0xff] %v4670
      %4960 = vst [vmem:[%s4829] ss:$4 sm:$0xff] %v4671
      %v4961 = vld.sshfl [vmem:[#allocation1] sm:$0xff pattern:$0x73625140]
      %v4962 = vld.sshfl [vmem:[#allocation1 + $0x20] sm:$0xff pattern:$0x73625140]
      %4963 = vst [vmem:[#allocation1] ss:$4 sm:$0xff] %v4672
      %4964 = vst [vmem:[%s4817] ss:$4 sm:$0xff] %v4673
      %4965 = vst [vmem:[%s4819] ss:$4 sm:$0xff] %v4674
      %4966 = vst [vmem:[%s4821] ss:$4 sm:$0xff] %v4675
      %4967 = vst [vmem:[%s4823] ss:$4 sm:$0xff] %v4676
      %4968 = vst [vmem:[%s4825] ss:$4 sm:$0xff] %v4677
      %4969 = vst [vmem:[%s4827] ss:$4 sm:$0xff] %v4678
      %4970 = vst [vmem:[%s4829] ss:$4 sm:$0xff] %v4679
      %v4971 = vld.sshfl [vmem:[#allocation1] sm:$0xff pattern:$0x73625140]
      %v4972 = vld.sshfl [vmem:[#allocation1 + $0x20] sm:$0xff pattern:$0x73625140]
      %4973 = vst [vmem:[#allocation1] ss:$4 sm:$0xff] %v4680
      %4974 = vst [vmem:[%s4817] ss:$4 sm:$0xff] %v4681
      %4975 = vst [vmem:[%s4819] ss:$4 sm:$0xff] %v4682
      %4976 = vst [vmem:[%s4821] ss:$4 sm:$0xff] %v4683
      %4977 = vst [vmem:[%s4823] ss:$4 sm:$0xff] %v4684
      %4978 = vst [vmem:[%s4825] ss:$4 sm:$0xff] %v4685
      %4979 = vst [vmem:[%s4827] ss:$4 sm:$0xff] %v4686
      %4980 = vst [vmem:[%s4829] ss:$4 sm:$0xff] %v4687
      %v4981 = vld.sshfl [vmem:[#allocation1] sm:$0xff pattern:$0x73625140]
      %v4982 = vld.sshfl [vmem:[#allocation1 + $0x20] sm:$0xff pattern:$0x73625140]
      %v5015 = vpack.c.bf16 %v4831, %v4831
      %v5016 = vpack.c.bf16 %v4832, %v4832
      %v5017 = vpack.c.bf16 %v4841, %v4841
      %v5018 = vpack.c.bf16 %v4842, %v4842
      %v5019 = vpack.c.bf16 %v4851, %v4851
      %v5020 = vpack.c.bf16 %v4852, %v4852
      %v5021 = vpack.c.bf16 %v4861, %v4861
      %v5022 = vpack.c.bf16 %v4862, %v4862
      %v5023 = vpack.c.bf16 %v4871, %v4871
      %v5024 = vpack.c.bf16 %v4872, %v4872
      %v5025 = vpack.c.bf16 %v4881, %v4881
      %v5026 = vpack.c.bf16 %v4882, %v4882
      %v5027 = vpack.c.bf16 %v4891, %v4891
      %v5028 = vpack.c.bf16 %v4892, %v4892
      %v5029 = vpack.c.bf16 %v4901, %v4901
      %v5030 = vpack.c.bf16 %v4902, %v4902
      %v5031 = vpack.c.bf16 %v4911, %v4911
      %v5032 = vpack.c.bf16 %v4912, %v4912
      %v5033 = vpack.c.bf16 %v4921, %v4921
      %v5034 = vpack.c.bf16 %v4922, %v4922
      %v5035 = vpack.c.bf16 %v4931, %v4931
      %v5036 = vpack.c.bf16 %v4932, %v4932
      %v5037 = vpack.c.bf16 %v4941, %v4941
      %v5038 = vpack.c.bf16 %v4942, %v4942
      %v5039 = vpack.c.bf16 %v4951, %v4951
      %v5040 = vpack.c.bf16 %v4952, %v4952
      %v5041 = vpack.c.bf16 %v4961, %v4961
      %v5042 = vpack.c.bf16 %v4962, %v4962
      %v5043 = vpack.c.bf16 %v4971, %v4971
      %v5044 = vpack.c.bf16 %v4972, %v4972
      %v5045 = vpack.c.bf16 %v4981, %v4981
      %v5046 = vpack.c.bf16 %v4982, %v4982
      %v5063 = vunpack.c.l.b16 %v5015
      %v5064 = vunpack.c.l.b16 %v5017
      %v5065 = vunpack.c.l.b16 %v5019
      %v5066 = vunpack.c.l.b16 %v5021
      %v5067 = vunpack.c.l.b16 %v5023
      %v5068 = vunpack.c.l.b16 %v5025
      %v5069 = vunpack.c.l.b16 %v5027
      %v5070 = vunpack.c.l.b16 %v5029
      %v5071 = vunpack.c.l.b16 %v5031
      %v5072 = vunpack.c.l.b16 %v5033
      %v5073 = vunpack.c.l.b16 %v5035
      %v5074 = vunpack.c.l.b16 %v5037
      %v5075 = vunpack.c.l.b16 %v5039
      %v5076 = vunpack.c.l.b16 %v5041
      %v5077 = vunpack.c.l.b16 %v5043
      %v5078 = vunpack.c.l.b16 %v5045
      %v5079 = vpack.c.b16 %v5063, %v5063
      %v5080 = vpack.c.b16 %v5064, %v5064
      %v5081 = vpack.c.b16 %v5065, %v5065
      %v5082 = vpack.c.b16 %v5066, %v5066
      %v5083 = vpack.c.b16 %v5067, %v5067
      %v5084 = vpack.c.b16 %v5068, %v5068
      %v5085 = vpack.c.b16 %v5069, %v5069
      %v5086 = vpack.c.b16 %v5070, %v5070
      %v5087 = vpack.c.b16 %v5071, %v5071
      %v5088 = vpack.c.b16 %v5072, %v5072
      %v5089 = vpack.c.b16 %v5073, %v5073
      %v5090 = vpack.c.b16 %v5074, %v5074
      %v5091 = vpack.c.b16 %v5075, %v5075
      %v5092 = vpack.c.b16 %v5076, %v5076
      %v5093 = vpack.c.b16 %v5077, %v5077
      %v5094 = vpack.c.b16 %v5078, %v5078
      %v5096 = vshrl.u32 %v5079, 16
      %v5099 = vshrl.u32 %v5080, 16
      %v5102 = vshrl.u32 %v5081, 16
      %v5105 = vshrl.u32 %v5082, 16
      %v5108 = vshrl.u32 %v5083, 16
      %v5111 = vshrl.u32 %v5084, 16
      %v5114 = vshrl.u32 %v5085, 16
      %v5117 = vshrl.u32 %v5086, 16
      %v5120 = vshrl.u32 %v5087, 16
      %v5123 = vshrl.u32 %v5088, 16
      %v5126 = vshrl.u32 %v5089, 16
      %v5129 = vshrl.u32 %v5090, 16
      %v5132 = vshrl.u32 %v5091, 16
      %v5135 = vshrl.u32 %v5092, 16
      %v5138 = vshrl.u32 %v5093, 16
      %v5141 = vshrl.u32 %v5094, 16
      %v5175 = vunpack.c.l.b16 %v5016
      %v5176 = vunpack.c.l.b16 %v5018
      %v5177 = vunpack.c.l.b16 %v5020
      %v5178 = vunpack.c.l.b16 %v5022
      %v5179 = vunpack.c.l.b16 %v5024
      %v5180 = vunpack.c.l.b16 %v5026
      %v5181 = vunpack.c.l.b16 %v5028
      %v5182 = vunpack.c.l.b16 %v5030
      %v5183 = vunpack.c.l.b16 %v5032
      %v5184 = vunpack.c.l.b16 %v5034
      %v5185 = vunpack.c.l.b16 %v5036
      %v5186 = vunpack.c.l.b16 %v5038
      %v5187 = vunpack.c.l.b16 %v5040
      %v5188 = vunpack.c.l.b16 %v5042
      %v5189 = vunpack.c.l.b16 %v5044
      %v5190 = vunpack.c.l.b16 %v5046
      %v5191 = vpack.c.b16 %v5175, %v5063
      %v5192 = vpack.c.b16 %v5176, %v5064
      %v5193 = vpack.c.b16 %v5177, %v5065
      %v5194 = vpack.c.b16 %v5178, %v5066
      %v5195 = vpack.c.b16 %v5179, %v5067
      %v5196 = vpack.c.b16 %v5180, %v5068
      %v5197 = vpack.c.b16 %v5181, %v5069
      %v5198 = vpack.c.b16 %v5182, %v5070
      %v5199 = vpack.c.b16 %v5183, %v5071
      %v5200 = vpack.c.b16 %v5184, %v5072
      %v5201 = vpack.c.b16 %v5185, %v5073
      %v5202 = vpack.c.b16 %v5186, %v5074
      %v5203 = vpack.c.b16 %v5187, %v5075
      %v5204 = vpack.c.b16 %v5188, %v5076
      %v5205 = vpack.c.b16 %v5189, %v5077
      %v5206 = vpack.c.b16 %v5190, %v5078
      %v5208 = vshrl.u32 %v5191, 16
      %v5210 = vrot.slane %v5208, 7
      %v5211 = vshll.u32 %v5191, 16
      %v5213 = vor.u32 %v5210, %v5211
      %v5215 = vshrl.u32 %v5192, 16
      %v5217 = vrot.slane %v5215, 7
      %v5218 = vshll.u32 %v5192, 16
      %v5220 = vor.u32 %v5217, %v5218
      %v5222 = vshrl.u32 %v5193, 16
      %v5224 = vrot.slane %v5222, 7
      %v5225 = vshll.u32 %v5193, 16
      %v5227 = vor.u32 %v5224, %v5225
      %v5229 = vshrl.u32 %v5194, 16
      %v5231 = vrot.slane %v5229, 7
      %v5232 = vshll.u32 %v5194, 16
      %v5234 = vor.u32 %v5231, %v5232
      %v5236 = vshrl.u32 %v5195, 16
      %v5238 = vrot.slane %v5236, 7
      %v5239 = vshll.u32 %v5195, 16
      %v5241 = vor.u32 %v5238, %v5239
      %v5243 = vshrl.u32 %v5196, 16
      %v5245 = vrot.slane %v5243, 7
      %v5246 = vshll.u32 %v5196, 16
      %v5248 = vor.u32 %v5245, %v5246
      %v5250 = vshrl.u32 %v5197, 16
      %v5252 = vrot.slane %v5250, 7
      %v5253 = vshll.u32 %v5197, 16
      %v5255 = vor.u32 %v5252, %v5253
      %v5257 = vshrl.u32 %v5198, 16
      %v5259 = vrot.slane %v5257, 7
      %v5260 = vshll.u32 %v5198, 16
      %v5262 = vor.u32 %v5259, %v5260
      %v5264 = vshrl.u32 %v5199, 16
      %v5266 = vrot.slane %v5264, 7
      %v5267 = vshll.u32 %v5199, 16
      %v5269 = vor.u32 %v5266, %v5267
      %v5271 = vshrl.u32 %v5200, 16
      %v5273 = vrot.slane %v5271, 7
      %v5274 = vshll.u32 %v5200, 16
      %v5276 = vor.u32 %v5273, %v5274
      %v5278 = vshrl.u32 %v5201, 16
      %v5280 = vrot.slane %v5278, 7
      %v5281 = vshll.u32 %v5201, 16
      %v5283 = vor.u32 %v5280, %v5281
      %v5285 = vshrl.u32 %v5202, 16
      %v5287 = vrot.slane %v5285, 7
      %v5288 = vshll.u32 %v5202, 16
      %v5290 = vor.u32 %v5287, %v5288
      %v5292 = vshrl.u32 %v5203, 16
      %v5294 = vrot.slane %v5292, 7
      %v5295 = vshll.u32 %v5203, 16
      %v5297 = vor.u32 %v5294, %v5295
      %v5299 = vshrl.u32 %v5204, 16
      %v5301 = vrot.slane %v5299, 7
      %v5302 = vshll.u32 %v5204, 16
      %v5304 = vor.u32 %v5301, %v5302
      %v5306 = vshrl.u32 %v5205, 16
      %v5308 = vrot.slane %v5306, 7
      %v5309 = vshll.u32 %v5205, 16
      %v5311 = vor.u32 %v5308, %v5309
      %v5313 = vshrl.u32 %v5206, 16
      %v5315 = vrot.slane %v5313, 7
      %v5316 = vshll.u32 %v5206, 16
      %v5318 = vor.u32 %v5315, %v5316
      %v5351 = vpack.c.b16 %v5175, %v5175
      %v5352 = vpack.c.b16 %v5176, %v5176
      %v5353 = vpack.c.b16 %v5177, %v5177
      %v5354 = vpack.c.b16 %v5178, %v5178
      %v5355 = vpack.c.b16 %v5179, %v5179
      %v5356 = vpack.c.b16 %v5180, %v5180
      %v5357 = vpack.c.b16 %v5181, %v5181
      %v5358 = vpack.c.b16 %v5182, %v5182
      %v5359 = vpack.c.b16 %v5183, %v5183
      %v5360 = vpack.c.b16 %v5184, %v5184
      %v5361 = vpack.c.b16 %v5185, %v5185
      %v5362 = vpack.c.b16 %v5186, %v5186
      %v5363 = vpack.c.b16 %v5187, %v5187
      %v5364 = vpack.c.b16 %v5188, %v5188
      %v5365 = vpack.c.b16 %v5189, %v5189
      %v5366 = vpack.c.b16 %v5190, %v5190
      %v5368 = vshll.u32 %v5351, 16
      %v5370 = vrot.slane %v5368, 3
      %v5372 = vshll.u32 %v5352, 16
      %v5374 = vrot.slane %v5372, 3
      %v5376 = vshll.u32 %v5353, 16
      %v5378 = vrot.slane %v5376, 3
      %v5380 = vshll.u32 %v5354, 16
      %v5382 = vrot.slane %v5380, 3
      %v5384 = vshll.u32 %v5355, 16
      %v5386 = vrot.slane %v5384, 3
      %v5388 = vshll.u32 %v5356, 16
      %v5390 = vrot.slane %v5388, 3
      %v5392 = vshll.u32 %v5357, 16
      %v5394 = vrot.slane %v5392, 3
      %v5396 = vshll.u32 %v5358, 16
      %v5398 = vrot.slane %v5396, 3
      %v5400 = vshll.u32 %v5359, 16
      %v5402 = vrot.slane %v5400, 3
      %v5404 = vshll.u32 %v5360, 16
      %v5406 = vrot.slane %v5404, 3
      %v5408 = vshll.u32 %v5361, 16
      %v5410 = vrot.slane %v5408, 3
      %v5412 = vshll.u32 %v5362, 16
      %v5414 = vrot.slane %v5412, 3
      %v5416 = vshll.u32 %v5363, 16
      %v5418 = vrot.slane %v5416, 3
      %v5420 = vshll.u32 %v5364, 16
      %v5422 = vrot.slane %v5420, 3
      %v5424 = vshll.u32 %v5365, 16
      %v5426 = vrot.slane %v5424, 3
      %v5428 = vshll.u32 %v5366, 16
      %v5430 = vrot.slane %v5428, 3
      %vm5447 = vcmask 1040384
      %vm5448 = vsmask.f32 256
      %vm5449 = vmand %vm5447, %vm5448
      %v5450 = vsel %vm5449, %v5096, %v5213
      %v5451 = vsel %vm5449, %v5099, %v5220
      %v5452 = vsel %vm5449, %v5102, %v5227
      %v5453 = vsel %vm5449, %v5105, %v5234
      %v5454 = vsel %vm5449, %v5108, %v5241
      %v5455 = vsel %vm5449, %v5111, %v5248
      %v5456 = vsel %vm5449, %v5114, %v5255
      %v5457 = vsel %vm5449, %v5117, %v5262
      %v5458 = vsel %vm5449, %v5120, %v5269
      %v5459 = vsel %vm5449, %v5123, %v5276
      %v5460 = vsel %vm5449, %v5126, %v5283
      %v5461 = vsel %vm5449, %v5129, %v5290
      %v5462 = vsel %vm5449, %v5132, %v5297
      %v5463 = vsel %vm5449, %v5135, %v5304
      %v5464 = vsel %vm5449, %v5138, %v5311
      %v5465 = vsel %vm5449, %v5141, %v5318
      %v5466 = vsel %vm5449, %v5210, %v5370
      %v5467 = vsel %vm5449, %v5217, %v5374
      %v5468 = vsel %vm5449, %v5224, %v5378
      %v5469 = vsel %vm5449, %v5231, %v5382
      %v5470 = vsel %vm5449, %v5238, %v5386
      %v5471 = vsel %vm5449, %v5245, %v5390
      %v5472 = vsel %vm5449, %v5252, %v5394
      %v5473 = vsel %vm5449, %v5259, %v5398
      %v5474 = vsel %vm5449, %v5266, %v5402
      %v5475 = vsel %vm5449, %v5273, %v5406
      %v5476 = vsel %vm5449, %v5280, %v5410
      %v5477 = vsel %vm5449, %v5287, %v5414
      %v5478 = vsel %vm5449, %v5294, %v5418
      %v5479 = vsel %vm5449, %v5301, %v5422
      %v5480 = vsel %vm5449, %v5308, %v5426
      %v5481 = vsel %vm5449, %v5315, %v5430
      %v5498 = vrot.slane %v5451, 1
      %v5499 = vrot.slane %v5451, 2
      %v5500 = vrot.slane %v5451, 3
      %v5501 = vrot.slane %v5451, 4
      %v5502 = vrot.slane %v5451, 5
      %v5503 = vrot.slane %v5451, 6
      %v5504 = vrot.slane %v5451, 7
      %v5505 = vrot.slane %v5450, 1
      %v5506 = vrot.slane %v5450, 2
      %v5507 = vrot.slane %v5450, 3
      %v5508 = vrot.slane %v5450, 4
      %v5509 = vrot.slane %v5450, 5
      %v5510 = vrot.slane %v5450, 6
      %v5511 = vrot.slane %v5450, 7
      %v5512 = vrot.slane %v5452, 1
      %v5513 = vrot.slane %v5452, 2
      %v5514 = vrot.slane %v5452, 3
      %v5515 = vrot.slane %v5452, 4
      %v5516 = vrot.slane %v5452, 5
      %v5517 = vrot.slane %v5452, 6
      %v5518 = vrot.slane %v5452, 7
      %v5519 = vrot.slane %v5453, 1
      %v5520 = vrot.slane %v5453, 2
      %v5521 = vrot.slane %v5453, 3
      %v5522 = vrot.slane %v5453, 4
      %v5523 = vrot.slane %v5453, 5
      %v5524 = vrot.slane %v5453, 6
      %v5525 = vrot.slane %v5453, 7
      %v5526 = vrot.slane %v5454, 1
      %v5527 = vrot.slane %v5454, 2
      %v5528 = vrot.slane %v5454, 3
      %v5529 = vrot.slane %v5454, 4
      %v5530 = vrot.slane %v5454, 5
      %v5531 = vrot.slane %v5454, 6
      %v5532 = vrot.slane %v5454, 7
      %v5533 = vrot.slane %v5455, 1
      %v5534 = vrot.slane %v5455, 2
      %v5535 = vrot.slane %v5455, 3
      %v5536 = vrot.slane %v5455, 4
      %v5537 = vrot.slane %v5455, 5
      %v5538 = vrot.slane %v5455, 6
      %v5539 = vrot.slane %v5455, 7
      %v5540 = vrot.slane %v5456, 1
      %v5541 = vrot.slane %v5456, 2
      %v5542 = vrot.slane %v5456, 3
      %v5543 = vrot.slane %v5456, 4
      %v5544 = vrot.slane %v5456, 5
      %v5545 = vrot.slane %v5456, 6
      %v5546 = vrot.slane %v5456, 7
      %v5547 = vrot.slane %v5457, 1
      %v5548 = vrot.slane %v5457, 2
      %v5549 = vrot.slane %v5457, 3
      %v5550 = vrot.slane %v5457, 4
      %v5551 = vrot.slane %v5457, 5
      %v5552 = vrot.slane %v5457, 6
      %v5553 = vrot.slane %v5457, 7
      %v5554 = vrot.slane %v5458, 1
      %v5555 = vrot.slane %v5458, 2
      %v5556 = vrot.slane %v5458, 3
      %v5557 = vrot.slane %v5458, 4
      %v5558 = vrot.slane %v5458, 5
      %v5559 = vrot.slane %v5458, 6
      %v5560 = vrot.slane %v5458, 7
      %v5561 = vrot.slane %v5459, 1
      %v5562 = vrot.slane %v5459, 2
      %v5563 = vrot.slane %v5459, 3
      %v5564 = vrot.slane %v5459, 4
      %v5565 = vrot.slane %v5459, 5
      %v5566 = vrot.slane %v5459, 6
      %v5567 = vrot.slane %v5459, 7
      %v5568 = vrot.slane %v5460, 1
      %v5569 = vrot.slane %v5460, 2
      %v5570 = vrot.slane %v5460, 3
      %v5571 = vrot.slane %v5460, 4
      %v5572 = vrot.slane %v5460, 5
      %v5573 = vrot.slane %v5460, 6
      %v5574 = vrot.slane %v5460, 7
      %v5575 = vrot.slane %v5461, 1
      %v5576 = vrot.slane %v5461, 2
      %v5577 = vrot.slane %v5461, 3
      %v5578 = vrot.slane %v5461, 4
      %v5579 = vrot.slane %v5461, 5
      %v5580 = vrot.slane %v5461, 6
      %v5581 = vrot.slane %v5461, 7
      %v5582 = vrot.slane %v5462, 1
      %v5583 = vrot.slane %v5462, 2
      %v5584 = vrot.slane %v5462, 3
      %v5585 = vrot.slane %v5462, 4
      %v5586 = vrot.slane %v5462, 5
      %v5587 = vrot.slane %v5462, 6
      %v5588 = vrot.slane %v5462, 7
      %v5589 = vrot.slane %v5463, 1
      %v5590 = vrot.slane %v5463, 2
      %v5591 = vrot.slane %v5463, 3
      %v5592 = vrot.slane %v5463, 4
      %v5593 = vrot.slane %v5463, 5
      %v5594 = vrot.slane %v5463, 6
      %v5595 = vrot.slane %v5463, 7
      %v5596 = vrot.slane %v5464, 1
      %v5597 = vrot.slane %v5464, 2
      %v5598 = vrot.slane %v5464, 3
      %v5599 = vrot.slane %v5464, 4
      %v5600 = vrot.slane %v5464, 5
      %v5601 = vrot.slane %v5464, 6
      %v5602 = vrot.slane %v5464, 7
      %v5603 = vrot.slane %v5465, 1
      %v5604 = vrot.slane %v5465, 2
      %v5605 = vrot.slane %v5465, 3
      %v5606 = vrot.slane %v5465, 4
      %v5607 = vrot.slane %v5465, 5
      %v5608 = vrot.slane %v5465, 6
      %v5609 = vrot.slane %v5465, 7
      %5611 = vst [vmem:[#allocation1] ss:$9 sm:$0xff] %v5451
      %s5613 = scalar_lea.vmem [#allocation1], 1
      %5614 = vst [vmem:[%s5613] ss:$9 sm:$0xff] %v5498
      %s5616 = scalar_lea.vmem [#allocation1], 2
      %5617 = vst [vmem:[%s5616] ss:$9 sm:$0xff] %v5499
      %s5619 = scalar_lea.vmem [#allocation1], 3
      %5620 = vst [vmem:[%s5619] ss:$9 sm:$0xff] %v5500
      %s5622 = scalar_lea.vmem [#allocation1], 4
      %5623 = vst [vmem:[%s5622] ss:$9 sm:$0xff] %v5501
      %s5625 = scalar_lea.vmem [#allocation1], 5
      %5626 = vst [vmem:[%s5625] ss:$9 sm:$0xff] %v5502
      %s5628 = scalar_lea.vmem [#allocation1], 6
      %5629 = vst [vmem:[%s5628] ss:$9 sm:$0xff] %v5503
      %s5631 = scalar_lea.vmem [#allocation1], 7
      %5632 = vst [vmem:[%s5631] ss:$9 sm:$0xff] %v5504
      %v5633 = vld [vmem:[#allocation1] sm:$0xff]
      %5636 = vst [vmem:[#allocation1] ss:$9 sm:$0xff] %v5467
      %5638 = vst [vmem:[%s5613] ss:$9 sm:$0xff] %v5450
      %5640 = vst [vmem:[%s5616] ss:$9 sm:$0xff] %v5505
      %5642 = vst [vmem:[%s5619] ss:$9 sm:$0xff] %v5506
      %5644 = vst [vmem:[%s5622] ss:$9 sm:$0xff] %v5507
      %5646 = vst [vmem:[%s5625] ss:$9 sm:$0xff] %v5508
      %5648 = vst [vmem:[%s5628] ss:$9 sm:$0xff] %v5509
      %5650 = vst [vmem:[%s5631] ss:$9 sm:$0xff] %v5510
      %v5651 = vld [vmem:[#allocation1] sm:$0xff]
      %5654 = vst [vmem:[#allocation1] ss:$9 sm:$0xff] %v5511
      %5656 = vst [vmem:[%s5613] ss:$9 sm:$0xff] %v5466
      %5657 = vst [vmem:[%s5616] ss:$9 sm:$0xff] %v5451
      %5658 = vst [vmem:[%s5619] ss:$9 sm:$0xff] %v5498
      %5659 = vst [vmem:[%s5622] ss:$9 sm:$0xff] %v5499
      %5660 = vst [vmem:[%s5625] ss:$9 sm:$0xff] %v5500
      %5661 = vst [vmem:[%s5628] ss:$9 sm:$0xff] %v5501
      %5662 = vst [vmem:[%s5631] ss:$9 sm:$0xff] %v5502
      %v5663 = vld [vmem:[#allocation1] sm:$0xff]
      %5665 = vst [vmem:[#allocation1] ss:$9 sm:$0xff] %v5503
      %5666 = vst [vmem:[%s5613] ss:$9 sm:$0xff] %v5504
      %5667 = vst [vmem:[%s5616] ss:$9 sm:$0xff] %v5467
      %5669 = vst [vmem:[%s5619] ss:$9 sm:$0xff] %v5452
      %5671 = vst [vmem:[%s5622] ss:$9 sm:$0xff] %v5512
      %5673 = vst [vmem:[%s5625] ss:$9 sm:$0xff] %v5513
      %5675 = vst [vmem:[%s5628] ss:$9 sm:$0xff] %v5514
      %5677 = vst [vmem:[%s5631] ss:$9 sm:$0xff] %v5515
      %v5678 = vld [vmem:[#allocation1] sm:$0xff]
      %5681 = vst [vmem:[#allocation1] ss:$9 sm:$0xff] %v5516
      %5683 = vst [vmem:[%s5613] ss:$9 sm:$0xff] %v5517
      %5685 = vst [vmem:[%s5616] ss:$9 sm:$0xff] %v5518
      %5687 = vst [vmem:[%s5619] ss:$9 sm:$0xff] %v5468
      %5689 = vst [vmem:[%s5622] ss:$9 sm:$0xff] %v5453
      %5691 = vst [vmem:[%s5625] ss:$9 sm:$0xff] %v5519
      %5693 = vst [vmem:[%s5628] ss:$9 sm:$0xff] %v5520
      %5695 = vst [vmem:[%s5631] ss:$9 sm:$0xff] %v5521
      %v5696 = vld [vmem:[#allocation1] sm:$0xff]
      %5699 = vst [vmem:[#allocation1] ss:$9 sm:$0xff] %v5522
      %5701 = vst [vmem:[%s5613] ss:$9 sm:$0xff] %v5523
      %5703 = vst [vmem:[%s5616] ss:$9 sm:$0xff] %v5524
      %5705 = vst [vmem:[%s5619] ss:$9 sm:$0xff] %v5525
      %5707 = vst [vmem:[%s5622] ss:$9 sm:$0xff] %v5469
      %5709 = vst [vmem:[%s5625] ss:$9 sm:$0xff] %v5454
      %5711 = vst [vmem:[%s5628] ss:$9 sm:$0xff] %v5526
      %5713 = vst [vmem:[%s5631] ss:$9 sm:$0xff] %v5527
      %v5714 = vld [vmem:[#allocation1] sm:$0xff]
      %5717 = vst [vmem:[#allocation1] ss:$9 sm:$0xff] %v5528
      %5719 = vst [vmem:[%s5613] ss:$9 sm:$0xff] %v5529
      %5721 = vst [vmem:[%s5616] ss:$9 sm:$0xff] %v5530
      %5723 = vst [vmem:[%s5619] ss:$9 sm:$0xff] %v5531
      %5725 = vst [vmem:[%s5622] ss:$9 sm:$0xff] %v5532
      %5727 = vst [vmem:[%s5625] ss:$9 sm:$0xff] %v5470
      %5729 = vst [vmem:[%s5628] ss:$9 sm:$0xff] %v5455
      %5731 = vst [vmem:[%s5631] ss:$9 sm:$0xff] %v5533
      %v5732 = vld [vmem:[#allocation1] sm:$0xff]
      %5735 = vst [vmem:[#allocation1] ss:$9 sm:$0xff] %v5534
      %5737 = vst [vmem:[%s5613] ss:$9 sm:$0xff] %v5535
      %5739 = vst [vmem:[%s5616] ss:$9 sm:$0xff] %v5536
      %5741 = vst [vmem:[%s5619] ss:$9 sm:$0xff] %v5537
      %5743 = vst [vmem:[%s5622] ss:$9 sm:$0xff] %v5538
      %5745 = vst [vmem:[%s5625] ss:$9 sm:$0xff] %v5539
      %5747 = vst [vmem:[%s5628] ss:$9 sm:$0xff] %v5471
      %5749 = vst [vmem:[%s5631] ss:$9 sm:$0xff] %v5456
      %v5750 = vld [vmem:[#allocation1] sm:$0xff]
      %5753 = vst [vmem:[#allocation1] ss:$9 sm:$0xff] %v5540
      %5755 = vst [vmem:[%s5613] ss:$9 sm:$0xff] %v5541
      %5757 = vst [vmem:[%s5616] ss:$9 sm:$0xff] %v5542
      %5759 = vst [vmem:[%s5619] ss:$9 sm:$0xff] %v5543
      %5761 = vst [vmem:[%s5622] ss:$9 sm:$0xff] %v5544
      %5763 = vst [vmem:[%s5625] ss:$9 sm:$0xff] %v5545
      %5765 = vst [vmem:[%s5628] ss:$9 sm:$0xff] %v5546
      %5767 = vst [vmem:[%s5631] ss:$9 sm:$0xff] %v5472
      %v5768 = vld [vmem:[#allocation1] sm:$0xff]
      %5771 = vst [vmem:[#allocation1] ss:$9 sm:$0xff] %v5457
      %5773 = vst [vmem:[%s5613] ss:$9 sm:$0xff] %v5547
      %5775 = vst [vmem:[%s5616] ss:$9 sm:$0xff] %v5548
      %5777 = vst [vmem:[%s5619] ss:$9 sm:$0xff] %v5549
      %5779 = vst [vmem:[%s5622] ss:$9 sm:$0xff] %v5550
      %5781 = vst [vmem:[%s5625] ss:$9 sm:$0xff] %v5551
      %5783 = vst [vmem:[%s5628] ss:$9 sm:$0xff] %v5552
      %5785 = vst [vmem:[%s5631] ss:$9 sm:$0xff] %v5553
      %v5786 = vld [vmem:[#allocation1] sm:$0xff]
      %5789 = vst [vmem:[#allocation1] ss:$9 sm:$0xff] %v5473
      %5791 = vst [vmem:[%s5613] ss:$9 sm:$0xff] %v5458
      %5793 = vst [vmem:[%s5616] ss:$9 sm:$0xff] %v5554
      %5795 = vst [vmem:[%s5619] ss:$9 sm:$0xff] %v5555
      %5797 = vst [vmem:[%s5622] ss:$9 sm:$0xff] %v5556
      %5799 = vst [vmem:[%s5625] ss:$9 sm:$0xff] %v5557
      %5801 = vst [vmem:[%s5628] ss:$9 sm:$0xff] %v5558
      %5803 = vst [vmem:[%s5631] ss:$9 sm:$0xff] %v5559
      %v5804 = vld [vmem:[#allocation1] sm:$0xff]
      %5807 = vst [vmem:[#allocation1] ss:$9 sm:$0xff] %v5560
      %5809 = vst [vmem:[%s5613] ss:$9 sm:$0xff] %v5474
      %5811 = vst [vmem:[%s5616] ss:$9 sm:$0xff] %v5459
      %5813 = vst [vmem:[%s5619] ss:$9 sm:$0xff] %v5561
      %5815 = vst [vmem:[%s5622] ss:$9 sm:$0xff] %v5562
      %5817 = vst [vmem:[%s5625] ss:$9 sm:$0xff] %v5563
      %5819 = vst [vmem:[%s5628] ss:$9 sm:$0xff] %v5564
      %5821 = vst [vmem:[%s5631] ss:$9 sm:$0xff] %v5565
      %v5822 = vld [vmem:[#allocation1] sm:$0xff]
      %5825 = vst [vmem:[#allocation1] ss:$9 sm:$0xff] %v5566
      %5827 = vst [vmem:[%s5613] ss:$9 sm:$0xff] %v5567
      %5829 = vst [vmem:[%s5616] ss:$9 sm:$0xff] %v5475
      %5831 = vst [vmem:[%s5619] ss:$9 sm:$0xff] %v5460
      %5833 = vst [vmem:[%s5622] ss:$9 sm:$0xff] %v5568
      %5835 = vst [vmem:[%s5625] ss:$9 sm:$0xff] %v5569
      %5837 = vst [vmem:[%s5628] ss:$9 sm:$0xff] %v5570
      %5839 = vst [vmem:[%s5631] ss:$9 sm:$0xff] %v5571
      %v5840 = vld [vmem:[#allocation1] sm:$0xff]
      %5843 = vst [vmem:[#allocation1] ss:$9 sm:$0xff] %v5572
      %5845 = vst [vmem:[%s5613] ss:$9 sm:$0xff] %v5573
      %5847 = vst [vmem:[%s5616] ss:$9 sm:$0xff] %v5574
      %5849 = vst [vmem:[%s5619] ss:$9 sm:$0xff] %v5476
      %5851 = vst [vmem:[%s5622] ss:$9 sm:$0xff] %v5461
      %5853 = vst [vmem:[%s5625] ss:$9 sm:$0xff] %v5575
      %5855 = vst [vmem:[%s5628] ss:$9 sm:$0xff] %v5576
      %5857 = vst [vmem:[%s5631] ss:$9 sm:$0xff] %v5577
      %v5858 = vld [vmem:[#allocation1] sm:$0xff]
      %5861 = vst [vmem:[#allocation1] ss:$9 sm:$0xff] %v5578
      %5863 = vst [vmem:[%s5613] ss:$9 sm:$0xff] %v5579
      %5865 = vst [vmem:[%s5616] ss:$9 sm:$0xff] %v5580
      %5867 = vst [vmem:[%s5619] ss:$9 sm:$0xff] %v5581
      %5869 = vst [vmem:[%s5622] ss:$9 sm:$0xff] %v5477
      %5871 = vst [vmem:[%s5625] ss:$9 sm:$0xff] %v5462
      %5873 = vst [vmem:[%s5628] ss:$9 sm:$0xff] %v5582
      %5875 = vst [vmem:[%s5631] ss:$9 sm:$0xff] %v5583
      %v5876 = vld [vmem:[#allocation1] sm:$0xff]
      %5879 = vst [vmem:[#allocation1] ss:$9 sm:$0xff] %v5584
      %5881 = vst [vmem:[%s5613] ss:$9 sm:$0xff] %v5585
      %5883 = vst [vmem:[%s5616] ss:$9 sm:$0xff] %v5586
      %5885 = vst [vmem:[%s5619] ss:$9 sm:$0xff] %v5587
      %5887 = vst [vmem:[%s5622] ss:$9 sm:$0xff] %v5588
      %5889 = vst [vmem:[%s5625] ss:$9 sm:$0xff] %v5478
      %5891 = vst [vmem:[%s5628] ss:$9 sm:$0xff] %v5463
      %5893 = vst [vmem:[%s5631] ss:$9 sm:$0xff] %v5589
      %v5894 = vld [vmem:[#allocation1] sm:$0xff]
      %5897 = vst [vmem:[#allocation1] ss:$9 sm:$0xff] %v5590
      %5899 = vst [vmem:[%s5613] ss:$9 sm:$0xff] %v5591
      %5901 = vst [vmem:[%s5616] ss:$9 sm:$0xff] %v5592
      %5903 = vst [vmem:[%s5619] ss:$9 sm:$0xff] %v5593
      %5905 = vst [vmem:[%s5622] ss:$9 sm:$0xff] %v5594
      %5907 = vst [vmem:[%s5625] ss:$9 sm:$0xff] %v5595
      %5909 = vst [vmem:[%s5628] ss:$9 sm:$0xff] %v5479
      %5911 = vst [vmem:[%s5631] ss:$9 sm:$0xff] %v5464
      %v5912 = vld [vmem:[#allocation1] sm:$0xff]
      %5915 = vst [vmem:[#allocation1] ss:$9 sm:$0xff] %v5596
      %5917 = vst [vmem:[%s5613] ss:$9 sm:$0xff] %v5597
      %5919 = vst [vmem:[%s5616] ss:$9 sm:$0xff] %v5598
      %5921 = vst [vmem:[%s5619] ss:$9 sm:$0xff] %v5599
      %5923 = vst [vmem:[%s5622] ss:$9 sm:$0xff] %v5600
      %5925 = vst [vmem:[%s5625] ss:$9 sm:$0xff] %v5601
      %5927 = vst [vmem:[%s5628] ss:$9 sm:$0xff] %v5602
      %5929 = vst [vmem:[%s5631] ss:$9 sm:$0xff] %v5480
      %v5930 = vld [vmem:[#allocation1] sm:$0xff]
      %5933 = vst [vmem:[#allocation1] ss:$9 sm:$0xff] %v5465
      %5935 = vst [vmem:[%s5613] ss:$9 sm:$0xff] %v5603
      %5937 = vst [vmem:[%s5616] ss:$9 sm:$0xff] %v5604
      %5939 = vst [vmem:[%s5619] ss:$9 sm:$0xff] %v5605
      %5941 = vst [vmem:[%s5622] ss:$9 sm:$0xff] %v5606
      %5943 = vst [vmem:[%s5625] ss:$9 sm:$0xff] %v5607
      %5945 = vst [vmem:[%s5628] ss:$9 sm:$0xff] %v5608
      %5947 = vst [vmem:[%s5631] ss:$9 sm:$0xff] %v5609
      %v5948 = vld [vmem:[#allocation1] sm:$0xff]
      %5951 = vst [vmem:[#allocation1] ss:$9 sm:$0xff] %v5481
      %5952 = vst [vmem:[%s5613] ss:$9 sm:$0xff] %v5464
      %5953 = vst [vmem:[%s5616] ss:$9 sm:$0xff] %v5596
      %5954 = vst [vmem:[%s5619] ss:$9 sm:$0xff] %v5597
      %5955 = vst [vmem:[%s5622] ss:$9 sm:$0xff] %v5598
      %5956 = vst [vmem:[%s5625] ss:$9 sm:$0xff] %v5599
      %5957 = vst [vmem:[%s5628] ss:$9 sm:$0xff] %v5600
      %5958 = vst [vmem:[%s5631] ss:$9 sm:$0xff] %v5601
      %v5959 = vld [vmem:[#allocation1] sm:$0xff]
      %5961 = vst [vmem:[#allocation1] ss:$9 sm:$0xff] %v5602
      %5962 = vst [vmem:[%s5613] ss:$9 sm:$0xff] %v5480
      %v5963 = vld [vmem:[#allocation1] sm:$0xff]
      %vm5964 = vcmask 1041408
      %v5966 = vsel %vm5964, %v5963, 0
      %v5968 = vunpack.c.l.b16 %v5633
      %v5969 = vunpack.c.h.b16 %v5633
      %v5970 = vunpack.c.l.b16 %v5651
      %v5971 = vunpack.c.h.b16 %v5651
      %v5972 = vunpack.c.l.b16 %v5663
      %v5973 = vunpack.c.h.b16 %v5663
      %v5974 = vunpack.c.l.b16 %v5678
      %v5975 = vunpack.c.h.b16 %v5678
      %v5976 = vunpack.c.l.b16 %v5696
      %v5977 = vunpack.c.h.b16 %v5696
      %v5978 = vunpack.c.l.b16 %v5714
      %v5979 = vunpack.c.h.b16 %v5714
      %v5980 = vunpack.c.l.b16 %v5732
      %v5981 = vunpack.c.h.b16 %v5732
      %v5982 = vunpack.c.l.b16 %v5750
      %v5983 = vunpack.c.h.b16 %v5750
      %v5984 = vunpack.c.l.b16 %v5768
      %v5985 = vunpack.c.h.b16 %v5768
      %v5986 = vunpack.c.l.b16 %v5786
      %v5987 = vunpack.c.h.b16 %v5786
      %v5988 = vunpack.c.l.b16 %v5804
      %v5989 = vunpack.c.h.b16 %v5804
      %v5990 = vunpack.c.l.b16 %v5822
      %v5991 = vunpack.c.h.b16 %v5822
      %v5992 = vunpack.c.l.b16 %v5840
      %v5993 = vunpack.c.h.b16 %v5840
      %v5994 = vunpack.c.l.b16 %v5858
      %v5995 = vunpack.c.h.b16 %v5858
      %v5996 = vunpack.c.l.b16 %v5876
      %v5997 = vunpack.c.h.b16 %v5876
      %v5998 = vunpack.c.l.b16 %v5894
      %v5999 = vunpack.c.h.b16 %v5894
      %v6000 = vunpack.c.l.b16 %v5912
      %v6001 = vunpack.c.h.b16 %v5912
      %v6002 = vunpack.c.l.b16 %v5930
      %v6003 = vunpack.c.h.b16 %v5930
      %v6004 = vunpack.c.l.b16 %v5948
      %v6005 = vunpack.c.h.b16 %v5948
      %v6006 = vunpack.c.l.b16 %v5959
      %v6007 = vunpack.c.h.b16 %v5959
      %v6008 = vunpack.c.l.b16 %v5966
      %v6009 = vpack.c.b16 %v5968, %v5968
      %v6010 = vpack.c.b16 %v5969, %v5969
      %v6011 = vpack.c.b16 %v5970, %v5970
      %v6012 = vpack.c.b16 %v5971, %v5971
      %v6013 = vpack.c.b16 %v5972, %v5972
      %v6014 = vpack.c.b16 %v5973, %v5973
      %v6015 = vpack.c.b16 %v5974, %v5974
      %v6016 = vpack.c.b16 %v5975, %v5975
      %v6017 = vpack.c.b16 %v5976, %v5976
      %v6018 = vpack.c.b16 %v5977, %v5977
      %v6019 = vpack.c.b16 %v5978, %v5978
      %v6020 = vpack.c.b16 %v5979, %v5979
      %v6021 = vpack.c.b16 %v5980, %v5980
      %v6022 = vpack.c.b16 %v5981, %v5981
      %v6023 = vpack.c.b16 %v5982, %v5982
      %v6024 = vpack.c.b16 %v5983, %v5983
      %v6025 = vpack.c.b16 %v5984, %v5984
      %v6026 = vpack.c.b16 %v5985, %v5985
      %v6027 = vpack.c.b16 %v5986, %v5986
      %v6028 = vpack.c.b16 %v5987, %v5987
      %v6029 = vpack.c.b16 %v5988, %v5988
      %v6030 = vpack.c.b16 %v5989, %v5989
      %v6031 = vpack.c.b16 %v5990, %v5990
      %v6032 = vpack.c.b16 %v5991, %v5991
      %v6033 = vpack.c.b16 %v5992, %v5992
      %v6034 = vpack.c.b16 %v5993, %v5993
      %v6035 = vpack.c.b16 %v5994, %v5994
      %v6036 = vpack.c.b16 %v5995, %v5995
      %v6037 = vpack.c.b16 %v5996, %v5996
      %v6038 = vpack.c.b16 %v5997, %v5997
      %v6039 = vpack.c.b16 %v5998, %v5998
      %v6040 = vpack.c.b16 %v5999, %v5999
      %v6041 = vpack.c.b16 %v6000, %v6000
      %v6042 = vpack.c.b16 %v6001, %v6001
      %v6043 = vpack.c.b16 %v6002, %v6002
      %v6044 = vpack.c.b16 %v6003, %v6003
      %v6045 = vpack.c.b16 %v6004, %v6004
      %v6046 = vpack.c.b16 %v6005, %v6005
      %v6047 = vpack.c.b16 %v6006, %v6006
      %v6048 = vpack.c.b16 %v6007, %v6007
      %v6049 = vpack.c.b16 %v6008, %v6008
      %6091 = vst [vmem:[%s197] sm:$0xf] %v6009
      %6092 = vst [vmem:[%s197 + $0x4] sm:$0xf] %v6010
      %6093 = vst [vmem:[%s197 + $0x8] sm:$0xf] %v6011
      %6094 = vst [vmem:[%s197 + $0xc] sm:$0xf] %v6012
      %6095 = vst [vmem:[%s197 + $0x10] sm:$0xf] %v6013
      %6096 = vst [vmem:[%s197 + $0x14] sm:$0xf] %v6014
      %6097 = vst [vmem:[%s197 + $0x18] sm:$0xf] %v6015
      %6098 = vst [vmem:[%s197 + $0x1c] sm:$0xf] %v6016
      %6099 = vst [vmem:[%s197 + $0x20] sm:$0xf] %v6017
      %6100 = vst [vmem:[%s197 + $0x24] sm:$0xf] %v6018
      %6101 = vst [vmem:[%s197 + $0x28] sm:$0xf] %v6019
      %6102 = vst [vmem:[%s197 + $0x2c] sm:$0xf] %v6020
      %6103 = vst [vmem:[%s197 + $0x30] sm:$0xf] %v6021
      %6104 = vst [vmem:[%s197 + $0x34] sm:$0xf] %v6022
      %6105 = vst [vmem:[%s197 + $0x38] sm:$0xf] %v6023
      %6106 = vst [vmem:[%s197 + $0x3c] sm:$0xf] %v6024
      %6107 = vst [vmem:[%s197 + $0x40] sm:$0xf] %v6025
      %6108 = vst [vmem:[%s197 + $0x44] sm:$0xf] %v6026
      %6109 = vst [vmem:[%s197 + $0x48] sm:$0xf] %v6027
      %6110 = vst [vmem:[%s197 + $0x4c] sm:$0xf] %v6028
      %6111 = vst [vmem:[%s197 + $0x50] sm:$0xf] %v6029
      %6112 = vst [vmem:[%s197 + $0x54] sm:$0xf] %v6030
      %6113 = vst [vmem:[%s197 + $0x58] sm:$0xf] %v6031
      %6114 = vst [vmem:[%s197 + $0x5c] sm:$0xf] %v6032
      %6115 = vst [vmem:[%s197 + $0x60] sm:$0xf] %v6033
      %6116 = vst [vmem:[%s197 + $0x64] sm:$0xf] %v6034
      %6117 = vst [vmem:[%s197 + $0x68] sm:$0xf] %v6035
      %6118 = vst [vmem:[%s197 + $0x6c] sm:$0xf] %v6036
      %6119 = vst [vmem:[%s197 + $0x70] sm:$0xf] %v6037
      %6120 = vst [vmem:[%s197 + $0x74] sm:$0xf] %v6038
      %6121 = vst [vmem:[%s197 + $0x78] sm:$0xf] %v6039
      %6122 = vst [vmem:[%s197 + $0x7c] sm:$0xf] %v6040
      %6123 = vst [vmem:[%s197 + $0x80] sm:$0xf] %v6041
      %6124 = vst [vmem:[%s197 + $0x84] sm:$0xf] %v6042
      %6125 = vst [vmem:[%s197 + $0x88] sm:$0xf] %v6043
      %6126 = vst [vmem:[%s197 + $0x8c] sm:$0xf] %v6044
      %6127 = vst [vmem:[%s197 + $0x90] sm:$0xf] %v6045
      %6128 = vst [vmem:[%s197 + $0x94] sm:$0xf] %v6046
      %6129 = vst [vmem:[%s197 + $0x98] sm:$0xf] %v6047
      %6130 = vst [vmem:[%s197 + $0x9c] sm:$0xf] %v6048
      %6131 = vst [vmem:[%s197 + $0xa0] sm:$0xf] %v6049
      %p6132 = scmp.lt.s32.totalorder %s15, 1
      %s6133 = scalar_select %p6132, %s15, 1
      %s6134 = smul.addr %s6133, 41
      %s6135 = smul.addr %s6134, 4
      %s6136 = scalar_lea.vmem %s4, %s6135
      // Predicated region
      $region37: #{residual_block_forward.2} parent=35 // pred_check
        %p6137 = pneg %p122
      $region38: #{residual_block_forward.2} parent=35 // pred_check_branch
        %6139 = sbr.rel (%p6137) target = $region40
      $region39: #{residual_block_forward.2} parent=35 // pred_region
        _
      $region40: #{residual_block_forward.2} parent=35 // pred_fallthru
        _
    $region36: #{residual_block_forward.2} parent=5 // pred_fallthru
      _
    %p6140 = scmp.le.s32.totalorder 2, %s10
    // Predicated region
    $region41: #{residual_block_forward.2} parent=5 // pred_check
      %p6141 = pneg %p6140
    $region42: #{residual_block_forward.2} parent=5 // pred_check_branch
      %6143 = sbr.rel (%p6141) target = $region44
    $region43: #{residual_block_forward.2} parent=5 // pred_region
      %s6144 = ssub.s32 %s10, 2
      // Predicated region
      $region45: #{residual_block_forward.2} parent=43 // pred_check
        %p6145 = pneg %p128
      $region46: #{residual_block_forward.2} parent=43 // pred_check_branch
        %6147 = sbr.rel (%p6145) target = $region48
      $region47: #{residual_block_forward.2} parent=43 // pred_region
        %p6148 = scmp.lt.s32.totalorder %s16, 1
        %s6149 = scalar_select %p6148, %s16, 1
        %s6150 = smul.addr %s6149, 41
        %s6151 = smul.addr %s6150, 4
        %s6152 = scalar_lea.vmem %s4, %s6151
      $region48: #{residual_block_forward.2} parent=43 // pred_fallthru
        _
    $region44: #{residual_block_forward.2} parent=5 // pred_fallthru
      _
  $region6: #{residual_block_forward.2} parent=0 // loop_footer
    %s14 = sadd.s32 1, %s10
  $region7: #{residual_block_forward.2} parent=0 // loop_footer_branch
    %9 = sbr.rel target = $region3
  $region8: #{residual_block_forward.2} parent=0 // loop_exit
    _

</llo_original>
